<compile_context>
chip_gen: v5e
topology: v5e:2x2
jax: 0.10.0
libtpu: 0.0.40
codegen_flags: <defaults>
</compile_context>

<pallas_src>
import math
import numpy as np

import jax
import jax.numpy as jnp
from jax.experimental import pallas as pl
from jax.experimental.pallas import tpu as pltpu


_SQRT_HALF = 0.7071067811865476
_EPS = 1e-5


# ----------------------------- in-kernel helpers -----------------------------

def _erf(x):
    # Abramowitz & Stegun 7.1.26, |err| < 1.5e-7; matches torch's exact (erf)
    # nn.GELU to fp32 tolerance and lowers on all TPU generations.
    a1, a2, a3, a4, a5 = 0.254829592, -0.284496736, 1.421413741, -1.453152027, 1.061405429
    p = 0.3275911
    ax = jnp.abs(x)
    t = 1.0 / (1.0 + p * ax)
    poly = ((((a5 * t + a4) * t + a3) * t + a2) * t + a1) * t
    y = 1.0 - poly * jnp.exp(-ax * ax)
    return jnp.where(x >= 0.0, y, -y)


def _gelu(x):
    return 0.5 * x * (1.0 + _erf(x * _SQRT_HALF))


def _instance_norm(y, ms_ref, mst_ref):
    """InstanceNorm2d on a (C, N*P) tile.

    ms  (N*P, N): entries 1/P -> y @ ms gives per-(row, sample-segment) means.
    mst (N, N*P): 0/1          -> broadcasts per-segment stats back to lanes.
    Single-pass variance E[x^2] - mean^2; biased, eps=1e-5 (PyTorch defaults).
    """
    ms = ms_ref[...]
    mst = mst_ref[...]
    mean = jnp.dot(y, ms, preferred_element_type=jnp.float32)        # (C, N)
    ex2 = jnp.dot(y * y, ms, preferred_element_type=jnp.float32)     # (C, N)
    var = ex2 - mean * mean
    inv = jax.lax.rsqrt(var + _EPS)
    mean_f = jnp.dot(mean, mst, preferred_element_type=jnp.float32)  # (C, N*P)
    inv_f = jnp.dot(inv, mst, preferred_element_type=jnp.float32)    # (C, N*P)
    return (y - mean_f) * inv_f


def _conv5x5(a, g_ref, w_ref, b_ref):
    """5x5 stride-2 pad-2 conv on a (Cin, N*Pin) tile -> (Cout, N*Pout).

    Each of the 25 taps: lane-gather matmul with a constant 0/1 block-diagonal
    matrix (zero rows = zero padding), then a (Cout, Cin) channel-mix matmul.
    """
    n_taps = g_ref.shape[0]
    acc = jnp.dot(w_ref[0],
                  jnp.dot(a, g_ref[0], preferred_element_type=jnp.float32),
                  preferred_element_type=jnp.float32)
    for kk in range(1, n_taps):
        shifted = jnp.dot(a, g_ref[kk], preferred_element_type=jnp.float32)
        acc = acc + jnp.dot(w_ref[kk], shifted, preferred_element_type=jnp.float32)
    return acc + b_ref[...]


def style_encoder_kernel(p0_ref, w10_ref, b10_ref, w20_ref, b20_ref,
                         gpool_ref,
                         g1_ref, w11_ref, b11_ref, w21_ref, b21_ref,
                         g2_ref, w12_ref, b12_ref, w22_ref, b22_ref,
                         ms0_ref, ms0t_ref, ms1_ref, ms1t_ref, ms2_ref, ms2t_ref,
                         o_ref):
    f32 = jnp.float32

    # ---- ConvBlock 0: conv5x5 (wrapper-built patches) -> IN -> GELU -> 1x1 ----
    y = jnp.dot(w10_ref[...], p0_ref[...], preferred_element_type=f32) + b10_ref[...]
    y = _instance_norm(y, ms0_ref, ms0t_ref)
    y = _gelu(y)                                    # Dropout: identity (eval)
    y = jnp.dot(w20_ref[...], y, preferred_element_type=f32) + b20_ref[...]

    # ---- AvgPool2d(2) as a lane-gather matmul ----
    y = jnp.dot(y, gpool_ref[...], preferred_element_type=f32)

    # ---- ConvBlock 1 ----
    y = _conv5x5(y, g1_ref, w11_ref, b11_ref)
    y = _instance_norm(y, ms1_ref, ms1t_ref)
    y = _gelu(y)
    y = jnp.dot(w21_ref[...], y, preferred_element_type=f32) + b21_ref[...]
    # TODO(synk): DWConvBlock(16, 32) not defined in the source module; identity.

    # ---- ConvBlock 2 ----
    y = _conv5x5(y, g2_ref, w12_ref, b12_ref)
    y = _instance_norm(y, ms2_ref, ms2t_ref)
    y = _gelu(y)
    y = jnp.dot(w22_ref[...], y, preferred_element_type=f32) + b22_ref[...]
    # TODO(synk): DWConvBlock(32, 64) not defined in the source module; identity.

    o_ref[...] = y.astype(o_ref.dtype)


# -------------------- trace-time constants (numpy, static) -------------------

def _pool_matrix(n, h, w):
    """(N*H*W, N*Ho*Wo) block-diagonal 2x2 average-pool matrix (entries 0.25)."""
    ho, wo = h // 2, w // 2
    g = np.zeros((n * h * w, n * ho * wo), np.float32)
    for b in range(n):
        for i in range(ho * 2):
            for j in range(wo * 2):
                g[b * h * w + i * w + j, b * ho * wo + (i // 2) * wo + (j // 2)] = 0.25
    return g


def _conv_gather_matrices(n, h, w, k=5, s=2, pad=2):
    """Per-tap 0/1 lane-gather matrices (k*k, N*H*W, N*Ho*Wo); zero rows = padding."""
    ho = (h + 2 * pad - k) // s + 1
    wo = (w + 2 * pad - k) // s + 1
    g = np.zeros((k * k, n * h * w, n * ho * wo), np.float32)
    for kh in range(k):
        for kw in range(k):
            kk = kh * k + kw
            for b in range(n):
                for oh in range(ho):
                    ih = s * oh - pad + kh
                    if ih < 0 or ih >= h:
                        continue
                    for ow in range(wo):
                        iw = s * ow - pad + kw
                        if iw < 0 or iw >= w:
                            continue
                        g[kk, b * h * w + ih * w + iw, b * ho * wo + oh * wo + ow] = 1.0
    return g, ho, wo


def _segment_matrices(n, p):
    """ms (N*P, N) with 1/P entries (mean reduce); mst (N, N*P) with 1s (expand)."""
    ms = np.zeros((n * p, n), np.float32)
    mst = np.zeros((n, n * p), np.float32)
    for i in range(n):
        ms[i * p:(i + 1) * p, i] = 1.0 / p
        mst[i, i * p:(i + 1) * p] = 1.0
    return ms, mst


# ------------------------------ XLA-side glue --------------------------------

def _im2col_T(x_nchw, k=5, s=2, pad=2, row_pad_to=8):
    """Transposed im2col for conv0: rows = (kh,kw,ci) padded to mult of 8,
    lanes = batch-folded spatial (N*Ho*Wo)."""
    N, C, H, W = x_nchw.shape
    Ho = (H + 2 * pad - k) // s + 1
    Wo = (W + 2 * pad - k) // s + 1
    xp = jnp.pad(x_nchw, ((0, 0), (0, 0), (pad, pad), (pad, pad)))
    taps = []
    for kh in range(k):
        for kw in range(k):
            taps.append(xp[:, :, kh:kh + s * (Ho - 1) + 1:s, kw:kw + s * (Wo - 1) + 1:s])
    pat = jnp.stack(taps, axis=0)                       # (k*k, N, C, Ho, Wo)
    pat = jnp.transpose(pat, (0, 2, 1, 3, 4))           # (k*k, C, N, Ho, Wo)
    pat = pat.reshape(k * k * C, N * Ho * Wo)           # rows: tap-major, ci-minor
    kkc = k * k * C
    kkc_pad = ((kkc + row_pad_to - 1) // row_pad_to) * row_pad_to
    if kkc_pad != kkc:
        pat = jnp.pad(pat, ((0, kkc_pad - kkc), (0, 0)))
    return pat, Ho, Wo, kkc, kkc_pad


def _full_spec(a):
    nd = a.ndim
    return pl.BlockSpec(a.shape, lambda i: (0,) * nd)


def style_encoder_forward(x_nchw, params):
    N, _, _, _ = x_nchw.shape
    w10, b10, w20, b20 = params["conv0"]
    w11, b11, w21, b21 = params["conv1"]
    w12, b12, w22, b22 = params["conv2"]
    C0, C1, C2 = w10.shape[0], w11.shape[0], w12.shape[0]

    # conv0 patches (transposed, lane-dense) built once on the 32 KB input.
    patches0, Ho0, Wo0, kkc0, kkc0_pad = _im2col_T(x_nchw)

    # Weights to matmul layouts (PyTorch OIHW -> transposed matmul forms).
    w10m = jnp.transpose(w10, (0, 2, 3, 1)).reshape(C0, kkc0)
    w10m = jnp.pad(w10m, ((0, 0), (0, kkc0_pad - kkc0)))
    w20m = w20[:, :, 0, 0]
    w11t = jnp.transpose(w11, (2, 3, 0, 1)).reshape(25, C1, C0)
    w21m = w21[:, :, 0, 0]
    w12t = jnp.transpose(w12, (2, 3, 0, 1)).reshape(25, C2, C1)
    w22m = w22[:, :, 0, 0]

    # Static (trace-time) spatial-gather / segment constants.
    Hp, Wp = Ho0 // 2, Wo0 // 2                               # after AvgPool2d(2)
    gpool = jnp.asarray(_pool_matrix(N, Ho0, Wo0))
    g1_np, Ho1, Wo1 = _conv_gather_matrices(N, Hp, Wp)
    g2_np, Ho2, Wo2 = _conv_gather_matrices(N, Ho1, Wo1)
    ms0_np, ms0t_np = _segment_matrices(N, Ho0 * Wo0)
    ms1_np, ms1t_np = _segment_matrices(N, Ho1 * Wo1)
    ms2_np, ms2t_np = _segment_matrices(N, Ho2 * Wo2)

    inputs = [
        patches0,
        w10m, b10.reshape(C0, 1), w20m, b20.reshape(C0, 1),
        gpool,
        jnp.asarray(g1_np), w11t, b11.reshape(C1, 1), w21m, b21.reshape(C1, 1),
        jnp.asarray(g2_np), w12t, b12.reshape(C2, 1), w22m, b22.reshape(C2, 1),
        jnp.asarray(ms0_np), jnp.asarray(ms0t_np),
        jnp.asarray(ms1_np), jnp.asarray(ms1t_np),
        jnp.asarray(ms2_np), jnp.asarray(ms2t_np),
    ]

    out2d = pl.pallas_call(
        style_encoder_kernel,
        out_shape=jax.ShapeDtypeStruct((C2, N * Ho2 * Wo2), x_nchw.dtype),
        grid=(1,),
        in_specs=[_full_spec(a) for a in inputs],
        out_specs=pl.BlockSpec((C2, N * Ho2 * Wo2), lambda i: (0, 0)),
        compiler_params=pltpu.CompilerParams(dimension_semantics=("arbitrary",)),
    )(*inputs)

    # (C2, N*Ho2*Wo2) -> (N, C2, Ho2, Wo2)  (NCHW, PyTorch convention)
    return jnp.transpose(out2d.reshape(C2, N, Ho2, Wo2), (1, 0, 2, 3))


# --------------------- plain-XLA reference (sanity check) --------------------

def _ref_convblock(x, w1, b1, w2, b2):
    dn = ("NCHW", "OIHW", "NCHW")
    y = jax.lax.conv_general_dilated(x, w1, (2, 2), ((2, 2), (2, 2)), dimension_numbers=dn)
    y = y + b1.reshape(1, -1, 1, 1)
    mean = jnp.mean(y, axis=(2, 3), keepdims=True)
    var = jnp.mean((y - mean) ** 2, axis=(2, 3), keepdims=True)
    y = (y - mean) * jax.lax.rsqrt(var + _EPS)
    y = 0.5 * y * (1.0 + jax.lax.erf(y * _SQRT_HALF))
    y = jax.lax.conv_general_dilated(y, w2, (1, 1), ((0, 0), (0, 0)), dimension_numbers=dn)
    return y + b2.reshape(1, -1, 1, 1)


def _ref_forward(x, params):
    y = _ref_convblock(x, *params["conv0"])
    n, c, h, w = y.shape
    y = y.reshape(n, c, h // 2, 2, w // 2, 2).mean(axis=(3, 5))
    y = _ref_convblock(y, *params["conv1"])
    y = _ref_convblock(y, *params["conv2"])
    return y


# ------------------------------- init & main ---------------------------------

def init_convblock_params(key, cin, cout, k=5):
    k1, k2, k3, k4 = jax.random.split(key, 4)
    w1 = jax.random.normal(k1, (cout, cin, k, k), jnp.float32) / math.sqrt(cin * k * k)
    b1 = 0.01 * jax.random.normal(k2, (cout,), jnp.float32)
    w2 = jax.random.normal(k3, (cout, cout, 1, 1), jnp.float32) / math.sqrt(cout)
    b2 = 0.01 * jax.random.normal(k4, (cout,), jnp.float32)
    return (w1, b1, w2, b2)


def init_params(key, in_channels):
    k0, k1, k2 = jax.random.split(key, 3)
    return {
        "conv0": init_convblock_params(k0, in_channels, 8),
        "conv1": init_convblock_params(k1, 8, 16),
        "conv2": init_convblock_params(k2, 16, 32),
    }


if __name__ == "__main__":
    key = jax.random.PRNGKey(0)
    kp, kx = jax.random.split(key)
    in_channels = 4
    params = init_params(kp, in_channels)
    x = jax.random.normal(kx, (2, in_channels, 32, 32), jnp.float32)   # NCHW

    out = jax.block_until_ready(jax.jit(style_encoder_forward)(x, params))
    assert out.shape == (2, 32, 2, 2), out.shape
    assert bool(jnp.all(jnp.isfinite(out)))

    # Sanity check against a plain-XLA forward.  Mean-relative metric with a
    # loose bound: both paths use the TPU's default (reduced-precision) matmul
    # modes, so only structural/indexing bugs (order-1 errors) should trip it.
    ref = jax.block_until_ready(jax.jit(_ref_forward)(x, params))
    rel = float(jnp.mean(jnp.abs(out - ref)) / (jnp.mean(jnp.abs(ref)) + 1e-6))
    assert rel < 0.05, f"kernel/reference mismatch: mean rel err = {rel}"

    print("KERNEL_OK")
</pallas_src>

<mosaic_0001>
module attributes {stable_mosaic.version = 11 : i64} {
  func.func @style_encoder_kernel(%arg0: i32, %arg1: memref<104x512xf32, #tpu.memory_space<vmem>>, %arg2: memref<8x104xf32, #tpu.memory_space<vmem>>, %arg3: memref<8x1xf32, #tpu.memory_space<vmem>>, %arg4: memref<8x8xf32, #tpu.memory_space<vmem>>, %arg5: memref<8x1xf32, #tpu.memory_space<vmem>>, %arg6: memref<512x128xf32, #tpu.memory_space<vmem>>, %arg7: memref<25x128x32xf32, #tpu.memory_space<vmem>>, %arg8: memref<25x16x8xf32, #tpu.memory_space<vmem>>, %arg9: memref<16x1xf32, #tpu.memory_space<vmem>>, %arg10: memref<16x16xf32, #tpu.memory_space<vmem>>, %arg11: memref<16x1xf32, #tpu.memory_space<vmem>>, %arg12: memref<25x32x8xf32, #tpu.memory_space<vmem>>, %arg13: memref<25x32x16xf32, #tpu.memory_space<vmem>>, %arg14: memref<32x1xf32, #tpu.memory_space<vmem>>, %arg15: memref<32x32xf32, #tpu.memory_space<vmem>>, %arg16: memref<32x1xf32, #tpu.memory_space<vmem>>, %arg17: memref<512x2xf32, #tpu.memory_space<vmem>>, %arg18: memref<2x512xf32, #tpu.memory_space<vmem>>, %arg19: memref<32x2xf32, #tpu.memory_space<vmem>>, %arg20: memref<2x32xf32, #tpu.memory_space<vmem>>, %arg21: memref<8x2xf32, #tpu.memory_space<vmem>>, %arg22: memref<2x8xf32, #tpu.memory_space<vmem>>, %arg23: memref<32x8xf32, #tpu.memory_space<vmem>>) attributes {dimension_semantics = [#tpu.dimension_semantics<arbitrary>], iteration_bounds = array<i64: 1>, scalar_prefetch = 0 : i64, scratch_operands = 0 : i64, tpu.core_type = #tpu.core_type<tc>, window_params = [{pipeline_mode = #tpu.pipeline_mode<synchronous>, transform_indices = @transform_0, window_bounds = array<i64: 104, 512>}, {pipeline_mode = #tpu.pipeline_mode<synchronous>, transform_indices = @transform_1, window_bounds = array<i64: 8, 104>}, {pipeline_mode = #tpu.pipeline_mode<synchronous>, transform_indices = @transform_2, window_bounds = array<i64: 8, 1>}, {pipeline_mode = #tpu.pipeline_mode<synchronous>, transform_indices = @transform_3, window_bounds = array<i64: 8, 8>}, {pipeline_mode = #tpu.pipeline_mode<synchronous>, transform_indices = @transform_4, window_bounds = array<i64: 8, 1>}, {pipeline_mode = #tpu.pipeline_mode<synchronous>, transform_indices = @transform_5, window_bounds = array<i64: 512, 128>}, {pipeline_mode = #tpu.pipeline_mode<synchronous>, transform_indices = @transform_6, window_bounds = array<i64: 25, 128, 32>}, {pipeline_mode = #tpu.pipeline_mode<synchronous>, transform_indices = @transform_7, window_bounds = array<i64: 25, 16, 8>}, {pipeline_mode = #tpu.pipeline_mode<synchronous>, transform_indices = @transform_8, window_bounds = array<i64: 16, 1>}, {pipeline_mode = #tpu.pipeline_mode<synchronous>, transform_indices = @transform_9, window_bounds = array<i64: 16, 16>}, {pipeline_mode = #tpu.pipeline_mode<synchronous>, transform_indices = @transform_10, window_bounds = array<i64: 16, 1>}, {pipeline_mode = #tpu.pipeline_mode<synchronous>, transform_indices = @transform_11, window_bounds = array<i64: 25, 32, 8>}, {pipeline_mode = #tpu.pipeline_mode<synchronous>, transform_indices = @transform_12, window_bounds = array<i64: 25, 32, 16>}, {pipeline_mode = #tpu.pipeline_mode<synchronous>, transform_indices = @transform_13, window_bounds = array<i64: 32, 1>}, {pipeline_mode = #tpu.pipeline_mode<synchronous>, transform_indices = @transform_14, window_bounds = array<i64: 32, 32>}, {pipeline_mode = #tpu.pipeline_mode<synchronous>, transform_indices = @transform_15, window_bounds = array<i64: 32, 1>}, {pipeline_mode = #tpu.pipeline_mode<synchronous>, transform_indices = @transform_16, window_bounds = array<i64: 512, 2>}, {pipeline_mode = #tpu.pipeline_mode<synchronous>, transform_indices = @transform_17, window_bounds = array<i64: 2, 512>}, {pipeline_mode = #tpu.pipeline_mode<synchronous>, transform_indices = @transform_18, window_bounds = array<i64: 32, 2>}, {pipeline_mode = #tpu.pipeline_mode<synchronous>, transform_indices = @transform_19, window_bounds = array<i64: 2, 32>}, {pipeline_mode = #tpu.pipeline_mode<synchronous>, transform_indices = @transform_20, window_bounds = array<i64: 8, 2>}, {pipeline_mode = #tpu.pipeline_mode<synchronous>, transform_indices = @transform_21, window_bounds = array<i64: 2, 8>}, {pipeline_mode = #tpu.pipeline_mode<synchronous>, transform_indices = @transform_22, window_bounds = array<i64: 32, 8>}]} {
    %c0 = arith.constant 0 : index
    %c0_0 = arith.constant 0 : index
    %0 = vector.load %arg2[%c0, %c0_0] : memref<8x104xf32, #tpu.memory_space<vmem>>, vector<8x104xf32>
    %c0_1 = arith.constant 0 : index
    %c0_2 = arith.constant 0 : index
    %1 = vector.load %arg1[%c0_1, %c0_2] : memref<104x512xf32, #tpu.memory_space<vmem>>, vector<104x512xf32>
    %cst = arith.constant dense<0.000000e+00> : vector<8x512xf32>
    %2 = tpu.matmul %0, %1, %cst {dimension_numbers = #tpu.dot_dimension_numbers<[1], [0], [0], [1], [0, 0, 1, 1], [], []>} : vector<8x104xf32>, vector<104x512xf32>, vector<8x512xf32> -> vector<8x512xf32>
    %c0_3 = arith.constant 0 : index
    %c0_4 = arith.constant 0 : index
    %3 = vector.load %arg3[%c0_3, %c0_4] : memref<8x1xf32, #tpu.memory_space<vmem>>, vector<8x1xf32>
    %4 = vector.broadcast %3 : vector<8x1xf32> to vector<8x512xf32>
    %5 = arith.addf %2, %4 : vector<8x512xf32>
    %c0_5 = arith.constant 0 : index
    %c0_6 = arith.constant 0 : index
    %6 = vector.load %arg17[%c0_5, %c0_6] : memref<512x2xf32, #tpu.memory_space<vmem>>, vector<512x2xf32>
    %c0_7 = arith.constant 0 : index
    %c0_8 = arith.constant 0 : index
    %7 = vector.load %arg18[%c0_7, %c0_8] : memref<2x512xf32, #tpu.memory_space<vmem>>, vector<2x512xf32>
    %cst_9 = arith.constant dense<0.000000e+00> : vector<8x2xf32>
    %8 = tpu.matmul %5, %6, %cst_9 {dimension_numbers = #tpu.dot_dimension_numbers<[1], [0], [0], [1], [0, 0, 1, 1], [], []>} : vector<8x512xf32>, vector<512x2xf32>, vector<8x2xf32> -> vector<8x2xf32>
    %9 = arith.mulf %5, %5 : vector<8x512xf32>
    %cst_10 = arith.constant dense<0.000000e+00> : vector<8x2xf32>
    %10 = tpu.matmul %9, %6, %cst_10 {dimension_numbers = #tpu.dot_dimension_numbers<[1], [0], [0], [1], [0, 0, 1, 1], [], []>} : vector<8x512xf32>, vector<512x2xf32>, vector<8x2xf32> -> vector<8x2xf32>
    %11 = arith.mulf %8, %8 : vector<8x2xf32>
    %12 = arith.subf %10, %11 : vector<8x2xf32>
    %cst_11 = arith.constant 9.99999974E-6 : f32
    %13 = vector.broadcast %cst_11 : f32 to vector<8x2xf32>
    %14 = arith.addf %12, %13 : vector<8x2xf32>
    %15 = math.rsqrt %14 : vector<8x2xf32>
    %cst_12 = arith.constant dense<0.000000e+00> : vector<8x512xf32>
    %16 = tpu.matmul %8, %7, %cst_12 {dimension_numbers = #tpu.dot_dimension_numbers<[1], [0], [0], [1], [0, 0, 1, 1], [], []>} : vector<8x2xf32>, vector<2x512xf32>, vector<8x512xf32> -> vector<8x512xf32>
    %cst_13 = arith.constant dense<0.000000e+00> : vector<8x512xf32>
    %17 = tpu.matmul %15, %7, %cst_13 {dimension_numbers = #tpu.dot_dimension_numbers<[1], [0], [0], [1], [0, 0, 1, 1], [], []>} : vector<8x2xf32>, vector<2x512xf32>, vector<8x512xf32> -> vector<8x512xf32>
    %18 = arith.subf %5, %16 : vector<8x512xf32>
    %19 = arith.mulf %18, %17 : vector<8x512xf32>
    %cst_14 = arith.constant 5.000000e-01 : f32
    %20 = vector.broadcast %cst_14 : f32 to vector<8x512xf32>
    %21 = arith.mulf %20, %19 : vector<8x512xf32>
    %cst_15 = arith.constant 0.707106769 : f32
    %22 = vector.broadcast %cst_15 : f32 to vector<8x512xf32>
    %23 = arith.mulf %19, %22 : vector<8x512xf32>
    %24 = math.absf %23 : vector<8x512xf32>
    %cst_16 = arith.constant 0.327591091 : f32
    %25 = vector.broadcast %cst_16 : f32 to vector<8x512xf32>
    %26 = arith.mulf %25, %24 : vector<8x512xf32>
    %cst_17 = arith.constant 1.000000e+00 : f32
    %27 = vector.broadcast %cst_17 : f32 to vector<8x512xf32>
    %28 = arith.addf %27, %26 : vector<8x512xf32>
    %cst_18 = arith.constant 1.000000e+00 : f32
    %29 = vector.broadcast %cst_18 : f32 to vector<8x512xf32>
    %30 = arith.divf %29, %28 : vector<8x512xf32>
    %cst_19 = arith.constant 1.06140542 : f32
    %31 = vector.broadcast %cst_19 : f32 to vector<8x512xf32>
    %32 = arith.mulf %31, %30 : vector<8x512xf32>
    %cst_20 = arith.constant -1.45315206 : f32
    %33 = vector.broadcast %cst_20 : f32 to vector<8x512xf32>
    %34 = arith.addf %32, %33 : vector<8x512xf32>
    %35 = arith.mulf %34, %30 : vector<8x512xf32>
    %cst_21 = arith.constant 1.42141378 : f32
    %36 = vector.broadcast %cst_21 : f32 to vector<8x512xf32>
    %37 = arith.addf %35, %36 : vector<8x512xf32>
    %38 = arith.mulf %37, %30 : vector<8x512xf32>
    %cst_22 = arith.constant -0.284496725 : f32
    %39 = vector.broadcast %cst_22 : f32 to vector<8x512xf32>
    %40 = arith.addf %38, %39 : vector<8x512xf32>
    %41 = arith.mulf %40, %30 : vector<8x512xf32>
    %cst_23 = arith.constant 0.254829586 : f32
    %42 = vector.broadcast %cst_23 : f32 to vector<8x512xf32>
    %43 = arith.addf %41, %42 : vector<8x512xf32>
    %44 = arith.mulf %43, %30 : vector<8x512xf32>
    %cst_24 = arith.constant 0.000000e+00 : f32
    %45 = vector.broadcast %cst_24 : f32 to vector<8x512xf32>
    %46 = arith.subf %45, %24 : vector<8x512xf32>
    %47 = arith.mulf %46, %24 : vector<8x512xf32>
    %48 = math.exp %47 : vector<8x512xf32>
    %49 = arith.mulf %44, %48 : vector<8x512xf32>
    %cst_25 = arith.constant 1.000000e+00 : f32
    %50 = vector.broadcast %cst_25 : f32 to vector<8x512xf32>
    %51 = arith.subf %50, %49 : vector<8x512xf32>
    %cst_26 = arith.constant 0.000000e+00 : f32
    %52 = vector.broadcast %cst_26 : f32 to vector<8x512xf32>
    %53 = arith.cmpf oge, %23, %52 : vector<8x512xf32>
    %cst_27 = arith.constant 0.000000e+00 : f32
    %54 = vector.broadcast %cst_27 : f32 to vector<8x512xf32>
    %55 = arith.subf %54, %51 : vector<8x512xf32>
    %56 = arith.select %53, %51, %55 : vector<8x512xi1>, vector<8x512xf32>
    %cst_28 = arith.constant 1.000000e+00 : f32
    %57 = vector.broadcast %cst_28 : f32 to vector<8x512xf32>
    %58 = arith.addf %57, %56 : vector<8x512xf32>
    %59 = arith.mulf %21, %58 : vector<8x512xf32>
    %c0_29 = arith.constant 0 : index
    %c0_30 = arith.constant 0 : index
    %60 = vector.load %arg4[%c0_29, %c0_30] : memref<8x8xf32, #tpu.memory_space<vmem>>, vector<8x8xf32>
    %cst_31 = arith.constant dense<0.000000e+00> : vector<8x512xf32>
    %61 = tpu.matmul %60, %59, %cst_31 {dimension_numbers = #tpu.dot_dimension_numbers<[1], [0], [0], [1], [0, 0, 1, 1], [], []>} : vector<8x8xf32>, vector<8x512xf32>, vector<8x512xf32> -> vector<8x512xf32>
    %c0_32 = arith.constant 0 : index
    %c0_33 = arith.constant 0 : index
    %62 = vector.load %arg5[%c0_32, %c0_33] : memref<8x1xf32, #tpu.memory_space<vmem>>, vector<8x1xf32>
    %63 = vector.broadcast %62 : vector<8x1xf32> to vector<8x512xf32>
    %64 = arith.addf %61, %63 : vector<8x512xf32>
    %c0_34 = arith.constant 0 : index
    %c0_35 = arith.constant 0 : index
    %65 = vector.load %arg6[%c0_34, %c0_35] : memref<512x128xf32, #tpu.memory_space<vmem>>, vector<512x128xf32>
    %cst_36 = arith.constant dense<0.000000e+00> : vector<8x128xf32>
    %66 = tpu.matmul %64, %65, %cst_36 {dimension_numbers = #tpu.dot_dimension_numbers<[1], [0], [0], [1], [0, 0, 1, 1], [], []>} : vector<8x512xf32>, vector<512x128xf32>, vector<8x128xf32> -> vector<8x128xf32>
    %c0_37 = arith.constant 0 : index
    %c0_38 = arith.constant 0 : index
    %c0_39 = arith.constant 0 : index
    %67 = vector.load %arg8[%c0_37, %c0_38, %c0_39] : memref<25x16x8xf32, #tpu.memory_space<vmem>>, vector<1x16x8xf32>
    %68 = vector.shape_cast %67 : vector<1x16x8xf32> to vector<16x8xf32>
    %c0_40 = arith.constant 0 : index
    %c0_41 = arith.constant 0 : index
    %c0_42 = arith.constant 0 : index
    %69 = vector.load %arg7[%c0_40, %c0_41, %c0_42] : memref<25x128x32xf32, #tpu.memory_space<vmem>>, vector<1x128x32xf32>
    %70 = vector.shape_cast %69 : vector<1x128x32xf32> to vector<128x32xf32>
    %cst_43 = arith.constant dense<0.000000e+00> : vector<8x32xf32>
    %71 = tpu.matmul %66, %70, %cst_43 {dimension_numbers = #tpu.dot_dimension_numbers<[1], [0], [0], [1], [0, 0, 1, 1], [], []>} : vector<8x128xf32>, vector<128x32xf32>, vector<8x32xf32> -> vector<8x32xf32>
    %cst_44 = arith.constant dense<0.000000e+00> : vector<16x32xf32>
    %72 = tpu.matmul %68, %71, %cst_44 {dimension_numbers = #tpu.dot_dimension_numbers<[1], [0], [0], [1], [0, 0, 1, 1], [], []>} : vector<16x8xf32>, vector<8x32xf32>, vector<16x32xf32> -> vector<16x32xf32>
    %c1 = arith.constant 1 : index
    %c0_45 = arith.constant 0 : index
    %c0_46 = arith.constant 0 : index
    %73 = vector.load %arg7[%c1, %c0_45, %c0_46] : memref<25x128x32xf32, #tpu.memory_space<vmem>>, vector<1x128x32xf32>
    %74 = vector.shape_cast %73 : vector<1x128x32xf32> to vector<128x32xf32>
    %cst_47 = arith.constant dense<0.000000e+00> : vector<8x32xf32>
    %75 = tpu.matmul %66, %74, %cst_47 {dimension_numbers = #tpu.dot_dimension_numbers<[1], [0], [0], [1], [0, 0, 1, 1], [], []>} : vector<8x128xf32>, vector<128x32xf32>, vector<8x32xf32> -> vector<8x32xf32>
    %c1_48 = arith.constant 1 : index
    %c0_49 = arith.constant 0 : index
    %c0_50 = arith.constant 0 : index
    %76 = vector.load %arg8[%c1_48, %c0_49, %c0_50] : memref<25x16x8xf32, #tpu.memory_space<vmem>>, vector<1x16x8xf32>
    %77 = vector.shape_cast %76 : vector<1x16x8xf32> to vector<16x8xf32>
    %cst_51 = arith.constant dense<0.000000e+00> : vector<16x32xf32>
    %78 = tpu.matmul %77, %75, %cst_51 {dimension_numbers = #tpu.dot_dimension_numbers<[1], [0], [0], [1], [0, 0, 1, 1], [], []>} : vector<16x8xf32>, vector<8x32xf32>, vector<16x32xf32> -> vector<16x32xf32>
    %79 = arith.addf %72, %78 : vector<16x32xf32>
    %c2 = arith.constant 2 : index
    %c0_52 = arith.constant 0 : index
    %c0_53 = arith.constant 0 : index
    %80 = vector.load %arg7[%c2, %c0_52, %c0_53] : memref<25x128x32xf32, #tpu.memory_space<vmem>>, vector<1x128x32xf32>
    %81 = vector.shape_cast %80 : vector<1x128x32xf32> to vector<128x32xf32>
    %cst_54 = arith.constant dense<0.000000e+00> : vector<8x32xf32>
    %82 = tpu.matmul %66, %81, %cst_54 {dimension_numbers = #tpu.dot_dimension_numbers<[1], [0], [0], [1], [0, 0, 1, 1], [], []>} : vector<8x128xf32>, vector<128x32xf32>, vector<8x32xf32> -> vector<8x32xf32>
    %c2_55 = arith.constant 2 : index
    %c0_56 = arith.constant 0 : index
    %c0_57 = arith.constant 0 : index
    %83 = vector.load %arg8[%c2_55, %c0_56, %c0_57] : memref<25x16x8xf32, #tpu.memory_space<vmem>>, vector<1x16x8xf32>
    %84 = vector.shape_cast %83 : vector<1x16x8xf32> to vector<16x8xf32>
    %cst_58 = arith.constant dense<0.000000e+00> : vector<16x32xf32>
    %85 = tpu.matmul %84, %82, %cst_58 {dimension_numbers = #tpu.dot_dimension_numbers<[1], [0], [0], [1], [0, 0, 1, 1], [], []>} : vector<16x8xf32>, vector<8x32xf32>, vector<16x32xf32> -> vector<16x32xf32>
    %86 = arith.addf %79, %85 : vector<16x32xf32>
    %c3 = arith.constant 3 : index
    %c0_59 = arith.constant 0 : index
    %c0_60 = arith.constant 0 : index
    %87 = vector.load %arg7[%c3, %c0_59, %c0_60] : memref<25x128x32xf32, #tpu.memory_space<vmem>>, vector<1x128x32xf32>
    %88 = vector.shape_cast %87 : vector<1x128x32xf32> to vector<128x32xf32>
    %cst_61 = arith.constant dense<0.000000e+00> : vector<8x32xf32>
    %89 = tpu.matmul %66, %88, %cst_61 {dimension_numbers = #tpu.dot_dimension_numbers<[1], [0], [0], [1], [0, 0, 1, 1], [], []>} : vector<8x128xf32>, vector<128x32xf32>, vector<8x32xf32> -> vector<8x32xf32>
    %c3_62 = arith.constant 3 : index
    %c0_63 = arith.constant 0 : index
    %c0_64 = arith.constant 0 : index
    %90 = vector.load %arg8[%c3_62, %c0_63, %c0_64] : memref<25x16x8xf32, #tpu.memory_space<vmem>>, vector<1x16x8xf32>
    %91 = vector.shape_cast %90 : vector<1x16x8xf32> to vector<16x8xf32>
    %cst_65 = arith.constant dense<0.000000e+00> : vector<16x32xf32>
    %92 = tpu.matmul %91, %89, %cst_65 {dimension_numbers = #tpu.dot_dimension_numbers<[1], [0], [0], [1], [0, 0, 1, 1], [], []>} : vector<16x8xf32>, vector<8x32xf32>, vector<16x32xf32> -> vector<16x32xf32>
    %93 = arith.addf %86, %92 : vector<16x32xf32>
    %c4 = arith.constant 4 : index
    %c0_66 = arith.constant 0 : index
    %c0_67 = arith.constant 0 : index
    %94 = vector.load %arg7[%c4, %c0_66, %c0_67] : memref<25x128x32xf32, #tpu.memory_space<vmem>>, vector<1x128x32xf32>
    %95 = vector.shape_cast %94 : vector<1x128x32xf32> to vector<128x32xf32>
    %cst_68 = arith.constant dense<0.000000e+00> : vector<8x32xf32>
    %96 = tpu.matmul %66, %95, %cst_68 {dimension_numbers = #tpu.dot_dimension_numbers<[1], [0], [0], [1], [0, 0, 1, 1], [], []>} : vector<8x128xf32>, vector<128x32xf32>, vector<8x32xf32> -> vector<8x32xf32>
    %c4_69 = arith.constant 4 : index
    %c0_70 = arith.constant 0 : index
    %c0_71 = arith.constant 0 : index
    %97 = vector.load %arg8[%c4_69, %c0_70, %c0_71] : memref<25x16x8xf32, #tpu.memory_space<vmem>>, vector<1x16x8xf32>
    %98 = vector.shape_cast %97 : vector<1x16x8xf32> to vector<16x8xf32>
    %cst_72 = arith.constant dense<0.000000e+00> : vector<16x32xf32>
    %99 = tpu.matmul %98, %96, %cst_72 {dimension_numbers = #tpu.dot_dimension_numbers<[1], [0], [0], [1], [0, 0, 1, 1], [], []>} : vector<16x8xf32>, vector<8x32xf32>, vector<16x32xf32> -> vector<16x32xf32>
    %100 = arith.addf %93, %99 : vector<16x32xf32>
    %c5 = arith.constant 5 : index
    %c0_73 = arith.constant 0 : index
    %c0_74 = arith.constant 0 : index
    %101 = vector.load %arg7[%c5, %c0_73, %c0_74] : memref<25x128x32xf32, #tpu.memory_space<vmem>>, vector<1x128x32xf32>
    %102 = vector.shape_cast %101 : vector<1x128x32xf32> to vector<128x32xf32>
    %cst_75 = arith.constant dense<0.000000e+00> : vector<8x32xf32>
    %103 = tpu.matmul %66, %102, %cst_75 {dimension_numbers = #tpu.dot_dimension_numbers<[1], [0], [0], [1], [0, 0, 1, 1], [], []>} : vector<8x128xf32>, vector<128x32xf32>, vector<8x32xf32> -> vector<8x32xf32>
    %c5_76 = arith.constant 5 : index
    %c0_77 = arith.constant 0 : index
    %c0_78 = arith.constant 0 : index
    %104 = vector.load %arg8[%c5_76, %c0_77, %c0_78] : memref<25x16x8xf32, #tpu.memory_space<vmem>>, vector<1x16x8xf32>
    %105 = vector.shape_cast %104 : vector<1x16x8xf32> to vector<16x8xf32>
    %cst_79 = arith.constant dense<0.000000e+00> : vector<16x32xf32>
    %106 = tpu.matmul %105, %103, %cst_79 {dimension_numbers = #tpu.dot_dimension_numbers<[1], [0], [0], [1], [0, 0, 1, 1], [], []>} : vector<16x8xf32>, vector<8x32xf32>, vector<16x32xf32> -> vector<16x32xf32>
    %107 = arith.addf %100, %106 : vector<16x32xf32>
    %c6 = arith.constant 6 : index
    %c0_80 = arith.constant 0 : index
    %c0_81 = arith.constant 0 : index
    %108 = vector.load %arg7[%c6, %c0_80, %c0_81] : memref<25x128x32xf32, #tpu.memory_space<vmem>>, vector<1x128x32xf32>
    %109 = vector.shape_cast %108 : vector<1x128x32xf32> to vector<128x32xf32>
    %cst_82 = arith.constant dense<0.000000e+00> : vector<8x32xf32>
    %110 = tpu.matmul %66, %109, %cst_82 {dimension_numbers = #tpu.dot_dimension_numbers<[1], [0], [0], [1], [0, 0, 1, 1], [], []>} : vector<8x128xf32>, vector<128x32xf32>, vector<8x32xf32> -> vector<8x32xf32>
    %c6_83 = arith.constant 6 : index
    %c0_84 = arith.constant 0 : index
    %c0_85 = arith.constant 0 : index
    %111 = vector.load %arg8[%c6_83, %c0_84, %c0_85] : memref<25x16x8xf32, #tpu.memory_space<vmem>>, vector<1x16x8xf32>
    %112 = vector.shape_cast %111 : vector<1x16x8xf32> to vector<16x8xf32>
    %cst_86 = arith.constant dense<0.000000e+00> : vector<16x32xf32>
    %113 = tpu.matmul %112, %110, %cst_86 {dimension_numbers = #tpu.dot_dimension_numbers<[1], [0], [0], [1], [0, 0, 1, 1], [], []>} : vector<16x8xf32>, vector<8x32xf32>, vector<16x32xf32> -> vector<16x32xf32>
    %114 = arith.addf %107, %113 : vector<16x32xf32>
    %c7 = arith.constant 7 : index
    %c0_87 = arith.constant 0 : index
    %c0_88 = arith.constant 0 : index
    %115 = vector.load %arg7[%c7, %c0_87, %c0_88] : memref<25x128x32xf32, #tpu.memory_space<vmem>>, vector<1x128x32xf32>
    %116 = vector.shape_cast %115 : vector<1x128x32xf32> to vector<128x32xf32>
    %cst_89 = arith.constant dense<0.000000e+00> : vector<8x32xf32>
    %117 = tpu.matmul %66, %116, %cst_89 {dimension_numbers = #tpu.dot_dimension_numbers<[1], [0], [0], [1], [0, 0, 1, 1], [], []>} : vector<8x128xf32>, vector<128x32xf32>, vector<8x32xf32> -> vector<8x32xf32>
    %c7_90 = arith.constant 7 : index
    %c0_91 = arith.constant 0 : index
    %c0_92 = arith.constant 0 : index
    %118 = vector.load %arg8[%c7_90, %c0_91, %c0_92] : memref<25x16x8xf32, #tpu.memory_space<vmem>>, vector<1x16x8xf32>
    %119 = vector.shape_cast %118 : vector<1x16x8xf32> to vector<16x8xf32>
    %cst_93 = arith.constant dense<0.000000e+00> : vector<16x32xf32>
    %120 = tpu.matmul %119, %117, %cst_93 {dimension_numbers = #tpu.dot_dimension_numbers<[1], [0], [0], [1], [0, 0, 1, 1], [], []>} : vector<16x8xf32>, vector<8x32xf32>, vector<16x32xf32> -> vector<16x32xf32>
    %121 = arith.addf %114, %120 : vector<16x32xf32>
    %c8 = arith.constant 8 : index
    %c0_94 = arith.constant 0 : index
    %c0_95 = arith.constant 0 : index
    %122 = vector.load %arg7[%c8, %c0_94, %c0_95] : memref<25x128x32xf32, #tpu.memory_space<vmem>>, vector<1x128x32xf32>
    %123 = vector.shape_cast %122 : vector<1x128x32xf32> to vector<128x32xf32>
    %cst_96 = arith.constant dense<0.000000e+00> : vector<8x32xf32>
    %124 = tpu.matmul %66, %123, %cst_96 {dimension_numbers = #tpu.dot_dimension_numbers<[1], [0], [0], [1], [0, 0, 1, 1], [], []>} : vector<8x128xf32>, vector<128x32xf32>, vector<8x32xf32> -> vector<8x32xf32>
    %c8_97 = arith.constant 8 : index
    %c0_98 = arith.constant 0 : index
    %c0_99 = arith.constant 0 : index
    %125 = vector.load %arg8[%c8_97, %c0_98, %c0_99] : memref<25x16x8xf32, #tpu.memory_space<vmem>>, vector<1x16x8xf32>
    %126 = vector.shape_cast %125 : vector<1x16x8xf32> to vector<16x8xf32>
    %cst_100 = arith.constant dense<0.000000e+00> : vector<16x32xf32>
    %127 = tpu.matmul %126, %124, %cst_100 {dimension_numbers = #tpu.dot_dimension_numbers<[1], [0], [0], [1], [0, 0, 1, 1], [], []>} : vector<16x8xf32>, vector<8x32xf32>, vector<16x32xf32> -> vector<16x32xf32>
    %128 = arith.addf %121, %127 : vector<16x32xf32>
    %c9 = arith.constant 9 : index
    %c0_101 = arith.constant 0 : index
    %c0_102 = arith.constant 0 : index
    %129 = vector.load %arg7[%c9, %c0_101, %c0_102] : memref<25x128x32xf32, #tpu.memory_space<vmem>>, vector<1x128x32xf32>
    %130 = vector.shape_cast %129 : vector<1x128x32xf32> to vector<128x32xf32>
    %cst_103 = arith.constant dense<0.000000e+00> : vector<8x32xf32>
    %131 = tpu.matmul %66, %130, %cst_103 {dimension_numbers = #tpu.dot_dimension_numbers<[1], [0], [0], [1], [0, 0, 1, 1], [], []>} : vector<8x128xf32>, vector<128x32xf32>, vector<8x32xf32> -> vector<8x32xf32>
    %c9_104 = arith.constant 9 : index
    %c0_105 = arith.constant 0 : index
    %c0_106 = arith.constant 0 : index
    %132 = vector.load %arg8[%c9_104, %c0_105, %c0_106] : memref<25x16x8xf32, #tpu.memory_space<vmem>>, vector<1x16x8xf32>
    %133 = vector.shape_cast %132 : vector<1x16x8xf32> to vector<16x8xf32>
    %cst_107 = arith.constant dense<0.000000e+00> : vector<16x32xf32>
    %134 = tpu.matmul %133, %131, %cst_107 {dimension_numbers = #tpu.dot_dimension_numbers<[1], [0], [0], [1], [0, 0, 1, 1], [], []>} : vector<16x8xf32>, vector<8x32xf32>, vector<16x32xf32> -> vector<16x32xf32>
    %135 = arith.addf %128, %134 : vector<16x32xf32>
    %c10 = arith.constant 10 : index
    %c0_108 = arith.constant 0 : index
    %c0_109 = arith.constant 0 : index
    %136 = vector.load %arg7[%c10, %c0_108, %c0_109] : memref<25x128x32xf32, #tpu.memory_space<vmem>>, vector<1x128x32xf32>
    %137 = vector.shape_cast %136 : vector<1x128x32xf32> to vector<128x32xf32>
    %cst_110 = arith.constant dense<0.000000e+00> : vector<8x32xf32>
    %138 = tpu.matmul %66, %137, %cst_110 {dimension_numbers = #tpu.dot_dimension_numbers<[1], [0], [0], [1], [0, 0, 1, 1], [], []>} : vector<8x128xf32>, vector<128x32xf32>, vector<8x32xf32> -> vector<8x32xf32>
    %c10_111 = arith.constant 10 : index
    %c0_112 = arith.constant 0 : index
    %c0_113 = arith.constant 0 : index
    %139 = vector.load %arg8[%c10_111, %c0_112, %c0_113] : memref<25x16x8xf32, #tpu.memory_space<vmem>>, vector<1x16x8xf32>
    %140 = vector.shape_cast %139 : vector<1x16x8xf32> to vector<16x8xf32>
    %cst_114 = arith.constant dense<0.000000e+00> : vector<16x32xf32>
    %141 = tpu.matmul %140, %138, %cst_114 {dimension_numbers = #tpu.dot_dimension_numbers<[1], [0], [0], [1], [0, 0, 1, 1], [], []>} : vector<16x8xf32>, vector<8x32xf32>, vector<16x32xf32> -> vector<16x32xf32>
    %142 = arith.addf %135, %141 : vector<16x32xf32>
    %c11 = arith.constant 11 : index
    %c0_115 = arith.constant 0 : index
    %c0_116 = arith.constant 0 : index
    %143 = vector.load %arg7[%c11, %c0_115, %c0_116] : memref<25x128x32xf32, #tpu.memory_space<vmem>>, vector<1x128x32xf32>
    %144 = vector.shape_cast %143 : vector<1x128x32xf32> to vector<128x32xf32>
    %cst_117 = arith.constant dense<0.000000e+00> : vector<8x32xf32>
    %145 = tpu.matmul %66, %144, %cst_117 {dimension_numbers = #tpu.dot_dimension_numbers<[1], [0], [0], [1], [0, 0, 1, 1], [], []>} : vector<8x128xf32>, vector<128x32xf32>, vector<8x32xf32> -> vector<8x32xf32>
    %c11_118 = arith.constant 11 : index
    %c0_119 = arith.constant 0 : index
    %c0_120 = arith.constant 0 : index
    %146 = vector.load %arg8[%c11_118, %c0_119, %c0_120] : memref<25x16x8xf32, #tpu.memory_space<vmem>>, vector<1x16x8xf32>
    %147 = vector.shape_cast %146 : vector<1x16x8xf32> to vector<16x8xf32>
    %cst_121 = arith.constant dense<0.000000e+00> : vector<16x32xf32>
    %148 = tpu.matmul %147, %145, %cst_121 {dimension_numbers = #tpu.dot_dimension_numbers<[1], [0], [0], [1], [0, 0, 1, 1], [], []>} : vector<16x8xf32>, vector<8x32xf32>, vector<16x32xf32> -> vector<16x32xf32>
    %149 = arith.addf %142, %148 : vector<16x32xf32>
    %c12 = arith.constant 12 : index
    %c0_122 = arith.constant 0 : index
    %c0_123 = arith.constant 0 : index
    %150 = vector.load %arg7[%c12, %c0_122, %c0_123] : memref<25x128x32xf32, #tpu.memory_space<vmem>>, vector<1x128x32xf32>
    %151 = vector.shape_cast %150 : vector<1x128x32xf32> to vector<128x32xf32>
    %cst_124 = arith.constant dense<0.000000e+00> : vector<8x32xf32>
    %152 = tpu.matmul %66, %151, %cst_124 {dimension_numbers = #tpu.dot_dimension_numbers<[1], [0], [0], [1], [0, 0, 1, 1], [], []>} : vector<8x128xf32>, vector<128x32xf32>, vector<8x32xf32> -> vector<8x32xf32>
    %c12_125 = arith.constant 12 : index
    %c0_126 = arith.constant 0 : index
    %c0_127 = arith.constant 0 : index
    %153 = vector.load %arg8[%c12_125, %c0_126, %c0_127] : memref<25x16x8xf32, #tpu.memory_space<vmem>>, vector<1x16x8xf32>
    %154 = vector.shape_cast %153 : vector<1x16x8xf32> to vector<16x8xf32>
    %cst_128 = arith.constant dense<0.000000e+00> : vector<16x32xf32>
    %155 = tpu.matmul %154, %152, %cst_128 {dimension_numbers = #tpu.dot_dimension_numbers<[1], [0], [0], [1], [0, 0, 1, 1], [], []>} : vector<16x8xf32>, vector<8x32xf32>, vector<16x32xf32> -> vector<16x32xf32>
    %156 = arith.addf %149, %155 : vector<16x32xf32>
    %c13 = arith.constant 13 : index
    %c0_129 = arith.constant 0 : index
    %c0_130 = arith.constant 0 : index
    %157 = vector.load %arg7[%c13, %c0_129, %c0_130] : memref<25x128x32xf32, #tpu.memory_space<vmem>>, vector<1x128x32xf32>
    %158 = vector.shape_cast %157 : vector<1x128x32xf32> to vector<128x32xf32>
    %cst_131 = arith.constant dense<0.000000e+00> : vector<8x32xf32>
    %159 = tpu.matmul %66, %158, %cst_131 {dimension_numbers = #tpu.dot_dimension_numbers<[1], [0], [0], [1], [0, 0, 1, 1], [], []>} : vector<8x128xf32>, vector<128x32xf32>, vector<8x32xf32> -> vector<8x32xf32>
    %c13_132 = arith.constant 13 : index
    %c0_133 = arith.constant 0 : index
    %c0_134 = arith.constant 0 : index
    %160 = vector.load %arg8[%c13_132, %c0_133, %c0_134] : memref<25x16x8xf32, #tpu.memory_space<vmem>>, vector<1x16x8xf32>
    %161 = vector.shape_cast %160 : vector<1x16x8xf32> to vector<16x8xf32>
    %cst_135 = arith.constant dense<0.000000e+00> : vector<16x32xf32>
    %162 = tpu.matmul %161, %159, %cst_135 {dimension_numbers = #tpu.dot_dimension_numbers<[1], [0], [0], [1], [0, 0, 1, 1], [], []>} : vector<16x8xf32>, vector<8x32xf32>, vector<16x32xf32> -> vector<16x32xf32>
    %163 = arith.addf %156, %162 : vector<16x32xf32>
    %c14 = arith.constant 14 : index
    %c0_136 = arith.constant 0 : index
    %c0_137 = arith.constant 0 : index
    %164 = vector.load %arg7[%c14, %c0_136, %c0_137] : memref<25x128x32xf32, #tpu.memory_space<vmem>>, vector<1x128x32xf32>
    %165 = vector.shape_cast %164 : vector<1x128x32xf32> to vector<128x32xf32>
    %cst_138 = arith.constant dense<0.000000e+00> : vector<8x32xf32>
    %166 = tpu.matmul %66, %165, %cst_138 {dimension_numbers = #tpu.dot_dimension_numbers<[1], [0], [0], [1], [0, 0, 1, 1], [], []>} : vector<8x128xf32>, vector<128x32xf32>, vector<8x32xf32> -> vector<8x32xf32>
    %c14_139 = arith.constant 14 : index
    %c0_140 = arith.constant 0 : index
    %c0_141 = arith.constant 0 : index
    %167 = vector.load %arg8[%c14_139, %c0_140, %c0_141] : memref<25x16x8xf32, #tpu.memory_space<vmem>>, vector<1x16x8xf32>
    %168 = vector.shape_cast %167 : vector<1x16x8xf32> to vector<16x8xf32>
    %cst_142 = arith.constant dense<0.000000e+00> : vector<16x32xf32>
    %169 = tpu.matmul %168, %166, %cst_142 {dimension_numbers = #tpu.dot_dimension_numbers<[1], [0], [0], [1], [0, 0, 1, 1], [], []>} : vector<16x8xf32>, vector<8x32xf32>, vector<16x32xf32> -> vector<16x32xf32>
    %170 = arith.addf %163, %169 : vector<16x32xf32>
    %c15 = arith.constant 15 : index
    %c0_143 = arith.constant 0 : index
    %c0_144 = arith.constant 0 : index
    %171 = vector.load %arg7[%c15, %c0_143, %c0_144] : memref<25x128x32xf32, #tpu.memory_space<vmem>>, vector<1x128x32xf32>
    %172 = vector.shape_cast %171 : vector<1x128x32xf32> to vector<128x32xf32>
    %cst_145 = arith.constant dense<0.000000e+00> : vector<8x32xf32>
    %173 = tpu.matmul %66, %172, %cst_145 {dimension_numbers = #tpu.dot_dimension_numbers<[1], [0], [0], [1], [0, 0, 1, 1], [], []>} : vector<8x128xf32>, vector<128x32xf32>, vector<8x32xf32> -> vector<8x32xf32>
    %c15_146 = arith.constant 15 : index
    %c0_147 = arith.constant 0 : index
    %c0_148 = arith.constant 0 : index
    %174 = vector.load %arg8[%c15_146, %c0_147, %c0_148] : memref<25x16x8xf32, #tpu.memory_space<vmem>>, vector<1x16x8xf32>
    %175 = vector.shape_cast %174 : vector<1x16x8xf32> to vector<16x8xf32>
    %cst_149 = arith.constant dense<0.000000e+00> : vector<16x32xf32>
    %176 = tpu.matmul %175, %173, %cst_149 {dimension_numbers = #tpu.dot_dimension_numbers<[1], [0], [0], [1], [0, 0, 1, 1], [], []>} : vector<16x8xf32>, vector<8x32xf32>, vector<16x32xf32> -> vector<16x32xf32>
    %177 = arith.addf %170, %176 : vector<16x32xf32>
    %c16 = arith.constant 16 : index
    %c0_150 = arith.constant 0 : index
    %c0_151 = arith.constant 0 : index
    %178 = vector.load %arg7[%c16, %c0_150, %c0_151] : memref<25x128x32xf32, #tpu.memory_space<vmem>>, vector<1x128x32xf32>
    %179 = vector.shape_cast %178 : vector<1x128x32xf32> to vector<128x32xf32>
    %cst_152 = arith.constant dense<0.000000e+00> : vector<8x32xf32>
    %180 = tpu.matmul %66, %179, %cst_152 {dimension_numbers = #tpu.dot_dimension_numbers<[1], [0], [0], [1], [0, 0, 1, 1], [], []>} : vector<8x128xf32>, vector<128x32xf32>, vector<8x32xf32> -> vector<8x32xf32>
    %c16_153 = arith.constant 16 : index
    %c0_154 = arith.constant 0 : index
    %c0_155 = arith.constant 0 : index
    %181 = vector.load %arg8[%c16_153, %c0_154, %c0_155] : memref<25x16x8xf32, #tpu.memory_space<vmem>>, vector<1x16x8xf32>
    %182 = vector.shape_cast %181 : vector<1x16x8xf32> to vector<16x8xf32>
    %cst_156 = arith.constant dense<0.000000e+00> : vector<16x32xf32>
    %183 = tpu.matmul %182, %180, %cst_156 {dimension_numbers = #tpu.dot_dimension_numbers<[1], [0], [0], [1], [0, 0, 1, 1], [], []>} : vector<16x8xf32>, vector<8x32xf32>, vector<16x32xf32> -> vector<16x32xf32>
    %184 = arith.addf %177, %183 : vector<16x32xf32>
    %c17 = arith.constant 17 : index
    %c0_157 = arith.constant 0 : index
    %c0_158 = arith.constant 0 : index
    %185 = vector.load %arg7[%c17, %c0_157, %c0_158] : memref<25x128x32xf32, #tpu.memory_space<vmem>>, vector<1x128x32xf32>
    %186 = vector.shape_cast %185 : vector<1x128x32xf32> to vector<128x32xf32>
    %cst_159 = arith.constant dense<0.000000e+00> : vector<8x32xf32>
    %187 = tpu.matmul %66, %186, %cst_159 {dimension_numbers = #tpu.dot_dimension_numbers<[1], [0], [0], [1], [0, 0, 1, 1], [], []>} : vector<8x128xf32>, vector<128x32xf32>, vector<8x32xf32> -> vector<8x32xf32>
    %c17_160 = arith.constant 17 : index
    %c0_161 = arith.constant 0 : index
    %c0_162 = arith.constant 0 : index
    %188 = vector.load %arg8[%c17_160, %c0_161, %c0_162] : memref<25x16x8xf32, #tpu.memory_space<vmem>>, vector<1x16x8xf32>
    %189 = vector.shape_cast %188 : vector<1x16x8xf32> to vector<16x8xf32>
    %cst_163 = arith.constant dense<0.000000e+00> : vector<16x32xf32>
    %190 = tpu.matmul %189, %187, %cst_163 {dimension_numbers = #tpu.dot_dimension_numbers<[1], [0], [0], [1], [0, 0, 1, 1], [], []>} : vector<16x8xf32>, vector<8x32xf32>, vector<16x32xf32> -> vector<16x32xf32>
    %191 = arith.addf %184, %190 : vector<16x32xf32>
    %c18 = arith.constant 18 : index
    %c0_164 = arith.constant 0 : index
    %c0_165 = arith.constant 0 : index
    %192 = vector.load %arg7[%c18, %c0_164, %c0_165] : memref<25x128x32xf32, #tpu.memory_space<vmem>>, vector<1x128x32xf32>
    %193 = vector.shape_cast %192 : vector<1x128x32xf32> to vector<128x32xf32>
    %cst_166 = arith.constant dense<0.000000e+00> : vector<8x32xf32>
    %194 = tpu.matmul %66, %193, %cst_166 {dimension_numbers = #tpu.dot_dimension_numbers<[1], [0], [0], [1], [0, 0, 1, 1], [], []>} : vector<8x128xf32>, vector<128x32xf32>, vector<8x32xf32> -> vector<8x32xf32>
    %c18_167 = arith.constant 18 : index
    %c0_168 = arith.constant 0 : index
    %c0_169 = arith.constant 0 : index
    %195 = vector.load %arg8[%c18_167, %c0_168, %c0_169] : memref<25x16x8xf32, #tpu.memory_space<vmem>>, vector<1x16x8xf32>
    %196 = vector.shape_cast %195 : vector<1x16x8xf32> to vector<16x8xf32>
    %cst_170 = arith.constant dense<0.000000e+00> : vector<16x32xf32>
    %197 = tpu.matmul %196, %194, %cst_170 {dimension_numbers = #tpu.dot_dimension_numbers<[1], [0], [0], [1], [0, 0, 1, 1], [], []>} : vector<16x8xf32>, vector<8x32xf32>, vector<16x32xf32> -> vector<16x32xf32>
    %198 = arith.addf %191, %197 : vector<16x32xf32>
    %c19 = arith.constant 19 : index
    %c0_171 = arith.constant 0 : index
    %c0_172 = arith.constant 0 : index
    %199 = vector.load %arg7[%c19, %c0_171, %c0_172] : memref<25x128x32xf32, #tpu.memory_space<vmem>>, vector<1x128x32xf32>
    %200 = vector.shape_cast %199 : vector<1x128x32xf32> to vector<128x32xf32>
    %cst_173 = arith.constant dense<0.000000e+00> : vector<8x32xf32>
    %201 = tpu.matmul %66, %200, %cst_173 {dimension_numbers = #tpu.dot_dimension_numbers<[1], [0], [0], [1], [0, 0, 1, 1], [], []>} : vector<8x128xf32>, vector<128x32xf32>, vector<8x32xf32> -> vector<8x32xf32>
    %c19_174 = arith.constant 19 : index
    %c0_175 = arith.constant 0 : index
    %c0_176 = arith.constant 0 : index
    %202 = vector.load %arg8[%c19_174, %c0_175, %c0_176] : memref<25x16x8xf32, #tpu.memory_space<vmem>>, vector<1x16x8xf32>
    %203 = vector.shape_cast %202 : vector<1x16x8xf32> to vector<16x8xf32>
    %cst_177 = arith.constant dense<0.000000e+00> : vector<16x32xf32>
    %204 = tpu.matmul %203, %201, %cst_177 {dimension_numbers = #tpu.dot_dimension_numbers<[1], [0], [0], [1], [0, 0, 1, 1], [], []>} : vector<16x8xf32>, vector<8x32xf32>, vector<16x32xf32> -> vector<16x32xf32>
    %205 = arith.addf %198, %204 : vector<16x32xf32>
    %c20 = arith.constant 20 : index
    %c0_178 = arith.constant 0 : index
    %c0_179 = arith.constant 0 : index
    %206 = vector.load %arg7[%c20, %c0_178, %c0_179] : memref<25x128x32xf32, #tpu.memory_space<vmem>>, vector<1x128x32xf32>
    %207 = vector.shape_cast %206 : vector<1x128x32xf32> to vector<128x32xf32>
    %cst_180 = arith.constant dense<0.000000e+00> : vector<8x32xf32>
    %208 = tpu.matmul %66, %207, %cst_180 {dimension_numbers = #tpu.dot_dimension_numbers<[1], [0], [0], [1], [0, 0, 1, 1], [], []>} : vector<8x128xf32>, vector<128x32xf32>, vector<8x32xf32> -> vector<8x32xf32>
    %c20_181 = arith.constant 20 : index
    %c0_182 = arith.constant 0 : index
    %c0_183 = arith.constant 0 : index
    %209 = vector.load %arg8[%c20_181, %c0_182, %c0_183] : memref<25x16x8xf32, #tpu.memory_space<vmem>>, vector<1x16x8xf32>
    %210 = vector.shape_cast %209 : vector<1x16x8xf32> to vector<16x8xf32>
    %cst_184 = arith.constant dense<0.000000e+00> : vector<16x32xf32>
    %211 = tpu.matmul %210, %208, %cst_184 {dimension_numbers = #tpu.dot_dimension_numbers<[1], [0], [0], [1], [0, 0, 1, 1], [], []>} : vector<16x8xf32>, vector<8x32xf32>, vector<16x32xf32> -> vector<16x32xf32>
    %212 = arith.addf %205, %211 : vector<16x32xf32>
    %c21 = arith.constant 21 : index
    %c0_185 = arith.constant 0 : index
    %c0_186 = arith.constant 0 : index
    %213 = vector.load %arg7[%c21, %c0_185, %c0_186] : memref<25x128x32xf32, #tpu.memory_space<vmem>>, vector<1x128x32xf32>
    %214 = vector.shape_cast %213 : vector<1x128x32xf32> to vector<128x32xf32>
    %cst_187 = arith.constant dense<0.000000e+00> : vector<8x32xf32>
    %215 = tpu.matmul %66, %214, %cst_187 {dimension_numbers = #tpu.dot_dimension_numbers<[1], [0], [0], [1], [0, 0, 1, 1], [], []>} : vector<8x128xf32>, vector<128x32xf32>, vector<8x32xf32> -> vector<8x32xf32>
    %c21_188 = arith.constant 21 : index
    %c0_189 = arith.constant 0 : index
    %c0_190 = arith.constant 0 : index
    %216 = vector.load %arg8[%c21_188, %c0_189, %c0_190] : memref<25x16x8xf32, #tpu.memory_space<vmem>>, vector<1x16x8xf32>
    %217 = vector.shape_cast %216 : vector<1x16x8xf32> to vector<16x8xf32>
    %cst_191 = arith.constant dense<0.000000e+00> : vector<16x32xf32>
    %218 = tpu.matmul %217, %215, %cst_191 {dimension_numbers = #tpu.dot_dimension_numbers<[1], [0], [0], [1], [0, 0, 1, 1], [], []>} : vector<16x8xf32>, vector<8x32xf32>, vector<16x32xf32> -> vector<16x32xf32>
    %219 = arith.addf %212, %218 : vector<16x32xf32>
    %c22 = arith.constant 22 : index
    %c0_192 = arith.constant 0 : index
    %c0_193 = arith.constant 0 : index
    %220 = vector.load %arg7[%c22, %c0_192, %c0_193] : memref<25x128x32xf32, #tpu.memory_space<vmem>>, vector<1x128x32xf32>
    %221 = vector.shape_cast %220 : vector<1x128x32xf32> to vector<128x32xf32>
    %cst_194 = arith.constant dense<0.000000e+00> : vector<8x32xf32>
    %222 = tpu.matmul %66, %221, %cst_194 {dimension_numbers = #tpu.dot_dimension_numbers<[1], [0], [0], [1], [0, 0, 1, 1], [], []>} : vector<8x128xf32>, vector<128x32xf32>, vector<8x32xf32> -> vector<8x32xf32>
    %c22_195 = arith.constant 22 : index
    %c0_196 = arith.constant 0 : index
    %c0_197 = arith.constant 0 : index
    %223 = vector.load %arg8[%c22_195, %c0_196, %c0_197] : memref<25x16x8xf32, #tpu.memory_space<vmem>>, vector<1x16x8xf32>
    %224 = vector.shape_cast %223 : vector<1x16x8xf32> to vector<16x8xf32>
    %cst_198 = arith.constant dense<0.000000e+00> : vector<16x32xf32>
    %225 = tpu.matmul %224, %222, %cst_198 {dimension_numbers = #tpu.dot_dimension_numbers<[1], [0], [0], [1], [0, 0, 1, 1], [], []>} : vector<16x8xf32>, vector<8x32xf32>, vector<16x32xf32> -> vector<16x32xf32>
    %226 = arith.addf %219, %225 : vector<16x32xf32>
    %c23 = arith.constant 23 : index
    %c0_199 = arith.constant 0 : index
    %c0_200 = arith.constant 0 : index
    %227 = vector.load %arg7[%c23, %c0_199, %c0_200] : memref<25x128x32xf32, #tpu.memory_space<vmem>>, vector<1x128x32xf32>
    %228 = vector.shape_cast %227 : vector<1x128x32xf32> to vector<128x32xf32>
    %cst_201 = arith.constant dense<0.000000e+00> : vector<8x32xf32>
    %229 = tpu.matmul %66, %228, %cst_201 {dimension_numbers = #tpu.dot_dimension_numbers<[1], [0], [0], [1], [0, 0, 1, 1], [], []>} : vector<8x128xf32>, vector<128x32xf32>, vector<8x32xf32> -> vector<8x32xf32>
    %c23_202 = arith.constant 23 : index
    %c0_203 = arith.constant 0 : index
    %c0_204 = arith.constant 0 : index
    %230 = vector.load %arg8[%c23_202, %c0_203, %c0_204] : memref<25x16x8xf32, #tpu.memory_space<vmem>>, vector<1x16x8xf32>
    %231 = vector.shape_cast %230 : vector<1x16x8xf32> to vector<16x8xf32>
    %cst_205 = arith.constant dense<0.000000e+00> : vector<16x32xf32>
    %232 = tpu.matmul %231, %229, %cst_205 {dimension_numbers = #tpu.dot_dimension_numbers<[1], [0], [0], [1], [0, 0, 1, 1], [], []>} : vector<16x8xf32>, vector<8x32xf32>, vector<16x32xf32> -> vector<16x32xf32>
    %233 = arith.addf %226, %232 : vector<16x32xf32>
    %c24 = arith.constant 24 : index
    %c0_206 = arith.constant 0 : index
    %c0_207 = arith.constant 0 : index
    %234 = vector.load %arg7[%c24, %c0_206, %c0_207] : memref<25x128x32xf32, #tpu.memory_space<vmem>>, vector<1x128x32xf32>
    %235 = vector.shape_cast %234 : vector<1x128x32xf32> to vector<128x32xf32>
    %cst_208 = arith.constant dense<0.000000e+00> : vector<8x32xf32>
    %236 = tpu.matmul %66, %235, %cst_208 {dimension_numbers = #tpu.dot_dimension_numbers<[1], [0], [0], [1], [0, 0, 1, 1], [], []>} : vector<8x128xf32>, vector<128x32xf32>, vector<8x32xf32> -> vector<8x32xf32>
    %c24_209 = arith.constant 24 : index
    %c0_210 = arith.constant 0 : index
    %c0_211 = arith.constant 0 : index
    %237 = vector.load %arg8[%c24_209, %c0_210, %c0_211] : memref<25x16x8xf32, #tpu.memory_space<vmem>>, vector<1x16x8xf32>
    %238 = vector.shape_cast %237 : vector<1x16x8xf32> to vector<16x8xf32>
    %cst_212 = arith.constant dense<0.000000e+00> : vector<16x32xf32>
    %239 = tpu.matmul %238, %236, %cst_212 {dimension_numbers = #tpu.dot_dimension_numbers<[1], [0], [0], [1], [0, 0, 1, 1], [], []>} : vector<16x8xf32>, vector<8x32xf32>, vector<16x32xf32> -> vector<16x32xf32>
    %240 = arith.addf %233, %239 : vector<16x32xf32>
    %c0_213 = arith.constant 0 : index
    %c0_214 = arith.constant 0 : index
    %241 = vector.load %arg9[%c0_213, %c0_214] : memref<16x1xf32, #tpu.memory_space<vmem>>, vector<16x1xf32>
    %242 = vector.broadcast %241 : vector<16x1xf32> to vector<16x32xf32>
    %243 = arith.addf %240, %242 : vector<16x32xf32>
    %c0_215 = arith.constant 0 : index
    %c0_216 = arith.constant 0 : index
    %244 = vector.load %arg19[%c0_215, %c0_216] : memref<32x2xf32, #tpu.memory_space<vmem>>, vector<32x2xf32>
    %c0_217 = arith.constant 0 : index
    %c0_218 = arith.constant 0 : index
    %245 = vector.load %arg20[%c0_217, %c0_218] : memref<2x32xf32, #tpu.memory_space<vmem>>, vector<2x32xf32>
    %cst_219 = arith.constant dense<0.000000e+00> : vector<16x2xf32>
    %246 = tpu.matmul %243, %244, %cst_219 {dimension_numbers = #tpu.dot_dimension_numbers<[1], [0], [0], [1], [0, 0, 1, 1], [], []>} : vector<16x32xf32>, vector<32x2xf32>, vector<16x2xf32> -> vector<16x2xf32>
    %247 = arith.mulf %243, %243 : vector<16x32xf32>
    %cst_220 = arith.constant dense<0.000000e+00> : vector<16x2xf32>
    %248 = tpu.matmul %247, %244, %cst_220 {dimension_numbers = #tpu.dot_dimension_numbers<[1], [0], [0], [1], [0, 0, 1, 1], [], []>} : vector<16x32xf32>, vector<32x2xf32>, vector<16x2xf32> -> vector<16x2xf32>
    %249 = arith.mulf %246, %246 : vector<16x2xf32>
    %250 = arith.subf %248, %249 : vector<16x2xf32>
    %cst_221 = arith.constant 9.99999974E-6 : f32
    %251 = vector.broadcast %cst_221 : f32 to vector<16x2xf32>
    %252 = arith.addf %250, %251 : vector<16x2xf32>
    %253 = math.rsqrt %252 : vector<16x2xf32>
    %cst_222 = arith.constant dense<0.000000e+00> : vector<16x32xf32>
    %254 = tpu.matmul %246, %245, %cst_222 {dimension_numbers = #tpu.dot_dimension_numbers<[1], [0], [0], [1], [0, 0, 1, 1], [], []>} : vector<16x2xf32>, vector<2x32xf32>, vector<16x32xf32> -> vector<16x32xf32>
    %cst_223 = arith.constant dense<0.000000e+00> : vector<16x32xf32>
    %255 = tpu.matmul %253, %245, %cst_223 {dimension_numbers = #tpu.dot_dimension_numbers<[1], [0], [0], [1], [0, 0, 1, 1], [], []>} : vector<16x2xf32>, vector<2x32xf32>, vector<16x32xf32> -> vector<16x32xf32>
    %256 = arith.subf %243, %254 : vector<16x32xf32>
    %257 = arith.mulf %256, %255 : vector<16x32xf32>
    %cst_224 = arith.constant 5.000000e-01 : f32
    %258 = vector.broadcast %cst_224 : f32 to vector<16x32xf32>
    %259 = arith.mulf %258, %257 : vector<16x32xf32>
    %cst_225 = arith.constant 0.707106769 : f32
    %260 = vector.broadcast %cst_225 : f32 to vector<16x32xf32>
    %261 = arith.mulf %257, %260 : vector<16x32xf32>
    %262 = math.absf %261 : vector<16x32xf32>
    %cst_226 = arith.constant 0.327591091 : f32
    %263 = vector.broadcast %cst_226 : f32 to vector<16x32xf32>
    %264 = arith.mulf %263, %262 : vector<16x32xf32>
    %cst_227 = arith.constant 1.000000e+00 : f32
    %265 = vector.broadcast %cst_227 : f32 to vector<16x32xf32>
    %266 = arith.addf %265, %264 : vector<16x32xf32>
    %cst_228 = arith.constant 1.000000e+00 : f32
    %267 = vector.broadcast %cst_228 : f32 to vector<16x32xf32>
    %268 = arith.divf %267, %266 : vector<16x32xf32>
    %cst_229 = arith.constant 1.06140542 : f32
    %269 = vector.broadcast %cst_229 : f32 to vector<16x32xf32>
    %270 = arith.mulf %269, %268 : vector<16x32xf32>
    %cst_230 = arith.constant -1.45315206 : f32
    %271 = vector.broadcast %cst_230 : f32 to vector<16x32xf32>
    %272 = arith.addf %270, %271 : vector<16x32xf32>
    %273 = arith.mulf %272, %268 : vector<16x32xf32>
    %cst_231 = arith.constant 1.42141378 : f32
    %274 = vector.broadcast %cst_231 : f32 to vector<16x32xf32>
    %275 = arith.addf %273, %274 : vector<16x32xf32>
    %276 = arith.mulf %275, %268 : vector<16x32xf32>
    %cst_232 = arith.constant -0.284496725 : f32
    %277 = vector.broadcast %cst_232 : f32 to vector<16x32xf32>
    %278 = arith.addf %276, %277 : vector<16x32xf32>
    %279 = arith.mulf %278, %268 : vector<16x32xf32>
    %cst_233 = arith.constant 0.254829586 : f32
    %280 = vector.broadcast %cst_233 : f32 to vector<16x32xf32>
    %281 = arith.addf %279, %280 : vector<16x32xf32>
    %282 = arith.mulf %281, %268 : vector<16x32xf32>
    %cst_234 = arith.constant 0.000000e+00 : f32
    %283 = vector.broadcast %cst_234 : f32 to vector<16x32xf32>
    %284 = arith.subf %283, %262 : vector<16x32xf32>
    %285 = arith.mulf %284, %262 : vector<16x32xf32>
    %286 = math.exp %285 : vector<16x32xf32>
    %287 = arith.mulf %282, %286 : vector<16x32xf32>
    %cst_235 = arith.constant 1.000000e+00 : f32
    %288 = vector.broadcast %cst_235 : f32 to vector<16x32xf32>
    %289 = arith.subf %288, %287 : vector<16x32xf32>
    %cst_236 = arith.constant 0.000000e+00 : f32
    %290 = vector.broadcast %cst_236 : f32 to vector<16x32xf32>
    %291 = arith.cmpf oge, %261, %290 : vector<16x32xf32>
    %cst_237 = arith.constant 0.000000e+00 : f32
    %292 = vector.broadcast %cst_237 : f32 to vector<16x32xf32>
    %293 = arith.subf %292, %289 : vector<16x32xf32>
    %294 = arith.select %291, %289, %293 : vector<16x32xi1>, vector<16x32xf32>
    %cst_238 = arith.constant 1.000000e+00 : f32
    %295 = vector.broadcast %cst_238 : f32 to vector<16x32xf32>
    %296 = arith.addf %295, %294 : vector<16x32xf32>
    %297 = arith.mulf %259, %296 : vector<16x32xf32>
    %c0_239 = arith.constant 0 : index
    %c0_240 = arith.constant 0 : index
    %298 = vector.load %arg10[%c0_239, %c0_240] : memref<16x16xf32, #tpu.memory_space<vmem>>, vector<16x16xf32>
    %cst_241 = arith.constant dense<0.000000e+00> : vector<16x32xf32>
    %299 = tpu.matmul %298, %297, %cst_241 {dimension_numbers = #tpu.dot_dimension_numbers<[1], [0], [0], [1], [0, 0, 1, 1], [], []>} : vector<16x16xf32>, vector<16x32xf32>, vector<16x32xf32> -> vector<16x32xf32>
    %c0_242 = arith.constant 0 : index
    %c0_243 = arith.constant 0 : index
    %300 = vector.load %arg11[%c0_242, %c0_243] : memref<16x1xf32, #tpu.memory_space<vmem>>, vector<16x1xf32>
    %301 = vector.broadcast %300 : vector<16x1xf32> to vector<16x32xf32>
    %302 = arith.addf %299, %301 : vector<16x32xf32>
    %c0_244 = arith.constant 0 : index
    %c0_245 = arith.constant 0 : index
    %c0_246 = arith.constant 0 : index
    %303 = vector.load %arg13[%c0_244, %c0_245, %c0_246] : memref<25x32x16xf32, #tpu.memory_space<vmem>>, vector<1x32x16xf32>
    %304 = vector.shape_cast %303 : vector<1x32x16xf32> to vector<32x16xf32>
    %c0_247 = arith.constant 0 : index
    %c0_248 = arith.constant 0 : index
    %c0_249 = arith.constant 0 : index
    %305 = vector.load %arg12[%c0_247, %c0_248, %c0_249] : memref<25x32x8xf32, #tpu.memory_space<vmem>>, vector<1x32x8xf32>
    %306 = vector.shape_cast %305 : vector<1x32x8xf32> to vector<32x8xf32>
    %cst_250 = arith.constant dense<0.000000e+00> : vector<16x8xf32>
    %307 = tpu.matmul %302, %306, %cst_250 {dimension_numbers = #tpu.dot_dimension_numbers<[1], [0], [0], [1], [0, 0, 1, 1], [], []>} : vector<16x32xf32>, vector<32x8xf32>, vector<16x8xf32> -> vector<16x8xf32>
    %cst_251 = arith.constant dense<0.000000e+00> : vector<32x8xf32>
    %308 = tpu.matmul %304, %307, %cst_251 {dimension_numbers = #tpu.dot_dimension_numbers<[1], [0], [0], [1], [0, 0, 1, 1], [], []>} : vector<32x16xf32>, vector<16x8xf32>, vector<32x8xf32> -> vector<32x8xf32>
    %c1_252 = arith.constant 1 : index
    %c0_253 = arith.constant 0 : index
    %c0_254 = arith.constant 0 : index
    %309 = vector.load %arg12[%c1_252, %c0_253, %c0_254] : memref<25x32x8xf32, #tpu.memory_space<vmem>>, vector<1x32x8xf32>
    %310 = vector.shape_cast %309 : vector<1x32x8xf32> to vector<32x8xf32>
    %cst_255 = arith.constant dense<0.000000e+00> : vector<16x8xf32>
    %311 = tpu.matmul %302, %310, %cst_255 {dimension_numbers = #tpu.dot_dimension_numbers<[1], [0], [0], [1], [0, 0, 1, 1], [], []>} : vector<16x32xf32>, vector<32x8xf32>, vector<16x8xf32> -> vector<16x8xf32>
    %c1_256 = arith.constant 1 : index
    %c0_257 = arith.constant 0 : index
    %c0_258 = arith.constant 0 : index
    %312 = vector.load %arg13[%c1_256, %c0_257, %c0_258] : memref<25x32x16xf32, #tpu.memory_space<vmem>>, vector<1x32x16xf32>
    %313 = vector.shape_cast %312 : vector<1x32x16xf32> to vector<32x16xf32>
    %cst_259 = arith.constant dense<0.000000e+00> : vector<32x8xf32>
    %314 = tpu.matmul %313, %311, %cst_259 {dimension_numbers = #tpu.dot_dimension_numbers<[1], [0], [0], [1], [0, 0, 1, 1], [], []>} : vector<32x16xf32>, vector<16x8xf32>, vector<32x8xf32> -> vector<32x8xf32>
    %315 = arith.addf %308, %314 : vector<32x8xf32>
    %c2_260 = arith.constant 2 : index
    %c0_261 = arith.constant 0 : index
    %c0_262 = arith.constant 0 : index
    %316 = vector.load %arg12[%c2_260, %c0_261, %c0_262] : memref<25x32x8xf32, #tpu.memory_space<vmem>>, vector<1x32x8xf32>
    %317 = vector.shape_cast %316 : vector<1x32x8xf32> to vector<32x8xf32>
    %cst_263 = arith.constant dense<0.000000e+00> : vector<16x8xf32>
    %318 = tpu.matmul %302, %317, %cst_263 {dimension_numbers = #tpu.dot_dimension_numbers<[1], [0], [0], [1], [0, 0, 1, 1], [], []>} : vector<16x32xf32>, vector<32x8xf32>, vector<16x8xf32> -> vector<16x8xf32>
    %c2_264 = arith.constant 2 : index
    %c0_265 = arith.constant 0 : index
    %c0_266 = arith.constant 0 : index
    %319 = vector.load %arg13[%c2_264, %c0_265, %c0_266] : memref<25x32x16xf32, #tpu.memory_space<vmem>>, vector<1x32x16xf32>
    %320 = vector.shape_cast %319 : vector<1x32x16xf32> to vector<32x16xf32>
    %cst_267 = arith.constant dense<0.000000e+00> : vector<32x8xf32>
    %321 = tpu.matmul %320, %318, %cst_267 {dimension_numbers = #tpu.dot_dimension_numbers<[1], [0], [0], [1], [0, 0, 1, 1], [], []>} : vector<32x16xf32>, vector<16x8xf32>, vector<32x8xf32> -> vector<32x8xf32>
    %322 = arith.addf %315, %321 : vector<32x8xf32>
    %c3_268 = arith.constant 3 : index
    %c0_269 = arith.constant 0 : index
    %c0_270 = arith.constant 0 : index
    %323 = vector.load %arg12[%c3_268, %c0_269, %c0_270] : memref<25x32x8xf32, #tpu.memory_space<vmem>>, vector<1x32x8xf32>
    %324 = vector.shape_cast %323 : vector<1x32x8xf32> to vector<32x8xf32>
    %cst_271 = arith.constant dense<0.000000e+00> : vector<16x8xf32>
    %325 = tpu.matmul %302, %324, %cst_271 {dimension_numbers = #tpu.dot_dimension_numbers<[1], [0], [0], [1], [0, 0, 1, 1], [], []>} : vector<16x32xf32>, vector<32x8xf32>, vector<16x8xf32> -> vector<16x8xf32>
    %c3_272 = arith.constant 3 : index
    %c0_273 = arith.constant 0 : index
    %c0_274 = arith.constant 0 : index
    %326 = vector.load %arg13[%c3_272, %c0_273, %c0_274] : memref<25x32x16xf32, #tpu.memory_space<vmem>>, vector<1x32x16xf32>
    %327 = vector.shape_cast %326 : vector<1x32x16xf32> to vector<32x16xf32>
    %cst_275 = arith.constant dense<0.000000e+00> : vector<32x8xf32>
    %328 = tpu.matmul %327, %325, %cst_275 {dimension_numbers = #tpu.dot_dimension_numbers<[1], [0], [0], [1], [0, 0, 1, 1], [], []>} : vector<32x16xf32>, vector<16x8xf32>, vector<32x8xf32> -> vector<32x8xf32>
    %329 = arith.addf %322, %328 : vector<32x8xf32>
    %c4_276 = arith.constant 4 : index
    %c0_277 = arith.constant 0 : index
    %c0_278 = arith.constant 0 : index
    %330 = vector.load %arg12[%c4_276, %c0_277, %c0_278] : memref<25x32x8xf32, #tpu.memory_space<vmem>>, vector<1x32x8xf32>
    %331 = vector.shape_cast %330 : vector<1x32x8xf32> to vector<32x8xf32>
    %cst_279 = arith.constant dense<0.000000e+00> : vector<16x8xf32>
    %332 = tpu.matmul %302, %331, %cst_279 {dimension_numbers = #tpu.dot_dimension_numbers<[1], [0], [0], [1], [0, 0, 1, 1], [], []>} : vector<16x32xf32>, vector<32x8xf32>, vector<16x8xf32> -> vector<16x8xf32>
    %c4_280 = arith.constant 4 : index
    %c0_281 = arith.constant 0 : index
    %c0_282 = arith.constant 0 : index
    %333 = vector.load %arg13[%c4_280, %c0_281, %c0_282] : memref<25x32x16xf32, #tpu.memory_space<vmem>>, vector<1x32x16xf32>
    %334 = vector.shape_cast %333 : vector<1x32x16xf32> to vector<32x16xf32>
    %cst_283 = arith.constant dense<0.000000e+00> : vector<32x8xf32>
    %335 = tpu.matmul %334, %332, %cst_283 {dimension_numbers = #tpu.dot_dimension_numbers<[1], [0], [0], [1], [0, 0, 1, 1], [], []>} : vector<32x16xf32>, vector<16x8xf32>, vector<32x8xf32> -> vector<32x8xf32>
    %336 = arith.addf %329, %335 : vector<32x8xf32>
    %c5_284 = arith.constant 5 : index
    %c0_285 = arith.constant 0 : index
    %c0_286 = arith.constant 0 : index
    %337 = vector.load %arg12[%c5_284, %c0_285, %c0_286] : memref<25x32x8xf32, #tpu.memory_space<vmem>>, vector<1x32x8xf32>
    %338 = vector.shape_cast %337 : vector<1x32x8xf32> to vector<32x8xf32>
    %cst_287 = arith.constant dense<0.000000e+00> : vector<16x8xf32>
    %339 = tpu.matmul %302, %338, %cst_287 {dimension_numbers = #tpu.dot_dimension_numbers<[1], [0], [0], [1], [0, 0, 1, 1], [], []>} : vector<16x32xf32>, vector<32x8xf32>, vector<16x8xf32> -> vector<16x8xf32>
    %c5_288 = arith.constant 5 : index
    %c0_289 = arith.constant 0 : index
    %c0_290 = arith.constant 0 : index
    %340 = vector.load %arg13[%c5_288, %c0_289, %c0_290] : memref<25x32x16xf32, #tpu.memory_space<vmem>>, vector<1x32x16xf32>
    %341 = vector.shape_cast %340 : vector<1x32x16xf32> to vector<32x16xf32>
    %cst_291 = arith.constant dense<0.000000e+00> : vector<32x8xf32>
    %342 = tpu.matmul %341, %339, %cst_291 {dimension_numbers = #tpu.dot_dimension_numbers<[1], [0], [0], [1], [0, 0, 1, 1], [], []>} : vector<32x16xf32>, vector<16x8xf32>, vector<32x8xf32> -> vector<32x8xf32>
    %343 = arith.addf %336, %342 : vector<32x8xf32>
    %c6_292 = arith.constant 6 : index
    %c0_293 = arith.constant 0 : index
    %c0_294 = arith.constant 0 : index
    %344 = vector.load %arg12[%c6_292, %c0_293, %c0_294] : memref<25x32x8xf32, #tpu.memory_space<vmem>>, vector<1x32x8xf32>
    %345 = vector.shape_cast %344 : vector<1x32x8xf32> to vector<32x8xf32>
    %cst_295 = arith.constant dense<0.000000e+00> : vector<16x8xf32>
    %346 = tpu.matmul %302, %345, %cst_295 {dimension_numbers = #tpu.dot_dimension_numbers<[1], [0], [0], [1], [0, 0, 1, 1], [], []>} : vector<16x32xf32>, vector<32x8xf32>, vector<16x8xf32> -> vector<16x8xf32>
    %c6_296 = arith.constant 6 : index
    %c0_297 = arith.constant 0 : index
    %c0_298 = arith.constant 0 : index
    %347 = vector.load %arg13[%c6_296, %c0_297, %c0_298] : memref<25x32x16xf32, #tpu.memory_space<vmem>>, vector<1x32x16xf32>
    %348 = vector.shape_cast %347 : vector<1x32x16xf32> to vector<32x16xf32>
    %cst_299 = arith.constant dense<0.000000e+00> : vector<32x8xf32>
    %349 = tpu.matmul %348, %346, %cst_299 {dimension_numbers = #tpu.dot_dimension_numbers<[1], [0], [0], [1], [0, 0, 1, 1], [], []>} : vector<32x16xf32>, vector<16x8xf32>, vector<32x8xf32> -> vector<32x8xf32>
    %350 = arith.addf %343, %349 : vector<32x8xf32>
    %c7_300 = arith.constant 7 : index
    %c0_301 = arith.constant 0 : index
    %c0_302 = arith.constant 0 : index
    %351 = vector.load %arg12[%c7_300, %c0_301, %c0_302] : memref<25x32x8xf32, #tpu.memory_space<vmem>>, vector<1x32x8xf32>
    %352 = vector.shape_cast %351 : vector<1x32x8xf32> to vector<32x8xf32>
    %cst_303 = arith.constant dense<0.000000e+00> : vector<16x8xf32>
    %353 = tpu.matmul %302, %352, %cst_303 {dimension_numbers = #tpu.dot_dimension_numbers<[1], [0], [0], [1], [0, 0, 1, 1], [], []>} : vector<16x32xf32>, vector<32x8xf32>, vector<16x8xf32> -> vector<16x8xf32>
    %c7_304 = arith.constant 7 : index
    %c0_305 = arith.constant 0 : index
    %c0_306 = arith.constant 0 : index
    %354 = vector.load %arg13[%c7_304, %c0_305, %c0_306] : memref<25x32x16xf32, #tpu.memory_space<vmem>>, vector<1x32x16xf32>
    %355 = vector.shape_cast %354 : vector<1x32x16xf32> to vector<32x16xf32>
    %cst_307 = arith.constant dense<0.000000e+00> : vector<32x8xf32>
    %356 = tpu.matmul %355, %353, %cst_307 {dimension_numbers = #tpu.dot_dimension_numbers<[1], [0], [0], [1], [0, 0, 1, 1], [], []>} : vector<32x16xf32>, vector<16x8xf32>, vector<32x8xf32> -> vector<32x8xf32>
    %357 = arith.addf %350, %356 : vector<32x8xf32>
    %c8_308 = arith.constant 8 : index
    %c0_309 = arith.constant 0 : index
    %c0_310 = arith.constant 0 : index
    %358 = vector.load %arg12[%c8_308, %c0_309, %c0_310] : memref<25x32x8xf32, #tpu.memory_space<vmem>>, vector<1x32x8xf32>
    %359 = vector.shape_cast %358 : vector<1x32x8xf32> to vector<32x8xf32>
    %cst_311 = arith.constant dense<0.000000e+00> : vector<16x8xf32>
    %360 = tpu.matmul %302, %359, %cst_311 {dimension_numbers = #tpu.dot_dimension_numbers<[1], [0], [0], [1], [0, 0, 1, 1], [], []>} : vector<16x32xf32>, vector<32x8xf32>, vector<16x8xf32> -> vector<16x8xf32>
    %c8_312 = arith.constant 8 : index
    %c0_313 = arith.constant 0 : index
    %c0_314 = arith.constant 0 : index
    %361 = vector.load %arg13[%c8_312, %c0_313, %c0_314] : memref<25x32x16xf32, #tpu.memory_space<vmem>>, vector<1x32x16xf32>
    %362 = vector.shape_cast %361 : vector<1x32x16xf32> to vector<32x16xf32>
    %cst_315 = arith.constant dense<0.000000e+00> : vector<32x8xf32>
    %363 = tpu.matmul %362, %360, %cst_315 {dimension_numbers = #tpu.dot_dimension_numbers<[1], [0], [0], [1], [0, 0, 1, 1], [], []>} : vector<32x16xf32>, vector<16x8xf32>, vector<32x8xf32> -> vector<32x8xf32>
    %364 = arith.addf %357, %363 : vector<32x8xf32>
    %c9_316 = arith.constant 9 : index
    %c0_317 = arith.constant 0 : index
    %c0_318 = arith.constant 0 : index
    %365 = vector.load %arg12[%c9_316, %c0_317, %c0_318] : memref<25x32x8xf32, #tpu.memory_space<vmem>>, vector<1x32x8xf32>
    %366 = vector.shape_cast %365 : vector<1x32x8xf32> to vector<32x8xf32>
    %cst_319 = arith.constant dense<0.000000e+00> : vector<16x8xf32>
    %367 = tpu.matmul %302, %366, %cst_319 {dimension_numbers = #tpu.dot_dimension_numbers<[1], [0], [0], [1], [0, 0, 1, 1], [], []>} : vector<16x32xf32>, vector<32x8xf32>, vector<16x8xf32> -> vector<16x8xf32>
    %c9_320 = arith.constant 9 : index
    %c0_321 = arith.constant 0 : index
    %c0_322 = arith.constant 0 : index
    %368 = vector.load %arg13[%c9_320, %c0_321, %c0_322] : memref<25x32x16xf32, #tpu.memory_space<vmem>>, vector<1x32x16xf32>
    %369 = vector.shape_cast %368 : vector<1x32x16xf32> to vector<32x16xf32>
    %cst_323 = arith.constant dense<0.000000e+00> : vector<32x8xf32>
    %370 = tpu.matmul %369, %367, %cst_323 {dimension_numbers = #tpu.dot_dimension_numbers<[1], [0], [0], [1], [0, 0, 1, 1], [], []>} : vector<32x16xf32>, vector<16x8xf32>, vector<32x8xf32> -> vector<32x8xf32>
    %371 = arith.addf %364, %370 : vector<32x8xf32>
    %c10_324 = arith.constant 10 : index
    %c0_325 = arith.constant 0 : index
    %c0_326 = arith.constant 0 : index
    %372 = vector.load %arg12[%c10_324, %c0_325, %c0_326] : memref<25x32x8xf32, #tpu.memory_space<vmem>>, vector<1x32x8xf32>
    %373 = vector.shape_cast %372 : vector<1x32x8xf32> to vector<32x8xf32>
    %cst_327 = arith.constant dense<0.000000e+00> : vector<16x8xf32>
    %374 = tpu.matmul %302, %373, %cst_327 {dimension_numbers = #tpu.dot_dimension_numbers<[1], [0], [0], [1], [0, 0, 1, 1], [], []>} : vector<16x32xf32>, vector<32x8xf32>, vector<16x8xf32> -> vector<16x8xf32>
    %c10_328 = arith.constant 10 : index
    %c0_329 = arith.constant 0 : index
    %c0_330 = arith.constant 0 : index
    %375 = vector.load %arg13[%c10_328, %c0_329, %c0_330] : memref<25x32x16xf32, #tpu.memory_space<vmem>>, vector<1x32x16xf32>
    %376 = vector.shape_cast %375 : vector<1x32x16xf32> to vector<32x16xf32>
    %cst_331 = arith.constant dense<0.000000e+00> : vector<32x8xf32>
    %377 = tpu.matmul %376, %374, %cst_331 {dimension_numbers = #tpu.dot_dimension_numbers<[1], [0], [0], [1], [0, 0, 1, 1], [], []>} : vector<32x16xf32>, vector<16x8xf32>, vector<32x8xf32> -> vector<32x8xf32>
    %378 = arith.addf %371, %377 : vector<32x8xf32>
    %c11_332 = arith.constant 11 : index
    %c0_333 = arith.constant 0 : index
    %c0_334 = arith.constant 0 : index
    %379 = vector.load %arg12[%c11_332, %c0_333, %c0_334] : memref<25x32x8xf32, #tpu.memory_space<vmem>>, vector<1x32x8xf32>
    %380 = vector.shape_cast %379 : vector<1x32x8xf32> to vector<32x8xf32>
    %cst_335 = arith.constant dense<0.000000e+00> : vector<16x8xf32>
    %381 = tpu.matmul %302, %380, %cst_335 {dimension_numbers = #tpu.dot_dimension_numbers<[1], [0], [0], [1], [0, 0, 1, 1], [], []>} : vector<16x32xf32>, vector<32x8xf32>, vector<16x8xf32> -> vector<16x8xf32>
    %c11_336 = arith.constant 11 : index
    %c0_337 = arith.constant 0 : index
    %c0_338 = arith.constant 0 : index
    %382 = vector.load %arg13[%c11_336, %c0_337, %c0_338] : memref<25x32x16xf32, #tpu.memory_space<vmem>>, vector<1x32x16xf32>
    %383 = vector.shape_cast %382 : vector<1x32x16xf32> to vector<32x16xf32>
    %cst_339 = arith.constant dense<0.000000e+00> : vector<32x8xf32>
    %384 = tpu.matmul %383, %381, %cst_339 {dimension_numbers = #tpu.dot_dimension_numbers<[1], [0], [0], [1], [0, 0, 1, 1], [], []>} : vector<32x16xf32>, vector<16x8xf32>, vector<32x8xf32> -> vector<32x8xf32>
    %385 = arith.addf %378, %384 : vector<32x8xf32>
    %c12_340 = arith.constant 12 : index
    %c0_341 = arith.constant 0 : index
    %c0_342 = arith.constant 0 : index
    %386 = vector.load %arg12[%c12_340, %c0_341, %c0_342] : memref<25x32x8xf32, #tpu.memory_space<vmem>>, vector<1x32x8xf32>
    %387 = vector.shape_cast %386 : vector<1x32x8xf32> to vector<32x8xf32>
    %cst_343 = arith.constant dense<0.000000e+00> : vector<16x8xf32>
    %388 = tpu.matmul %302, %387, %cst_343 {dimension_numbers = #tpu.dot_dimension_numbers<[1], [0], [0], [1], [0, 0, 1, 1], [], []>} : vector<16x32xf32>, vector<32x8xf32>, vector<16x8xf32> -> vector<16x8xf32>
    %c12_344 = arith.constant 12 : index
    %c0_345 = arith.constant 0 : index
    %c0_346 = arith.constant 0 : index
    %389 = vector.load %arg13[%c12_344, %c0_345, %c0_346] : memref<25x32x16xf32, #tpu.memory_space<vmem>>, vector<1x32x16xf32>
    %390 = vector.shape_cast %389 : vector<1x32x16xf32> to vector<32x16xf32>
    %cst_347 = arith.constant dense<0.000000e+00> : vector<32x8xf32>
    %391 = tpu.matmul %390, %388, %cst_347 {dimension_numbers = #tpu.dot_dimension_numbers<[1], [0], [0], [1], [0, 0, 1, 1], [], []>} : vector<32x16xf32>, vector<16x8xf32>, vector<32x8xf32> -> vector<32x8xf32>
    %392 = arith.addf %385, %391 : vector<32x8xf32>
    %c13_348 = arith.constant 13 : index
    %c0_349 = arith.constant 0 : index
    %c0_350 = arith.constant 0 : index
    %393 = vector.load %arg12[%c13_348, %c0_349, %c0_350] : memref<25x32x8xf32, #tpu.memory_space<vmem>>, vector<1x32x8xf32>
    %394 = vector.shape_cast %393 : vector<1x32x8xf32> to vector<32x8xf32>
    %cst_351 = arith.constant dense<0.000000e+00> : vector<16x8xf32>
    %395 = tpu.matmul %302, %394, %cst_351 {dimension_numbers = #tpu.dot_dimension_numbers<[1], [0], [0], [1], [0, 0, 1, 1], [], []>} : vector<16x32xf32>, vector<32x8xf32>, vector<16x8xf32> -> vector<16x8xf32>
    %c13_352 = arith.constant 13 : index
    %c0_353 = arith.constant 0 : index
    %c0_354 = arith.constant 0 : index
    %396 = vector.load %arg13[%c13_352, %c0_353, %c0_354] : memref<25x32x16xf32, #tpu.memory_space<vmem>>, vector<1x32x16xf32>
    %397 = vector.shape_cast %396 : vector<1x32x16xf32> to vector<32x16xf32>
    %cst_355 = arith.constant dense<0.000000e+00> : vector<32x8xf32>
    %398 = tpu.matmul %397, %395, %cst_355 {dimension_numbers = #tpu.dot_dimension_numbers<[1], [0], [0], [1], [0, 0, 1, 1], [], []>} : vector<32x16xf32>, vector<16x8xf32>, vector<32x8xf32> -> vector<32x8xf32>
    %399 = arith.addf %392, %398 : vector<32x8xf32>
    %c14_356 = arith.constant 14 : index
    %c0_357 = arith.constant 0 : index
    %c0_358 = arith.constant 0 : index
    %400 = vector.load %arg12[%c14_356, %c0_357, %c0_358] : memref<25x32x8xf32, #tpu.memory_space<vmem>>, vector<1x32x8xf32>
    %401 = vector.shape_cast %400 : vector<1x32x8xf32> to vector<32x8xf32>
    %cst_359 = arith.constant dense<0.000000e+00> : vector<16x8xf32>
    %402 = tpu.matmul %302, %401, %cst_359 {dimension_numbers = #tpu.dot_dimension_numbers<[1], [0], [0], [1], [0, 0, 1, 1], [], []>} : vector<16x32xf32>, vector<32x8xf32>, vector<16x8xf32> -> vector<16x8xf32>
    %c14_360 = arith.constant 14 : index
    %c0_361 = arith.constant 0 : index
    %c0_362 = arith.constant 0 : index
    %403 = vector.load %arg13[%c14_360, %c0_361, %c0_362] : memref<25x32x16xf32, #tpu.memory_space<vmem>>, vector<1x32x16xf32>
    %404 = vector.shape_cast %403 : vector<1x32x16xf32> to vector<32x16xf32>
    %cst_363 = arith.constant dense<0.000000e+00> : vector<32x8xf32>
    %405 = tpu.matmul %404, %402, %cst_363 {dimension_numbers = #tpu.dot_dimension_numbers<[1], [0], [0], [1], [0, 0, 1, 1], [], []>} : vector<32x16xf32>, vector<16x8xf32>, vector<32x8xf32> -> vector<32x8xf32>
    %406 = arith.addf %399, %405 : vector<32x8xf32>
    %c15_364 = arith.constant 15 : index
    %c0_365 = arith.constant 0 : index
    %c0_366 = arith.constant 0 : index
    %407 = vector.load %arg12[%c15_364, %c0_365, %c0_366] : memref<25x32x8xf32, #tpu.memory_space<vmem>>, vector<1x32x8xf32>
    %408 = vector.shape_cast %407 : vector<1x32x8xf32> to vector<32x8xf32>
    %cst_367 = arith.constant dense<0.000000e+00> : vector<16x8xf32>
    %409 = tpu.matmul %302, %408, %cst_367 {dimension_numbers = #tpu.dot_dimension_numbers<[1], [0], [0], [1], [0, 0, 1, 1], [], []>} : vector<16x32xf32>, vector<32x8xf32>, vector<16x8xf32> -> vector<16x8xf32>
    %c15_368 = arith.constant 15 : index
    %c0_369 = arith.constant 0 : index
    %c0_370 = arith.constant 0 : index
    %410 = vector.load %arg13[%c15_368, %c0_369, %c0_370] : memref<25x32x16xf32, #tpu.memory_space<vmem>>, vector<1x32x16xf32>
    %411 = vector.shape_cast %410 : vector<1x32x16xf32> to vector<32x16xf32>
    %cst_371 = arith.constant dense<0.000000e+00> : vector<32x8xf32>
    %412 = tpu.matmul %411, %409, %cst_371 {dimension_numbers = #tpu.dot_dimension_numbers<[1], [0], [0], [1], [0, 0, 1, 1], [], []>} : vector<32x16xf32>, vector<16x8xf32>, vector<32x8xf32> -> vector<32x8xf32>
    %413 = arith.addf %406, %412 : vector<32x8xf32>
    %c16_372 = arith.constant 16 : index
    %c0_373 = arith.constant 0 : index
    %c0_374 = arith.constant 0 : index
    %414 = vector.load %arg12[%c16_372, %c0_373, %c0_374] : memref<25x32x8xf32, #tpu.memory_space<vmem>>, vector<1x32x8xf32>
    %415 = vector.shape_cast %414 : vector<1x32x8xf32> to vector<32x8xf32>
    %cst_375 = arith.constant dense<0.000000e+00> : vector<16x8xf32>
    %416 = tpu.matmul %302, %415, %cst_375 {dimension_numbers = #tpu.dot_dimension_numbers<[1], [0], [0], [1], [0, 0, 1, 1], [], []>} : vector<16x32xf32>, vector<32x8xf32>, vector<16x8xf32> -> vector<16x8xf32>
    %c16_376 = arith.constant 16 : index
    %c0_377 = arith.constant 0 : index
    %c0_378 = arith.constant 0 : index
    %417 = vector.load %arg13[%c16_376, %c0_377, %c0_378] : memref<25x32x16xf32, #tpu.memory_space<vmem>>, vector<1x32x16xf32>
    %418 = vector.shape_cast %417 : vector<1x32x16xf32> to vector<32x16xf32>
    %cst_379 = arith.constant dense<0.000000e+00> : vector<32x8xf32>
    %419 = tpu.matmul %418, %416, %cst_379 {dimension_numbers = #tpu.dot_dimension_numbers<[1], [0], [0], [1], [0, 0, 1, 1], [], []>} : vector<32x16xf32>, vector<16x8xf32>, vector<32x8xf32> -> vector<32x8xf32>
    %420 = arith.addf %413, %419 : vector<32x8xf32>
    %c17_380 = arith.constant 17 : index
    %c0_381 = arith.constant 0 : index
    %c0_382 = arith.constant 0 : index
    %421 = vector.load %arg12[%c17_380, %c0_381, %c0_382] : memref<25x32x8xf32, #tpu.memory_space<vmem>>, vector<1x32x8xf32>
    %422 = vector.shape_cast %421 : vector<1x32x8xf32> to vector<32x8xf32>
    %cst_383 = arith.constant dense<0.000000e+00> : vector<16x8xf32>
    %423 = tpu.matmul %302, %422, %cst_383 {dimension_numbers = #tpu.dot_dimension_numbers<[1], [0], [0], [1], [0, 0, 1, 1], [], []>} : vector<16x32xf32>, vector<32x8xf32>, vector<16x8xf32> -> vector<16x8xf32>
    %c17_384 = arith.constant 17 : index
    %c0_385 = arith.constant 0 : index
    %c0_386 = arith.constant 0 : index
    %424 = vector.load %arg13[%c17_384, %c0_385, %c0_386] : memref<25x32x16xf32, #tpu.memory_space<vmem>>, vector<1x32x16xf32>
    %425 = vector.shape_cast %424 : vector<1x32x16xf32> to vector<32x16xf32>
    %cst_387 = arith.constant dense<0.000000e+00> : vector<32x8xf32>
    %426 = tpu.matmul %425, %423, %cst_387 {dimension_numbers = #tpu.dot_dimension_numbers<[1], [0], [0], [1], [0, 0, 1, 1], [], []>} : vector<32x16xf32>, vector<16x8xf32>, vector<32x8xf32> -> vector<32x8xf32>
    %427 = arith.addf %420, %426 : vector<32x8xf32>
    %c18_388 = arith.constant 18 : index
    %c0_389 = arith.constant 0 : index
    %c0_390 = arith.constant 0 : index
    %428 = vector.load %arg12[%c18_388, %c0_389, %c0_390] : memref<25x32x8xf32, #tpu.memory_space<vmem>>, vector<1x32x8xf32>
    %429 = vector.shape_cast %428 : vector<1x32x8xf32> to vector<32x8xf32>
    %cst_391 = arith.constant dense<0.000000e+00> : vector<16x8xf32>
    %430 = tpu.matmul %302, %429, %cst_391 {dimension_numbers = #tpu.dot_dimension_numbers<[1], [0], [0], [1], [0, 0, 1, 1], [], []>} : vector<16x32xf32>, vector<32x8xf32>, vector<16x8xf32> -> vector<16x8xf32>
    %c18_392 = arith.constant 18 : index
    %c0_393 = arith.constant 0 : index
    %c0_394 = arith.constant 0 : index
    %431 = vector.load %arg13[%c18_392, %c0_393, %c0_394] : memref<25x32x16xf32, #tpu.memory_space<vmem>>, vector<1x32x16xf32>
    %432 = vector.shape_cast %431 : vector<1x32x16xf32> to vector<32x16xf32>
    %cst_395 = arith.constant dense<0.000000e+00> : vector<32x8xf32>
    %433 = tpu.matmul %432, %430, %cst_395 {dimension_numbers = #tpu.dot_dimension_numbers<[1], [0], [0], [1], [0, 0, 1, 1], [], []>} : vector<32x16xf32>, vector<16x8xf32>, vector<32x8xf32> -> vector<32x8xf32>
    %434 = arith.addf %427, %433 : vector<32x8xf32>
    %c19_396 = arith.constant 19 : index
    %c0_397 = arith.constant 0 : index
    %c0_398 = arith.constant 0 : index
    %435 = vector.load %arg12[%c19_396, %c0_397, %c0_398] : memref<25x32x8xf32, #tpu.memory_space<vmem>>, vector<1x32x8xf32>
    %436 = vector.shape_cast %435 : vector<1x32x8xf32> to vector<32x8xf32>
    %cst_399 = arith.constant dense<0.000000e+00> : vector<16x8xf32>
    %437 = tpu.matmul %302, %436, %cst_399 {dimension_numbers = #tpu.dot_dimension_numbers<[1], [0], [0], [1], [0, 0, 1, 1], [], []>} : vector<16x32xf32>, vector<32x8xf32>, vector<16x8xf32> -> vector<16x8xf32>
    %c19_400 = arith.constant 19 : index
    %c0_401 = arith.constant 0 : index
    %c0_402 = arith.constant 0 : index
    %438 = vector.load %arg13[%c19_400, %c0_401, %c0_402] : memref<25x32x16xf32, #tpu.memory_space<vmem>>, vector<1x32x16xf32>
    %439 = vector.shape_cast %438 : vector<1x32x16xf32> to vector<32x16xf32>
    %cst_403 = arith.constant dense<0.000000e+00> : vector<32x8xf32>
    %440 = tpu.matmul %439, %437, %cst_403 {dimension_numbers = #tpu.dot_dimension_numbers<[1], [0], [0], [1], [0, 0, 1, 1], [], []>} : vector<32x16xf32>, vector<16x8xf32>, vector<32x8xf32> -> vector<32x8xf32>
    %441 = arith.addf %434, %440 : vector<32x8xf32>
    %c20_404 = arith.constant 20 : index
    %c0_405 = arith.constant 0 : index
    %c0_406 = arith.constant 0 : index
    %442 = vector.load %arg12[%c20_404, %c0_405, %c0_406] : memref<25x32x8xf32, #tpu.memory_space<vmem>>, vector<1x32x8xf32>
    %443 = vector.shape_cast %442 : vector<1x32x8xf32> to vector<32x8xf32>
    %cst_407 = arith.constant dense<0.000000e+00> : vector<16x8xf32>
    %444 = tpu.matmul %302, %443, %cst_407 {dimension_numbers = #tpu.dot_dimension_numbers<[1], [0], [0], [1], [0, 0, 1, 1], [], []>} : vector<16x32xf32>, vector<32x8xf32>, vector<16x8xf32> -> vector<16x8xf32>
    %c20_408 = arith.constant 20 : index
    %c0_409 = arith.constant 0 : index
    %c0_410 = arith.constant 0 : index
    %445 = vector.load %arg13[%c20_408, %c0_409, %c0_410] : memref<25x32x16xf32, #tpu.memory_space<vmem>>, vector<1x32x16xf32>
    %446 = vector.shape_cast %445 : vector<1x32x16xf32> to vector<32x16xf32>
    %cst_411 = arith.constant dense<0.000000e+00> : vector<32x8xf32>
    %447 = tpu.matmul %446, %444, %cst_411 {dimension_numbers = #tpu.dot_dimension_numbers<[1], [0], [0], [1], [0, 0, 1, 1], [], []>} : vector<32x16xf32>, vector<16x8xf32>, vector<32x8xf32> -> vector<32x8xf32>
    %448 = arith.addf %441, %447 : vector<32x8xf32>
    %c21_412 = arith.constant 21 : index
    %c0_413 = arith.constant 0 : index
    %c0_414 = arith.constant 0 : index
    %449 = vector.load %arg12[%c21_412, %c0_413, %c0_414] : memref<25x32x8xf32, #tpu.memory_space<vmem>>, vector<1x32x8xf32>
    %450 = vector.shape_cast %449 : vector<1x32x8xf32> to vector<32x8xf32>
    %cst_415 = arith.constant dense<0.000000e+00> : vector<16x8xf32>
    %451 = tpu.matmul %302, %450, %cst_415 {dimension_numbers = #tpu.dot_dimension_numbers<[1], [0], [0], [1], [0, 0, 1, 1], [], []>} : vector<16x32xf32>, vector<32x8xf32>, vector<16x8xf32> -> vector<16x8xf32>
    %c21_416 = arith.constant 21 : index
    %c0_417 = arith.constant 0 : index
    %c0_418 = arith.constant 0 : index
    %452 = vector.load %arg13[%c21_416, %c0_417, %c0_418] : memref<25x32x16xf32, #tpu.memory_space<vmem>>, vector<1x32x16xf32>
    %453 = vector.shape_cast %452 : vector<1x32x16xf32> to vector<32x16xf32>
    %cst_419 = arith.constant dense<0.000000e+00> : vector<32x8xf32>
    %454 = tpu.matmul %453, %451, %cst_419 {dimension_numbers = #tpu.dot_dimension_numbers<[1], [0], [0], [1], [0, 0, 1, 1], [], []>} : vector<32x16xf32>, vector<16x8xf32>, vector<32x8xf32> -> vector<32x8xf32>
    %455 = arith.addf %448, %454 : vector<32x8xf32>
    %c22_420 = arith.constant 22 : index
    %c0_421 = arith.constant 0 : index
    %c0_422 = arith.constant 0 : index
    %456 = vector.load %arg12[%c22_420, %c0_421, %c0_422] : memref<25x32x8xf32, #tpu.memory_space<vmem>>, vector<1x32x8xf32>
    %457 = vector.shape_cast %456 : vector<1x32x8xf32> to vector<32x8xf32>
    %cst_423 = arith.constant dense<0.000000e+00> : vector<16x8xf32>
    %458 = tpu.matmul %302, %457, %cst_423 {dimension_numbers = #tpu.dot_dimension_numbers<[1], [0], [0], [1], [0, 0, 1, 1], [], []>} : vector<16x32xf32>, vector<32x8xf32>, vector<16x8xf32> -> vector<16x8xf32>
    %c22_424 = arith.constant 22 : index
    %c0_425 = arith.constant 0 : index
    %c0_426 = arith.constant 0 : index
    %459 = vector.load %arg13[%c22_424, %c0_425, %c0_426] : memref<25x32x16xf32, #tpu.memory_space<vmem>>, vector<1x32x16xf32>
    %460 = vector.shape_cast %459 : vector<1x32x16xf32> to vector<32x16xf32>
    %cst_427 = arith.constant dense<0.000000e+00> : vector<32x8xf32>
    %461 = tpu.matmul %460, %458, %cst_427 {dimension_numbers = #tpu.dot_dimension_numbers<[1], [0], [0], [1], [0, 0, 1, 1], [], []>} : vector<32x16xf32>, vector<16x8xf32>, vector<32x8xf32> -> vector<32x8xf32>
    %462 = arith.addf %455, %461 : vector<32x8xf32>
    %c23_428 = arith.constant 23 : index
    %c0_429 = arith.constant 0 : index
    %c0_430 = arith.constant 0 : index
    %463 = vector.load %arg12[%c23_428, %c0_429, %c0_430] : memref<25x32x8xf32, #tpu.memory_space<vmem>>, vector<1x32x8xf32>
    %464 = vector.shape_cast %463 : vector<1x32x8xf32> to vector<32x8xf32>
    %cst_431 = arith.constant dense<0.000000e+00> : vector<16x8xf32>
    %465 = tpu.matmul %302, %464, %cst_431 {dimension_numbers = #tpu.dot_dimension_numbers<[1], [0], [0], [1], [0, 0, 1, 1], [], []>} : vector<16x32xf32>, vector<32x8xf32>, vector<16x8xf32> -> vector<16x8xf32>
    %c23_432 = arith.constant 23 : index
    %c0_433 = arith.constant 0 : index
    %c0_434 = arith.constant 0 : index
    %466 = vector.load %arg13[%c23_432, %c0_433, %c0_434] : memref<25x32x16xf32, #tpu.memory_space<vmem>>, vector<1x32x16xf32>
    %467 = vector.shape_cast %466 : vector<1x32x16xf32> to vector<32x16xf32>
    %cst_435 = arith.constant dense<0.000000e+00> : vector<32x8xf32>
    %468 = tpu.matmul %467, %465, %cst_435 {dimension_numbers = #tpu.dot_dimension_numbers<[1], [0], [0], [1], [0, 0, 1, 1], [], []>} : vector<32x16xf32>, vector<16x8xf32>, vector<32x8xf32> -> vector<32x8xf32>
    %469 = arith.addf %462, %468 : vector<32x8xf32>
    %c24_436 = arith.constant 24 : index
    %c0_437 = arith.constant 0 : index
    %c0_438 = arith.constant 0 : index
    %470 = vector.load %arg12[%c24_436, %c0_437, %c0_438] : memref<25x32x8xf32, #tpu.memory_space<vmem>>, vector<1x32x8xf32>
    %471 = vector.shape_cast %470 : vector<1x32x8xf32> to vector<32x8xf32>
    %cst_439 = arith.constant dense<0.000000e+00> : vector<16x8xf32>
    %472 = tpu.matmul %302, %471, %cst_439 {dimension_numbers = #tpu.dot_dimension_numbers<[1], [0], [0], [1], [0, 0, 1, 1], [], []>} : vector<16x32xf32>, vector<32x8xf32>, vector<16x8xf32> -> vector<16x8xf32>
    %c24_440 = arith.constant 24 : index
    %c0_441 = arith.constant 0 : index
    %c0_442 = arith.constant 0 : index
    %473 = vector.load %arg13[%c24_440, %c0_441, %c0_442] : memref<25x32x16xf32, #tpu.memory_space<vmem>>, vector<1x32x16xf32>
    %474 = vector.shape_cast %473 : vector<1x32x16xf32> to vector<32x16xf32>
    %cst_443 = arith.constant dense<0.000000e+00> : vector<32x8xf32>
    %475 = tpu.matmul %474, %472, %cst_443 {dimension_numbers = #tpu.dot_dimension_numbers<[1], [0], [0], [1], [0, 0, 1, 1], [], []>} : vector<32x16xf32>, vector<16x8xf32>, vector<32x8xf32> -> vector<32x8xf32>
    %476 = arith.addf %469, %475 : vector<32x8xf32>
    %c0_444 = arith.constant 0 : index
    %c0_445 = arith.constant 0 : index
    %477 = vector.load %arg14[%c0_444, %c0_445] : memref<32x1xf32, #tpu.memory_space<vmem>>, vector<32x1xf32>
    %478 = vector.broadcast %477 : vector<32x1xf32> to vector<32x8xf32>
    %479 = arith.addf %476, %478 : vector<32x8xf32>
    %c0_446 = arith.constant 0 : index
    %c0_447 = arith.constant 0 : index
    %480 = vector.load %arg21[%c0_446, %c0_447] : memref<8x2xf32, #tpu.memory_space<vmem>>, vector<8x2xf32>
    %c0_448 = arith.constant 0 : index
    %c0_449 = arith.constant 0 : index
    %481 = vector.load %arg22[%c0_448, %c0_449] : memref<2x8xf32, #tpu.memory_space<vmem>>, vector<2x8xf32>
    %cst_450 = arith.constant dense<0.000000e+00> : vector<32x2xf32>
    %482 = tpu.matmul %479, %480, %cst_450 {dimension_numbers = #tpu.dot_dimension_numbers<[1], [0], [0], [1], [0, 0, 1, 1], [], []>} : vector<32x8xf32>, vector<8x2xf32>, vector<32x2xf32> -> vector<32x2xf32>
    %483 = arith.mulf %479, %479 : vector<32x8xf32>
    %cst_451 = arith.constant dense<0.000000e+00> : vector<32x2xf32>
    %484 = tpu.matmul %483, %480, %cst_451 {dimension_numbers = #tpu.dot_dimension_numbers<[1], [0], [0], [1], [0, 0, 1, 1], [], []>} : vector<32x8xf32>, vector<8x2xf32>, vector<32x2xf32> -> vector<32x2xf32>
    %485 = arith.mulf %482, %482 : vector<32x2xf32>
    %486 = arith.subf %484, %485 : vector<32x2xf32>
    %cst_452 = arith.constant 9.99999974E-6 : f32
    %487 = vector.broadcast %cst_452 : f32 to vector<32x2xf32>
    %488 = arith.addf %486, %487 : vector<32x2xf32>
    %489 = math.rsqrt %488 : vector<32x2xf32>
    %cst_453 = arith.constant dense<0.000000e+00> : vector<32x8xf32>
    %490 = tpu.matmul %482, %481, %cst_453 {dimension_numbers = #tpu.dot_dimension_numbers<[1], [0], [0], [1], [0, 0, 1, 1], [], []>} : vector<32x2xf32>, vector<2x8xf32>, vector<32x8xf32> -> vector<32x8xf32>
    %cst_454 = arith.constant dense<0.000000e+00> : vector<32x8xf32>
    %491 = tpu.matmul %489, %481, %cst_454 {dimension_numbers = #tpu.dot_dimension_numbers<[1], [0], [0], [1], [0, 0, 1, 1], [], []>} : vector<32x2xf32>, vector<2x8xf32>, vector<32x8xf32> -> vector<32x8xf32>
    %492 = arith.subf %479, %490 : vector<32x8xf32>
    %493 = arith.mulf %492, %491 : vector<32x8xf32>
    %cst_455 = arith.constant 5.000000e-01 : f32
    %494 = vector.broadcast %cst_455 : f32 to vector<32x8xf32>
    %495 = arith.mulf %494, %493 : vector<32x8xf32>
    %cst_456 = arith.constant 0.707106769 : f32
    %496 = vector.broadcast %cst_456 : f32 to vector<32x8xf32>
    %497 = arith.mulf %493, %496 : vector<32x8xf32>
    %498 = math.absf %497 : vector<32x8xf32>
    %cst_457 = arith.constant 0.327591091 : f32
    %499 = vector.broadcast %cst_457 : f32 to vector<32x8xf32>
    %500 = arith.mulf %499, %498 : vector<32x8xf32>
    %cst_458 = arith.constant 1.000000e+00 : f32
    %501 = vector.broadcast %cst_458 : f32 to vector<32x8xf32>
    %502 = arith.addf %501, %500 : vector<32x8xf32>
    %cst_459 = arith.constant 1.000000e+00 : f32
    %503 = vector.broadcast %cst_459 : f32 to vector<32x8xf32>
    %504 = arith.divf %503, %502 : vector<32x8xf32>
    %cst_460 = arith.constant 1.06140542 : f32
    %505 = vector.broadcast %cst_460 : f32 to vector<32x8xf32>
    %506 = arith.mulf %505, %504 : vector<32x8xf32>
    %cst_461 = arith.constant -1.45315206 : f32
    %507 = vector.broadcast %cst_461 : f32 to vector<32x8xf32>
    %508 = arith.addf %506, %507 : vector<32x8xf32>
    %509 = arith.mulf %508, %504 : vector<32x8xf32>
    %cst_462 = arith.constant 1.42141378 : f32
    %510 = vector.broadcast %cst_462 : f32 to vector<32x8xf32>
    %511 = arith.addf %509, %510 : vector<32x8xf32>
    %512 = arith.mulf %511, %504 : vector<32x8xf32>
    %cst_463 = arith.constant -0.284496725 : f32
    %513 = vector.broadcast %cst_463 : f32 to vector<32x8xf32>
    %514 = arith.addf %512, %513 : vector<32x8xf32>
    %515 = arith.mulf %514, %504 : vector<32x8xf32>
    %cst_464 = arith.constant 0.254829586 : f32
    %516 = vector.broadcast %cst_464 : f32 to vector<32x8xf32>
    %517 = arith.addf %515, %516 : vector<32x8xf32>
    %518 = arith.mulf %517, %504 : vector<32x8xf32>
    %cst_465 = arith.constant 0.000000e+00 : f32
    %519 = vector.broadcast %cst_465 : f32 to vector<32x8xf32>
    %520 = arith.subf %519, %498 : vector<32x8xf32>
    %521 = arith.mulf %520, %498 : vector<32x8xf32>
    %522 = math.exp %521 : vector<32x8xf32>
    %523 = arith.mulf %518, %522 : vector<32x8xf32>
    %cst_466 = arith.constant 1.000000e+00 : f32
    %524 = vector.broadcast %cst_466 : f32 to vector<32x8xf32>
    %525 = arith.subf %524, %523 : vector<32x8xf32>
    %cst_467 = arith.constant 0.000000e+00 : f32
    %526 = vector.broadcast %cst_467 : f32 to vector<32x8xf32>
    %527 = arith.cmpf oge, %497, %526 : vector<32x8xf32>
    %cst_468 = arith.constant 0.000000e+00 : f32
    %528 = vector.broadcast %cst_468 : f32 to vector<32x8xf32>
    %529 = arith.subf %528, %525 : vector<32x8xf32>
    %530 = arith.select %527, %525, %529 : vector<32x8xi1>, vector<32x8xf32>
    %cst_469 = arith.constant 1.000000e+00 : f32
    %531 = vector.broadcast %cst_469 : f32 to vector<32x8xf32>
    %532 = arith.addf %531, %530 : vector<32x8xf32>
    %533 = arith.mulf %495, %532 : vector<32x8xf32>
    %c0_470 = arith.constant 0 : index
    %c0_471 = arith.constant 0 : index
    %534 = vector.load %arg15[%c0_470, %c0_471] : memref<32x32xf32, #tpu.memory_space<vmem>>, vector<32x32xf32>
    %cst_472 = arith.constant dense<0.000000e+00> : vector<32x8xf32>
    %535 = tpu.matmul %534, %533, %cst_472 {dimension_numbers = #tpu.dot_dimension_numbers<[1], [0], [0], [1], [0, 0, 1, 1], [], []>} : vector<32x32xf32>, vector<32x8xf32>, vector<32x8xf32> -> vector<32x8xf32>
    %c0_473 = arith.constant 0 : index
    %c0_474 = arith.constant 0 : index
    %536 = vector.load %arg16[%c0_473, %c0_474] : memref<32x1xf32, #tpu.memory_space<vmem>>, vector<32x1xf32>
    %537 = vector.broadcast %536 : vector<32x1xf32> to vector<32x8xf32>
    %538 = arith.addf %535, %537 : vector<32x8xf32>
    %c0_475 = arith.constant 0 : index
    %c0_476 = arith.constant 0 : index
    %539 = vector.load %arg23[%c0_475, %c0_476] : memref<32x8xf32, #tpu.memory_space<vmem>>, vector<32x8xf32>
    tpu.vector_store %arg23[%c0_475, %c0_476], %538 {strides = array<i32>} : memref<32x8xf32, #tpu.memory_space<vmem>>, vector<32x8xf32>,
    return
  }
  func.func @transform_0(%arg0: i32) -> (i32, i32) {
    %c0_i32 = arith.constant 0 : i32
    %c0_i32_0 = arith.constant 0 : i32
    %c0_i32_1 = arith.constant 0 : i32
    return %c0_i32, %c0_i32_0 : i32, i32
  }
  func.func @transform_1(%arg0: i32) -> (i32, i32) {
    %c0_i32 = arith.constant 0 : i32
    %c0_i32_0 = arith.constant 0 : i32
    %c0_i32_1 = arith.constant 0 : i32
    return %c0_i32, %c0_i32_0 : i32, i32
  }
  func.func @transform_2(%arg0: i32) -> (i32, i32) {
    %c0_i32 = arith.constant 0 : i32
    %c0_i32_0 = arith.constant 0 : i32
    %c0_i32_1 = arith.constant 0 : i32
    return %c0_i32, %c0_i32_0 : i32, i32
  }
  func.func @transform_3(%arg0: i32) -> (i32, i32) {
    %c0_i32 = arith.constant 0 : i32
    %c0_i32_0 = arith.constant 0 : i32
    %c0_i32_1 = arith.constant 0 : i32
    return %c0_i32, %c0_i32_0 : i32, i32
  }
  func.func @transform_4(%arg0: i32) -> (i32, i32) {
    %c0_i32 = arith.constant 0 : i32
    %c0_i32_0 = arith.constant 0 : i32
    %c0_i32_1 = arith.constant 0 : i32
    return %c0_i32, %c0_i32_0 : i32, i32
  }
  func.func @transform_5(%arg0: i32) -> (i32, i32) {
    %c0_i32 = arith.constant 0 : i32
    %c0_i32_0 = arith.constant 0 : i32
    %c0_i32_1 = arith.constant 0 : i32
    return %c0_i32, %c0_i32_0 : i32, i32
  }
  func.func @transform_6(%arg0: i32) -> (i32, i32, i32) {
    %c0_i32 = arith.constant 0 : i32
    %c0_i32_0 = arith.constant 0 : i32
    %c0_i32_1 = arith.constant 0 : i32
    %c0_i32_2 = arith.constant 0 : i32
    return %c0_i32, %c0_i32_0, %c0_i32_1 : i32, i32, i32
  }
  func.func @transform_7(%arg0: i32) -> (i32, i32, i32) {
    %c0_i32 = arith.constant 0 : i32
    %c0_i32_0 = arith.constant 0 : i32
    %c0_i32_1 = arith.constant 0 : i32
    %c0_i32_2 = arith.constant 0 : i32
    return %c0_i32, %c0_i32_0, %c0_i32_1 : i32, i32, i32
  }
  func.func @transform_8(%arg0: i32) -> (i32, i32) {
    %c0_i32 = arith.constant 0 : i32
    %c0_i32_0 = arith.constant 0 : i32
    %c0_i32_1 = arith.constant 0 : i32
    return %c0_i32, %c0_i32_0 : i32, i32
  }
  func.func @transform_9(%arg0: i32) -> (i32, i32) {
    %c0_i32 = arith.constant 0 : i32
    %c0_i32_0 = arith.constant 0 : i32
    %c0_i32_1 = arith.constant 0 : i32
    return %c0_i32, %c0_i32_0 : i32, i32
  }
  func.func @transform_10(%arg0: i32) -> (i32, i32) {
    %c0_i32 = arith.constant 0 : i32
    %c0_i32_0 = arith.constant 0 : i32
    %c0_i32_1 = arith.constant 0 : i32
    return %c0_i32, %c0_i32_0 : i32, i32
  }
  func.func @transform_11(%arg0: i32) -> (i32, i32, i32) {
    %c0_i32 = arith.constant 0 : i32
    %c0_i32_0 = arith.constant 0 : i32
    %c0_i32_1 = arith.constant 0 : i32
    %c0_i32_2 = arith.constant 0 : i32
    return %c0_i32, %c0_i32_0, %c0_i32_1 : i32, i32, i32
  }
  func.func @transform_12(%arg0: i32) -> (i32, i32, i32) {
    %c0_i32 = arith.constant 0 : i32
    %c0_i32_0 = arith.constant 0 : i32
    %c0_i32_1 = arith.constant 0 : i32
    %c0_i32_2 = arith.constant 0 : i32
    return %c0_i32, %c0_i32_0, %c0_i32_1 : i32, i32, i32
  }
  func.func @transform_13(%arg0: i32) -> (i32, i32) {
    %c0_i32 = arith.constant 0 : i32
    %c0_i32_0 = arith.constant 0 : i32
    %c0_i32_1 = arith.constant 0 : i32
    return %c0_i32, %c0_i32_0 : i32, i32
  }
  func.func @transform_14(%arg0: i32) -> (i32, i32) {
    %c0_i32 = arith.constant 0 : i32
    %c0_i32_0 = arith.constant 0 : i32
    %c0_i32_1 = arith.constant 0 : i32
    return %c0_i32, %c0_i32_0 : i32, i32
  }
  func.func @transform_15(%arg0: i32) -> (i32, i32) {
    %c0_i32 = arith.constant 0 : i32
    %c0_i32_0 = arith.constant 0 : i32
    %c0_i32_1 = arith.constant 0 : i32
    return %c0_i32, %c0_i32_0 : i32, i32
  }
  func.func @transform_16(%arg0: i32) -> (i32, i32) {
    %c0_i32 = arith.constant 0 : i32
    %c0_i32_0 = arith.constant 0 : i32
    %c0_i32_1 = arith.constant 0 : i32
    return %c0_i32, %c0_i32_0 : i32, i32
  }
  func.func @transform_17(%arg0: i32) -> (i32, i32) {
    %c0_i32 = arith.constant 0 : i32
    %c0_i32_0 = arith.constant 0 : i32
    %c0_i32_1 = arith.constant 0 : i32
    return %c0_i32, %c0_i32_0 : i32, i32
  }
  func.func @transform_18(%arg0: i32) -> (i32, i32) {
    %c0_i32 = arith.constant 0 : i32
    %c0_i32_0 = arith.constant 0 : i32
    %c0_i32_1 = arith.constant 0 : i32
    return %c0_i32, %c0_i32_0 : i32, i32
  }
  func.func @transform_19(%arg0: i32) -> (i32, i32) {
    %c0_i32 = arith.constant 0 : i32
    %c0_i32_0 = arith.constant 0 : i32
    %c0_i32_1 = arith.constant 0 : i32
    return %c0_i32, %c0_i32_0 : i32, i32
  }
  func.func @transform_20(%arg0: i32) -> (i32, i32) {
    %c0_i32 = arith.constant 0 : i32
    %c0_i32_0 = arith.constant 0 : i32
    %c0_i32_1 = arith.constant 0 : i32
    return %c0_i32, %c0_i32_0 : i32, i32
  }
  func.func @transform_21(%arg0: i32) -> (i32, i32) {
    %c0_i32 = arith.constant 0 : i32
    %c0_i32_0 = arith.constant 0 : i32
    %c0_i32_1 = arith.constant 0 : i32
    return %c0_i32, %c0_i32_0 : i32, i32
  }
  func.func @transform_22(%arg0: i32) -> (i32, i32) {
    %c0_i32 = arith.constant 0 : i32
    %c0_i32_0 = arith.constant 0 : i32
    %c0_i32_1 = arith.constant 0 : i32
    return %c0_i32, %c0_i32_0 : i32, i32
  }
}

</mosaic_0001>

<llo_original>
// kernel: style_encoder_forward.1
$region0: #{style_encoder_forward.1}
  #allocation0 [shape = 'u32[]', space=smem, size = 0x4, offset = 0x4, fixed_abs, tag = 'smem constant byte address 0x4 - core index']
  #allocation1 [shape = 'u32[72,128]{1,0:T(1,128)}', space=vmem, size = 0x9000, scoped, tag = 'internal scratch']
  %s0 = inlined_call_operand.vmem [shape: f32[104,512], index: 0, kind: input, shape index: {}]
  %s1 = inlined_call_operand.vmem [shape: f32[8,104], index: 1, kind: input, shape index: {}]
  %s2 = inlined_call_operand.vmem [shape: f32[8,1], index: 2, kind: input, shape index: {}]
  %s3 = inlined_call_operand.vmem [shape: f32[8,8], index: 3, kind: input, shape index: {}]
  %s4 = inlined_call_operand.vmem [shape: f32[8,1], index: 4, kind: input, shape index: {}]
  %s5 = inlined_call_operand.vmem [shape: f32[512,128], index: 5, kind: input, shape index: {}]
  %s6 = inlined_call_operand.vmem [shape: f32[25,128,32], index: 6, kind: input, shape index: {}]
  %s7 = inlined_call_operand.vmem [shape: f32[25,16,8], index: 7, kind: input, shape index: {}]
  %s8 = inlined_call_operand.vmem [shape: f32[16,1], index: 8, kind: input, shape index: {}]
  %s9 = inlined_call_operand.vmem [shape: f32[16,16], index: 9, kind: input, shape index: {}]
  %s10 = inlined_call_operand.vmem [shape: f32[16,1], index: 10, kind: input, shape index: {}]
  %s11 = inlined_call_operand.vmem [shape: f32[25,32,8], index: 11, kind: input, shape index: {}]
  %s12 = inlined_call_operand.vmem [shape: f32[25,32,16], index: 12, kind: input, shape index: {}]
  %s13 = inlined_call_operand.vmem [shape: f32[32,1], index: 13, kind: input, shape index: {}]
  %s14 = inlined_call_operand.vmem [shape: f32[32,32], index: 14, kind: input, shape index: {}]
  %s15 = inlined_call_operand.vmem [shape: f32[32,1], index: 15, kind: input, shape index: {}]
  %s16 = inlined_call_operand.vmem [shape: f32[512,2], index: 16, kind: input, shape index: {}]
  %s17 = inlined_call_operand.vmem [shape: f32[2,512], index: 17, kind: input, shape index: {}]
  %s18 = inlined_call_operand.vmem [shape: f32[32,2], index: 18, kind: input, shape index: {}]
  %s19 = inlined_call_operand.vmem [shape: f32[2,32], index: 19, kind: input, shape index: {}]
  %s20 = inlined_call_operand.vmem [shape: f32[8,2], index: 20, kind: input, shape index: {}]
  %s21 = inlined_call_operand.vmem [shape: f32[2,8], index: 21, kind: input, shape index: {}]
  %s22 = inlined_call_operand.vmem [shape: f32[32,8], index: 22, kind: output, shape index: {}]
  %s23 = sld [smem:[#allocation0]]
  $region98: #{style_encoder_forward.1} parent=0
    _
  %s25 = ssub.s32 1, %s23
  %s26 = scalar_select 0, %s25, %s23
  // Predicated region
  $region2: #{style_encoder_forward.1} parent=0 // pred_check
    _
  $region3: #{style_encoder_forward.1} parent=0 // pred_check_branch
    %28 = sbr.rel (0) target = $region5
  $region4: #{style_encoder_forward.1} parent=0 // pred_region
    _
  $region5: #{style_encoder_forward.1} parent=0 // pred_fallthru
    _
  // Predicated region
  $region6: #{style_encoder_forward.1} parent=0 // pred_check
    _
  $region7: #{style_encoder_forward.1} parent=0 // pred_check_branch
    %30 = sbr.rel (0) target = $region9
  $region8: #{style_encoder_forward.1} parent=0 // pred_region
    _
  $region9: #{style_encoder_forward.1} parent=0 // pred_fallthru
    _
  // Predicated region
  $region10: #{style_encoder_forward.1} parent=0 // pred_check
    _
  $region11: #{style_encoder_forward.1} parent=0 // pred_check_branch
    %32 = sbr.rel (0) target = $region13
  $region12: #{style_encoder_forward.1} parent=0 // pred_region
    _
  $region13: #{style_encoder_forward.1} parent=0 // pred_fallthru
    _
  // Predicated region
  $region14: #{style_encoder_forward.1} parent=0 // pred_check
    _
  $region15: #{style_encoder_forward.1} parent=0 // pred_check_branch
    %34 = sbr.rel (0) target = $region17
  $region16: #{style_encoder_forward.1} parent=0 // pred_region
    _
  $region17: #{style_encoder_forward.1} parent=0 // pred_fallthru
    _
  // Predicated region
  $region18: #{style_encoder_forward.1} parent=0 // pred_check
    _
  $region19: #{style_encoder_forward.1} parent=0 // pred_check_branch
    %36 = sbr.rel (0) target = $region21
  $region20: #{style_encoder_forward.1} parent=0 // pred_region
    _
  $region21: #{style_encoder_forward.1} parent=0 // pred_fallthru
    _
  // Predicated region
  $region22: #{style_encoder_forward.1} parent=0 // pred_check
    _
  $region23: #{style_encoder_forward.1} parent=0 // pred_check_branch
    %38 = sbr.rel (0) target = $region25
  $region24: #{style_encoder_forward.1} parent=0 // pred_region
    _
  $region25: #{style_encoder_forward.1} parent=0 // pred_fallthru
    _
  // Predicated region
  $region26: #{style_encoder_forward.1} parent=0 // pred_check
    _
  $region27: #{style_encoder_forward.1} parent=0 // pred_check_branch
    %40 = sbr.rel (0) target = $region29
  $region28: #{style_encoder_forward.1} parent=0 // pred_region
    _
  $region29: #{style_encoder_forward.1} parent=0 // pred_fallthru
    _
  // Predicated region
  $region30: #{style_encoder_forward.1} parent=0 // pred_check
    _
  $region31: #{style_encoder_forward.1} parent=0 // pred_check_branch
    %42 = sbr.rel (0) target = $region33
  $region32: #{style_encoder_forward.1} parent=0 // pred_region
    _
  $region33: #{style_encoder_forward.1} parent=0 // pred_fallthru
    _
  // Predicated region
  $region34: #{style_encoder_forward.1} parent=0 // pred_check
    _
  $region35: #{style_encoder_forward.1} parent=0 // pred_check_branch
    %44 = sbr.rel (0) target = $region37
  $region36: #{style_encoder_forward.1} parent=0 // pred_region
    _
  $region37: #{style_encoder_forward.1} parent=0 // pred_fallthru
    _
  // Predicated region
  $region38: #{style_encoder_forward.1} parent=0 // pred_check
    _
  $region39: #{style_encoder_forward.1} parent=0 // pred_check_branch
    %46 = sbr.rel (0) target = $region41
  $region40: #{style_encoder_forward.1} parent=0 // pred_region
    _
  $region41: #{style_encoder_forward.1} parent=0 // pred_fallthru
    _
  // Predicated region
  $region42: #{style_encoder_forward.1} parent=0 // pred_check
    _
  $region43: #{style_encoder_forward.1} parent=0 // pred_check_branch
    %48 = sbr.rel (0) target = $region45
  $region44: #{style_encoder_forward.1} parent=0 // pred_region
    _
  $region45: #{style_encoder_forward.1} parent=0 // pred_fallthru
    _
  // Predicated region
  $region46: #{style_encoder_forward.1} parent=0 // pred_check
    _
  $region47: #{style_encoder_forward.1} parent=0 // pred_check_branch
    %50 = sbr.rel (0) target = $region49
  $region48: #{style_encoder_forward.1} parent=0 // pred_region
    _
  $region49: #{style_encoder_forward.1} parent=0 // pred_fallthru
    _
  // Predicated region
  $region50: #{style_encoder_forward.1} parent=0 // pred_check
    _
  $region51: #{style_encoder_forward.1} parent=0 // pred_check_branch
    %52 = sbr.rel (0) target = $region53
  $region52: #{style_encoder_forward.1} parent=0 // pred_region
    _
  $region53: #{style_encoder_forward.1} parent=0 // pred_fallthru
    _
  // Predicated region
  $region54: #{style_encoder_forward.1} parent=0 // pred_check
    _
  $region55: #{style_encoder_forward.1} parent=0 // pred_check_branch
    %54 = sbr.rel (0) target = $region57
  $region56: #{style_encoder_forward.1} parent=0 // pred_region
    _
  $region57: #{style_encoder_forward.1} parent=0 // pred_fallthru
    _
  // Predicated region
  $region58: #{style_encoder_forward.1} parent=0 // pred_check
    _
  $region59: #{style_encoder_forward.1} parent=0 // pred_check_branch
    %56 = sbr.rel (0) target = $region61
  $region60: #{style_encoder_forward.1} parent=0 // pred_region
    _
  $region61: #{style_encoder_forward.1} parent=0 // pred_fallthru
    _
  // Predicated region
  $region62: #{style_encoder_forward.1} parent=0 // pred_check
    _
  $region63: #{style_encoder_forward.1} parent=0 // pred_check_branch
    %58 = sbr.rel (0) target = $region65
  $region64: #{style_encoder_forward.1} parent=0 // pred_region
    _
  $region65: #{style_encoder_forward.1} parent=0 // pred_fallthru
    _
  // Predicated region
  $region66: #{style_encoder_forward.1} parent=0 // pred_check
    _
  $region67: #{style_encoder_forward.1} parent=0 // pred_check_branch
    %60 = sbr.rel (0) target = $region69
  $region68: #{style_encoder_forward.1} parent=0 // pred_region
    _
  $region69: #{style_encoder_forward.1} parent=0 // pred_fallthru
    _
  // Predicated region
  $region70: #{style_encoder_forward.1} parent=0 // pred_check
    _
  $region71: #{style_encoder_forward.1} parent=0 // pred_check_branch
    %62 = sbr.rel (0) target = $region73
  $region72: #{style_encoder_forward.1} parent=0 // pred_region
    _
  $region73: #{style_encoder_forward.1} parent=0 // pred_fallthru
    _
  // Predicated region
  $region74: #{style_encoder_forward.1} parent=0 // pred_check
    _
  $region75: #{style_encoder_forward.1} parent=0 // pred_check_branch
    %64 = sbr.rel (0) target = $region77
  $region76: #{style_encoder_forward.1} parent=0 // pred_region
    _
  $region77: #{style_encoder_forward.1} parent=0 // pred_fallthru
    _
  // Predicated region
  $region78: #{style_encoder_forward.1} parent=0 // pred_check
    _
  $region79: #{style_encoder_forward.1} parent=0 // pred_check_branch
    %66 = sbr.rel (0) target = $region81
  $region80: #{style_encoder_forward.1} parent=0 // pred_region
    _
  $region81: #{style_encoder_forward.1} parent=0 // pred_fallthru
    _
  // Predicated region
  $region82: #{style_encoder_forward.1} parent=0 // pred_check
    _
  $region83: #{style_encoder_forward.1} parent=0 // pred_check_branch
    %68 = sbr.rel (0) target = $region85
  $region84: #{style_encoder_forward.1} parent=0 // pred_region
    _
  $region85: #{style_encoder_forward.1} parent=0 // pred_fallthru
    _
  // Predicated region
  $region86: #{style_encoder_forward.1} parent=0 // pred_check
    _
  $region87: #{style_encoder_forward.1} parent=0 // pred_check_branch
    %70 = sbr.rel (0) target = $region89
  $region88: #{style_encoder_forward.1} parent=0 // pred_region
    _
  $region89: #{style_encoder_forward.1} parent=0 // pred_fallthru
    _
  %v71 = vld [vmem:[%s1] sm:$0xff]
  %v72 = vld [vmem:[%s0] sm:$0xff]
  %v73 = vld [vmem:[%s0 + $0x8] sm:$0xff]
  %v74 = vld [vmem:[%s0 + $0x10] sm:$0xff]
  %v75 = vld [vmem:[%s0 + $0x18] sm:$0xff]
  %v76 = vld [vmem:[%s0 + $0x20] sm:$0xff]
  %v77 = vld [vmem:[%s0 + $0x28] sm:$0xff]
  %v78 = vld [vmem:[%s0 + $0x30] sm:$0xff]
  %v79 = vld [vmem:[%s0 + $0x38] sm:$0xff]
  %v80 = vld [vmem:[%s0 + $0x40] sm:$0xff]
  %v81 = vld [vmem:[%s0 + $0x48] sm:$0xff]
  %v82 = vld [vmem:[%s0 + $0x50] sm:$0xff]
  %v83 = vld [vmem:[%s0 + $0x58] sm:$0xff]
  %v84 = vld [vmem:[%s0 + $0x60] sm:$0xff]
  %v85 = vld [vmem:[%s0 + $0x68] sm:$0xff]
  %v86 = vld [vmem:[%s0 + $0x70] sm:$0xff]
  %v87 = vld [vmem:[%s0 + $0x78] sm:$0xff]
  %v88 = vld [vmem:[%s0 + $0x80] sm:$0xff]
  %v89 = vld [vmem:[%s0 + $0x88] sm:$0xff]
  %v90 = vld [vmem:[%s0 + $0x90] sm:$0xff]
  %v91 = vld [vmem:[%s0 + $0x98] sm:$0xff]
  %v92 = vld [vmem:[%s0 + $0xa0] sm:$0xff]
  %v93 = vld [vmem:[%s0 + $0xa8] sm:$0xff]
  %v94 = vld [vmem:[%s0 + $0xb0] sm:$0xff]
  %v95 = vld [vmem:[%s0 + $0xb8] sm:$0xff]
  %v96 = vld [vmem:[%s0 + $0xc0] sm:$0xff]
  %v97 = vld [vmem:[%s0 + $0xc8] sm:$0xff]
  %v98 = vld [vmem:[%s0 + $0xd0] sm:$0xff]
  %v99 = vld [vmem:[%s0 + $0xd8] sm:$0xff]
  %v100 = vld [vmem:[%s0 + $0xe0] sm:$0xff]
  %v101 = vld [vmem:[%s0 + $0xe8] sm:$0xff]
  %v102 = vld [vmem:[%s0 + $0xf0] sm:$0xff]
  %v103 = vld [vmem:[%s0 + $0xf8] sm:$0xff]
  %v104 = vld [vmem:[%s0 + $0x100] sm:$0xff]
  %v105 = vld [vmem:[%s0 + $0x108] sm:$0xff]
  %v106 = vld [vmem:[%s0 + $0x110] sm:$0xff]
  %v107 = vld [vmem:[%s0 + $0x118] sm:$0xff]
  %v108 = vld [vmem:[%s0 + $0x120] sm:$0xff]
  %v109 = vld [vmem:[%s0 + $0x128] sm:$0xff]
  %v110 = vld [vmem:[%s0 + $0x130] sm:$0xff]
  %v111 = vld [vmem:[%s0 + $0x138] sm:$0xff]
  %v112 = vld [vmem:[%s0 + $0x140] sm:$0xff]
  %v113 = vld [vmem:[%s0 + $0x148] sm:$0xff]
  %v114 = vld [vmem:[%s0 + $0x150] sm:$0xff]
  %v115 = vld [vmem:[%s0 + $0x158] sm:$0xff]
  %v116 = vld [vmem:[%s0 + $0x160] sm:$0xff]
  %v117 = vld [vmem:[%s0 + $0x168] sm:$0xff]
  %v118 = vld [vmem:[%s0 + $0x170] sm:$0xff]
  %v119 = vld [vmem:[%s0 + $0x178] sm:$0xff]
  %v120 = vld [vmem:[%s0 + $0x180] sm:$0xff]
  %v121 = vld [vmem:[%s0 + $0x188] sm:$0xff]
  %v122 = vld [vmem:[%s0 + $0x190] sm:$0xff]
  %v123 = vld [vmem:[%s0 + $0x198] sm:$0xff]
  %v124 = vld [vmem:[%s2] sm:$0xff]
  %126 = vset.pattern.permute.xlu0 0
  %127 = vperm.xlu0 %126, %v124
  %v128 = vpop.permute.xlu0 %127
  %vm130 = vcmask 850944
  %v132 = vsel %vm130, %v71, 0
  %134 = vmatpush.msra.mxu0 0.0
  %135 = vmatpush.msra.mxu0 0.0
  %136 = vmatpush.msra.mxu0 0.0
  %137 = vmatpush.msra.mxu0 %v120
  %138 = vmatpush.msra.mxu0 %v116
  %139 = vmatpush.msra.mxu0 %v112
  %140 = vmatpush.msra.mxu0 %v108
  %141 = vmatpush.msra.mxu0 %v104
  %142 = vmatpush.msra.mxu0 %v100
  %143 = vmatpush.msra.mxu0 %v96
  %144 = vmatpush.msra.mxu0 %v92
  %145 = vmatpush.msra.mxu0 %v88
  %146 = vmatpush.msra.mxu0 %v84
  %147 = vmatpush.msra.mxu0 %v80
  %148 = vmatpush.msra.mxu0 %v76
  %149 = vmatpush.msra.mxu0 %v72
  %150 = vmatmul.f32.gmra.mxu0 %v132
  %v151 = vpop.f32.mrf.mxu0
  %v152 = vadd.f32 %v128, %v151
  %153 = vdwg.mxu0
  %154 = vmatpush.msra.mxu0 0.0
  %155 = vmatpush.msra.mxu0 0.0
  %156 = vmatpush.msra.mxu0 0.0
  %157 = vmatpush.msra.mxu0 %v121
  %158 = vmatpush.msra.mxu0 %v117
  %159 = vmatpush.msra.mxu0 %v113
  %160 = vmatpush.msra.mxu0 %v109
  %161 = vmatpush.msra.mxu0 %v105
  %162 = vmatpush.msra.mxu0 %v101
  %163 = vmatpush.msra.mxu0 %v97
  %164 = vmatpush.msra.mxu0 %v93
  %165 = vmatpush.msra.mxu0 %v89
  %166 = vmatpush.msra.mxu0 %v85
  %167 = vmatpush.msra.mxu0 %v81
  %168 = vmatpush.msra.mxu0 %v77
  %169 = vmatpush.msra.mxu0 %v73
  %170 = vmatmul.f32.gmra.mxu0 %v132
  %v171 = vpop.f32.mrf.mxu0
  %v172 = vadd.f32 %v128, %v171
  %173 = vdwg.mxu0
  %174 = vmatpush.msra.mxu0 0.0
  %175 = vmatpush.msra.mxu0 0.0
  %176 = vmatpush.msra.mxu0 0.0
  %177 = vmatpush.msra.mxu0 %v122
  %178 = vmatpush.msra.mxu0 %v118
  %179 = vmatpush.msra.mxu0 %v114
  %180 = vmatpush.msra.mxu0 %v110
  %181 = vmatpush.msra.mxu0 %v106
  %182 = vmatpush.msra.mxu0 %v102
  %183 = vmatpush.msra.mxu0 %v98
  %184 = vmatpush.msra.mxu0 %v94
  %185 = vmatpush.msra.mxu0 %v90
  %186 = vmatpush.msra.mxu0 %v86
  %187 = vmatpush.msra.mxu0 %v82
  %188 = vmatpush.msra.mxu0 %v78
  %189 = vmatpush.msra.mxu0 %v74
  %190 = vmatmul.f32.gmra.mxu0 %v132
  %v191 = vpop.f32.mrf.mxu0
  %v192 = vadd.f32 %v128, %v191
  %193 = vdwg.mxu0
  %194 = vmatpush.msra.mxu0 0.0
  %195 = vmatpush.msra.mxu0 0.0
  %196 = vmatpush.msra.mxu0 0.0
  %197 = vmatpush.msra.mxu0 %v123
  %198 = vmatpush.msra.mxu0 %v119
  %199 = vmatpush.msra.mxu0 %v115
  %200 = vmatpush.msra.mxu0 %v111
  %201 = vmatpush.msra.mxu0 %v107
  %202 = vmatpush.msra.mxu0 %v103
  %203 = vmatpush.msra.mxu0 %v99
  %204 = vmatpush.msra.mxu0 %v95
  %205 = vmatpush.msra.mxu0 %v91
  %206 = vmatpush.msra.mxu0 %v87
  %207 = vmatpush.msra.mxu0 %v83
  %208 = vmatpush.msra.mxu0 %v79
  %209 = vmatpush.msra.mxu0 %v75
  %210 = vmatmul.f32.gmra.mxu0 %v132
  %v211 = vpop.f32.mrf.mxu0
  %v212 = vadd.f32 %v128, %v211
  %213 = vdwg.mxu0
  %v214 = vld [vmem:[%s16] sm:$0xff]
  %v215 = vld [vmem:[%s16 + $0x8] sm:$0xff]
  %v216 = vld [vmem:[%s16 + $0x10] sm:$0xff]
  %v217 = vld [vmem:[%s16 + $0x18] sm:$0xff]
  %v218 = vld [vmem:[%s16 + $0x20] sm:$0xff]
  %v219 = vld [vmem:[%s16 + $0x28] sm:$0xff]
  %v220 = vld [vmem:[%s16 + $0x30] sm:$0xff]
  %v221 = vld [vmem:[%s16 + $0x38] sm:$0xff]
  %v222 = vld [vmem:[%s16 + $0x40] sm:$0xff]
  %v223 = vld [vmem:[%s16 + $0x48] sm:$0xff]
  %v224 = vld [vmem:[%s16 + $0x50] sm:$0xff]
  %v225 = vld [vmem:[%s16 + $0x58] sm:$0xff]
  %v226 = vld [vmem:[%s16 + $0x60] sm:$0xff]
  %v227 = vld [vmem:[%s16 + $0x68] sm:$0xff]
  %v228 = vld [vmem:[%s16 + $0x70] sm:$0xff]
  %v229 = vld [vmem:[%s16 + $0x78] sm:$0xff]
  %v230 = vld [vmem:[%s16 + $0x80] sm:$0xff]
  %v231 = vld [vmem:[%s16 + $0x88] sm:$0xff]
  %v232 = vld [vmem:[%s16 + $0x90] sm:$0xff]
  %v233 = vld [vmem:[%s16 + $0x98] sm:$0xff]
  %v234 = vld [vmem:[%s16 + $0xa0] sm:$0xff]
  %v235 = vld [vmem:[%s16 + $0xa8] sm:$0xff]
  %v236 = vld [vmem:[%s16 + $0xb0] sm:$0xff]
  %v237 = vld [vmem:[%s16 + $0xb8] sm:$0xff]
  %v238 = vld [vmem:[%s16 + $0xc0] sm:$0xff]
  %v239 = vld [vmem:[%s16 + $0xc8] sm:$0xff]
  %v240 = vld [vmem:[%s16 + $0xd0] sm:$0xff]
  %v241 = vld [vmem:[%s16 + $0xd8] sm:$0xff]
  %v242 = vld [vmem:[%s16 + $0xe0] sm:$0xff]
  %v243 = vld [vmem:[%s16 + $0xe8] sm:$0xff]
  %v244 = vld [vmem:[%s16 + $0xf0] sm:$0xff]
  %v245 = vld [vmem:[%s16 + $0xf8] sm:$0xff]
  %v246 = vld [vmem:[%s16 + $0x100] sm:$0xff]
  %v247 = vld [vmem:[%s16 + $0x108] sm:$0xff]
  %v248 = vld [vmem:[%s16 + $0x110] sm:$0xff]
  %v249 = vld [vmem:[%s16 + $0x118] sm:$0xff]
  %v250 = vld [vmem:[%s16 + $0x120] sm:$0xff]
  %v251 = vld [vmem:[%s16 + $0x128] sm:$0xff]
  %v252 = vld [vmem:[%s16 + $0x130] sm:$0xff]
  %v253 = vld [vmem:[%s16 + $0x138] sm:$0xff]
  %v254 = vld [vmem:[%s16 + $0x140] sm:$0xff]
  %v255 = vld [vmem:[%s16 + $0x148] sm:$0xff]
  %v256 = vld [vmem:[%s16 + $0x150] sm:$0xff]
  %v257 = vld [vmem:[%s16 + $0x158] sm:$0xff]
  %v258 = vld [vmem:[%s16 + $0x160] sm:$0xff]
  %v259 = vld [vmem:[%s16 + $0x168] sm:$0xff]
  %v260 = vld [vmem:[%s16 + $0x170] sm:$0xff]
  %v261 = vld [vmem:[%s16 + $0x178] sm:$0xff]
  %v262 = vld [vmem:[%s16 + $0x180] sm:$0xff]
  %v263 = vld [vmem:[%s16 + $0x188] sm:$0xff]
  %v264 = vld [vmem:[%s16 + $0x190] sm:$0xff]
  %v265 = vld [vmem:[%s16 + $0x198] sm:$0xff]
  %v266 = vld [vmem:[%s16 + $0x1a0] sm:$0xff]
  %v267 = vld [vmem:[%s16 + $0x1a8] sm:$0xff]
  %v268 = vld [vmem:[%s16 + $0x1b0] sm:$0xff]
  %v269 = vld [vmem:[%s16 + $0x1b8] sm:$0xff]
  %v270 = vld [vmem:[%s16 + $0x1c0] sm:$0xff]
  %v271 = vld [vmem:[%s16 + $0x1c8] sm:$0xff]
  %v272 = vld [vmem:[%s16 + $0x1d0] sm:$0xff]
  %v273 = vld [vmem:[%s16 + $0x1d8] sm:$0xff]
  %v274 = vld [vmem:[%s16 + $0x1e0] sm:$0xff]
  %v275 = vld [vmem:[%s16 + $0x1e8] sm:$0xff]
  %v276 = vld [vmem:[%s16 + $0x1f0] sm:$0xff]
  %v277 = vld [vmem:[%s16 + $0x1f8] sm:$0xff]
  %v278 = vld [vmem:[%s17] sm:$0xff]
  %279 = vmatpush.msra.mxu0 %v229
  %280 = vmatpush.msra.mxu0 %v228
  %281 = vmatpush.msra.mxu0 %v227
  %282 = vmatpush.msra.mxu0 %v226
  %283 = vmatpush.msra.mxu0 %v225
  %284 = vmatpush.msra.mxu0 %v224
  %285 = vmatpush.msra.mxu0 %v223
  %286 = vmatpush.msra.mxu0 %v222
  %287 = vmatpush.msra.mxu0 %v221
  %288 = vmatpush.msra.mxu0 %v220
  %289 = vmatpush.msra.mxu0 %v219
  %290 = vmatpush.msra.mxu0 %v218
  %291 = vmatpush.msra.mxu0 %v217
  %292 = vmatpush.msra.mxu0 %v216
  %293 = vmatpush.msra.mxu0 %v215
  %294 = vmatpush.msra.mxu0 %v214
  %295 = vmatmul.f32.gmra.mxu0 %v152
  %v296 = vpop.f32.mrf.mxu0
  %v297 = vadd.f32 0.0, %v296
  %298 = vdwg.mxu0
  %299 = vmatpush.msra.mxu0 %v245
  %300 = vmatpush.msra.mxu0 %v244
  %301 = vmatpush.msra.mxu0 %v243
  %302 = vmatpush.msra.mxu0 %v242
  %303 = vmatpush.msra.mxu0 %v241
  %304 = vmatpush.msra.mxu0 %v240
  %305 = vmatpush.msra.mxu0 %v239
  %306 = vmatpush.msra.mxu0 %v238
  %307 = vmatpush.msra.mxu0 %v237
  %308 = vmatpush.msra.mxu0 %v236
  %309 = vmatpush.msra.mxu0 %v235
  %310 = vmatpush.msra.mxu0 %v234
  %311 = vmatpush.msra.mxu0 %v233
  %312 = vmatpush.msra.mxu0 %v232
  %313 = vmatpush.msra.mxu0 %v231
  %314 = vmatpush.msra.mxu0 %v230
  %315 = vmatmul.f32.gmra.mxu0 %v172
  %v316 = vpop.f32.mrf.mxu0
  %v317 = vadd.f32 %v297, %v316
  %318 = vdwg.mxu0
  %319 = vmatpush.msra.mxu0 %v261
  %320 = vmatpush.msra.mxu0 %v260
  %321 = vmatpush.msra.mxu0 %v259
  %322 = vmatpush.msra.mxu0 %v258
  %323 = vmatpush.msra.mxu0 %v257
  %324 = vmatpush.msra.mxu0 %v256
  %325 = vmatpush.msra.mxu0 %v255
  %326 = vmatpush.msra.mxu0 %v254
  %327 = vmatpush.msra.mxu0 %v253
  %328 = vmatpush.msra.mxu0 %v252
  %329 = vmatpush.msra.mxu0 %v251
  %330 = vmatpush.msra.mxu0 %v250
  %331 = vmatpush.msra.mxu0 %v249
  %332 = vmatpush.msra.mxu0 %v248
  %333 = vmatpush.msra.mxu0 %v247
  %334 = vmatpush.msra.mxu0 %v246
  %335 = vmatmul.f32.gmra.mxu0 %v192
  %v336 = vpop.f32.mrf.mxu0
  %v337 = vadd.f32 %v317, %v336
  %338 = vdwg.mxu0
  %339 = vmatpush.msra.mxu0 %v277
  %340 = vmatpush.msra.mxu0 %v276
  %341 = vmatpush.msra.mxu0 %v275
  %342 = vmatpush.msra.mxu0 %v274
  %343 = vmatpush.msra.mxu0 %v273
  %344 = vmatpush.msra.mxu0 %v272
  %345 = vmatpush.msra.mxu0 %v271
  %346 = vmatpush.msra.mxu0 %v270
  %347 = vmatpush.msra.mxu0 %v269
  %348 = vmatpush.msra.mxu0 %v268
  %349 = vmatpush.msra.mxu0 %v267
  %350 = vmatpush.msra.mxu0 %v266
  %351 = vmatpush.msra.mxu0 %v265
  %352 = vmatpush.msra.mxu0 %v264
  %353 = vmatpush.msra.mxu0 %v263
  %354 = vmatpush.msra.mxu0 %v262
  %355 = vmatmul.f32.gmra.mxu0 %v212
  %v356 = vpop.f32.mrf.mxu0
  %v357 = vadd.f32 %v337, %v356
  %358 = vdwg.mxu0
  %v359 = vmul.f32 %v152, %v152
  %v360 = vmul.f32 %v172, %v172
  %v361 = vmul.f32 %v192, %v192
  %v362 = vmul.f32 %v212, %v212
  %363 = vmatpush.msra.mxu0 %v229
  %364 = vmatpush.msra.mxu0 %v228
  %365 = vmatpush.msra.mxu0 %v227
  %366 = vmatpush.msra.mxu0 %v226
  %367 = vmatpush.msra.mxu0 %v225
  %368 = vmatpush.msra.mxu0 %v224
  %369 = vmatpush.msra.mxu0 %v223
  %370 = vmatpush.msra.mxu0 %v222
  %371 = vmatpush.msra.mxu0 %v221
  %372 = vmatpush.msra.mxu0 %v220
  %373 = vmatpush.msra.mxu0 %v219
  %374 = vmatpush.msra.mxu0 %v218
  %375 = vmatpush.msra.mxu0 %v217
  %376 = vmatpush.msra.mxu0 %v216
  %377 = vmatpush.msra.mxu0 %v215
  %378 = vmatpush.msra.mxu0 %v214
  %379 = vmatmul.f32.gmra.mxu0 %v359
  %v380 = vpop.f32.mrf.mxu0
  %v381 = vadd.f32 0.0, %v380
  %382 = vdwg.mxu0
  %383 = vmatpush.msra.mxu0 %v245
  %384 = vmatpush.msra.mxu0 %v244
  %385 = vmatpush.msra.mxu0 %v243
  %386 = vmatpush.msra.mxu0 %v242
  %387 = vmatpush.msra.mxu0 %v241
  %388 = vmatpush.msra.mxu0 %v240
  %389 = vmatpush.msra.mxu0 %v239
  %390 = vmatpush.msra.mxu0 %v238
  %391 = vmatpush.msra.mxu0 %v237
  %392 = vmatpush.msra.mxu0 %v236
  %393 = vmatpush.msra.mxu0 %v235
  %394 = vmatpush.msra.mxu0 %v234
  %395 = vmatpush.msra.mxu0 %v233
  %396 = vmatpush.msra.mxu0 %v232
  %397 = vmatpush.msra.mxu0 %v231
  %398 = vmatpush.msra.mxu0 %v230
  %399 = vmatmul.f32.gmra.mxu0 %v360
  %v400 = vpop.f32.mrf.mxu0
  %v401 = vadd.f32 %v381, %v400
  %402 = vdwg.mxu0
  %403 = vmatpush.msra.mxu0 %v261
  %404 = vmatpush.msra.mxu0 %v260
  %405 = vmatpush.msra.mxu0 %v259
  %406 = vmatpush.msra.mxu0 %v258
  %407 = vmatpush.msra.mxu0 %v257
  %408 = vmatpush.msra.mxu0 %v256
  %409 = vmatpush.msra.mxu0 %v255
  %410 = vmatpush.msra.mxu0 %v254
  %411 = vmatpush.msra.mxu0 %v253
  %412 = vmatpush.msra.mxu0 %v252
  %413 = vmatpush.msra.mxu0 %v251
  %414 = vmatpush.msra.mxu0 %v250
  %415 = vmatpush.msra.mxu0 %v249
  %416 = vmatpush.msra.mxu0 %v248
  %417 = vmatpush.msra.mxu0 %v247
  %418 = vmatpush.msra.mxu0 %v246
  %419 = vmatmul.f32.gmra.mxu0 %v361
  %v420 = vpop.f32.mrf.mxu0
  %v421 = vadd.f32 %v401, %v420
  %422 = vdwg.mxu0
  %423 = vmatpush.msra.mxu0 %v277
  %424 = vmatpush.msra.mxu0 %v276
  %425 = vmatpush.msra.mxu0 %v275
  %426 = vmatpush.msra.mxu0 %v274
  %427 = vmatpush.msra.mxu0 %v273
  %428 = vmatpush.msra.mxu0 %v272
  %429 = vmatpush.msra.mxu0 %v271
  %430 = vmatpush.msra.mxu0 %v270
  %431 = vmatpush.msra.mxu0 %v269
  %432 = vmatpush.msra.mxu0 %v268
  %433 = vmatpush.msra.mxu0 %v267
  %434 = vmatpush.msra.mxu0 %v266
  %435 = vmatpush.msra.mxu0 %v265
  %436 = vmatpush.msra.mxu0 %v264
  %437 = vmatpush.msra.mxu0 %v263
  %438 = vmatpush.msra.mxu0 %v262
  %439 = vmatmul.f32.gmra.mxu0 %v362
  %v440 = vpop.f32.mrf.mxu0
  %v441 = vadd.f32 %v421, %v440
  %442 = vdwg.mxu0
  %v443 = vmul.f32 %v357, %v357
  %v444 = vsub.f32 %v441, %v443
  %v445 = vadd.f32 %v444, 1e-05
  %v446 = vrsqrt.pop %v445
  %v447 = vmul.f32 %v446, %v445
  %v448 = vmul.f32 %v447, %v446
  %v449 = vmul.f32 0.5, %v448
  %v450 = vsub.f32 1.5, %v449
  %v451 = vmul.f32 %v446, %v450
  %vm452 = vweird.f32 %v445
  %vm453 = vweird.f32 %v446
  %vm454 = vmor %vm452, %vm453
  %v455 = vsel %vm454, %v446, %v451
  %457 = vst [vmem:[#allocation1] ss:$4 sm:$0xff] %v278
  %v458 = vld.sshfl [vmem:[#allocation1] sm:$0xff pattern:$0x73625140]
  %v459 = vld.sshfl [vmem:[#allocation1 + $0x8] sm:$0xff pattern:$0x73625140]
  %v460 = vld.sshfl [vmem:[#allocation1 + $0x10] sm:$0xff pattern:$0x73625140]
  %v461 = vld.sshfl [vmem:[#allocation1 + $0x18] sm:$0xff pattern:$0x73625140]
  %vm462 = vcmask 15360
  %v464 = vsel %vm462, %v357, 0
  %vm466 = vcmask 1041408
  %v467 = vsel %vm466, %v458, 0
  %v469 = vsel %vm466, %v459, 0
  %v471 = vsel %vm466, %v460, 0
  %v473 = vsel %vm466, %v461, 0
  %475 = vmatpush.msra.mxu0 0.0
  %476 = vmatpush.msra.mxu0 0.0
  %477 = vmatpush.msra.mxu0 0.0
  %478 = vmatpush.msra.mxu0 0.0
  %479 = vmatpush.msra.mxu0 0.0
  %480 = vmatpush.msra.mxu0 0.0
  %481 = vmatpush.msra.mxu0 0.0
  %482 = vmatpush.msra.mxu0 0.0
  %483 = vmatpush.msra.mxu0 0.0
  %484 = vmatpush.msra.mxu0 0.0
  %485 = vmatpush.msra.mxu0 0.0
  %486 = vmatpush.msra.mxu0 0.0
  %487 = vmatpush.msra.mxu0 0.0
  %488 = vmatpush.msra.mxu0 0.0
  %489 = vmatpush.msra.mxu0 0.0
  %490 = vmatpush.msra.mxu0 %v467
  %491 = vmatmul.f32.gmra.mxu0 %v464
  %v492 = vpop.f32.mrf.mxu0
  %v493 = vadd.f32 0.0, %v492
  %494 = vdwg.mxu0
  %495 = vmatpush.msra.mxu0 0.0
  %496 = vmatpush.msra.mxu0 0.0
  %497 = vmatpush.msra.mxu0 0.0
  %498 = vmatpush.msra.mxu0 0.0
  %499 = vmatpush.msra.mxu0 0.0
  %500 = vmatpush.msra.mxu0 0.0
  %501 = vmatpush.msra.mxu0 0.0
  %502 = vmatpush.msra.mxu0 0.0
  %503 = vmatpush.msra.mxu0 0.0
  %504 = vmatpush.msra.mxu0 0.0
  %505 = vmatpush.msra.mxu0 0.0
  %506 = vmatpush.msra.mxu0 0.0
  %507 = vmatpush.msra.mxu0 0.0
  %508 = vmatpush.msra.mxu0 0.0
  %509 = vmatpush.msra.mxu0 0.0
  %510 = vmatpush.msra.mxu0 %v469
  %511 = vmatmul.f32.gmra.mxu0 %v464
  %v512 = vpop.f32.mrf.mxu0
  %v513 = vadd.f32 0.0, %v512
  %514 = vdwg.mxu0
  %515 = vmatpush.msra.mxu0 0.0
  %516 = vmatpush.msra.mxu0 0.0
  %517 = vmatpush.msra.mxu0 0.0
  %518 = vmatpush.msra.mxu0 0.0
  %519 = vmatpush.msra.mxu0 0.0
  %520 = vmatpush.msra.mxu0 0.0
  %521 = vmatpush.msra.mxu0 0.0
  %522 = vmatpush.msra.mxu0 0.0
  %523 = vmatpush.msra.mxu0 0.0
  %524 = vmatpush.msra.mxu0 0.0
  %525 = vmatpush.msra.mxu0 0.0
  %526 = vmatpush.msra.mxu0 0.0
  %527 = vmatpush.msra.mxu0 0.0
  %528 = vmatpush.msra.mxu0 0.0
  %529 = vmatpush.msra.mxu0 0.0
  %530 = vmatpush.msra.mxu0 %v471
  %531 = vmatmul.f32.gmra.mxu0 %v464
  %v532 = vpop.f32.mrf.mxu0
  %v533 = vadd.f32 0.0, %v532
  %534 = vdwg.mxu0
  %535 = vmatpush.msra.mxu0 0.0
  %536 = vmatpush.msra.mxu0 0.0
  %537 = vmatpush.msra.mxu0 0.0
  %538 = vmatpush.msra.mxu0 0.0
  %539 = vmatpush.msra.mxu0 0.0
  %540 = vmatpush.msra.mxu0 0.0
  %541 = vmatpush.msra.mxu0 0.0
  %542 = vmatpush.msra.mxu0 0.0
  %543 = vmatpush.msra.mxu0 0.0
  %544 = vmatpush.msra.mxu0 0.0
  %545 = vmatpush.msra.mxu0 0.0
  %546 = vmatpush.msra.mxu0 0.0
  %547 = vmatpush.msra.mxu0 0.0
  %548 = vmatpush.msra.mxu0 0.0
  %549 = vmatpush.msra.mxu0 0.0
  %550 = vmatpush.msra.mxu0 %v473
  %551 = vmatmul.f32.gmra.mxu0 %v464
  %v552 = vpop.f32.mrf.mxu0
  %v553 = vadd.f32 0.0, %v552
  %554 = vdwg.mxu0
  %555 = vst [vmem:[#allocation1] ss:$4 sm:$0xff] %v278
  %v556 = vld.sshfl [vmem:[#allocation1] sm:$0xff pattern:$0x73625140]
  %v557 = vld.sshfl [vmem:[#allocation1 + $0x8] sm:$0xff pattern:$0x73625140]
  %v558 = vld.sshfl [vmem:[#allocation1 + $0x10] sm:$0xff pattern:$0x73625140]
  %v559 = vld.sshfl [vmem:[#allocation1 + $0x18] sm:$0xff pattern:$0x73625140]
  %v561 = vsel %vm462, %v455, 0
  %v563 = vsel %vm466, %v556, 0
  %v565 = vsel %vm466, %v557, 0
  %v567 = vsel %vm466, %v558, 0
  %v569 = vsel %vm466, %v559, 0
  %571 = vmatpush.msra.mxu0 0.0
  %572 = vmatpush.msra.mxu0 0.0
  %573 = vmatpush.msra.mxu0 0.0
  %574 = vmatpush.msra.mxu0 0.0
  %575 = vmatpush.msra.mxu0 0.0
  %576 = vmatpush.msra.mxu0 0.0
  %577 = vmatpush.msra.mxu0 0.0
  %578 = vmatpush.msra.mxu0 0.0
  %579 = vmatpush.msra.mxu0 0.0
  %580 = vmatpush.msra.mxu0 0.0
  %581 = vmatpush.msra.mxu0 0.0
  %582 = vmatpush.msra.mxu0 0.0
  %583 = vmatpush.msra.mxu0 0.0
  %584 = vmatpush.msra.mxu0 0.0
  %585 = vmatpush.msra.mxu0 0.0
  %586 = vmatpush.msra.mxu0 %v563
  %587 = vmatmul.f32.gmra.mxu0 %v561
  %v588 = vpop.f32.mrf.mxu0
  %v589 = vadd.f32 0.0, %v588
  %590 = vdwg.mxu0
  %591 = vmatpush.msra.mxu0 0.0
  %592 = vmatpush.msra.mxu0 0.0
  %593 = vmatpush.msra.mxu0 0.0
  %594 = vmatpush.msra.mxu0 0.0
  %595 = vmatpush.msra.mxu0 0.0
  %596 = vmatpush.msra.mxu0 0.0
  %597 = vmatpush.msra.mxu0 0.0
  %598 = vmatpush.msra.mxu0 0.0
  %599 = vmatpush.msra.mxu0 0.0
  %600 = vmatpush.msra.mxu0 0.0
  %601 = vmatpush.msra.mxu0 0.0
  %602 = vmatpush.msra.mxu0 0.0
  %603 = vmatpush.msra.mxu0 0.0
  %604 = vmatpush.msra.mxu0 0.0
  %605 = vmatpush.msra.mxu0 0.0
  %606 = vmatpush.msra.mxu0 %v565
  %607 = vmatmul.f32.gmra.mxu0 %v561
  %v608 = vpop.f32.mrf.mxu0
  %v609 = vadd.f32 0.0, %v608
  %610 = vdwg.mxu0
  %611 = vmatpush.msra.mxu0 0.0
  %612 = vmatpush.msra.mxu0 0.0
  %613 = vmatpush.msra.mxu0 0.0
  %614 = vmatpush.msra.mxu0 0.0
  %615 = vmatpush.msra.mxu0 0.0
  %616 = vmatpush.msra.mxu0 0.0
  %617 = vmatpush.msra.mxu0 0.0
  %618 = vmatpush.msra.mxu0 0.0
  %619 = vmatpush.msra.mxu0 0.0
  %620 = vmatpush.msra.mxu0 0.0
  %621 = vmatpush.msra.mxu0 0.0
  %622 = vmatpush.msra.mxu0 0.0
  %623 = vmatpush.msra.mxu0 0.0
  %624 = vmatpush.msra.mxu0 0.0
  %625 = vmatpush.msra.mxu0 0.0
  %626 = vmatpush.msra.mxu0 %v567
  %627 = vmatmul.f32.gmra.mxu0 %v561
  %v628 = vpop.f32.mrf.mxu0
  %v629 = vadd.f32 0.0, %v628
  %630 = vdwg.mxu0
  %631 = vmatpush.msra.mxu0 0.0
  %632 = vmatpush.msra.mxu0 0.0
  %633 = vmatpush.msra.mxu0 0.0
  %634 = vmatpush.msra.mxu0 0.0
  %635 = vmatpush.msra.mxu0 0.0
  %636 = vmatpush.msra.mxu0 0.0
  %637 = vmatpush.msra.mxu0 0.0
  %638 = vmatpush.msra.mxu0 0.0
  %639 = vmatpush.msra.mxu0 0.0
  %640 = vmatpush.msra.mxu0 0.0
  %641 = vmatpush.msra.mxu0 0.0
  %642 = vmatpush.msra.mxu0 0.0
  %643 = vmatpush.msra.mxu0 0.0
  %644 = vmatpush.msra.mxu0 0.0
  %645 = vmatpush.msra.mxu0 0.0
  %646 = vmatpush.msra.mxu0 %v569
  %647 = vmatmul.f32.gmra.mxu0 %v561
  %v648 = vpop.f32.mrf.mxu0
  %v649 = vadd.f32 0.0, %v648
  %650 = vdwg.mxu0
  %v651 = vsub.f32 %v152, %v493
  %v652 = vsub.f32 %v172, %v513
  %v653 = vsub.f32 %v192, %v533
  %v654 = vsub.f32 %v212, %v553
  %v655 = vmul.f32 %v651, %v589
  %v656 = vmul.f32 %v652, %v609
  %v657 = vmul.f32 %v653, %v629
  %v658 = vmul.f32 %v654, %v649
  %v659 = vmul.f32 %v655, 0.5
  %v660 = vmul.f32 %v656, 0.5
  %v661 = vmul.f32 %v657, 0.5
  %v662 = vmul.f32 %v658, 0.5
  %v663 = vmul.f32 %v655, 0.70710677
  %v664 = vmul.f32 %v656, 0.70710677
  %v665 = vmul.f32 %v657, 0.70710677
  %v666 = vmul.f32 %v658, 0.70710677
  %v667 = vand.u32 2147483647, %v663
  %v668 = vand.u32 2147483647, %v664
  %v669 = vand.u32 2147483647, %v665
  %v670 = vand.u32 2147483647, %v666
  %v671 = vmul.f32 %v667, 0.3275911
  %v672 = vmul.f32 %v668, 0.3275911
  %v673 = vmul.f32 %v669, 0.3275911
  %v674 = vmul.f32 %v670, 0.3275911
  %v675 = vadd.f32 %v671, 1.0
  %v676 = vadd.f32 %v672, 1.0
  %v677 = vadd.f32 %v673, 1.0
  %v678 = vadd.f32 %v674, 1.0
  %v679 = vrcp.pop %v675
  %v680 = vmul.f32 %v675, %v679
  %v681 = vsub.f32 1.0, %v680
  %v682 = vmul.f32 %v679, %v681
  %v683 = vadd.f32 %v679, %v682
  %vm684 = vweird.f32 %v675
  %vm685 = vweird.f32 %v679
  %vm686 = vmor %vm684, %vm685
  %v687 = vsel %vm686, %v679, %v683
  %v688 = vand.u32 2147483647, %v675
  %vm689 = vcmp.eq.f32.partialorder %v688, 8.507059e+37
  %v690 = vand.u32 %v675, 2147483648
  %v691 = vor.u32 1.1754944e-38, %v690
  %v692 = vsel %vm689, %v691, %v687
  %v693 = vmul.f32 1.0, %v692
  %v694 = vrcp.pop %v676
  %v695 = vmul.f32 %v676, %v694
  %v696 = vsub.f32 1.0, %v695
  %v697 = vmul.f32 %v694, %v696
  %v698 = vadd.f32 %v694, %v697
  %vm699 = vweird.f32 %v676
  %vm700 = vweird.f32 %v694
  %vm701 = vmor %vm699, %vm700
  %v702 = vsel %vm701, %v694, %v698
  %v703 = vand.u32 2147483647, %v676
  %vm704 = vcmp.eq.f32.partialorder %v703, 8.507059e+37
  %v705 = vand.u32 %v676, 2147483648
  %v706 = vor.u32 1.1754944e-38, %v705
  %v707 = vsel %vm704, %v706, %v702
  %v708 = vmul.f32 1.0, %v707
  %v709 = vrcp.pop %v677
  %v710 = vmul.f32 %v677, %v709
  %v711 = vsub.f32 1.0, %v710
  %v712 = vmul.f32 %v709, %v711
  %v713 = vadd.f32 %v709, %v712
  %vm714 = vweird.f32 %v677
  %vm715 = vweird.f32 %v709
  %vm716 = vmor %vm714, %vm715
  %v717 = vsel %vm716, %v709, %v713
  %v718 = vand.u32 2147483647, %v677
  %vm719 = vcmp.eq.f32.partialorder %v718, 8.507059e+37
  %v720 = vand.u32 %v677, 2147483648
  %v721 = vor.u32 1.1754944e-38, %v720
  %v722 = vsel %vm719, %v721, %v717
  %v723 = vmul.f32 1.0, %v722
  %v724 = vrcp.pop %v678
  %v725 = vmul.f32 %v678, %v724
  %v726 = vsub.f32 1.0, %v725
  %v727 = vmul.f32 %v724, %v726
  %v728 = vadd.f32 %v724, %v727
  %vm729 = vweird.f32 %v678
  %vm730 = vweird.f32 %v724
  %vm731 = vmor %vm729, %vm730
  %v732 = vsel %vm731, %v724, %v728
  %v733 = vand.u32 2147483647, %v678
  %vm734 = vcmp.eq.f32.partialorder %v733, 8.507059e+37
  %v735 = vand.u32 %v678, 2147483648
  %v736 = vor.u32 1.1754944e-38, %v735
  %v737 = vsel %vm734, %v736, %v732
  %v738 = vmul.f32 1.0, %v737
  %v739 = vmul.f32 %v693, 1.0614054
  %v740 = vmul.f32 %v708, 1.0614054
  %v741 = vmul.f32 %v723, 1.0614054
  %v742 = vmul.f32 %v738, 1.0614054
  %v743 = vadd.f32 %v739, -1.4531521
  %v744 = vadd.f32 %v740, -1.4531521
  %v745 = vadd.f32 %v741, -1.4531521
  %v746 = vadd.f32 %v742, -1.4531521
  %v747 = vmul.f32 %v743, %v693
  %v748 = vmul.f32 %v744, %v708
  %v749 = vmul.f32 %v745, %v723
  %v750 = vmul.f32 %v746, %v738
  %v751 = vadd.f32 %v747, 1.4214138
  %v752 = vadd.f32 %v748, 1.4214138
  %v753 = vadd.f32 %v749, 1.4214138
  %v754 = vadd.f32 %v750, 1.4214138
  %v755 = vmul.f32 %v751, %v693
  %v756 = vmul.f32 %v752, %v708
  %v757 = vmul.f32 %v753, %v723
  %v758 = vmul.f32 %v754, %v738
  %v759 = vadd.f32 %v755, -0.28449672
  %v760 = vadd.f32 %v756, -0.28449672
  %v761 = vadd.f32 %v757, -0.28449672
  %v762 = vadd.f32 %v758, -0.28449672
  %v763 = vmul.f32 %v759, %v693
  %v764 = vmul.f32 %v760, %v708
  %v765 = vmul.f32 %v761, %v723
  %v766 = vmul.f32 %v762, %v738
  %v767 = vadd.f32 %v763, 0.2548296
  %v768 = vadd.f32 %v764, 0.2548296
  %v769 = vadd.f32 %v765, 0.2548296
  %v770 = vadd.f32 %v766, 0.2548296
  %v771 = vmul.f32 %v767, %v693
  %v772 = vmul.f32 %v768, %v708
  %v773 = vmul.f32 %v769, %v723
  %v774 = vmul.f32 %v770, %v738
  %v775 = vsub.f32 0.0, %v667
  %v776 = vsub.f32 0.0, %v668
  %v777 = vsub.f32 0.0, %v669
  %v778 = vsub.f32 0.0, %v670
  %v779 = vmul.f32 %v775, %v667
  %v780 = vmul.f32 %v776, %v668
  %v781 = vmul.f32 %v777, %v669
  %v782 = vmul.f32 %v778, %v670
  %v783 = vmul.f32 %v779, 1.442695
  %v784 = vpow.pop %v783
  %v785 = vmul.f32 %v780, 1.442695
  %v786 = vpow.pop %v785
  %v787 = vmul.f32 %v781, 1.442695
  %v788 = vpow.pop %v787
  %v789 = vmul.f32 %v782, 1.442695
  %v790 = vpow.pop %v789
  %v791 = vmul.f32 %v771, %v784
  %v792 = vmul.f32 %v772, %v786
  %v793 = vmul.f32 %v773, %v788
  %v794 = vmul.f32 %v774, %v790
  %v795 = vsub.f32 1.0, %v791
  %v796 = vsub.f32 1.0, %v792
  %v797 = vsub.f32 1.0, %v793
  %v798 = vsub.f32 1.0, %v794
  %vm799 = vcmp.ge.f32.partialorder %v663, 0.0
  %vm800 = vcmp.ge.f32.partialorder %v664, 0.0
  %vm801 = vcmp.ge.f32.partialorder %v665, 0.0
  %vm802 = vcmp.ge.f32.partialorder %v666, 0.0
  %v803 = vsub.f32 0.0, %v795
  %v804 = vsub.f32 0.0, %v796
  %v805 = vsub.f32 0.0, %v797
  %v806 = vsub.f32 0.0, %v798
  %v807 = vsel %vm799, %v795, %v803
  %v808 = vsel %vm800, %v796, %v804
  %v809 = vsel %vm801, %v797, %v805
  %v810 = vsel %vm802, %v798, %v806
  %v811 = vadd.f32 %v807, 1.0
  %v812 = vadd.f32 %v808, 1.0
  %v813 = vadd.f32 %v809, 1.0
  %v814 = vadd.f32 %v810, 1.0
  %v815 = vmul.f32 %v659, %v811
  %v816 = vmul.f32 %v660, %v812
  %v817 = vmul.f32 %v661, %v813
  %v818 = vmul.f32 %v662, %v814
  %v819 = vld [vmem:[%s3] sm:$0xff]
  %v820 = vld [vmem:[%s4] sm:$0xff]
  %822 = vset.pattern.permute.xlu0 0
  %823 = vperm.xlu0 %822, %v820
  %v824 = vpop.permute.xlu0 %823
  %vm826 = vcmask 64512
  %v828 = vsel %vm826, %v819, 0
  %830 = vmatpush.msra.mxu0 0.0
  %831 = vmatpush.msra.mxu0 0.0
  %832 = vmatpush.msra.mxu0 0.0
  %833 = vmatpush.msra.mxu0 0.0
  %834 = vmatpush.msra.mxu0 0.0
  %835 = vmatpush.msra.mxu0 0.0
  %836 = vmatpush.msra.mxu0 0.0
  %837 = vmatpush.msra.mxu0 0.0
  %838 = vmatpush.msra.mxu0 0.0
  %839 = vmatpush.msra.mxu0 0.0
  %840 = vmatpush.msra.mxu0 0.0
  %841 = vmatpush.msra.mxu0 0.0
  %842 = vmatpush.msra.mxu0 0.0
  %843 = vmatpush.msra.mxu0 0.0
  %844 = vmatpush.msra.mxu0 0.0
  %845 = vmatpush.msra.mxu0 %v815
  %846 = vmatmul.f32.gmra.mxu0 %v828
  %v847 = vpop.f32.mrf.mxu0
  %v848 = vadd.f32 %v824, %v847
  %849 = vdwg.mxu0
  %850 = vmatpush.msra.mxu0 0.0
  %851 = vmatpush.msra.mxu0 0.0
  %852 = vmatpush.msra.mxu0 0.0
  %853 = vmatpush.msra.mxu0 0.0
  %854 = vmatpush.msra.mxu0 0.0
  %855 = vmatpush.msra.mxu0 0.0
  %856 = vmatpush.msra.mxu0 0.0
  %857 = vmatpush.msra.mxu0 0.0
  %858 = vmatpush.msra.mxu0 0.0
  %859 = vmatpush.msra.mxu0 0.0
  %860 = vmatpush.msra.mxu0 0.0
  %861 = vmatpush.msra.mxu0 0.0
  %862 = vmatpush.msra.mxu0 0.0
  %863 = vmatpush.msra.mxu0 0.0
  %864 = vmatpush.msra.mxu0 0.0
  %865 = vmatpush.msra.mxu0 %v816
  %866 = vmatmul.f32.gmra.mxu0 %v828
  %v867 = vpop.f32.mrf.mxu0
  %v868 = vadd.f32 %v824, %v867
  %869 = vdwg.mxu0
  %870 = vmatpush.msra.mxu0 0.0
  %871 = vmatpush.msra.mxu0 0.0
  %872 = vmatpush.msra.mxu0 0.0
  %873 = vmatpush.msra.mxu0 0.0
  %874 = vmatpush.msra.mxu0 0.0
  %875 = vmatpush.msra.mxu0 0.0
  %876 = vmatpush.msra.mxu0 0.0
  %877 = vmatpush.msra.mxu0 0.0
  %878 = vmatpush.msra.mxu0 0.0
  %879 = vmatpush.msra.mxu0 0.0
  %880 = vmatpush.msra.mxu0 0.0
  %881 = vmatpush.msra.mxu0 0.0
  %882 = vmatpush.msra.mxu0 0.0
  %883 = vmatpush.msra.mxu0 0.0
  %884 = vmatpush.msra.mxu0 0.0
  %885 = vmatpush.msra.mxu0 %v817
  %886 = vmatmul.f32.gmra.mxu0 %v828
  %v887 = vpop.f32.mrf.mxu0
  %v888 = vadd.f32 %v824, %v887
  %889 = vdwg.mxu0
  %890 = vmatpush.msra.mxu0 0.0
  %891 = vmatpush.msra.mxu0 0.0
  %892 = vmatpush.msra.mxu0 0.0
  %893 = vmatpush.msra.mxu0 0.0
  %894 = vmatpush.msra.mxu0 0.0
  %895 = vmatpush.msra.mxu0 0.0
  %896 = vmatpush.msra.mxu0 0.0
  %897 = vmatpush.msra.mxu0 0.0
  %898 = vmatpush.msra.mxu0 0.0
  %899 = vmatpush.msra.mxu0 0.0
  %900 = vmatpush.msra.mxu0 0.0
  %901 = vmatpush.msra.mxu0 0.0
  %902 = vmatpush.msra.mxu0 0.0
  %903 = vmatpush.msra.mxu0 0.0
  %904 = vmatpush.msra.mxu0 0.0
  %905 = vmatpush.msra.mxu0 %v818
  %906 = vmatmul.f32.gmra.mxu0 %v828
  %v907 = vpop.f32.mrf.mxu0
  %v908 = vadd.f32 %v824, %v907
  %909 = vdwg.mxu0
  %v910 = vld [vmem:[%s5] sm:$0xff]
  %v911 = vld [vmem:[%s5 + $0x8] sm:$0xff]
  %v912 = vld [vmem:[%s5 + $0x10] sm:$0xff]
  %v913 = vld [vmem:[%s5 + $0x18] sm:$0xff]
  %v914 = vld [vmem:[%s5 + $0x20] sm:$0xff]
  %v915 = vld [vmem:[%s5 + $0x28] sm:$0xff]
  %v916 = vld [vmem:[%s5 + $0x30] sm:$0xff]
  %v917 = vld [vmem:[%s5 + $0x38] sm:$0xff]
  %v918 = vld [vmem:[%s5 + $0x40] sm:$0xff]
  %v919 = vld [vmem:[%s5 + $0x48] sm:$0xff]
  %v920 = vld [vmem:[%s5 + $0x50] sm:$0xff]
  %v921 = vld [vmem:[%s5 + $0x58] sm:$0xff]
  %v922 = vld [vmem:[%s5 + $0x60] sm:$0xff]
  %v923 = vld [vmem:[%s5 + $0x68] sm:$0xff]
  %v924 = vld [vmem:[%s5 + $0x70] sm:$0xff]
  %v925 = vld [vmem:[%s5 + $0x78] sm:$0xff]
  %v926 = vld [vmem:[%s5 + $0x80] sm:$0xff]
  %v927 = vld [vmem:[%s5 + $0x88] sm:$0xff]
  %v928 = vld [vmem:[%s5 + $0x90] sm:$0xff]
  %v929 = vld [vmem:[%s5 + $0x98] sm:$0xff]
  %v930 = vld [vmem:[%s5 + $0xa0] sm:$0xff]
  %v931 = vld [vmem:[%s5 + $0xa8] sm:$0xff]
  %v932 = vld [vmem:[%s5 + $0xb0] sm:$0xff]
  %v933 = vld [vmem:[%s5 + $0xb8] sm:$0xff]
  %v934 = vld [vmem:[%s5 + $0xc0] sm:$0xff]
  %v935 = vld [vmem:[%s5 + $0xc8] sm:$0xff]
  %v936 = vld [vmem:[%s5 + $0xd0] sm:$0xff]
  %v937 = vld [vmem:[%s5 + $0xd8] sm:$0xff]
  %v938 = vld [vmem:[%s5 + $0xe0] sm:$0xff]
  %v939 = vld [vmem:[%s5 + $0xe8] sm:$0xff]
  %v940 = vld [vmem:[%s5 + $0xf0] sm:$0xff]
  %v941 = vld [vmem:[%s5 + $0xf8] sm:$0xff]
  %v942 = vld [vmem:[%s5 + $0x100] sm:$0xff]
  %v943 = vld [vmem:[%s5 + $0x108] sm:$0xff]
  %v944 = vld [vmem:[%s5 + $0x110] sm:$0xff]
  %v945 = vld [vmem:[%s5 + $0x118] sm:$0xff]
  %v946 = vld [vmem:[%s5 + $0x120] sm:$0xff]
  %v947 = vld [vmem:[%s5 + $0x128] sm:$0xff]
  %v948 = vld [vmem:[%s5 + $0x130] sm:$0xff]
  %v949 = vld [vmem:[%s5 + $0x138] sm:$0xff]
  %v950 = vld [vmem:[%s5 + $0x140] sm:$0xff]
  %v951 = vld [vmem:[%s5 + $0x148] sm:$0xff]
  %v952 = vld [vmem:[%s5 + $0x150] sm:$0xff]
  %v953 = vld [vmem:[%s5 + $0x158] sm:$0xff]
  %v954 = vld [vmem:[%s5 + $0x160] sm:$0xff]
  %v955 = vld [vmem:[%s5 + $0x168] sm:$0xff]
  %v956 = vld [vmem:[%s5 + $0x170] sm:$0xff]
  %v957 = vld [vmem:[%s5 + $0x178] sm:$0xff]
  %v958 = vld [vmem:[%s5 + $0x180] sm:$0xff]
  %v959 = vld [vmem:[%s5 + $0x188] sm:$0xff]
  %v960 = vld [vmem:[%s5 + $0x190] sm:$0xff]
  %v961 = vld [vmem:[%s5 + $0x198] sm:$0xff]
  %v962 = vld [vmem:[%s5 + $0x1a0] sm:$0xff]
  %v963 = vld [vmem:[%s5 + $0x1a8] sm:$0xff]
  %v964 = vld [vmem:[%s5 + $0x1b0] sm:$0xff]
  %v965 = vld [vmem:[%s5 + $0x1b8] sm:$0xff]
  %v966 = vld [vmem:[%s5 + $0x1c0] sm:$0xff]
  %v967 = vld [vmem:[%s5 + $0x1c8] sm:$0xff]
  %v968 = vld [vmem:[%s5 + $0x1d0] sm:$0xff]
  %v969 = vld [vmem:[%s5 + $0x1d8] sm:$0xff]
  %v970 = vld [vmem:[%s5 + $0x1e0] sm:$0xff]
  %v971 = vld [vmem:[%s5 + $0x1e8] sm:$0xff]
  %v972 = vld [vmem:[%s5 + $0x1f0] sm:$0xff]
  %v973 = vld [vmem:[%s5 + $0x1f8] sm:$0xff]
  %974 = vmatpush.msra.mxu0 %v925
  %975 = vmatpush.msra.mxu0 %v924
  %976 = vmatpush.msra.mxu0 %v923
  %977 = vmatpush.msra.mxu0 %v922
  %978 = vmatpush.msra.mxu0 %v921
  %979 = vmatpush.msra.mxu0 %v920
  %980 = vmatpush.msra.mxu0 %v919
  %981 = vmatpush.msra.mxu0 %v918
  %982 = vmatpush.msra.mxu0 %v917
  %983 = vmatpush.msra.mxu0 %v916
  %984 = vmatpush.msra.mxu0 %v915
  %985 = vmatpush.msra.mxu0 %v914
  %986 = vmatpush.msra.mxu0 %v913
  %987 = vmatpush.msra.mxu0 %v912
  %988 = vmatpush.msra.mxu0 %v911
  %989 = vmatpush.msra.mxu0 %v910
  %990 = vmatmul.f32.gmra.mxu0 %v848
  %v991 = vpop.f32.mrf.mxu0
  %v992 = vadd.f32 0.0, %v991
  %993 = vdwg.mxu0
  %994 = vmatpush.msra.mxu0 %v941
  %995 = vmatpush.msra.mxu0 %v940
  %996 = vmatpush.msra.mxu0 %v939
  %997 = vmatpush.msra.mxu0 %v938
  %998 = vmatpush.msra.mxu0 %v937
  %999 = vmatpush.msra.mxu0 %v936
  %1000 = vmatpush.msra.mxu0 %v935
  %1001 = vmatpush.msra.mxu0 %v934
  %1002 = vmatpush.msra.mxu0 %v933
  %1003 = vmatpush.msra.mxu0 %v932
  %1004 = vmatpush.msra.mxu0 %v931
  %1005 = vmatpush.msra.mxu0 %v930
  %1006 = vmatpush.msra.mxu0 %v929
  %1007 = vmatpush.msra.mxu0 %v928
  %1008 = vmatpush.msra.mxu0 %v927
  %1009 = vmatpush.msra.mxu0 %v926
  %1010 = vmatmul.f32.gmra.mxu0 %v868
  %v1011 = vpop.f32.mrf.mxu0
  %v1012 = vadd.f32 %v992, %v1011
  %1013 = vdwg.mxu0
  %1014 = vmatpush.msra.mxu0 %v957
  %1015 = vmatpush.msra.mxu0 %v956
  %1016 = vmatpush.msra.mxu0 %v955
  %1017 = vmatpush.msra.mxu0 %v954
  %1018 = vmatpush.msra.mxu0 %v953
  %1019 = vmatpush.msra.mxu0 %v952
  %1020 = vmatpush.msra.mxu0 %v951
  %1021 = vmatpush.msra.mxu0 %v950
  %1022 = vmatpush.msra.mxu0 %v949
  %1023 = vmatpush.msra.mxu0 %v948
  %1024 = vmatpush.msra.mxu0 %v947
  %1025 = vmatpush.msra.mxu0 %v946
  %1026 = vmatpush.msra.mxu0 %v945
  %1027 = vmatpush.msra.mxu0 %v944
  %1028 = vmatpush.msra.mxu0 %v943
  %1029 = vmatpush.msra.mxu0 %v942
  %1030 = vmatmul.f32.gmra.mxu0 %v888
  %v1031 = vpop.f32.mrf.mxu0
  %v1032 = vadd.f32 %v1012, %v1031
  %1033 = vdwg.mxu0
  %1034 = vmatpush.msra.mxu0 %v973
  %1035 = vmatpush.msra.mxu0 %v972
  %1036 = vmatpush.msra.mxu0 %v971
  %1037 = vmatpush.msra.mxu0 %v970
  %1038 = vmatpush.msra.mxu0 %v969
  %1039 = vmatpush.msra.mxu0 %v968
  %1040 = vmatpush.msra.mxu0 %v967
  %1041 = vmatpush.msra.mxu0 %v966
  %1042 = vmatpush.msra.mxu0 %v965
  %1043 = vmatpush.msra.mxu0 %v964
  %1044 = vmatpush.msra.mxu0 %v963
  %1045 = vmatpush.msra.mxu0 %v962
  %1046 = vmatpush.msra.mxu0 %v961
  %1047 = vmatpush.msra.mxu0 %v960
  %1048 = vmatpush.msra.mxu0 %v959
  %1049 = vmatpush.msra.mxu0 %v958
  %1050 = vmatmul.f32.gmra.mxu0 %v908
  %v1051 = vpop.f32.mrf.mxu0
  %v1052 = vadd.f32 %v1032, %v1051
  %1053 = vdwg.mxu0
  %v1054 = vld [vmem:[%s7] sm:$0xff]
  %v1055 = vld [vmem:[%s7 + $0x8] sm:$0xff]
  %v1056 = vld [vmem:[%s6] sm:$0xff]
  %v1057 = vld [vmem:[%s6 + $0x8] sm:$0xff]
  %v1058 = vld [vmem:[%s6 + $0x10] sm:$0xff]
  %v1059 = vld [vmem:[%s6 + $0x18] sm:$0xff]
  %v1060 = vld [vmem:[%s6 + $0x20] sm:$0xff]
  %v1061 = vld [vmem:[%s6 + $0x28] sm:$0xff]
  %v1062 = vld [vmem:[%s6 + $0x30] sm:$0xff]
  %v1063 = vld [vmem:[%s6 + $0x38] sm:$0xff]
  %v1064 = vld [vmem:[%s6 + $0x40] sm:$0xff]
  %v1065 = vld [vmem:[%s6 + $0x48] sm:$0xff]
  %v1066 = vld [vmem:[%s6 + $0x50] sm:$0xff]
  %v1067 = vld [vmem:[%s6 + $0x58] sm:$0xff]
  %v1068 = vld [vmem:[%s6 + $0x60] sm:$0xff]
  %v1069 = vld [vmem:[%s6 + $0x68] sm:$0xff]
  %v1070 = vld [vmem:[%s6 + $0x70] sm:$0xff]
  %v1071 = vld [vmem:[%s6 + $0x78] sm:$0xff]
  %1072 = vmatpush.msra.mxu0 %v1071
  %1073 = vmatpush.msra.mxu0 %v1070
  %1074 = vmatpush.msra.mxu0 %v1069
  %1075 = vmatpush.msra.mxu0 %v1068
  %1076 = vmatpush.msra.mxu0 %v1067
  %1077 = vmatpush.msra.mxu0 %v1066
  %1078 = vmatpush.msra.mxu0 %v1065
  %1079 = vmatpush.msra.mxu0 %v1064
  %1080 = vmatpush.msra.mxu0 %v1063
  %1081 = vmatpush.msra.mxu0 %v1062
  %1082 = vmatpush.msra.mxu0 %v1061
  %1083 = vmatpush.msra.mxu0 %v1060
  %1084 = vmatpush.msra.mxu0 %v1059
  %1085 = vmatpush.msra.mxu0 %v1058
  %1086 = vmatpush.msra.mxu0 %v1057
  %1087 = vmatpush.msra.mxu0 %v1056
  %1088 = vmatmul.f32.gmra.mxu0 %v1052
  %v1089 = vpop.f32.mrf.mxu0
  %v1090 = vadd.f32 0.0, %v1089
  %1091 = vdwg.mxu0
  %s1092 = scalar_lea.vmem %s6, 128
  %v1093 = vld [vmem:[%s1092] sm:$0xff]
  %v1094 = vld [vmem:[%s1092 + $0x8] sm:$0xff]
  %v1095 = vld [vmem:[%s1092 + $0x10] sm:$0xff]
  %v1096 = vld [vmem:[%s1092 + $0x18] sm:$0xff]
  %v1097 = vld [vmem:[%s1092 + $0x20] sm:$0xff]
  %v1098 = vld [vmem:[%s1092 + $0x28] sm:$0xff]
  %v1099 = vld [vmem:[%s1092 + $0x30] sm:$0xff]
  %v1100 = vld [vmem:[%s1092 + $0x38] sm:$0xff]
  %v1101 = vld [vmem:[%s1092 + $0x40] sm:$0xff]
  %v1102 = vld [vmem:[%s1092 + $0x48] sm:$0xff]
  %v1103 = vld [vmem:[%s1092 + $0x50] sm:$0xff]
  %v1104 = vld [vmem:[%s1092 + $0x58] sm:$0xff]
  %v1105 = vld [vmem:[%s1092 + $0x60] sm:$0xff]
  %v1106 = vld [vmem:[%s1092 + $0x68] sm:$0xff]
  %v1107 = vld [vmem:[%s1092 + $0x70] sm:$0xff]
  %v1108 = vld [vmem:[%s1092 + $0x78] sm:$0xff]
  %1109 = vmatpush.msra.mxu0 %v1108
  %1110 = vmatpush.msra.mxu0 %v1107
  %1111 = vmatpush.msra.mxu0 %v1106
  %1112 = vmatpush.msra.mxu0 %v1105
  %1113 = vmatpush.msra.mxu0 %v1104
  %1114 = vmatpush.msra.mxu0 %v1103
  %1115 = vmatpush.msra.mxu0 %v1102
  %1116 = vmatpush.msra.mxu0 %v1101
  %1117 = vmatpush.msra.mxu0 %v1100
  %1118 = vmatpush.msra.mxu0 %v1099
  %1119 = vmatpush.msra.mxu0 %v1098
  %1120 = vmatpush.msra.mxu0 %v1097
  %1121 = vmatpush.msra.mxu0 %v1096
  %1122 = vmatpush.msra.mxu0 %v1095
  %1123 = vmatpush.msra.mxu0 %v1094
  %1124 = vmatpush.msra.mxu0 %v1093
  %1125 = vmatmul.f32.gmra.mxu0 %v1052
  %v1126 = vpop.f32.mrf.mxu0
  %v1127 = vadd.f32 0.0, %v1126
  %1128 = vdwg.mxu0
  %s1129 = scalar_lea.vmem %s7, 16
  %v1130 = vld [vmem:[%s1129] sm:$0xff]
  %v1131 = vld [vmem:[%s1129 + $0x8] sm:$0xff]
  %v1133 = vsel %vm826, %v1130, 0
  %v1136 = vsel %vm826, %v1131, 0
  %1138 = vmatpush.msra.mxu0 0.0
  %1139 = vmatpush.msra.mxu0 0.0
  %1140 = vmatpush.msra.mxu0 0.0
  %1141 = vmatpush.msra.mxu0 0.0
  %1142 = vmatpush.msra.mxu0 0.0
  %1143 = vmatpush.msra.mxu0 0.0
  %1144 = vmatpush.msra.mxu0 0.0
  %1145 = vmatpush.msra.mxu0 0.0
  %1146 = vmatpush.msra.mxu0 0.0
  %1147 = vmatpush.msra.mxu0 0.0
  %1148 = vmatpush.msra.mxu0 0.0
  %1149 = vmatpush.msra.mxu0 0.0
  %1150 = vmatpush.msra.mxu0 0.0
  %1151 = vmatpush.msra.mxu0 0.0
  %1152 = vmatpush.msra.mxu0 0.0
  %1153 = vmatpush.msra.mxu0 %v1127
  %1154 = vmatmul.f32.gmra.mxu0 %v1133
  %v1155 = vpop.f32.mrf.mxu0
  %v1156 = vadd.f32 0.0, %v1155
  %1157 = vmatmul.f32.gmra.mxu0 %v1136
  %v1158 = vpop.f32.mrf.mxu0
  %v1159 = vadd.f32 0.0, %v1158
  %1160 = vdwg.mxu0
  %v1162 = vsel %vm826, %v1054, 0
  %v1165 = vsel %vm826, %v1055, 0
  %1167 = vmatpush.msra.mxu0 0.0
  %1168 = vmatpush.msra.mxu0 0.0
  %1169 = vmatpush.msra.mxu0 0.0
  %1170 = vmatpush.msra.mxu0 0.0
  %1171 = vmatpush.msra.mxu0 0.0
  %1172 = vmatpush.msra.mxu0 0.0
  %1173 = vmatpush.msra.mxu0 0.0
  %1174 = vmatpush.msra.mxu0 0.0
  %1175 = vmatpush.msra.mxu0 0.0
  %1176 = vmatpush.msra.mxu0 0.0
  %1177 = vmatpush.msra.mxu0 0.0
  %1178 = vmatpush.msra.mxu0 0.0
  %1179 = vmatpush.msra.mxu0 0.0
  %1180 = vmatpush.msra.mxu0 0.0
  %1181 = vmatpush.msra.mxu0 0.0
  %1182 = vmatpush.msra.mxu0 %v1090
  %1183 = vmatmul.f32.gmra.mxu0 %v1162
  %v1184 = vpop.f32.mrf.mxu0
  %v1185 = vadd.f32 %v1156, %v1184
  %1186 = vmatmul.f32.gmra.mxu0 %v1165
  %v1187 = vpop.f32.mrf.mxu0
  %v1188 = vadd.f32 %v1159, %v1187
  %1189 = vdwg.mxu0
  %s1190 = scalar_lea.vmem %s6, 256
  %v1191 = vld [vmem:[%s1190] sm:$0xff]
  %v1192 = vld [vmem:[%s1190 + $0x8] sm:$0xff]
  %v1193 = vld [vmem:[%s1190 + $0x10] sm:$0xff]
  %v1194 = vld [vmem:[%s1190 + $0x18] sm:$0xff]
  %v1195 = vld [vmem:[%s1190 + $0x20] sm:$0xff]
  %v1196 = vld [vmem:[%s1190 + $0x28] sm:$0xff]
  %v1197 = vld [vmem:[%s1190 + $0x30] sm:$0xff]
  %v1198 = vld [vmem:[%s1190 + $0x38] sm:$0xff]
  %v1199 = vld [vmem:[%s1190 + $0x40] sm:$0xff]
  %v1200 = vld [vmem:[%s1190 + $0x48] sm:$0xff]
  %v1201 = vld [vmem:[%s1190 + $0x50] sm:$0xff]
  %v1202 = vld [vmem:[%s1190 + $0x58] sm:$0xff]
  %v1203 = vld [vmem:[%s1190 + $0x60] sm:$0xff]
  %v1204 = vld [vmem:[%s1190 + $0x68] sm:$0xff]
  %v1205 = vld [vmem:[%s1190 + $0x70] sm:$0xff]
  %v1206 = vld [vmem:[%s1190 + $0x78] sm:$0xff]
  %1207 = vmatpush.msra.mxu0 %v1206
  %1208 = vmatpush.msra.mxu0 %v1205
  %1209 = vmatpush.msra.mxu0 %v1204
  %1210 = vmatpush.msra.mxu0 %v1203
  %1211 = vmatpush.msra.mxu0 %v1202
  %1212 = vmatpush.msra.mxu0 %v1201
  %1213 = vmatpush.msra.mxu0 %v1200
  %1214 = vmatpush.msra.mxu0 %v1199
  %1215 = vmatpush.msra.mxu0 %v1198
  %1216 = vmatpush.msra.mxu0 %v1197
  %1217 = vmatpush.msra.mxu0 %v1196
  %1218 = vmatpush.msra.mxu0 %v1195
  %1219 = vmatpush.msra.mxu0 %v1194
  %1220 = vmatpush.msra.mxu0 %v1193
  %1221 = vmatpush.msra.mxu0 %v1192
  %1222 = vmatpush.msra.mxu0 %v1191
  %1223 = vmatmul.f32.gmra.mxu0 %v1052
  %v1224 = vpop.f32.mrf.mxu0
  %v1225 = vadd.f32 0.0, %v1224
  %1226 = vdwg.mxu0
  %s1227 = scalar_lea.vmem %s7, 32
  %v1228 = vld [vmem:[%s1227] sm:$0xff]
  %v1229 = vld [vmem:[%s1227 + $0x8] sm:$0xff]
  %v1231 = vsel %vm826, %v1228, 0
  %v1234 = vsel %vm826, %v1229, 0
  %1236 = vmatpush.msra.mxu0 0.0
  %1237 = vmatpush.msra.mxu0 0.0
  %1238 = vmatpush.msra.mxu0 0.0
  %1239 = vmatpush.msra.mxu0 0.0
  %1240 = vmatpush.msra.mxu0 0.0
  %1241 = vmatpush.msra.mxu0 0.0
  %1242 = vmatpush.msra.mxu0 0.0
  %1243 = vmatpush.msra.mxu0 0.0
  %1244 = vmatpush.msra.mxu0 0.0
  %1245 = vmatpush.msra.mxu0 0.0
  %1246 = vmatpush.msra.mxu0 0.0
  %1247 = vmatpush.msra.mxu0 0.0
  %1248 = vmatpush.msra.mxu0 0.0
  %1249 = vmatpush.msra.mxu0 0.0
  %1250 = vmatpush.msra.mxu0 0.0
  %1251 = vmatpush.msra.mxu0 %v1225
  %1252 = vmatmul.f32.gmra.mxu0 %v1231
  %v1253 = vpop.f32.mrf.mxu0
  %v1254 = vadd.f32 0.0, %v1253
  %1255 = vmatmul.f32.gmra.mxu0 %v1234
  %v1256 = vpop.f32.mrf.mxu0
  %v1257 = vadd.f32 0.0, %v1256
  %1258 = vdwg.mxu0
  %v1259 = vadd.f32 %v1185, %v1254
  %v1260 = vadd.f32 %v1188, %v1257
  %s1261 = scalar_lea.vmem %s6, 384
  %v1262 = vld [vmem:[%s1261] sm:$0xff]
  %v1263 = vld [vmem:[%s1261 + $0x8] sm:$0xff]
  %v1264 = vld [vmem:[%s1261 + $0x10] sm:$0xff]
  %v1265 = vld [vmem:[%s1261 + $0x18] sm:$0xff]
  %v1266 = vld [vmem:[%s1261 + $0x20] sm:$0xff]
  %v1267 = vld [vmem:[%s1261 + $0x28] sm:$0xff]
  %v1268 = vld [vmem:[%s1261 + $0x30] sm:$0xff]
  %v1269 = vld [vmem:[%s1261 + $0x38] sm:$0xff]
  %v1270 = vld [vmem:[%s1261 + $0x40] sm:$0xff]
  %v1271 = vld [vmem:[%s1261 + $0x48] sm:$0xff]
  %v1272 = vld [vmem:[%s1261 + $0x50] sm:$0xff]
  %v1273 = vld [vmem:[%s1261 + $0x58] sm:$0xff]
  %v1274 = vld [vmem:[%s1261 + $0x60] sm:$0xff]
  %v1275 = vld [vmem:[%s1261 + $0x68] sm:$0xff]
  %v1276 = vld [vmem:[%s1261 + $0x70] sm:$0xff]
  %v1277 = vld [vmem:[%s1261 + $0x78] sm:$0xff]
  %1278 = vmatpush.msra.mxu0 %v1277
  %1279 = vmatpush.msra.mxu0 %v1276
  %1280 = vmatpush.msra.mxu0 %v1275
  %1281 = vmatpush.msra.mxu0 %v1274
  %1282 = vmatpush.msra.mxu0 %v1273
  %1283 = vmatpush.msra.mxu0 %v1272
  %1284 = vmatpush.msra.mxu0 %v1271
  %1285 = vmatpush.msra.mxu0 %v1270
  %1286 = vmatpush.msra.mxu0 %v1269
  %1287 = vmatpush.msra.mxu0 %v1268
  %1288 = vmatpush.msra.mxu0 %v1267
  %1289 = vmatpush.msra.mxu0 %v1266
  %1290 = vmatpush.msra.mxu0 %v1265
  %1291 = vmatpush.msra.mxu0 %v1264
  %1292 = vmatpush.msra.mxu0 %v1263
  %1293 = vmatpush.msra.mxu0 %v1262
  %1294 = vmatmul.f32.gmra.mxu0 %v1052
  %v1295 = vpop.f32.mrf.mxu0
  %v1296 = vadd.f32 0.0, %v1295
  %1297 = vdwg.mxu0
  %s1298 = scalar_lea.vmem %s7, 48
  %v1299 = vld [vmem:[%s1298] sm:$0xff]
  %v1300 = vld [vmem:[%s1298 + $0x8] sm:$0xff]
  %v1302 = vsel %vm826, %v1299, 0
  %v1305 = vsel %vm826, %v1300, 0
  %1307 = vmatpush.msra.mxu0 0.0
  %1308 = vmatpush.msra.mxu0 0.0
  %1309 = vmatpush.msra.mxu0 0.0
  %1310 = vmatpush.msra.mxu0 0.0
  %1311 = vmatpush.msra.mxu0 0.0
  %1312 = vmatpush.msra.mxu0 0.0
  %1313 = vmatpush.msra.mxu0 0.0
  %1314 = vmatpush.msra.mxu0 0.0
  %1315 = vmatpush.msra.mxu0 0.0
  %1316 = vmatpush.msra.mxu0 0.0
  %1317 = vmatpush.msra.mxu0 0.0
  %1318 = vmatpush.msra.mxu0 0.0
  %1319 = vmatpush.msra.mxu0 0.0
  %1320 = vmatpush.msra.mxu0 0.0
  %1321 = vmatpush.msra.mxu0 0.0
  %1322 = vmatpush.msra.mxu0 %v1296
  %1323 = vmatmul.f32.gmra.mxu0 %v1302
  %v1324 = vpop.f32.mrf.mxu0
  %v1325 = vadd.f32 0.0, %v1324
  %1326 = vmatmul.f32.gmra.mxu0 %v1305
  %v1327 = vpop.f32.mrf.mxu0
  %v1328 = vadd.f32 0.0, %v1327
  %1329 = vdwg.mxu0
  %v1330 = vadd.f32 %v1259, %v1325
  %v1331 = vadd.f32 %v1260, %v1328
  %s1332 = scalar_lea.vmem %s6, 512
  %v1333 = vld [vmem:[%s1332] sm:$0xff]
  %v1334 = vld [vmem:[%s1332 + $0x8] sm:$0xff]
  %v1335 = vld [vmem:[%s1332 + $0x10] sm:$0xff]
  %v1336 = vld [vmem:[%s1332 + $0x18] sm:$0xff]
  %v1337 = vld [vmem:[%s1332 + $0x20] sm:$0xff]
  %v1338 = vld [vmem:[%s1332 + $0x28] sm:$0xff]
  %v1339 = vld [vmem:[%s1332 + $0x30] sm:$0xff]
  %v1340 = vld [vmem:[%s1332 + $0x38] sm:$0xff]
  %v1341 = vld [vmem:[%s1332 + $0x40] sm:$0xff]
  %v1342 = vld [vmem:[%s1332 + $0x48] sm:$0xff]
  %v1343 = vld [vmem:[%s1332 + $0x50] sm:$0xff]
  %v1344 = vld [vmem:[%s1332 + $0x58] sm:$0xff]
  %v1345 = vld [vmem:[%s1332 + $0x60] sm:$0xff]
  %v1346 = vld [vmem:[%s1332 + $0x68] sm:$0xff]
  %v1347 = vld [vmem:[%s1332 + $0x70] sm:$0xff]
  %v1348 = vld [vmem:[%s1332 + $0x78] sm:$0xff]
  %1349 = vmatpush.msra.mxu0 %v1348
  %1350 = vmatpush.msra.mxu0 %v1347
  %1351 = vmatpush.msra.mxu0 %v1346
  %1352 = vmatpush.msra.mxu0 %v1345
  %1353 = vmatpush.msra.mxu0 %v1344
  %1354 = vmatpush.msra.mxu0 %v1343
  %1355 = vmatpush.msra.mxu0 %v1342
  %1356 = vmatpush.msra.mxu0 %v1341
  %1357 = vmatpush.msra.mxu0 %v1340
  %1358 = vmatpush.msra.mxu0 %v1339
  %1359 = vmatpush.msra.mxu0 %v1338
  %1360 = vmatpush.msra.mxu0 %v1337
  %1361 = vmatpush.msra.mxu0 %v1336
  %1362 = vmatpush.msra.mxu0 %v1335
  %1363 = vmatpush.msra.mxu0 %v1334
  %1364 = vmatpush.msra.mxu0 %v1333
  %1365 = vmatmul.f32.gmra.mxu0 %v1052
  %v1366 = vpop.f32.mrf.mxu0
  %v1367 = vadd.f32 0.0, %v1366
  %1368 = vdwg.mxu0
  %s1369 = scalar_lea.vmem %s7, 64
  %v1370 = vld [vmem:[%s1369] sm:$0xff]
  %v1371 = vld [vmem:[%s1369 + $0x8] sm:$0xff]
  %v1373 = vsel %vm826, %v1370, 0
  %v1376 = vsel %vm826, %v1371, 0
  %1378 = vmatpush.msra.mxu0 0.0
  %1379 = vmatpush.msra.mxu0 0.0
  %1380 = vmatpush.msra.mxu0 0.0
  %1381 = vmatpush.msra.mxu0 0.0
  %1382 = vmatpush.msra.mxu0 0.0
  %1383 = vmatpush.msra.mxu0 0.0
  %1384 = vmatpush.msra.mxu0 0.0
  %1385 = vmatpush.msra.mxu0 0.0
  %1386 = vmatpush.msra.mxu0 0.0
  %1387 = vmatpush.msra.mxu0 0.0
  %1388 = vmatpush.msra.mxu0 0.0
  %1389 = vmatpush.msra.mxu0 0.0
  %1390 = vmatpush.msra.mxu0 0.0
  %1391 = vmatpush.msra.mxu0 0.0
  %1392 = vmatpush.msra.mxu0 0.0
  %1393 = vmatpush.msra.mxu0 %v1367
  %1394 = vmatmul.f32.gmra.mxu0 %v1373
  %v1395 = vpop.f32.mrf.mxu0
  %v1396 = vadd.f32 0.0, %v1395
  %1397 = vmatmul.f32.gmra.mxu0 %v1376
  %v1398 = vpop.f32.mrf.mxu0
  %v1399 = vadd.f32 0.0, %v1398
  %1400 = vdwg.mxu0
  %v1401 = vadd.f32 %v1330, %v1396
  %v1402 = vadd.f32 %v1331, %v1399
  %s1403 = scalar_lea.vmem %s6, 640
  %v1404 = vld [vmem:[%s1403] sm:$0xff]
  %v1405 = vld [vmem:[%s1403 + $0x8] sm:$0xff]
  %v1406 = vld [vmem:[%s1403 + $0x10] sm:$0xff]
  %v1407 = vld [vmem:[%s1403 + $0x18] sm:$0xff]
  %v1408 = vld [vmem:[%s1403 + $0x20] sm:$0xff]
  %v1409 = vld [vmem:[%s1403 + $0x28] sm:$0xff]
  %v1410 = vld [vmem:[%s1403 + $0x30] sm:$0xff]
  %v1411 = vld [vmem:[%s1403 + $0x38] sm:$0xff]
  %v1412 = vld [vmem:[%s1403 + $0x40] sm:$0xff]
  %v1413 = vld [vmem:[%s1403 + $0x48] sm:$0xff]
  %v1414 = vld [vmem:[%s1403 + $0x50] sm:$0xff]
  %v1415 = vld [vmem:[%s1403 + $0x58] sm:$0xff]
  %v1416 = vld [vmem:[%s1403 + $0x60] sm:$0xff]
  %v1417 = vld [vmem:[%s1403 + $0x68] sm:$0xff]
  %v1418 = vld [vmem:[%s1403 + $0x70] sm:$0xff]
  %v1419 = vld [vmem:[%s1403 + $0x78] sm:$0xff]
  %1420 = vmatpush.msra.mxu0 %v1419
  %1421 = vmatpush.msra.mxu0 %v1418
  %1422 = vmatpush.msra.mxu0 %v1417
  %1423 = vmatpush.msra.mxu0 %v1416
  %1424 = vmatpush.msra.mxu0 %v1415
  %1425 = vmatpush.msra.mxu0 %v1414
  %1426 = vmatpush.msra.mxu0 %v1413
  %1427 = vmatpush.msra.mxu0 %v1412
  %1428 = vmatpush.msra.mxu0 %v1411
  %1429 = vmatpush.msra.mxu0 %v1410
  %1430 = vmatpush.msra.mxu0 %v1409
  %1431 = vmatpush.msra.mxu0 %v1408
  %1432 = vmatpush.msra.mxu0 %v1407
  %1433 = vmatpush.msra.mxu0 %v1406
  %1434 = vmatpush.msra.mxu0 %v1405
  %1435 = vmatpush.msra.mxu0 %v1404
  %1436 = vmatmul.f32.gmra.mxu0 %v1052
  %v1437 = vpop.f32.mrf.mxu0
  %v1438 = vadd.f32 0.0, %v1437
  %1439 = vdwg.mxu0
  %s1440 = scalar_lea.vmem %s7, 80
  %v1441 = vld [vmem:[%s1440] sm:$0xff]
  %v1442 = vld [vmem:[%s1440 + $0x8] sm:$0xff]
  %v1444 = vsel %vm826, %v1441, 0
  %v1447 = vsel %vm826, %v1442, 0
  %1449 = vmatpush.msra.mxu0 0.0
  %1450 = vmatpush.msra.mxu0 0.0
  %1451 = vmatpush.msra.mxu0 0.0
  %1452 = vmatpush.msra.mxu0 0.0
  %1453 = vmatpush.msra.mxu0 0.0
  %1454 = vmatpush.msra.mxu0 0.0
  %1455 = vmatpush.msra.mxu0 0.0
  %1456 = vmatpush.msra.mxu0 0.0
  %1457 = vmatpush.msra.mxu0 0.0
  %1458 = vmatpush.msra.mxu0 0.0
  %1459 = vmatpush.msra.mxu0 0.0
  %1460 = vmatpush.msra.mxu0 0.0
  %1461 = vmatpush.msra.mxu0 0.0
  %1462 = vmatpush.msra.mxu0 0.0
  %1463 = vmatpush.msra.mxu0 0.0
  %1464 = vmatpush.msra.mxu0 %v1438
  %1465 = vmatmul.f32.gmra.mxu0 %v1444
  %v1466 = vpop.f32.mrf.mxu0
  %v1467 = vadd.f32 0.0, %v1466
  %1468 = vmatmul.f32.gmra.mxu0 %v1447
  %v1469 = vpop.f32.mrf.mxu0
  %v1470 = vadd.f32 0.0, %v1469
  %1471 = vdwg.mxu0
  %v1472 = vadd.f32 %v1401, %v1467
  %v1473 = vadd.f32 %v1402, %v1470
  %s1474 = scalar_lea.vmem %s6, 768
  %v1475 = vld [vmem:[%s1474] sm:$0xff]
  %v1476 = vld [vmem:[%s1474 + $0x8] sm:$0xff]
  %v1477 = vld [vmem:[%s1474 + $0x10] sm:$0xff]
  %v1478 = vld [vmem:[%s1474 + $0x18] sm:$0xff]
  %v1479 = vld [vmem:[%s1474 + $0x20] sm:$0xff]
  %v1480 = vld [vmem:[%s1474 + $0x28] sm:$0xff]
  %v1481 = vld [vmem:[%s1474 + $0x30] sm:$0xff]
  %v1482 = vld [vmem:[%s1474 + $0x38] sm:$0xff]
  %v1483 = vld [vmem:[%s1474 + $0x40] sm:$0xff]
  %v1484 = vld [vmem:[%s1474 + $0x48] sm:$0xff]
  %v1485 = vld [vmem:[%s1474 + $0x50] sm:$0xff]
  %v1486 = vld [vmem:[%s1474 + $0x58] sm:$0xff]
  %v1487 = vld [vmem:[%s1474 + $0x60] sm:$0xff]
  %v1488 = vld [vmem:[%s1474 + $0x68] sm:$0xff]
  %v1489 = vld [vmem:[%s1474 + $0x70] sm:$0xff]
  %v1490 = vld [vmem:[%s1474 + $0x78] sm:$0xff]
  %1491 = vmatpush.msra.mxu0 %v1490
  %1492 = vmatpush.msra.mxu0 %v1489
  %1493 = vmatpush.msra.mxu0 %v1488
  %1494 = vmatpush.msra.mxu0 %v1487
  %1495 = vmatpush.msra.mxu0 %v1486
  %1496 = vmatpush.msra.mxu0 %v1485
  %1497 = vmatpush.msra.mxu0 %v1484
  %1498 = vmatpush.msra.mxu0 %v1483
  %1499 = vmatpush.msra.mxu0 %v1482
  %1500 = vmatpush.msra.mxu0 %v1481
  %1501 = vmatpush.msra.mxu0 %v1480
  %1502 = vmatpush.msra.mxu0 %v1479
  %1503 = vmatpush.msra.mxu0 %v1478
  %1504 = vmatpush.msra.mxu0 %v1477
  %1505 = vmatpush.msra.mxu0 %v1476
  %1506 = vmatpush.msra.mxu0 %v1475
  %1507 = vmatmul.f32.gmra.mxu0 %v1052
  %v1508 = vpop.f32.mrf.mxu0
  %v1509 = vadd.f32 0.0, %v1508
  %1510 = vdwg.mxu0
  %s1511 = scalar_lea.vmem %s7, 96
  %v1512 = vld [vmem:[%s1511] sm:$0xff]
  %v1513 = vld [vmem:[%s1511 + $0x8] sm:$0xff]
  %v1515 = vsel %vm826, %v1512, 0
  %v1518 = vsel %vm826, %v1513, 0
  %1520 = vmatpush.msra.mxu0 0.0
  %1521 = vmatpush.msra.mxu0 0.0
  %1522 = vmatpush.msra.mxu0 0.0
  %1523 = vmatpush.msra.mxu0 0.0
  %1524 = vmatpush.msra.mxu0 0.0
  %1525 = vmatpush.msra.mxu0 0.0
  %1526 = vmatpush.msra.mxu0 0.0
  %1527 = vmatpush.msra.mxu0 0.0
  %1528 = vmatpush.msra.mxu0 0.0
  %1529 = vmatpush.msra.mxu0 0.0
  %1530 = vmatpush.msra.mxu0 0.0
  %1531 = vmatpush.msra.mxu0 0.0
  %1532 = vmatpush.msra.mxu0 0.0
  %1533 = vmatpush.msra.mxu0 0.0
  %1534 = vmatpush.msra.mxu0 0.0
  %1535 = vmatpush.msra.mxu0 %v1509
  %1536 = vmatmul.f32.gmra.mxu0 %v1515
  %v1537 = vpop.f32.mrf.mxu0
  %v1538 = vadd.f32 0.0, %v1537
  %1539 = vmatmul.f32.gmra.mxu0 %v1518
  %v1540 = vpop.f32.mrf.mxu0
  %v1541 = vadd.f32 0.0, %v1540
  %1542 = vdwg.mxu0
  %v1543 = vadd.f32 %v1472, %v1538
  %v1544 = vadd.f32 %v1473, %v1541
  %s1545 = scalar_lea.vmem %s6, 896
  %v1546 = vld [vmem:[%s1545] sm:$0xff]
  %v1547 = vld [vmem:[%s1545 + $0x8] sm:$0xff]
  %v1548 = vld [vmem:[%s1545 + $0x10] sm:$0xff]
  %v1549 = vld [vmem:[%s1545 + $0x18] sm:$0xff]
  %v1550 = vld [vmem:[%s1545 + $0x20] sm:$0xff]
  %v1551 = vld [vmem:[%s1545 + $0x28] sm:$0xff]
  %v1552 = vld [vmem:[%s1545 + $0x30] sm:$0xff]
  %v1553 = vld [vmem:[%s1545 + $0x38] sm:$0xff]
  %v1554 = vld [vmem:[%s1545 + $0x40] sm:$0xff]
  %v1555 = vld [vmem:[%s1545 + $0x48] sm:$0xff]
  %v1556 = vld [vmem:[%s1545 + $0x50] sm:$0xff]
  %v1557 = vld [vmem:[%s1545 + $0x58] sm:$0xff]
  %v1558 = vld [vmem:[%s1545 + $0x60] sm:$0xff]
  %v1559 = vld [vmem:[%s1545 + $0x68] sm:$0xff]
  %v1560 = vld [vmem:[%s1545 + $0x70] sm:$0xff]
  %v1561 = vld [vmem:[%s1545 + $0x78] sm:$0xff]
  %1562 = vmatpush.msra.mxu0 %v1561
  %1563 = vmatpush.msra.mxu0 %v1560
  %1564 = vmatpush.msra.mxu0 %v1559
  %1565 = vmatpush.msra.mxu0 %v1558
  %1566 = vmatpush.msra.mxu0 %v1557
  %1567 = vmatpush.msra.mxu0 %v1556
  %1568 = vmatpush.msra.mxu0 %v1555
  %1569 = vmatpush.msra.mxu0 %v1554
  %1570 = vmatpush.msra.mxu0 %v1553
  %1571 = vmatpush.msra.mxu0 %v1552
  %1572 = vmatpush.msra.mxu0 %v1551
  %1573 = vmatpush.msra.mxu0 %v1550
  %1574 = vmatpush.msra.mxu0 %v1549
  %1575 = vmatpush.msra.mxu0 %v1548
  %1576 = vmatpush.msra.mxu0 %v1547
  %1577 = vmatpush.msra.mxu0 %v1546
  %1578 = vmatmul.f32.gmra.mxu0 %v1052
  %v1579 = vpop.f32.mrf.mxu0
  %v1580 = vadd.f32 0.0, %v1579
  %1581 = vdwg.mxu0
  %s1582 = scalar_lea.vmem %s7, 112
  %v1583 = vld [vmem:[%s1582] sm:$0xff]
  %v1584 = vld [vmem:[%s1582 + $0x8] sm:$0xff]
  %v1586 = vsel %vm826, %v1583, 0
  %v1589 = vsel %vm826, %v1584, 0
  %1591 = vmatpush.msra.mxu0 0.0
  %1592 = vmatpush.msra.mxu0 0.0
  %1593 = vmatpush.msra.mxu0 0.0
  %1594 = vmatpush.msra.mxu0 0.0
  %1595 = vmatpush.msra.mxu0 0.0
  %1596 = vmatpush.msra.mxu0 0.0
  %1597 = vmatpush.msra.mxu0 0.0
  %1598 = vmatpush.msra.mxu0 0.0
  %1599 = vmatpush.msra.mxu0 0.0
  %1600 = vmatpush.msra.mxu0 0.0
  %1601 = vmatpush.msra.mxu0 0.0
  %1602 = vmatpush.msra.mxu0 0.0
  %1603 = vmatpush.msra.mxu0 0.0
  %1604 = vmatpush.msra.mxu0 0.0
  %1605 = vmatpush.msra.mxu0 0.0
  %1606 = vmatpush.msra.mxu0 %v1580
  %1607 = vmatmul.f32.gmra.mxu0 %v1586
  %v1608 = vpop.f32.mrf.mxu0
  %v1609 = vadd.f32 0.0, %v1608
  %1610 = vmatmul.f32.gmra.mxu0 %v1589
  %v1611 = vpop.f32.mrf.mxu0
  %v1612 = vadd.f32 0.0, %v1611
  %1613 = vdwg.mxu0
  %v1614 = vadd.f32 %v1543, %v1609
  %v1615 = vadd.f32 %v1544, %v1612
  %s1616 = scalar_lea.vmem %s6, 1024
  %v1617 = vld [vmem:[%s1616] sm:$0xff]
  %v1618 = vld [vmem:[%s1616 + $0x8] sm:$0xff]
  %v1619 = vld [vmem:[%s1616 + $0x10] sm:$0xff]
  %v1620 = vld [vmem:[%s1616 + $0x18] sm:$0xff]
  %v1621 = vld [vmem:[%s1616 + $0x20] sm:$0xff]
  %v1622 = vld [vmem:[%s1616 + $0x28] sm:$0xff]
  %v1623 = vld [vmem:[%s1616 + $0x30] sm:$0xff]
  %v1624 = vld [vmem:[%s1616 + $0x38] sm:$0xff]
  %v1625 = vld [vmem:[%s1616 + $0x40] sm:$0xff]
  %v1626 = vld [vmem:[%s1616 + $0x48] sm:$0xff]
  %v1627 = vld [vmem:[%s1616 + $0x50] sm:$0xff]
  %v1628 = vld [vmem:[%s1616 + $0x58] sm:$0xff]
  %v1629 = vld [vmem:[%s1616 + $0x60] sm:$0xff]
  %v1630 = vld [vmem:[%s1616 + $0x68] sm:$0xff]
  %v1631 = vld [vmem:[%s1616 + $0x70] sm:$0xff]
  %v1632 = vld [vmem:[%s1616 + $0x78] sm:$0xff]
  %1633 = vmatpush.msra.mxu0 %v1632
  %1634 = vmatpush.msra.mxu0 %v1631
  %1635 = vmatpush.msra.mxu0 %v1630
  %1636 = vmatpush.msra.mxu0 %v1629
  %1637 = vmatpush.msra.mxu0 %v1628
  %1638 = vmatpush.msra.mxu0 %v1627
  %1639 = vmatpush.msra.mxu0 %v1626
  %1640 = vmatpush.msra.mxu0 %v1625
  %1641 = vmatpush.msra.mxu0 %v1624
  %1642 = vmatpush.msra.mxu0 %v1623
  %1643 = vmatpush.msra.mxu0 %v1622
  %1644 = vmatpush.msra.mxu0 %v1621
  %1645 = vmatpush.msra.mxu0 %v1620
  %1646 = vmatpush.msra.mxu0 %v1619
  %1647 = vmatpush.msra.mxu0 %v1618
  %1648 = vmatpush.msra.mxu0 %v1617
  %1649 = vmatmul.f32.gmra.mxu0 %v1052
  %v1650 = vpop.f32.mrf.mxu0
  %v1651 = vadd.f32 0.0, %v1650
  %1652 = vdwg.mxu0
  %s1653 = scalar_lea.vmem %s7, 128
  %v1654 = vld [vmem:[%s1653] sm:$0xff]
  %v1655 = vld [vmem:[%s1653 + $0x8] sm:$0xff]
  %v1657 = vsel %vm826, %v1654, 0
  %v1660 = vsel %vm826, %v1655, 0
  %1662 = vmatpush.msra.mxu0 0.0
  %1663 = vmatpush.msra.mxu0 0.0
  %1664 = vmatpush.msra.mxu0 0.0
  %1665 = vmatpush.msra.mxu0 0.0
  %1666 = vmatpush.msra.mxu0 0.0
  %1667 = vmatpush.msra.mxu0 0.0
  %1668 = vmatpush.msra.mxu0 0.0
  %1669 = vmatpush.msra.mxu0 0.0
  %1670 = vmatpush.msra.mxu0 0.0
  %1671 = vmatpush.msra.mxu0 0.0
  %1672 = vmatpush.msra.mxu0 0.0
  %1673 = vmatpush.msra.mxu0 0.0
  %1674 = vmatpush.msra.mxu0 0.0
  %1675 = vmatpush.msra.mxu0 0.0
  %1676 = vmatpush.msra.mxu0 0.0
  %1677 = vmatpush.msra.mxu0 %v1651
  %1678 = vmatmul.f32.gmra.mxu0 %v1657
  %v1679 = vpop.f32.mrf.mxu0
  %v1680 = vadd.f32 0.0, %v1679
  %1681 = vmatmul.f32.gmra.mxu0 %v1660
  %v1682 = vpop.f32.mrf.mxu0
  %v1683 = vadd.f32 0.0, %v1682
  %1684 = vdwg.mxu0
  %v1685 = vadd.f32 %v1614, %v1680
  %v1686 = vadd.f32 %v1615, %v1683
  %s1687 = scalar_lea.vmem %s6, 1152
  %v1688 = vld [vmem:[%s1687] sm:$0xff]
  %v1689 = vld [vmem:[%s1687 + $0x8] sm:$0xff]
  %v1690 = vld [vmem:[%s1687 + $0x10] sm:$0xff]
  %v1691 = vld [vmem:[%s1687 + $0x18] sm:$0xff]
  %v1692 = vld [vmem:[%s1687 + $0x20] sm:$0xff]
  %v1693 = vld [vmem:[%s1687 + $0x28] sm:$0xff]
  %v1694 = vld [vmem:[%s1687 + $0x30] sm:$0xff]
  %v1695 = vld [vmem:[%s1687 + $0x38] sm:$0xff]
  %v1696 = vld [vmem:[%s1687 + $0x40] sm:$0xff]
  %v1697 = vld [vmem:[%s1687 + $0x48] sm:$0xff]
  %v1698 = vld [vmem:[%s1687 + $0x50] sm:$0xff]
  %v1699 = vld [vmem:[%s1687 + $0x58] sm:$0xff]
  %v1700 = vld [vmem:[%s1687 + $0x60] sm:$0xff]
  %v1701 = vld [vmem:[%s1687 + $0x68] sm:$0xff]
  %v1702 = vld [vmem:[%s1687 + $0x70] sm:$0xff]
  %v1703 = vld [vmem:[%s1687 + $0x78] sm:$0xff]
  %1704 = vmatpush.msra.mxu0 %v1703
  %1705 = vmatpush.msra.mxu0 %v1702
  %1706 = vmatpush.msra.mxu0 %v1701
  %1707 = vmatpush.msra.mxu0 %v1700
  %1708 = vmatpush.msra.mxu0 %v1699
  %1709 = vmatpush.msra.mxu0 %v1698
  %1710 = vmatpush.msra.mxu0 %v1697
  %1711 = vmatpush.msra.mxu0 %v1696
  %1712 = vmatpush.msra.mxu0 %v1695
  %1713 = vmatpush.msra.mxu0 %v1694
  %1714 = vmatpush.msra.mxu0 %v1693
  %1715 = vmatpush.msra.mxu0 %v1692
  %1716 = vmatpush.msra.mxu0 %v1691
  %1717 = vmatpush.msra.mxu0 %v1690
  %1718 = vmatpush.msra.mxu0 %v1689
  %1719 = vmatpush.msra.mxu0 %v1688
  %1720 = vmatmul.f32.gmra.mxu0 %v1052
  %v1721 = vpop.f32.mrf.mxu0
  %v1722 = vadd.f32 0.0, %v1721
  %1723 = vdwg.mxu0
  %s1724 = scalar_lea.vmem %s7, 144
  %v1725 = vld [vmem:[%s1724] sm:$0xff]
  %v1726 = vld [vmem:[%s1724 + $0x8] sm:$0xff]
  %v1728 = vsel %vm826, %v1725, 0
  %v1731 = vsel %vm826, %v1726, 0
  %1733 = vmatpush.msra.mxu0 0.0
  %1734 = vmatpush.msra.mxu0 0.0
  %1735 = vmatpush.msra.mxu0 0.0
  %1736 = vmatpush.msra.mxu0 0.0
  %1737 = vmatpush.msra.mxu0 0.0
  %1738 = vmatpush.msra.mxu0 0.0
  %1739 = vmatpush.msra.mxu0 0.0
  %1740 = vmatpush.msra.mxu0 0.0
  %1741 = vmatpush.msra.mxu0 0.0
  %1742 = vmatpush.msra.mxu0 0.0
  %1743 = vmatpush.msra.mxu0 0.0
  %1744 = vmatpush.msra.mxu0 0.0
  %1745 = vmatpush.msra.mxu0 0.0
  %1746 = vmatpush.msra.mxu0 0.0
  %1747 = vmatpush.msra.mxu0 0.0
  %1748 = vmatpush.msra.mxu0 %v1722
  %1749 = vmatmul.f32.gmra.mxu0 %v1728
  %v1750 = vpop.f32.mrf.mxu0
  %v1751 = vadd.f32 0.0, %v1750
  %1752 = vmatmul.f32.gmra.mxu0 %v1731
  %v1753 = vpop.f32.mrf.mxu0
  %v1754 = vadd.f32 0.0, %v1753
  %1755 = vdwg.mxu0
  %v1756 = vadd.f32 %v1685, %v1751
  %v1757 = vadd.f32 %v1686, %v1754
  %s1758 = scalar_lea.vmem %s6, 1280
  %v1759 = vld [vmem:[%s1758] sm:$0xff]
  %v1760 = vld [vmem:[%s1758 + $0x8] sm:$0xff]
  %v1761 = vld [vmem:[%s1758 + $0x10] sm:$0xff]
  %v1762 = vld [vmem:[%s1758 + $0x18] sm:$0xff]
  %v1763 = vld [vmem:[%s1758 + $0x20] sm:$0xff]
  %v1764 = vld [vmem:[%s1758 + $0x28] sm:$0xff]
  %v1765 = vld [vmem:[%s1758 + $0x30] sm:$0xff]
  %v1766 = vld [vmem:[%s1758 + $0x38] sm:$0xff]
  %v1767 = vld [vmem:[%s1758 + $0x40] sm:$0xff]
  %v1768 = vld [vmem:[%s1758 + $0x48] sm:$0xff]
  %v1769 = vld [vmem:[%s1758 + $0x50] sm:$0xff]
  %v1770 = vld [vmem:[%s1758 + $0x58] sm:$0xff]
  %v1771 = vld [vmem:[%s1758 + $0x60] sm:$0xff]
  %v1772 = vld [vmem:[%s1758 + $0x68] sm:$0xff]
  %v1773 = vld [vmem:[%s1758 + $0x70] sm:$0xff]
  %v1774 = vld [vmem:[%s1758 + $0x78] sm:$0xff]
  %1775 = vmatpush.msra.mxu0 %v1774
  %1776 = vmatpush.msra.mxu0 %v1773
  %1777 = vmatpush.msra.mxu0 %v1772
  %1778 = vmatpush.msra.mxu0 %v1771
  %1779 = vmatpush.msra.mxu0 %v1770
  %1780 = vmatpush.msra.mxu0 %v1769
  %1781 = vmatpush.msra.mxu0 %v1768
  %1782 = vmatpush.msra.mxu0 %v1767
  %1783 = vmatpush.msra.mxu0 %v1766
  %1784 = vmatpush.msra.mxu0 %v1765
  %1785 = vmatpush.msra.mxu0 %v1764
  %1786 = vmatpush.msra.mxu0 %v1763
  %1787 = vmatpush.msra.mxu0 %v1762
  %1788 = vmatpush.msra.mxu0 %v1761
  %1789 = vmatpush.msra.mxu0 %v1760
  %1790 = vmatpush.msra.mxu0 %v1759
  %1791 = vmatmul.f32.gmra.mxu0 %v1052
  %v1792 = vpop.f32.mrf.mxu0
  %v1793 = vadd.f32 0.0, %v1792
  %1794 = vdwg.mxu0
  %s1795 = scalar_lea.vmem %s7, 160
  %v1796 = vld [vmem:[%s1795] sm:$0xff]
  %v1797 = vld [vmem:[%s1795 + $0x8] sm:$0xff]
  %v1799 = vsel %vm826, %v1796, 0
  %v1802 = vsel %vm826, %v1797, 0
  %1804 = vmatpush.msra.mxu0 0.0
  %1805 = vmatpush.msra.mxu0 0.0
  %1806 = vmatpush.msra.mxu0 0.0
  %1807 = vmatpush.msra.mxu0 0.0
  %1808 = vmatpush.msra.mxu0 0.0
  %1809 = vmatpush.msra.mxu0 0.0
  %1810 = vmatpush.msra.mxu0 0.0
  %1811 = vmatpush.msra.mxu0 0.0
  %1812 = vmatpush.msra.mxu0 0.0
  %1813 = vmatpush.msra.mxu0 0.0
  %1814 = vmatpush.msra.mxu0 0.0
  %1815 = vmatpush.msra.mxu0 0.0
  %1816 = vmatpush.msra.mxu0 0.0
  %1817 = vmatpush.msra.mxu0 0.0
  %1818 = vmatpush.msra.mxu0 0.0
  %1819 = vmatpush.msra.mxu0 %v1793
  %1820 = vmatmul.f32.gmra.mxu0 %v1799
  %v1821 = vpop.f32.mrf.mxu0
  %v1822 = vadd.f32 0.0, %v1821
  %1823 = vmatmul.f32.gmra.mxu0 %v1802
  %v1824 = vpop.f32.mrf.mxu0
  %v1825 = vadd.f32 0.0, %v1824
  %1826 = vdwg.mxu0
  %v1827 = vadd.f32 %v1756, %v1822
  %v1828 = vadd.f32 %v1757, %v1825
  %s1829 = scalar_lea.vmem %s6, 1408
  %v1830 = vld [vmem:[%s1829] sm:$0xff]
  %v1831 = vld [vmem:[%s1829 + $0x8] sm:$0xff]
  %v1832 = vld [vmem:[%s1829 + $0x10] sm:$0xff]
  %v1833 = vld [vmem:[%s1829 + $0x18] sm:$0xff]
  %v1834 = vld [vmem:[%s1829 + $0x20] sm:$0xff]
  %v1835 = vld [vmem:[%s1829 + $0x28] sm:$0xff]
  %v1836 = vld [vmem:[%s1829 + $0x30] sm:$0xff]
  %v1837 = vld [vmem:[%s1829 + $0x38] sm:$0xff]
  %v1838 = vld [vmem:[%s1829 + $0x40] sm:$0xff]
  %v1839 = vld [vmem:[%s1829 + $0x48] sm:$0xff]
  %v1840 = vld [vmem:[%s1829 + $0x50] sm:$0xff]
  %v1841 = vld [vmem:[%s1829 + $0x58] sm:$0xff]
  %v1842 = vld [vmem:[%s1829 + $0x60] sm:$0xff]
  %v1843 = vld [vmem:[%s1829 + $0x68] sm:$0xff]
  %v1844 = vld [vmem:[%s1829 + $0x70] sm:$0xff]
  %v1845 = vld [vmem:[%s1829 + $0x78] sm:$0xff]
  %1846 = vmatpush.msra.mxu0 %v1845
  %1847 = vmatpush.msra.mxu0 %v1844
  %1848 = vmatpush.msra.mxu0 %v1843
  %1849 = vmatpush.msra.mxu0 %v1842
  %1850 = vmatpush.msra.mxu0 %v1841
  %1851 = vmatpush.msra.mxu0 %v1840
  %1852 = vmatpush.msra.mxu0 %v1839
  %1853 = vmatpush.msra.mxu0 %v1838
  %1854 = vmatpush.msra.mxu0 %v1837
  %1855 = vmatpush.msra.mxu0 %v1836
  %1856 = vmatpush.msra.mxu0 %v1835
  %1857 = vmatpush.msra.mxu0 %v1834
  %1858 = vmatpush.msra.mxu0 %v1833
  %1859 = vmatpush.msra.mxu0 %v1832
  %1860 = vmatpush.msra.mxu0 %v1831
  %1861 = vmatpush.msra.mxu0 %v1830
  %1862 = vmatmul.f32.gmra.mxu0 %v1052
  %v1863 = vpop.f32.mrf.mxu0
  %v1864 = vadd.f32 0.0, %v1863
  %1865 = vdwg.mxu0
  %s1866 = scalar_lea.vmem %s7, 176
  %v1867 = vld [vmem:[%s1866] sm:$0xff]
  %v1868 = vld [vmem:[%s1866 + $0x8] sm:$0xff]
  %v1870 = vsel %vm826, %v1867, 0
  %v1873 = vsel %vm826, %v1868, 0
  %1875 = vmatpush.msra.mxu0 0.0
  %1876 = vmatpush.msra.mxu0 0.0
  %1877 = vmatpush.msra.mxu0 0.0
  %1878 = vmatpush.msra.mxu0 0.0
  %1879 = vmatpush.msra.mxu0 0.0
  %1880 = vmatpush.msra.mxu0 0.0
  %1881 = vmatpush.msra.mxu0 0.0
  %1882 = vmatpush.msra.mxu0 0.0
  %1883 = vmatpush.msra.mxu0 0.0
  %1884 = vmatpush.msra.mxu0 0.0
  %1885 = vmatpush.msra.mxu0 0.0
  %1886 = vmatpush.msra.mxu0 0.0
  %1887 = vmatpush.msra.mxu0 0.0
  %1888 = vmatpush.msra.mxu0 0.0
  %1889 = vmatpush.msra.mxu0 0.0
  %1890 = vmatpush.msra.mxu0 %v1864
  %1891 = vmatmul.f32.gmra.mxu0 %v1870
  %v1892 = vpop.f32.mrf.mxu0
  %v1893 = vadd.f32 0.0, %v1892
  %1894 = vmatmul.f32.gmra.mxu0 %v1873
  %v1895 = vpop.f32.mrf.mxu0
  %v1896 = vadd.f32 0.0, %v1895
  %1897 = vdwg.mxu0
  %v1898 = vadd.f32 %v1827, %v1893
  %v1899 = vadd.f32 %v1828, %v1896
  %s1900 = scalar_lea.vmem %s6, 1536
  %v1901 = vld [vmem:[%s1900] sm:$0xff]
  %v1902 = vld [vmem:[%s1900 + $0x8] sm:$0xff]
  %v1903 = vld [vmem:[%s1900 + $0x10] sm:$0xff]
  %v1904 = vld [vmem:[%s1900 + $0x18] sm:$0xff]
  %v1905 = vld [vmem:[%s1900 + $0x20] sm:$0xff]
  %v1906 = vld [vmem:[%s1900 + $0x28] sm:$0xff]
  %v1907 = vld [vmem:[%s1900 + $0x30] sm:$0xff]
  %v1908 = vld [vmem:[%s1900 + $0x38] sm:$0xff]
  %v1909 = vld [vmem:[%s1900 + $0x40] sm:$0xff]
  %v1910 = vld [vmem:[%s1900 + $0x48] sm:$0xff]
  %v1911 = vld [vmem:[%s1900 + $0x50] sm:$0xff]
  %v1912 = vld [vmem:[%s1900 + $0x58] sm:$0xff]
  %v1913 = vld [vmem:[%s1900 + $0x60] sm:$0xff]
  %v1914 = vld [vmem:[%s1900 + $0x68] sm:$0xff]
  %v1915 = vld [vmem:[%s1900 + $0x70] sm:$0xff]
  %v1916 = vld [vmem:[%s1900 + $0x78] sm:$0xff]
  %1917 = vmatpush.msra.mxu0 %v1916
  %1918 = vmatpush.msra.mxu0 %v1915
  %1919 = vmatpush.msra.mxu0 %v1914
  %1920 = vmatpush.msra.mxu0 %v1913
  %1921 = vmatpush.msra.mxu0 %v1912
  %1922 = vmatpush.msra.mxu0 %v1911
  %1923 = vmatpush.msra.mxu0 %v1910
  %1924 = vmatpush.msra.mxu0 %v1909
  %1925 = vmatpush.msra.mxu0 %v1908
  %1926 = vmatpush.msra.mxu0 %v1907
  %1927 = vmatpush.msra.mxu0 %v1906
  %1928 = vmatpush.msra.mxu0 %v1905
  %1929 = vmatpush.msra.mxu0 %v1904
  %1930 = vmatpush.msra.mxu0 %v1903
  %1931 = vmatpush.msra.mxu0 %v1902
  %1932 = vmatpush.msra.mxu0 %v1901
  %1933 = vmatmul.f32.gmra.mxu0 %v1052
  %v1934 = vpop.f32.mrf.mxu0
  %v1935 = vadd.f32 0.0, %v1934
  %1936 = vdwg.mxu0
  %s1937 = scalar_lea.vmem %s7, 192
  %v1938 = vld [vmem:[%s1937] sm:$0xff]
  %v1939 = vld [vmem:[%s1937 + $0x8] sm:$0xff]
  %v1941 = vsel %vm826, %v1938, 0
  %v1944 = vsel %vm826, %v1939, 0
  %1946 = vmatpush.msra.mxu0 0.0
  %1947 = vmatpush.msra.mxu0 0.0
  %1948 = vmatpush.msra.mxu0 0.0
  %1949 = vmatpush.msra.mxu0 0.0
  %1950 = vmatpush.msra.mxu0 0.0
  %1951 = vmatpush.msra.mxu0 0.0
  %1952 = vmatpush.msra.mxu0 0.0
  %1953 = vmatpush.msra.mxu0 0.0
  %1954 = vmatpush.msra.mxu0 0.0
  %1955 = vmatpush.msra.mxu0 0.0
  %1956 = vmatpush.msra.mxu0 0.0
  %1957 = vmatpush.msra.mxu0 0.0
  %1958 = vmatpush.msra.mxu0 0.0
  %1959 = vmatpush.msra.mxu0 0.0
  %1960 = vmatpush.msra.mxu0 0.0
  %1961 = vmatpush.msra.mxu0 %v1935
  %1962 = vmatmul.f32.gmra.mxu0 %v1941
  %v1963 = vpop.f32.mrf.mxu0
  %v1964 = vadd.f32 0.0, %v1963
  %1965 = vmatmul.f32.gmra.mxu0 %v1944
  %v1966 = vpop.f32.mrf.mxu0
  %v1967 = vadd.f32 0.0, %v1966
  %1968 = vdwg.mxu0
  %v1969 = vadd.f32 %v1898, %v1964
  %v1970 = vadd.f32 %v1899, %v1967
  %s1971 = scalar_lea.vmem %s6, 1664
  %v1972 = vld [vmem:[%s1971] sm:$0xff]
  %v1973 = vld [vmem:[%s1971 + $0x8] sm:$0xff]
  %v1974 = vld [vmem:[%s1971 + $0x10] sm:$0xff]
  %v1975 = vld [vmem:[%s1971 + $0x18] sm:$0xff]
  %v1976 = vld [vmem:[%s1971 + $0x20] sm:$0xff]
  %v1977 = vld [vmem:[%s1971 + $0x28] sm:$0xff]
  %v1978 = vld [vmem:[%s1971 + $0x30] sm:$0xff]
  %v1979 = vld [vmem:[%s1971 + $0x38] sm:$0xff]
  %v1980 = vld [vmem:[%s1971 + $0x40] sm:$0xff]
  %v1981 = vld [vmem:[%s1971 + $0x48] sm:$0xff]
  %v1982 = vld [vmem:[%s1971 + $0x50] sm:$0xff]
  %v1983 = vld [vmem:[%s1971 + $0x58] sm:$0xff]
  %v1984 = vld [vmem:[%s1971 + $0x60] sm:$0xff]
  %v1985 = vld [vmem:[%s1971 + $0x68] sm:$0xff]
  %v1986 = vld [vmem:[%s1971 + $0x70] sm:$0xff]
  %v1987 = vld [vmem:[%s1971 + $0x78] sm:$0xff]
  %1988 = vmatpush.msra.mxu0 %v1987
  %1989 = vmatpush.msra.mxu0 %v1986
  %1990 = vmatpush.msra.mxu0 %v1985
  %1991 = vmatpush.msra.mxu0 %v1984
  %1992 = vmatpush.msra.mxu0 %v1983
  %1993 = vmatpush.msra.mxu0 %v1982
  %1994 = vmatpush.msra.mxu0 %v1981
  %1995 = vmatpush.msra.mxu0 %v1980
  %1996 = vmatpush.msra.mxu0 %v1979
  %1997 = vmatpush.msra.mxu0 %v1978
  %1998 = vmatpush.msra.mxu0 %v1977
  %1999 = vmatpush.msra.mxu0 %v1976
  %2000 = vmatpush.msra.mxu0 %v1975
  %2001 = vmatpush.msra.mxu0 %v1974
  %2002 = vmatpush.msra.mxu0 %v1973
  %2003 = vmatpush.msra.mxu0 %v1972
  %2004 = vmatmul.f32.gmra.mxu0 %v1052
  %v2005 = vpop.f32.mrf.mxu0
  %v2006 = vadd.f32 0.0, %v2005
  %2007 = vdwg.mxu0
  %s2008 = scalar_lea.vmem %s7, 208
  %v2009 = vld [vmem:[%s2008] sm:$0xff]
  %v2010 = vld [vmem:[%s2008 + $0x8] sm:$0xff]
  %v2012 = vsel %vm826, %v2009, 0
  %v2015 = vsel %vm826, %v2010, 0
  %2017 = vmatpush.msra.mxu0 0.0
  %2018 = vmatpush.msra.mxu0 0.0
  %2019 = vmatpush.msra.mxu0 0.0
  %2020 = vmatpush.msra.mxu0 0.0
  %2021 = vmatpush.msra.mxu0 0.0
  %2022 = vmatpush.msra.mxu0 0.0
  %2023 = vmatpush.msra.mxu0 0.0
  %2024 = vmatpush.msra.mxu0 0.0
  %2025 = vmatpush.msra.mxu0 0.0
  %2026 = vmatpush.msra.mxu0 0.0
  %2027 = vmatpush.msra.mxu0 0.0
  %2028 = vmatpush.msra.mxu0 0.0
  %2029 = vmatpush.msra.mxu0 0.0
  %2030 = vmatpush.msra.mxu0 0.0
  %2031 = vmatpush.msra.mxu0 0.0
  %2032 = vmatpush.msra.mxu0 %v2006
  %2033 = vmatmul.f32.gmra.mxu0 %v2012
  %v2034 = vpop.f32.mrf.mxu0
  %v2035 = vadd.f32 0.0, %v2034
  %2036 = vmatmul.f32.gmra.mxu0 %v2015
  %v2037 = vpop.f32.mrf.mxu0
  %v2038 = vadd.f32 0.0, %v2037
  %2039 = vdwg.mxu0
  %v2040 = vadd.f32 %v1969, %v2035
  %v2041 = vadd.f32 %v1970, %v2038
  %s2042 = scalar_lea.vmem %s6, 1792
  %v2043 = vld [vmem:[%s2042] sm:$0xff]
  %v2044 = vld [vmem:[%s2042 + $0x8] sm:$0xff]
  %v2045 = vld [vmem:[%s2042 + $0x10] sm:$0xff]
  %v2046 = vld [vmem:[%s2042 + $0x18] sm:$0xff]
  %v2047 = vld [vmem:[%s2042 + $0x20] sm:$0xff]
  %v2048 = vld [vmem:[%s2042 + $0x28] sm:$0xff]
  %v2049 = vld [vmem:[%s2042 + $0x30] sm:$0xff]
  %v2050 = vld [vmem:[%s2042 + $0x38] sm:$0xff]
  %v2051 = vld [vmem:[%s2042 + $0x40] sm:$0xff]
  %v2052 = vld [vmem:[%s2042 + $0x48] sm:$0xff]
  %v2053 = vld [vmem:[%s2042 + $0x50] sm:$0xff]
  %v2054 = vld [vmem:[%s2042 + $0x58] sm:$0xff]
  %v2055 = vld [vmem:[%s2042 + $0x60] sm:$0xff]
  %v2056 = vld [vmem:[%s2042 + $0x68] sm:$0xff]
  %v2057 = vld [vmem:[%s2042 + $0x70] sm:$0xff]
  %v2058 = vld [vmem:[%s2042 + $0x78] sm:$0xff]
  %2059 = vmatpush.msra.mxu0 %v2058
  %2060 = vmatpush.msra.mxu0 %v2057
  %2061 = vmatpush.msra.mxu0 %v2056
  %2062 = vmatpush.msra.mxu0 %v2055
  %2063 = vmatpush.msra.mxu0 %v2054
  %2064 = vmatpush.msra.mxu0 %v2053
  %2065 = vmatpush.msra.mxu0 %v2052
  %2066 = vmatpush.msra.mxu0 %v2051
  %2067 = vmatpush.msra.mxu0 %v2050
  %2068 = vmatpush.msra.mxu0 %v2049
  %2069 = vmatpush.msra.mxu0 %v2048
  %2070 = vmatpush.msra.mxu0 %v2047
  %2071 = vmatpush.msra.mxu0 %v2046
  %2072 = vmatpush.msra.mxu0 %v2045
  %2073 = vmatpush.msra.mxu0 %v2044
  %2074 = vmatpush.msra.mxu0 %v2043
  %2075 = vmatmul.f32.gmra.mxu0 %v1052
  %v2076 = vpop.f32.mrf.mxu0
  %v2077 = vadd.f32 0.0, %v2076
  %2078 = vdwg.mxu0
  %s2079 = scalar_lea.vmem %s7, 224
  %v2080 = vld [vmem:[%s2079] sm:$0xff]
  %v2081 = vld [vmem:[%s2079 + $0x8] sm:$0xff]
  %v2083 = vsel %vm826, %v2080, 0
  %v2086 = vsel %vm826, %v2081, 0
  %2088 = vmatpush.msra.mxu0 0.0
  %2089 = vmatpush.msra.mxu0 0.0
  %2090 = vmatpush.msra.mxu0 0.0
  %2091 = vmatpush.msra.mxu0 0.0
  %2092 = vmatpush.msra.mxu0 0.0
  %2093 = vmatpush.msra.mxu0 0.0
  %2094 = vmatpush.msra.mxu0 0.0
  %2095 = vmatpush.msra.mxu0 0.0
  %2096 = vmatpush.msra.mxu0 0.0
  %2097 = vmatpush.msra.mxu0 0.0
  %2098 = vmatpush.msra.mxu0 0.0
  %2099 = vmatpush.msra.mxu0 0.0
  %2100 = vmatpush.msra.mxu0 0.0
  %2101 = vmatpush.msra.mxu0 0.0
  %2102 = vmatpush.msra.mxu0 0.0
  %2103 = vmatpush.msra.mxu0 %v2077
  %2104 = vmatmul.f32.gmra.mxu0 %v2083
  %v2105 = vpop.f32.mrf.mxu0
  %v2106 = vadd.f32 0.0, %v2105
  %2107 = vmatmul.f32.gmra.mxu0 %v2086
  %v2108 = vpop.f32.mrf.mxu0
  %v2109 = vadd.f32 0.0, %v2108
  %2110 = vdwg.mxu0
  %v2111 = vadd.f32 %v2040, %v2106
  %v2112 = vadd.f32 %v2041, %v2109
  %s2113 = scalar_lea.vmem %s6, 1920
  %v2114 = vld [vmem:[%s2113] sm:$0xff]
  %v2115 = vld [vmem:[%s2113 + $0x8] sm:$0xff]
  %v2116 = vld [vmem:[%s2113 + $0x10] sm:$0xff]
  %v2117 = vld [vmem:[%s2113 + $0x18] sm:$0xff]
  %v2118 = vld [vmem:[%s2113 + $0x20] sm:$0xff]
  %v2119 = vld [vmem:[%s2113 + $0x28] sm:$0xff]
  %v2120 = vld [vmem:[%s2113 + $0x30] sm:$0xff]
  %v2121 = vld [vmem:[%s2113 + $0x38] sm:$0xff]
  %v2122 = vld [vmem:[%s2113 + $0x40] sm:$0xff]
  %v2123 = vld [vmem:[%s2113 + $0x48] sm:$0xff]
  %v2124 = vld [vmem:[%s2113 + $0x50] sm:$0xff]
  %v2125 = vld [vmem:[%s2113 + $0x58] sm:$0xff]
  %v2126 = vld [vmem:[%s2113 + $0x60] sm:$0xff]
  %v2127 = vld [vmem:[%s2113 + $0x68] sm:$0xff]
  %v2128 = vld [vmem:[%s2113 + $0x70] sm:$0xff]
  %v2129 = vld [vmem:[%s2113 + $0x78] sm:$0xff]
  %2130 = vmatpush.msra.mxu0 %v2129
  %2131 = vmatpush.msra.mxu0 %v2128
  %2132 = vmatpush.msra.mxu0 %v2127
  %2133 = vmatpush.msra.mxu0 %v2126
  %2134 = vmatpush.msra.mxu0 %v2125
  %2135 = vmatpush.msra.mxu0 %v2124
  %2136 = vmatpush.msra.mxu0 %v2123
  %2137 = vmatpush.msra.mxu0 %v2122
  %2138 = vmatpush.msra.mxu0 %v2121
  %2139 = vmatpush.msra.mxu0 %v2120
  %2140 = vmatpush.msra.mxu0 %v2119
  %2141 = vmatpush.msra.mxu0 %v2118
  %2142 = vmatpush.msra.mxu0 %v2117
  %2143 = vmatpush.msra.mxu0 %v2116
  %2144 = vmatpush.msra.mxu0 %v2115
  %2145 = vmatpush.msra.mxu0 %v2114
  %2146 = vmatmul.f32.gmra.mxu0 %v1052
  %v2147 = vpop.f32.mrf.mxu0
  %v2148 = vadd.f32 0.0, %v2147
  %2149 = vdwg.mxu0
  %s2150 = scalar_lea.vmem %s7, 240
  %v2151 = vld [vmem:[%s2150] sm:$0xff]
  %v2152 = vld [vmem:[%s2150 + $0x8] sm:$0xff]
  %v2154 = vsel %vm826, %v2151, 0
  %v2157 = vsel %vm826, %v2152, 0
  %2159 = vmatpush.msra.mxu0 0.0
  %2160 = vmatpush.msra.mxu0 0.0
  %2161 = vmatpush.msra.mxu0 0.0
  %2162 = vmatpush.msra.mxu0 0.0
  %2163 = vmatpush.msra.mxu0 0.0
  %2164 = vmatpush.msra.mxu0 0.0
  %2165 = vmatpush.msra.mxu0 0.0
  %2166 = vmatpush.msra.mxu0 0.0
  %2167 = vmatpush.msra.mxu0 0.0
  %2168 = vmatpush.msra.mxu0 0.0
  %2169 = vmatpush.msra.mxu0 0.0
  %2170 = vmatpush.msra.mxu0 0.0
  %2171 = vmatpush.msra.mxu0 0.0
  %2172 = vmatpush.msra.mxu0 0.0
  %2173 = vmatpush.msra.mxu0 0.0
  %2174 = vmatpush.msra.mxu0 %v2148
  %2175 = vmatmul.f32.gmra.mxu0 %v2154
  %v2176 = vpop.f32.mrf.mxu0
  %v2177 = vadd.f32 0.0, %v2176
  %2178 = vmatmul.f32.gmra.mxu0 %v2157
  %v2179 = vpop.f32.mrf.mxu0
  %v2180 = vadd.f32 0.0, %v2179
  %2181 = vdwg.mxu0
  %v2182 = vadd.f32 %v2111, %v2177
  %v2183 = vadd.f32 %v2112, %v2180
  %s2184 = scalar_lea.vmem %s6, 2048
  %v2185 = vld [vmem:[%s2184] sm:$0xff]
  %v2186 = vld [vmem:[%s2184 + $0x8] sm:$0xff]
  %v2187 = vld [vmem:[%s2184 + $0x10] sm:$0xff]
  %v2188 = vld [vmem:[%s2184 + $0x18] sm:$0xff]
  %v2189 = vld [vmem:[%s2184 + $0x20] sm:$0xff]
  %v2190 = vld [vmem:[%s2184 + $0x28] sm:$0xff]
  %v2191 = vld [vmem:[%s2184 + $0x30] sm:$0xff]
  %v2192 = vld [vmem:[%s2184 + $0x38] sm:$0xff]
  %v2193 = vld [vmem:[%s2184 + $0x40] sm:$0xff]
  %v2194 = vld [vmem:[%s2184 + $0x48] sm:$0xff]
  %v2195 = vld [vmem:[%s2184 + $0x50] sm:$0xff]
  %v2196 = vld [vmem:[%s2184 + $0x58] sm:$0xff]
  %v2197 = vld [vmem:[%s2184 + $0x60] sm:$0xff]
  %v2198 = vld [vmem:[%s2184 + $0x68] sm:$0xff]
  %v2199 = vld [vmem:[%s2184 + $0x70] sm:$0xff]
  %v2200 = vld [vmem:[%s2184 + $0x78] sm:$0xff]
  %2201 = vmatpush.msra.mxu0 %v2200
  %2202 = vmatpush.msra.mxu0 %v2199
  %2203 = vmatpush.msra.mxu0 %v2198
  %2204 = vmatpush.msra.mxu0 %v2197
  %2205 = vmatpush.msra.mxu0 %v2196
  %2206 = vmatpush.msra.mxu0 %v2195
  %2207 = vmatpush.msra.mxu0 %v2194
  %2208 = vmatpush.msra.mxu0 %v2193
  %2209 = vmatpush.msra.mxu0 %v2192
  %2210 = vmatpush.msra.mxu0 %v2191
  %2211 = vmatpush.msra.mxu0 %v2190
  %2212 = vmatpush.msra.mxu0 %v2189
  %2213 = vmatpush.msra.mxu0 %v2188
  %2214 = vmatpush.msra.mxu0 %v2187
  %2215 = vmatpush.msra.mxu0 %v2186
  %2216 = vmatpush.msra.mxu0 %v2185
  %2217 = vmatmul.f32.gmra.mxu0 %v1052
  %v2218 = vpop.f32.mrf.mxu0
  %v2219 = vadd.f32 0.0, %v2218
  %2220 = vdwg.mxu0
  %s2221 = scalar_lea.vmem %s7, 256
  %v2222 = vld [vmem:[%s2221] sm:$0xff]
  %v2223 = vld [vmem:[%s2221 + $0x8] sm:$0xff]
  %v2225 = vsel %vm826, %v2222, 0
  %v2228 = vsel %vm826, %v2223, 0
  %2230 = vmatpush.msra.mxu0 0.0
  %2231 = vmatpush.msra.mxu0 0.0
  %2232 = vmatpush.msra.mxu0 0.0
  %2233 = vmatpush.msra.mxu0 0.0
  %2234 = vmatpush.msra.mxu0 0.0
  %2235 = vmatpush.msra.mxu0 0.0
  %2236 = vmatpush.msra.mxu0 0.0
  %2237 = vmatpush.msra.mxu0 0.0
  %2238 = vmatpush.msra.mxu0 0.0
  %2239 = vmatpush.msra.mxu0 0.0
  %2240 = vmatpush.msra.mxu0 0.0
  %2241 = vmatpush.msra.mxu0 0.0
  %2242 = vmatpush.msra.mxu0 0.0
  %2243 = vmatpush.msra.mxu0 0.0
  %2244 = vmatpush.msra.mxu0 0.0
  %2245 = vmatpush.msra.mxu0 %v2219
  %2246 = vmatmul.f32.gmra.mxu0 %v2225
  %v2247 = vpop.f32.mrf.mxu0
  %v2248 = vadd.f32 0.0, %v2247
  %2249 = vmatmul.f32.gmra.mxu0 %v2228
  %v2250 = vpop.f32.mrf.mxu0
  %v2251 = vadd.f32 0.0, %v2250
  %2252 = vdwg.mxu0
  %v2253 = vadd.f32 %v2182, %v2248
  %v2254 = vadd.f32 %v2183, %v2251
  %s2255 = scalar_lea.vmem %s6, 2176
  %v2256 = vld [vmem:[%s2255] sm:$0xff]
  %v2257 = vld [vmem:[%s2255 + $0x8] sm:$0xff]
  %v2258 = vld [vmem:[%s2255 + $0x10] sm:$0xff]
  %v2259 = vld [vmem:[%s2255 + $0x18] sm:$0xff]
  %v2260 = vld [vmem:[%s2255 + $0x20] sm:$0xff]
  %v2261 = vld [vmem:[%s2255 + $0x28] sm:$0xff]
  %v2262 = vld [vmem:[%s2255 + $0x30] sm:$0xff]
  %v2263 = vld [vmem:[%s2255 + $0x38] sm:$0xff]
  %v2264 = vld [vmem:[%s2255 + $0x40] sm:$0xff]
  %v2265 = vld [vmem:[%s2255 + $0x48] sm:$0xff]
  %v2266 = vld [vmem:[%s2255 + $0x50] sm:$0xff]
  %v2267 = vld [vmem:[%s2255 + $0x58] sm:$0xff]
  %v2268 = vld [vmem:[%s2255 + $0x60] sm:$0xff]
  %v2269 = vld [vmem:[%s2255 + $0x68] sm:$0xff]
  %v2270 = vld [vmem:[%s2255 + $0x70] sm:$0xff]
  %v2271 = vld [vmem:[%s2255 + $0x78] sm:$0xff]
  %2272 = vmatpush.msra.mxu0 %v2271
  %2273 = vmatpush.msra.mxu0 %v2270
  %2274 = vmatpush.msra.mxu0 %v2269
  %2275 = vmatpush.msra.mxu0 %v2268
  %2276 = vmatpush.msra.mxu0 %v2267
  %2277 = vmatpush.msra.mxu0 %v2266
  %2278 = vmatpush.msra.mxu0 %v2265
  %2279 = vmatpush.msra.mxu0 %v2264
  %2280 = vmatpush.msra.mxu0 %v2263
  %2281 = vmatpush.msra.mxu0 %v2262
  %2282 = vmatpush.msra.mxu0 %v2261
  %2283 = vmatpush.msra.mxu0 %v2260
  %2284 = vmatpush.msra.mxu0 %v2259
  %2285 = vmatpush.msra.mxu0 %v2258
  %2286 = vmatpush.msra.mxu0 %v2257
  %2287 = vmatpush.msra.mxu0 %v2256
  %2288 = vmatmul.f32.gmra.mxu0 %v1052
  %v2289 = vpop.f32.mrf.mxu0
  %v2290 = vadd.f32 0.0, %v2289
  %2291 = vdwg.mxu0
  %s2292 = scalar_lea.vmem %s7, 272
  %v2293 = vld [vmem:[%s2292] sm:$0xff]
  %v2294 = vld [vmem:[%s2292 + $0x8] sm:$0xff]
  %v2296 = vsel %vm826, %v2293, 0
  %v2299 = vsel %vm826, %v2294, 0
  %2301 = vmatpush.msra.mxu0 0.0
  %2302 = vmatpush.msra.mxu0 0.0
  %2303 = vmatpush.msra.mxu0 0.0
  %2304 = vmatpush.msra.mxu0 0.0
  %2305 = vmatpush.msra.mxu0 0.0
  %2306 = vmatpush.msra.mxu0 0.0
  %2307 = vmatpush.msra.mxu0 0.0
  %2308 = vmatpush.msra.mxu0 0.0
  %2309 = vmatpush.msra.mxu0 0.0
  %2310 = vmatpush.msra.mxu0 0.0
  %2311 = vmatpush.msra.mxu0 0.0
  %2312 = vmatpush.msra.mxu0 0.0
  %2313 = vmatpush.msra.mxu0 0.0
  %2314 = vmatpush.msra.mxu0 0.0
  %2315 = vmatpush.msra.mxu0 0.0
  %2316 = vmatpush.msra.mxu0 %v2290
  %2317 = vmatmul.f32.gmra.mxu0 %v2296
  %v2318 = vpop.f32.mrf.mxu0
  %v2319 = vadd.f32 0.0, %v2318
  %2320 = vmatmul.f32.gmra.mxu0 %v2299
  %v2321 = vpop.f32.mrf.mxu0
  %v2322 = vadd.f32 0.0, %v2321
  %2323 = vdwg.mxu0
  %v2324 = vadd.f32 %v2253, %v2319
  %v2325 = vadd.f32 %v2254, %v2322
  %s2326 = scalar_lea.vmem %s6, 2304
  %v2327 = vld [vmem:[%s2326] sm:$0xff]
  %v2328 = vld [vmem:[%s2326 + $0x8] sm:$0xff]
  %v2329 = vld [vmem:[%s2326 + $0x10] sm:$0xff]
  %v2330 = vld [vmem:[%s2326 + $0x18] sm:$0xff]
  %v2331 = vld [vmem:[%s2326 + $0x20] sm:$0xff]
  %v2332 = vld [vmem:[%s2326 + $0x28] sm:$0xff]
  %v2333 = vld [vmem:[%s2326 + $0x30] sm:$0xff]
  %v2334 = vld [vmem:[%s2326 + $0x38] sm:$0xff]
  %v2335 = vld [vmem:[%s2326 + $0x40] sm:$0xff]
  %v2336 = vld [vmem:[%s2326 + $0x48] sm:$0xff]
  %v2337 = vld [vmem:[%s2326 + $0x50] sm:$0xff]
  %v2338 = vld [vmem:[%s2326 + $0x58] sm:$0xff]
  %v2339 = vld [vmem:[%s2326 + $0x60] sm:$0xff]
  %v2340 = vld [vmem:[%s2326 + $0x68] sm:$0xff]
  %v2341 = vld [vmem:[%s2326 + $0x70] sm:$0xff]
  %v2342 = vld [vmem:[%s2326 + $0x78] sm:$0xff]
  %2343 = vmatpush.msra.mxu0 %v2342
  %2344 = vmatpush.msra.mxu0 %v2341
  %2345 = vmatpush.msra.mxu0 %v2340
  %2346 = vmatpush.msra.mxu0 %v2339
  %2347 = vmatpush.msra.mxu0 %v2338
  %2348 = vmatpush.msra.mxu0 %v2337
  %2349 = vmatpush.msra.mxu0 %v2336
  %2350 = vmatpush.msra.mxu0 %v2335
  %2351 = vmatpush.msra.mxu0 %v2334
  %2352 = vmatpush.msra.mxu0 %v2333
  %2353 = vmatpush.msra.mxu0 %v2332
  %2354 = vmatpush.msra.mxu0 %v2331
  %2355 = vmatpush.msra.mxu0 %v2330
  %2356 = vmatpush.msra.mxu0 %v2329
  %2357 = vmatpush.msra.mxu0 %v2328
  %2358 = vmatpush.msra.mxu0 %v2327
  %2359 = vmatmul.f32.gmra.mxu0 %v1052
  %v2360 = vpop.f32.mrf.mxu0
  %v2361 = vadd.f32 0.0, %v2360
  %2362 = vdwg.mxu0
  %s2363 = scalar_lea.vmem %s7, 288
  %v2364 = vld [vmem:[%s2363] sm:$0xff]
  %v2365 = vld [vmem:[%s2363 + $0x8] sm:$0xff]
  %v2367 = vsel %vm826, %v2364, 0
  %v2370 = vsel %vm826, %v2365, 0
  %2372 = vmatpush.msra.mxu0 0.0
  %2373 = vmatpush.msra.mxu0 0.0
  %2374 = vmatpush.msra.mxu0 0.0
  %2375 = vmatpush.msra.mxu0 0.0
  %2376 = vmatpush.msra.mxu0 0.0
  %2377 = vmatpush.msra.mxu0 0.0
  %2378 = vmatpush.msra.mxu0 0.0
  %2379 = vmatpush.msra.mxu0 0.0
  %2380 = vmatpush.msra.mxu0 0.0
  %2381 = vmatpush.msra.mxu0 0.0
  %2382 = vmatpush.msra.mxu0 0.0
  %2383 = vmatpush.msra.mxu0 0.0
  %2384 = vmatpush.msra.mxu0 0.0
  %2385 = vmatpush.msra.mxu0 0.0
  %2386 = vmatpush.msra.mxu0 0.0
  %2387 = vmatpush.msra.mxu0 %v2361
  %2388 = vmatmul.f32.gmra.mxu0 %v2367
  %v2389 = vpop.f32.mrf.mxu0
  %v2390 = vadd.f32 0.0, %v2389
  %2391 = vmatmul.f32.gmra.mxu0 %v2370
  %v2392 = vpop.f32.mrf.mxu0
  %v2393 = vadd.f32 0.0, %v2392
  %2394 = vdwg.mxu0
  %v2395 = vadd.f32 %v2324, %v2390
  %v2396 = vadd.f32 %v2325, %v2393
  %s2397 = scalar_lea.vmem %s6, 2432
  %v2398 = vld [vmem:[%s2397] sm:$0xff]
  %v2399 = vld [vmem:[%s2397 + $0x8] sm:$0xff]
  %v2400 = vld [vmem:[%s2397 + $0x10] sm:$0xff]
  %v2401 = vld [vmem:[%s2397 + $0x18] sm:$0xff]
  %v2402 = vld [vmem:[%s2397 + $0x20] sm:$0xff]
  %v2403 = vld [vmem:[%s2397 + $0x28] sm:$0xff]
  %v2404 = vld [vmem:[%s2397 + $0x30] sm:$0xff]
  %v2405 = vld [vmem:[%s2397 + $0x38] sm:$0xff]
  %v2406 = vld [vmem:[%s2397 + $0x40] sm:$0xff]
  %v2407 = vld [vmem:[%s2397 + $0x48] sm:$0xff]
  %v2408 = vld [vmem:[%s2397 + $0x50] sm:$0xff]
  %v2409 = vld [vmem:[%s2397 + $0x58] sm:$0xff]
  %v2410 = vld [vmem:[%s2397 + $0x60] sm:$0xff]
  %v2411 = vld [vmem:[%s2397 + $0x68] sm:$0xff]
  %v2412 = vld [vmem:[%s2397 + $0x70] sm:$0xff]
  %v2413 = vld [vmem:[%s2397 + $0x78] sm:$0xff]
  %2414 = vmatpush.msra.mxu0 %v2413
  %2415 = vmatpush.msra.mxu0 %v2412
  %2416 = vmatpush.msra.mxu0 %v2411
  %2417 = vmatpush.msra.mxu0 %v2410
  %2418 = vmatpush.msra.mxu0 %v2409
  %2419 = vmatpush.msra.mxu0 %v2408
  %2420 = vmatpush.msra.mxu0 %v2407
  %2421 = vmatpush.msra.mxu0 %v2406
  %2422 = vmatpush.msra.mxu0 %v2405
  %2423 = vmatpush.msra.mxu0 %v2404
  %2424 = vmatpush.msra.mxu0 %v2403
  %2425 = vmatpush.msra.mxu0 %v2402
  %2426 = vmatpush.msra.mxu0 %v2401
  %2427 = vmatpush.msra.mxu0 %v2400
  %2428 = vmatpush.msra.mxu0 %v2399
  %2429 = vmatpush.msra.mxu0 %v2398
  %2430 = vmatmul.f32.gmra.mxu0 %v1052
  %v2431 = vpop.f32.mrf.mxu0
  %v2432 = vadd.f32 0.0, %v2431
  %2433 = vdwg.mxu0
  %s2434 = scalar_lea.vmem %s7, 304
  %v2435 = vld [vmem:[%s2434] sm:$0xff]
  %v2436 = vld [vmem:[%s2434 + $0x8] sm:$0xff]
  %v2438 = vsel %vm826, %v2435, 0
  %v2441 = vsel %vm826, %v2436, 0
  %2443 = vmatpush.msra.mxu0 0.0
  %2444 = vmatpush.msra.mxu0 0.0
  %2445 = vmatpush.msra.mxu0 0.0
  %2446 = vmatpush.msra.mxu0 0.0
  %2447 = vmatpush.msra.mxu0 0.0
  %2448 = vmatpush.msra.mxu0 0.0
  %2449 = vmatpush.msra.mxu0 0.0
  %2450 = vmatpush.msra.mxu0 0.0
  %2451 = vmatpush.msra.mxu0 0.0
  %2452 = vmatpush.msra.mxu0 0.0
  %2453 = vmatpush.msra.mxu0 0.0
  %2454 = vmatpush.msra.mxu0 0.0
  %2455 = vmatpush.msra.mxu0 0.0
  %2456 = vmatpush.msra.mxu0 0.0
  %2457 = vmatpush.msra.mxu0 0.0
  %2458 = vmatpush.msra.mxu0 %v2432
  %2459 = vmatmul.f32.gmra.mxu0 %v2438
  %v2460 = vpop.f32.mrf.mxu0
  %v2461 = vadd.f32 0.0, %v2460
  %2462 = vmatmul.f32.gmra.mxu0 %v2441
  %v2463 = vpop.f32.mrf.mxu0
  %v2464 = vadd.f32 0.0, %v2463
  %2465 = vdwg.mxu0
  %v2466 = vadd.f32 %v2395, %v2461
  %v2467 = vadd.f32 %v2396, %v2464
  %s2468 = scalar_lea.vmem %s6, 2560
  %v2469 = vld [vmem:[%s2468] sm:$0xff]
  %v2470 = vld [vmem:[%s2468 + $0x8] sm:$0xff]
  %v2471 = vld [vmem:[%s2468 + $0x10] sm:$0xff]
  %v2472 = vld [vmem:[%s2468 + $0x18] sm:$0xff]
  %v2473 = vld [vmem:[%s2468 + $0x20] sm:$0xff]
  %v2474 = vld [vmem:[%s2468 + $0x28] sm:$0xff]
  %v2475 = vld [vmem:[%s2468 + $0x30] sm:$0xff]
  %v2476 = vld [vmem:[%s2468 + $0x38] sm:$0xff]
  %v2477 = vld [vmem:[%s2468 + $0x40] sm:$0xff]
  %v2478 = vld [vmem:[%s2468 + $0x48] sm:$0xff]
  %v2479 = vld [vmem:[%s2468 + $0x50] sm:$0xff]
  %v2480 = vld [vmem:[%s2468 + $0x58] sm:$0xff]
  %v2481 = vld [vmem:[%s2468 + $0x60] sm:$0xff]
  %v2482 = vld [vmem:[%s2468 + $0x68] sm:$0xff]
  %v2483 = vld [vmem:[%s2468 + $0x70] sm:$0xff]
  %v2484 = vld [vmem:[%s2468 + $0x78] sm:$0xff]
  %2485 = vmatpush.msra.mxu0 %v2484
  %2486 = vmatpush.msra.mxu0 %v2483
  %2487 = vmatpush.msra.mxu0 %v2482
  %2488 = vmatpush.msra.mxu0 %v2481
  %2489 = vmatpush.msra.mxu0 %v2480
  %2490 = vmatpush.msra.mxu0 %v2479
  %2491 = vmatpush.msra.mxu0 %v2478
  %2492 = vmatpush.msra.mxu0 %v2477
  %2493 = vmatpush.msra.mxu0 %v2476
  %2494 = vmatpush.msra.mxu0 %v2475
  %2495 = vmatpush.msra.mxu0 %v2474
  %2496 = vmatpush.msra.mxu0 %v2473
  %2497 = vmatpush.msra.mxu0 %v2472
  %2498 = vmatpush.msra.mxu0 %v2471
  %2499 = vmatpush.msra.mxu0 %v2470
  %2500 = vmatpush.msra.mxu0 %v2469
  %2501 = vmatmul.f32.gmra.mxu0 %v1052
  %v2502 = vpop.f32.mrf.mxu0
  %v2503 = vadd.f32 0.0, %v2502
  %2504 = vdwg.mxu0
  %s2505 = scalar_lea.vmem %s7, 320
  %v2506 = vld [vmem:[%s2505] sm:$0xff]
  %v2507 = vld [vmem:[%s2505 + $0x8] sm:$0xff]
  %v2509 = vsel %vm826, %v2506, 0
  %v2512 = vsel %vm826, %v2507, 0
  %2514 = vmatpush.msra.mxu0 0.0
  %2515 = vmatpush.msra.mxu0 0.0
  %2516 = vmatpush.msra.mxu0 0.0
  %2517 = vmatpush.msra.mxu0 0.0
  %2518 = vmatpush.msra.mxu0 0.0
  %2519 = vmatpush.msra.mxu0 0.0
  %2520 = vmatpush.msra.mxu0 0.0
  %2521 = vmatpush.msra.mxu0 0.0
  %2522 = vmatpush.msra.mxu0 0.0
  %2523 = vmatpush.msra.mxu0 0.0
  %2524 = vmatpush.msra.mxu0 0.0
  %2525 = vmatpush.msra.mxu0 0.0
  %2526 = vmatpush.msra.mxu0 0.0
  %2527 = vmatpush.msra.mxu0 0.0
  %2528 = vmatpush.msra.mxu0 0.0
  %2529 = vmatpush.msra.mxu0 %v2503
  %2530 = vmatmul.f32.gmra.mxu0 %v2509
  %v2531 = vpop.f32.mrf.mxu0
  %v2532 = vadd.f32 0.0, %v2531
  %2533 = vmatmul.f32.gmra.mxu0 %v2512
  %v2534 = vpop.f32.mrf.mxu0
  %v2535 = vadd.f32 0.0, %v2534
  %2536 = vdwg.mxu0
  %v2537 = vadd.f32 %v2466, %v2532
  %v2538 = vadd.f32 %v2467, %v2535
  %s2539 = scalar_lea.vmem %s6, 2688
  %v2540 = vld [vmem:[%s2539] sm:$0xff]
  %v2541 = vld [vmem:[%s2539 + $0x8] sm:$0xff]
  %v2542 = vld [vmem:[%s2539 + $0x10] sm:$0xff]
  %v2543 = vld [vmem:[%s2539 + $0x18] sm:$0xff]
  %v2544 = vld [vmem:[%s2539 + $0x20] sm:$0xff]
  %v2545 = vld [vmem:[%s2539 + $0x28] sm:$0xff]
  %v2546 = vld [vmem:[%s2539 + $0x30] sm:$0xff]
  %v2547 = vld [vmem:[%s2539 + $0x38] sm:$0xff]
  %v2548 = vld [vmem:[%s2539 + $0x40] sm:$0xff]
  %v2549 = vld [vmem:[%s2539 + $0x48] sm:$0xff]
  %v2550 = vld [vmem:[%s2539 + $0x50] sm:$0xff]
  %v2551 = vld [vmem:[%s2539 + $0x58] sm:$0xff]
  %v2552 = vld [vmem:[%s2539 + $0x60] sm:$0xff]
  %v2553 = vld [vmem:[%s2539 + $0x68] sm:$0xff]
  %v2554 = vld [vmem:[%s2539 + $0x70] sm:$0xff]
  %v2555 = vld [vmem:[%s2539 + $0x78] sm:$0xff]
  %2556 = vmatpush.msra.mxu0 %v2555
  %2557 = vmatpush.msra.mxu0 %v2554
  %2558 = vmatpush.msra.mxu0 %v2553
  %2559 = vmatpush.msra.mxu0 %v2552
  %2560 = vmatpush.msra.mxu0 %v2551
  %2561 = vmatpush.msra.mxu0 %v2550
  %2562 = vmatpush.msra.mxu0 %v2549
  %2563 = vmatpush.msra.mxu0 %v2548
  %2564 = vmatpush.msra.mxu0 %v2547
  %2565 = vmatpush.msra.mxu0 %v2546
  %2566 = vmatpush.msra.mxu0 %v2545
  %2567 = vmatpush.msra.mxu0 %v2544
  %2568 = vmatpush.msra.mxu0 %v2543
  %2569 = vmatpush.msra.mxu0 %v2542
  %2570 = vmatpush.msra.mxu0 %v2541
  %2571 = vmatpush.msra.mxu0 %v2540
  %2572 = vmatmul.f32.gmra.mxu0 %v1052
  %v2573 = vpop.f32.mrf.mxu0
  %v2574 = vadd.f32 0.0, %v2573
  %2575 = vdwg.mxu0
  %s2576 = scalar_lea.vmem %s7, 336
  %v2577 = vld [vmem:[%s2576] sm:$0xff]
  %v2578 = vld [vmem:[%s2576 + $0x8] sm:$0xff]
  %v2580 = vsel %vm826, %v2577, 0
  %v2583 = vsel %vm826, %v2578, 0
  %2585 = vmatpush.msra.mxu0 0.0
  %2586 = vmatpush.msra.mxu0 0.0
  %2587 = vmatpush.msra.mxu0 0.0
  %2588 = vmatpush.msra.mxu0 0.0
  %2589 = vmatpush.msra.mxu0 0.0
  %2590 = vmatpush.msra.mxu0 0.0
  %2591 = vmatpush.msra.mxu0 0.0
  %2592 = vmatpush.msra.mxu0 0.0
  %2593 = vmatpush.msra.mxu0 0.0
  %2594 = vmatpush.msra.mxu0 0.0
  %2595 = vmatpush.msra.mxu0 0.0
  %2596 = vmatpush.msra.mxu0 0.0
  %2597 = vmatpush.msra.mxu0 0.0
  %2598 = vmatpush.msra.mxu0 0.0
  %2599 = vmatpush.msra.mxu0 0.0
  %2600 = vmatpush.msra.mxu0 %v2574
  %2601 = vmatmul.f32.gmra.mxu0 %v2580
  %v2602 = vpop.f32.mrf.mxu0
  %v2603 = vadd.f32 0.0, %v2602
  %2604 = vmatmul.f32.gmra.mxu0 %v2583
  %v2605 = vpop.f32.mrf.mxu0
  %v2606 = vadd.f32 0.0, %v2605
  %2607 = vdwg.mxu0
  %v2608 = vadd.f32 %v2537, %v2603
  %v2609 = vadd.f32 %v2538, %v2606
  %s2610 = scalar_lea.vmem %s6, 2816
  %v2611 = vld [vmem:[%s2610] sm:$0xff]
  %v2612 = vld [vmem:[%s2610 + $0x8] sm:$0xff]
  %v2613 = vld [vmem:[%s2610 + $0x10] sm:$0xff]
  %v2614 = vld [vmem:[%s2610 + $0x18] sm:$0xff]
  %v2615 = vld [vmem:[%s2610 + $0x20] sm:$0xff]
  %v2616 = vld [vmem:[%s2610 + $0x28] sm:$0xff]
  %v2617 = vld [vmem:[%s2610 + $0x30] sm:$0xff]
  %v2618 = vld [vmem:[%s2610 + $0x38] sm:$0xff]
  %v2619 = vld [vmem:[%s2610 + $0x40] sm:$0xff]
  %v2620 = vld [vmem:[%s2610 + $0x48] sm:$0xff]
  %v2621 = vld [vmem:[%s2610 + $0x50] sm:$0xff]
  %v2622 = vld [vmem:[%s2610 + $0x58] sm:$0xff]
  %v2623 = vld [vmem:[%s2610 + $0x60] sm:$0xff]
  %v2624 = vld [vmem:[%s2610 + $0x68] sm:$0xff]
  %v2625 = vld [vmem:[%s2610 + $0x70] sm:$0xff]
  %v2626 = vld [vmem:[%s2610 + $0x78] sm:$0xff]
  %2627 = vmatpush.msra.mxu0 %v2626
  %2628 = vmatpush.msra.mxu0 %v2625
  %2629 = vmatpush.msra.mxu0 %v2624
  %2630 = vmatpush.msra.mxu0 %v2623
  %2631 = vmatpush.msra.mxu0 %v2622
  %2632 = vmatpush.msra.mxu0 %v2621
  %2633 = vmatpush.msra.mxu0 %v2620
  %2634 = vmatpush.msra.mxu0 %v2619
  %2635 = vmatpush.msra.mxu0 %v2618
  %2636 = vmatpush.msra.mxu0 %v2617
  %2637 = vmatpush.msra.mxu0 %v2616
  %2638 = vmatpush.msra.mxu0 %v2615
  %2639 = vmatpush.msra.mxu0 %v2614
  %2640 = vmatpush.msra.mxu0 %v2613
  %2641 = vmatpush.msra.mxu0 %v2612
  %2642 = vmatpush.msra.mxu0 %v2611
  %2643 = vmatmul.f32.gmra.mxu0 %v1052
  %v2644 = vpop.f32.mrf.mxu0
  %v2645 = vadd.f32 0.0, %v2644
  %2646 = vdwg.mxu0
  %s2647 = scalar_lea.vmem %s7, 352
  %v2648 = vld [vmem:[%s2647] sm:$0xff]
  %v2649 = vld [vmem:[%s2647 + $0x8] sm:$0xff]
  %v2651 = vsel %vm826, %v2648, 0
  %v2654 = vsel %vm826, %v2649, 0
  %2656 = vmatpush.msra.mxu0 0.0
  %2657 = vmatpush.msra.mxu0 0.0
  %2658 = vmatpush.msra.mxu0 0.0
  %2659 = vmatpush.msra.mxu0 0.0
  %2660 = vmatpush.msra.mxu0 0.0
  %2661 = vmatpush.msra.mxu0 0.0
  %2662 = vmatpush.msra.mxu0 0.0
  %2663 = vmatpush.msra.mxu0 0.0
  %2664 = vmatpush.msra.mxu0 0.0
  %2665 = vmatpush.msra.mxu0 0.0
  %2666 = vmatpush.msra.mxu0 0.0
  %2667 = vmatpush.msra.mxu0 0.0
  %2668 = vmatpush.msra.mxu0 0.0
  %2669 = vmatpush.msra.mxu0 0.0
  %2670 = vmatpush.msra.mxu0 0.0
  %2671 = vmatpush.msra.mxu0 %v2645
  %2672 = vmatmul.f32.gmra.mxu0 %v2651
  %v2673 = vpop.f32.mrf.mxu0
  %v2674 = vadd.f32 0.0, %v2673
  %2675 = vmatmul.f32.gmra.mxu0 %v2654
  %v2676 = vpop.f32.mrf.mxu0
  %v2677 = vadd.f32 0.0, %v2676
  %2678 = vdwg.mxu0
  %v2679 = vadd.f32 %v2608, %v2674
  %v2680 = vadd.f32 %v2609, %v2677
  %s2681 = scalar_lea.vmem %s6, 2944
  %v2682 = vld [vmem:[%s2681] sm:$0xff]
  %v2683 = vld [vmem:[%s2681 + $0x8] sm:$0xff]
  %v2684 = vld [vmem:[%s2681 + $0x10] sm:$0xff]
  %v2685 = vld [vmem:[%s2681 + $0x18] sm:$0xff]
  %v2686 = vld [vmem:[%s2681 + $0x20] sm:$0xff]
  %v2687 = vld [vmem:[%s2681 + $0x28] sm:$0xff]
  %v2688 = vld [vmem:[%s2681 + $0x30] sm:$0xff]
  %v2689 = vld [vmem:[%s2681 + $0x38] sm:$0xff]
  %v2690 = vld [vmem:[%s2681 + $0x40] sm:$0xff]
  %v2691 = vld [vmem:[%s2681 + $0x48] sm:$0xff]
  %v2692 = vld [vmem:[%s2681 + $0x50] sm:$0xff]
  %v2693 = vld [vmem:[%s2681 + $0x58] sm:$0xff]
  %v2694 = vld [vmem:[%s2681 + $0x60] sm:$0xff]
  %v2695 = vld [vmem:[%s2681 + $0x68] sm:$0xff]
  %v2696 = vld [vmem:[%s2681 + $0x70] sm:$0xff]
  %v2697 = vld [vmem:[%s2681 + $0x78] sm:$0xff]
  %2698 = vmatpush.msra.mxu0 %v2697
  %2699 = vmatpush.msra.mxu0 %v2696
  %2700 = vmatpush.msra.mxu0 %v2695
  %2701 = vmatpush.msra.mxu0 %v2694
  %2702 = vmatpush.msra.mxu0 %v2693
  %2703 = vmatpush.msra.mxu0 %v2692
  %2704 = vmatpush.msra.mxu0 %v2691
  %2705 = vmatpush.msra.mxu0 %v2690
  %2706 = vmatpush.msra.mxu0 %v2689
  %2707 = vmatpush.msra.mxu0 %v2688
  %2708 = vmatpush.msra.mxu0 %v2687
  %2709 = vmatpush.msra.mxu0 %v2686
  %2710 = vmatpush.msra.mxu0 %v2685
  %2711 = vmatpush.msra.mxu0 %v2684
  %2712 = vmatpush.msra.mxu0 %v2683
  %2713 = vmatpush.msra.mxu0 %v2682
  %2714 = vmatmul.f32.gmra.mxu0 %v1052
  %v2715 = vpop.f32.mrf.mxu0
  %v2716 = vadd.f32 0.0, %v2715
  %2717 = vdwg.mxu0
  %s2718 = scalar_lea.vmem %s7, 368
  %v2719 = vld [vmem:[%s2718] sm:$0xff]
  %v2720 = vld [vmem:[%s2718 + $0x8] sm:$0xff]
  %v2722 = vsel %vm826, %v2719, 0
  %v2725 = vsel %vm826, %v2720, 0
  %2727 = vmatpush.msra.mxu0 0.0
  %2728 = vmatpush.msra.mxu0 0.0
  %2729 = vmatpush.msra.mxu0 0.0
  %2730 = vmatpush.msra.mxu0 0.0
  %2731 = vmatpush.msra.mxu0 0.0
  %2732 = vmatpush.msra.mxu0 0.0
  %2733 = vmatpush.msra.mxu0 0.0
  %2734 = vmatpush.msra.mxu0 0.0
  %2735 = vmatpush.msra.mxu0 0.0
  %2736 = vmatpush.msra.mxu0 0.0
  %2737 = vmatpush.msra.mxu0 0.0
  %2738 = vmatpush.msra.mxu0 0.0
  %2739 = vmatpush.msra.mxu0 0.0
  %2740 = vmatpush.msra.mxu0 0.0
  %2741 = vmatpush.msra.mxu0 0.0
  %2742 = vmatpush.msra.mxu0 %v2716
  %2743 = vmatmul.f32.gmra.mxu0 %v2722
  %v2744 = vpop.f32.mrf.mxu0
  %v2745 = vadd.f32 0.0, %v2744
  %2746 = vmatmul.f32.gmra.mxu0 %v2725
  %v2747 = vpop.f32.mrf.mxu0
  %v2748 = vadd.f32 0.0, %v2747
  %2749 = vdwg.mxu0
  %v2750 = vadd.f32 %v2679, %v2745
  %v2751 = vadd.f32 %v2680, %v2748
  %s2752 = scalar_lea.vmem %s6, 3072
  %v2753 = vld [vmem:[%s2752] sm:$0xff]
  %v2754 = vld [vmem:[%s2752 + $0x8] sm:$0xff]
  %v2755 = vld [vmem:[%s2752 + $0x10] sm:$0xff]
  %v2756 = vld [vmem:[%s2752 + $0x18] sm:$0xff]
  %v2757 = vld [vmem:[%s2752 + $0x20] sm:$0xff]
  %v2758 = vld [vmem:[%s2752 + $0x28] sm:$0xff]
  %v2759 = vld [vmem:[%s2752 + $0x30] sm:$0xff]
  %v2760 = vld [vmem:[%s2752 + $0x38] sm:$0xff]
  %v2761 = vld [vmem:[%s2752 + $0x40] sm:$0xff]
  %v2762 = vld [vmem:[%s2752 + $0x48] sm:$0xff]
  %v2763 = vld [vmem:[%s2752 + $0x50] sm:$0xff]
  %v2764 = vld [vmem:[%s2752 + $0x58] sm:$0xff]
  %v2765 = vld [vmem:[%s2752 + $0x60] sm:$0xff]
  %v2766 = vld [vmem:[%s2752 + $0x68] sm:$0xff]
  %v2767 = vld [vmem:[%s2752 + $0x70] sm:$0xff]
  %v2768 = vld [vmem:[%s2752 + $0x78] sm:$0xff]
  %2769 = vmatpush.msra.mxu0 %v2768
  %2770 = vmatpush.msra.mxu0 %v2767
  %2771 = vmatpush.msra.mxu0 %v2766
  %2772 = vmatpush.msra.mxu0 %v2765
  %2773 = vmatpush.msra.mxu0 %v2764
  %2774 = vmatpush.msra.mxu0 %v2763
  %2775 = vmatpush.msra.mxu0 %v2762
  %2776 = vmatpush.msra.mxu0 %v2761
  %2777 = vmatpush.msra.mxu0 %v2760
  %2778 = vmatpush.msra.mxu0 %v2759
  %2779 = vmatpush.msra.mxu0 %v2758
  %2780 = vmatpush.msra.mxu0 %v2757
  %2781 = vmatpush.msra.mxu0 %v2756
  %2782 = vmatpush.msra.mxu0 %v2755
  %2783 = vmatpush.msra.mxu0 %v2754
  %2784 = vmatpush.msra.mxu0 %v2753
  %2785 = vmatmul.f32.gmra.mxu0 %v1052
  %v2786 = vpop.f32.mrf.mxu0
  %v2787 = vadd.f32 0.0, %v2786
  %2788 = vdwg.mxu0
  %s2789 = scalar_lea.vmem %s7, 384
  %v2790 = vld [vmem:[%s2789] sm:$0xff]
  %v2791 = vld [vmem:[%s2789 + $0x8] sm:$0xff]
  %v2793 = vsel %vm826, %v2790, 0
  %v2796 = vsel %vm826, %v2791, 0
  %2798 = vmatpush.msra.mxu0 0.0
  %2799 = vmatpush.msra.mxu0 0.0
  %2800 = vmatpush.msra.mxu0 0.0
  %2801 = vmatpush.msra.mxu0 0.0
  %2802 = vmatpush.msra.mxu0 0.0
  %2803 = vmatpush.msra.mxu0 0.0
  %2804 = vmatpush.msra.mxu0 0.0
  %2805 = vmatpush.msra.mxu0 0.0
  %2806 = vmatpush.msra.mxu0 0.0
  %2807 = vmatpush.msra.mxu0 0.0
  %2808 = vmatpush.msra.mxu0 0.0
  %2809 = vmatpush.msra.mxu0 0.0
  %2810 = vmatpush.msra.mxu0 0.0
  %2811 = vmatpush.msra.mxu0 0.0
  %2812 = vmatpush.msra.mxu0 0.0
  %2813 = vmatpush.msra.mxu0 %v2787
  %2814 = vmatmul.f32.gmra.mxu0 %v2793
  %v2815 = vpop.f32.mrf.mxu0
  %v2816 = vadd.f32 0.0, %v2815
  %2817 = vmatmul.f32.gmra.mxu0 %v2796
  %v2818 = vpop.f32.mrf.mxu0
  %v2819 = vadd.f32 0.0, %v2818
  %2820 = vdwg.mxu0
  %v2821 = vadd.f32 %v2750, %v2816
  %v2822 = vadd.f32 %v2751, %v2819
  %v2823 = vld [vmem:[%s8] sm:$0xff]
  %v2824 = vld [vmem:[%s8 + $0x8] sm:$0xff]
  %2826 = vset.pattern.permute.xlu0 0
  %2827 = vperm.xlu0 %2826, %v2823
  %v2828 = vpop.permute.xlu0 %2827
  %2831 = vset.pattern.permute.xlu0 0
  %2832 = vperm.xlu0 %2831, %v2824
  %v2833 = vpop.permute.xlu0 %2832
  %v2835 = vadd.f32 %v2821, %v2828
  %v2836 = vadd.f32 %v2822, %v2833
  %v2837 = vld [vmem:[%s18] sm:$0xff]
  %v2838 = vld [vmem:[%s18 + $0x8] sm:$0xff]
  %v2839 = vld [vmem:[%s18 + $0x10] sm:$0xff]
  %v2840 = vld [vmem:[%s18 + $0x18] sm:$0xff]
  %v2841 = vld [vmem:[%s19] sm:$0x3]
  %vm2842 = vcmask 261120
  %v2844 = vsel %vm2842, %v2835, 0
  %v2847 = vsel %vm2842, %v2836, 0
  %2849 = vmatpush.msra.mxu0 0.0
  %2850 = vmatpush.msra.mxu0 0.0
  %2851 = vmatpush.msra.mxu0 0.0
  %2852 = vmatpush.msra.mxu0 0.0
  %2853 = vmatpush.msra.mxu0 0.0
  %2854 = vmatpush.msra.mxu0 0.0
  %2855 = vmatpush.msra.mxu0 0.0
  %2856 = vmatpush.msra.mxu0 0.0
  %2857 = vmatpush.msra.mxu0 0.0
  %2858 = vmatpush.msra.mxu0 0.0
  %2859 = vmatpush.msra.mxu0 0.0
  %2860 = vmatpush.msra.mxu0 0.0
  %2861 = vmatpush.msra.mxu0 %v2840
  %2862 = vmatpush.msra.mxu0 %v2839
  %2863 = vmatpush.msra.mxu0 %v2838
  %2864 = vmatpush.msra.mxu0 %v2837
  %2865 = vmatmul.f32.gmra.mxu0 %v2844
  %v2866 = vpop.f32.mrf.mxu0
  %v2867 = vadd.f32 0.0, %v2866
  %2868 = vmatmul.f32.gmra.mxu0 %v2847
  %v2869 = vpop.f32.mrf.mxu0
  %v2870 = vadd.f32 0.0, %v2869
  %2871 = vdwg.mxu0
  %v2872 = vmul.f32 %v2835, %v2835
  %v2873 = vmul.f32 %v2836, %v2836
  %v2875 = vsel %vm2842, %v2872, 0
  %v2878 = vsel %vm2842, %v2873, 0
  %2880 = vmatpush.msra.mxu0 0.0
  %2881 = vmatpush.msra.mxu0 0.0
  %2882 = vmatpush.msra.mxu0 0.0
  %2883 = vmatpush.msra.mxu0 0.0
  %2884 = vmatpush.msra.mxu0 0.0
  %2885 = vmatpush.msra.mxu0 0.0
  %2886 = vmatpush.msra.mxu0 0.0
  %2887 = vmatpush.msra.mxu0 0.0
  %2888 = vmatpush.msra.mxu0 0.0
  %2889 = vmatpush.msra.mxu0 0.0
  %2890 = vmatpush.msra.mxu0 0.0
  %2891 = vmatpush.msra.mxu0 0.0
  %2892 = vmatpush.msra.mxu0 %v2840
  %2893 = vmatpush.msra.mxu0 %v2839
  %2894 = vmatpush.msra.mxu0 %v2838
  %2895 = vmatpush.msra.mxu0 %v2837
  %2896 = vmatmul.f32.gmra.mxu0 %v2875
  %v2897 = vpop.f32.mrf.mxu0
  %v2898 = vadd.f32 0.0, %v2897
  %2899 = vmatmul.f32.gmra.mxu0 %v2878
  %v2900 = vpop.f32.mrf.mxu0
  %v2901 = vadd.f32 0.0, %v2900
  %2902 = vdwg.mxu0
  %v2903 = vmul.f32 %v2867, %v2867
  %v2904 = vmul.f32 %v2870, %v2870
  %v2905 = vsub.f32 %v2898, %v2903
  %v2906 = vsub.f32 %v2901, %v2904
  %v2907 = vadd.f32 %v2905, 1e-05
  %v2908 = vadd.f32 %v2906, 1e-05
  %v2909 = vrsqrt.pop %v2907
  %v2910 = vmul.f32 %v2909, %v2907
  %v2911 = vmul.f32 %v2910, %v2909
  %v2912 = vmul.f32 0.5, %v2911
  %v2913 = vsub.f32 1.5, %v2912
  %v2914 = vmul.f32 %v2909, %v2913
  %vm2915 = vweird.f32 %v2907
  %vm2916 = vweird.f32 %v2909
  %vm2917 = vmor %vm2915, %vm2916
  %v2918 = vsel %vm2917, %v2909, %v2914
  %v2919 = vrsqrt.pop %v2908
  %v2920 = vmul.f32 %v2919, %v2908
  %v2921 = vmul.f32 %v2920, %v2919
  %v2922 = vmul.f32 0.5, %v2921
  %v2923 = vsub.f32 1.5, %v2922
  %v2924 = vmul.f32 %v2919, %v2923
  %vm2925 = vweird.f32 %v2908
  %vm2926 = vweird.f32 %v2919
  %vm2927 = vmor %vm2925, %vm2926
  %v2928 = vsel %vm2927, %v2919, %v2924
  %v2930 = vsel %vm462, %v2867, 0
  %v2933 = vsel %vm462, %v2870, 0
  %v2936 = vsel %vm466, %v2841, 0
  %2938 = vmatpush.msra.mxu0 0.0
  %2939 = vmatpush.msra.mxu0 0.0
  %2940 = vmatpush.msra.mxu0 0.0
  %2941 = vmatpush.msra.mxu0 0.0
  %2942 = vmatpush.msra.mxu0 0.0
  %2943 = vmatpush.msra.mxu0 0.0
  %2944 = vmatpush.msra.mxu0 0.0
  %2945 = vmatpush.msra.mxu0 0.0
  %2946 = vmatpush.msra.mxu0 0.0
  %2947 = vmatpush.msra.mxu0 0.0
  %2948 = vmatpush.msra.mxu0 0.0
  %2949 = vmatpush.msra.mxu0 0.0
  %2950 = vmatpush.msra.mxu0 0.0
  %2951 = vmatpush.msra.mxu0 0.0
  %2952 = vmatpush.msra.mxu0 0.0
  %2953 = vmatpush.msra.mxu0 %v2936
  %2954 = vmatmul.f32.gmra.mxu0 %v2930
  %v2955 = vpop.f32.mrf.mxu0
  %v2956 = vadd.f32 0.0, %v2955
  %2957 = vmatmul.f32.gmra.mxu0 %v2933
  %v2958 = vpop.f32.mrf.mxu0
  %v2959 = vadd.f32 0.0, %v2958
  %2960 = vdwg.mxu0
  %v2962 = vsel %vm462, %v2918, 0
  %v2965 = vsel %vm462, %v2928, 0
  %2967 = vmatpush.msra.mxu0 0.0
  %2968 = vmatpush.msra.mxu0 0.0
  %2969 = vmatpush.msra.mxu0 0.0
  %2970 = vmatpush.msra.mxu0 0.0
  %2971 = vmatpush.msra.mxu0 0.0
  %2972 = vmatpush.msra.mxu0 0.0
  %2973 = vmatpush.msra.mxu0 0.0
  %2974 = vmatpush.msra.mxu0 0.0
  %2975 = vmatpush.msra.mxu0 0.0
  %2976 = vmatpush.msra.mxu0 0.0
  %2977 = vmatpush.msra.mxu0 0.0
  %2978 = vmatpush.msra.mxu0 0.0
  %2979 = vmatpush.msra.mxu0 0.0
  %2980 = vmatpush.msra.mxu0 0.0
  %2981 = vmatpush.msra.mxu0 0.0
  %2982 = vmatpush.msra.mxu0 %v2936
  %2983 = vmatmul.f32.gmra.mxu0 %v2962
  %v2984 = vpop.f32.mrf.mxu0
  %v2985 = vadd.f32 0.0, %v2984
  %2986 = vmatmul.f32.gmra.mxu0 %v2965
  %v2987 = vpop.f32.mrf.mxu0
  %v2988 = vadd.f32 0.0, %v2987
  %2989 = vdwg.mxu0
  %v2990 = vsub.f32 %v2835, %v2956
  %v2991 = vsub.f32 %v2836, %v2959
  %v2992 = vmul.f32 %v2990, %v2985
  %v2993 = vmul.f32 %v2991, %v2988
  %v2994 = vmul.f32 %v2992, 0.5
  %v2995 = vmul.f32 %v2993, 0.5
  %v2996 = vmul.f32 %v2992, 0.70710677
  %v2997 = vmul.f32 %v2993, 0.70710677
  %v2998 = vand.u32 2147483647, %v2996
  %v2999 = vand.u32 2147483647, %v2997
  %v3000 = vmul.f32 %v2998, 0.3275911
  %v3001 = vmul.f32 %v2999, 0.3275911
  %v3002 = vadd.f32 %v3000, 1.0
  %v3003 = vadd.f32 %v3001, 1.0
  %v3004 = vrcp.pop %v3002
  %v3005 = vmul.f32 %v3002, %v3004
  %v3006 = vsub.f32 1.0, %v3005
  %v3007 = vmul.f32 %v3004, %v3006
  %v3008 = vadd.f32 %v3004, %v3007
  %vm3009 = vweird.f32 %v3002
  %vm3010 = vweird.f32 %v3004
  %vm3011 = vmor %vm3009, %vm3010
  %v3012 = vsel %vm3011, %v3004, %v3008
  %v3013 = vand.u32 2147483647, %v3002
  %vm3014 = vcmp.eq.f32.partialorder %v3013, 8.507059e+37
  %v3015 = vand.u32 %v3002, 2147483648
  %v3016 = vor.u32 1.1754944e-38, %v3015
  %v3017 = vsel %vm3014, %v3016, %v3012
  %v3018 = vmul.f32 1.0, %v3017
  %v3019 = vrcp.pop %v3003
  %v3020 = vmul.f32 %v3003, %v3019
  %v3021 = vsub.f32 1.0, %v3020
  %v3022 = vmul.f32 %v3019, %v3021
  %v3023 = vadd.f32 %v3019, %v3022
  %vm3024 = vweird.f32 %v3003
  %vm3025 = vweird.f32 %v3019
  %vm3026 = vmor %vm3024, %vm3025
  %v3027 = vsel %vm3026, %v3019, %v3023
  %v3028 = vand.u32 2147483647, %v3003
  %vm3029 = vcmp.eq.f32.partialorder %v3028, 8.507059e+37
  %v3030 = vand.u32 %v3003, 2147483648
  %v3031 = vor.u32 1.1754944e-38, %v3030
  %v3032 = vsel %vm3029, %v3031, %v3027
  %v3033 = vmul.f32 1.0, %v3032
  %v3034 = vmul.f32 %v3018, 1.0614054
  %v3035 = vmul.f32 %v3033, 1.0614054
  %v3036 = vadd.f32 %v3034, -1.4531521
  %v3037 = vadd.f32 %v3035, -1.4531521
  %v3038 = vmul.f32 %v3036, %v3018
  %v3039 = vmul.f32 %v3037, %v3033
  %v3040 = vadd.f32 %v3038, 1.4214138
  %v3041 = vadd.f32 %v3039, 1.4214138
  %v3042 = vmul.f32 %v3040, %v3018
  %v3043 = vmul.f32 %v3041, %v3033
  %v3044 = vadd.f32 %v3042, -0.28449672
  %v3045 = vadd.f32 %v3043, -0.28449672
  %v3046 = vmul.f32 %v3044, %v3018
  %v3047 = vmul.f32 %v3045, %v3033
  %v3048 = vadd.f32 %v3046, 0.2548296
  %v3049 = vadd.f32 %v3047, 0.2548296
  %v3050 = vmul.f32 %v3048, %v3018
  %v3051 = vmul.f32 %v3049, %v3033
  %v3052 = vsub.f32 0.0, %v2998
  %v3053 = vsub.f32 0.0, %v2999
  %v3054 = vmul.f32 %v3052, %v2998
  %v3055 = vmul.f32 %v3053, %v2999
  %v3056 = vmul.f32 %v3054, 1.442695
  %v3057 = vpow.pop %v3056
  %v3058 = vmul.f32 %v3055, 1.442695
  %v3059 = vpow.pop %v3058
  %v3060 = vmul.f32 %v3050, %v3057
  %v3061 = vmul.f32 %v3051, %v3059
  %v3062 = vsub.f32 1.0, %v3060
  %v3063 = vsub.f32 1.0, %v3061
  %vm3064 = vcmp.ge.f32.partialorder %v2996, 0.0
  %vm3065 = vcmp.ge.f32.partialorder %v2997, 0.0
  %v3066 = vsub.f32 0.0, %v3062
  %v3067 = vsub.f32 0.0, %v3063
  %v3068 = vsel %vm3064, %v3062, %v3066
  %v3069 = vsel %vm3065, %v3063, %v3067
  %v3070 = vadd.f32 %v3068, 1.0
  %v3071 = vadd.f32 %v3069, 1.0
  %v3072 = vmul.f32 %v2994, %v3070
  %v3073 = vmul.f32 %v2995, %v3071
  %v3074 = vld [vmem:[%s9] sm:$0xff]
  %v3075 = vld [vmem:[%s9 + $0x8] sm:$0xff]
  %v3076 = vld [vmem:[%s10] sm:$0xff]
  %v3077 = vld [vmem:[%s10 + $0x8] sm:$0xff]
  %3079 = vset.pattern.permute.xlu0 0
  %3080 = vperm.xlu0 %3079, %v3076
  %v3081 = vpop.permute.xlu0 %3080
  %3084 = vset.pattern.permute.xlu0 0
  %3085 = vperm.xlu0 %3084, %v3077
  %v3086 = vpop.permute.xlu0 %3085
  %vm3088 = vcmask 130048
  %v3090 = vsel %vm3088, %v3074, 0
  %v3093 = vsel %vm3088, %v3075, 0
  %3095 = vmatpush.msra.mxu0 0.0
  %3096 = vmatpush.msra.mxu0 0.0
  %3097 = vmatpush.msra.mxu0 0.0
  %3098 = vmatpush.msra.mxu0 0.0
  %3099 = vmatpush.msra.mxu0 0.0
  %3100 = vmatpush.msra.mxu0 0.0
  %3101 = vmatpush.msra.mxu0 0.0
  %3102 = vmatpush.msra.mxu0 0.0
  %3103 = vmatpush.msra.mxu0 0.0
  %3104 = vmatpush.msra.mxu0 0.0
  %3105 = vmatpush.msra.mxu0 0.0
  %3106 = vmatpush.msra.mxu0 0.0
  %3107 = vmatpush.msra.mxu0 0.0
  %3108 = vmatpush.msra.mxu0 0.0
  %3109 = vmatpush.msra.mxu0 %v3073
  %3110 = vmatpush.msra.mxu0 %v3072
  %3111 = vmatmul.f32.gmra.mxu0 %v3090
  %v3112 = vpop.f32.mrf.mxu0
  %v3113 = vadd.f32 %v3081, %v3112
  %3114 = vmatmul.f32.gmra.mxu0 %v3093
  %v3115 = vpop.f32.mrf.mxu0
  %v3116 = vadd.f32 %v3086, %v3115
  %3117 = vdwg.mxu0
  %v3118 = vld [vmem:[%s12] sm:$0xff]
  %v3119 = vld [vmem:[%s12 + $0x8] sm:$0xff]
  %v3120 = vld [vmem:[%s12 + $0x10] sm:$0xff]
  %v3121 = vld [vmem:[%s12 + $0x18] sm:$0xff]
  %v3122 = vld [vmem:[%s11] sm:$0xff]
  %v3123 = vld [vmem:[%s11 + $0x8] sm:$0xff]
  %v3124 = vld [vmem:[%s11 + $0x10] sm:$0xff]
  %v3125 = vld [vmem:[%s11 + $0x18] sm:$0xff]
  %v3127 = vsel %vm2842, %v3113, 0
  %v3130 = vsel %vm2842, %v3116, 0
  %3132 = vmatpush.msra.mxu0 0.0
  %3133 = vmatpush.msra.mxu0 0.0
  %3134 = vmatpush.msra.mxu0 0.0
  %3135 = vmatpush.msra.mxu0 0.0
  %3136 = vmatpush.msra.mxu0 0.0
  %3137 = vmatpush.msra.mxu0 0.0
  %3138 = vmatpush.msra.mxu0 0.0
  %3139 = vmatpush.msra.mxu0 0.0
  %3140 = vmatpush.msra.mxu0 0.0
  %3141 = vmatpush.msra.mxu0 0.0
  %3142 = vmatpush.msra.mxu0 0.0
  %3143 = vmatpush.msra.mxu0 0.0
  %3144 = vmatpush.msra.mxu0 %v3125
  %3145 = vmatpush.msra.mxu0 %v3124
  %3146 = vmatpush.msra.mxu0 %v3123
  %3147 = vmatpush.msra.mxu0 %v3122
  %3148 = vmatmul.f32.gmra.mxu0 %v3127
  %v3149 = vpop.f32.mrf.mxu0
  %v3150 = vadd.f32 0.0, %v3149
  %3151 = vmatmul.f32.gmra.mxu0 %v3130
  %v3152 = vpop.f32.mrf.mxu0
  %v3153 = vadd.f32 0.0, %v3152
  %3154 = vdwg.mxu0
  %s3155 = scalar_lea.vmem %s11, 32
  %v3156 = vld [vmem:[%s3155] sm:$0xff]
  %v3157 = vld [vmem:[%s3155 + $0x8] sm:$0xff]
  %v3158 = vld [vmem:[%s3155 + $0x10] sm:$0xff]
  %v3159 = vld [vmem:[%s3155 + $0x18] sm:$0xff]
  %3160 = vmatpush.msra.mxu0 0.0
  %3161 = vmatpush.msra.mxu0 0.0
  %3162 = vmatpush.msra.mxu0 0.0
  %3163 = vmatpush.msra.mxu0 0.0
  %3164 = vmatpush.msra.mxu0 0.0
  %3165 = vmatpush.msra.mxu0 0.0
  %3166 = vmatpush.msra.mxu0 0.0
  %3167 = vmatpush.msra.mxu0 0.0
  %3168 = vmatpush.msra.mxu0 0.0
  %3169 = vmatpush.msra.mxu0 0.0
  %3170 = vmatpush.msra.mxu0 0.0
  %3171 = vmatpush.msra.mxu0 0.0
  %3172 = vmatpush.msra.mxu0 %v3159
  %3173 = vmatpush.msra.mxu0 %v3158
  %3174 = vmatpush.msra.mxu0 %v3157
  %3175 = vmatpush.msra.mxu0 %v3156
  %3176 = vmatmul.f32.gmra.mxu0 %v3127
  %v3177 = vpop.f32.mrf.mxu0
  %v3178 = vadd.f32 0.0, %v3177
  %3179 = vmatmul.f32.gmra.mxu0 %v3130
  %v3180 = vpop.f32.mrf.mxu0
  %v3181 = vadd.f32 0.0, %v3180
  %3182 = vdwg.mxu0
  %s3183 = scalar_lea.vmem %s12, 32
  %v3184 = vld [vmem:[%s3183] sm:$0xff]
  %v3185 = vld [vmem:[%s3183 + $0x8] sm:$0xff]
  %v3186 = vld [vmem:[%s3183 + $0x10] sm:$0xff]
  %v3187 = vld [vmem:[%s3183 + $0x18] sm:$0xff]
  %v3189 = vsel %vm3088, %v3184, 0
  %v3192 = vsel %vm3088, %v3185, 0
  %v3195 = vsel %vm3088, %v3186, 0
  %v3198 = vsel %vm3088, %v3187, 0
  %3200 = vmatpush.msra.mxu0 0.0
  %3201 = vmatpush.msra.mxu0 0.0
  %3202 = vmatpush.msra.mxu0 0.0
  %3203 = vmatpush.msra.mxu0 0.0
  %3204 = vmatpush.msra.mxu0 0.0
  %3205 = vmatpush.msra.mxu0 0.0
  %3206 = vmatpush.msra.mxu0 0.0
  %3207 = vmatpush.msra.mxu0 0.0
  %3208 = vmatpush.msra.mxu0 0.0
  %3209 = vmatpush.msra.mxu0 0.0
  %3210 = vmatpush.msra.mxu0 0.0
  %3211 = vmatpush.msra.mxu0 0.0
  %3212 = vmatpush.msra.mxu0 0.0
  %3213 = vmatpush.msra.mxu0 0.0
  %3214 = vmatpush.msra.mxu0 %v3181
  %3215 = vmatpush.msra.mxu0 %v3178
  %3216 = vmatmul.f32.gmra.mxu0 %v3189
  %v3217 = vpop.f32.mrf.mxu0
  %v3218 = vadd.f32 0.0, %v3217
  %3219 = vmatmul.f32.gmra.mxu0 %v3192
  %v3220 = vpop.f32.mrf.mxu0
  %v3221 = vadd.f32 0.0, %v3220
  %3222 = vmatmul.f32.gmra.mxu0 %v3195
  %v3223 = vpop.f32.mrf.mxu0
  %v3224 = vadd.f32 0.0, %v3223
  %3225 = vmatmul.f32.gmra.mxu0 %v3198
  %v3226 = vpop.f32.mrf.mxu0
  %v3227 = vadd.f32 0.0, %v3226
  %3228 = vdwg.mxu0
  %v3230 = vsel %vm3088, %v3118, 0
  %v3233 = vsel %vm3088, %v3119, 0
  %v3236 = vsel %vm3088, %v3120, 0
  %v3239 = vsel %vm3088, %v3121, 0
  %3241 = vmatpush.msra.mxu0 0.0
  %3242 = vmatpush.msra.mxu0 0.0
  %3243 = vmatpush.msra.mxu0 0.0
  %3244 = vmatpush.msra.mxu0 0.0
  %3245 = vmatpush.msra.mxu0 0.0
  %3246 = vmatpush.msra.mxu0 0.0
  %3247 = vmatpush.msra.mxu0 0.0
  %3248 = vmatpush.msra.mxu0 0.0
  %3249 = vmatpush.msra.mxu0 0.0
  %3250 = vmatpush.msra.mxu0 0.0
  %3251 = vmatpush.msra.mxu0 0.0
  %3252 = vmatpush.msra.mxu0 0.0
  %3253 = vmatpush.msra.mxu0 0.0
  %3254 = vmatpush.msra.mxu0 0.0
  %3255 = vmatpush.msra.mxu0 %v3153
  %3256 = vmatpush.msra.mxu0 %v3150
  %3257 = vmatmul.f32.gmra.mxu0 %v3230
  %v3258 = vpop.f32.mrf.mxu0
  %v3259 = vadd.f32 %v3218, %v3258
  %3260 = vmatmul.f32.gmra.mxu0 %v3233
  %v3261 = vpop.f32.mrf.mxu0
  %v3262 = vadd.f32 %v3221, %v3261
  %3263 = vmatmul.f32.gmra.mxu0 %v3236
  %v3264 = vpop.f32.mrf.mxu0
  %v3265 = vadd.f32 %v3224, %v3264
  %3266 = vmatmul.f32.gmra.mxu0 %v3239
  %v3267 = vpop.f32.mrf.mxu0
  %v3268 = vadd.f32 %v3227, %v3267
  %3269 = vdwg.mxu0
  %s3270 = scalar_lea.vmem %s11, 64
  %v3271 = vld [vmem:[%s3270] sm:$0xff]
  %v3272 = vld [vmem:[%s3270 + $0x8] sm:$0xff]
  %v3273 = vld [vmem:[%s3270 + $0x10] sm:$0xff]
  %v3274 = vld [vmem:[%s3270 + $0x18] sm:$0xff]
  %3275 = vmatpush.msra.mxu0 0.0
  %3276 = vmatpush.msra.mxu0 0.0
  %3277 = vmatpush.msra.mxu0 0.0
  %3278 = vmatpush.msra.mxu0 0.0
  %3279 = vmatpush.msra.mxu0 0.0
  %3280 = vmatpush.msra.mxu0 0.0
  %3281 = vmatpush.msra.mxu0 0.0
  %3282 = vmatpush.msra.mxu0 0.0
  %3283 = vmatpush.msra.mxu0 0.0
  %3284 = vmatpush.msra.mxu0 0.0
  %3285 = vmatpush.msra.mxu0 0.0
  %3286 = vmatpush.msra.mxu0 0.0
  %3287 = vmatpush.msra.mxu0 %v3274
  %3288 = vmatpush.msra.mxu0 %v3273
  %3289 = vmatpush.msra.mxu0 %v3272
  %3290 = vmatpush.msra.mxu0 %v3271
  %3291 = vmatmul.f32.gmra.mxu0 %v3127
  %v3292 = vpop.f32.mrf.mxu0
  %v3293 = vadd.f32 0.0, %v3292
  %3294 = vmatmul.f32.gmra.mxu0 %v3130
  %v3295 = vpop.f32.mrf.mxu0
  %v3296 = vadd.f32 0.0, %v3295
  %3297 = vdwg.mxu0
  %s3298 = scalar_lea.vmem %s12, 64
  %v3299 = vld [vmem:[%s3298] sm:$0xff]
  %v3300 = vld [vmem:[%s3298 + $0x8] sm:$0xff]
  %v3301 = vld [vmem:[%s3298 + $0x10] sm:$0xff]
  %v3302 = vld [vmem:[%s3298 + $0x18] sm:$0xff]
  %v3304 = vsel %vm3088, %v3299, 0
  %v3307 = vsel %vm3088, %v3300, 0
  %v3310 = vsel %vm3088, %v3301, 0
  %v3313 = vsel %vm3088, %v3302, 0
  %3315 = vmatpush.msra.mxu0 0.0
  %3316 = vmatpush.msra.mxu0 0.0
  %3317 = vmatpush.msra.mxu0 0.0
  %3318 = vmatpush.msra.mxu0 0.0
  %3319 = vmatpush.msra.mxu0 0.0
  %3320 = vmatpush.msra.mxu0 0.0
  %3321 = vmatpush.msra.mxu0 0.0
  %3322 = vmatpush.msra.mxu0 0.0
  %3323 = vmatpush.msra.mxu0 0.0
  %3324 = vmatpush.msra.mxu0 0.0
  %3325 = vmatpush.msra.mxu0 0.0
  %3326 = vmatpush.msra.mxu0 0.0
  %3327 = vmatpush.msra.mxu0 0.0
  %3328 = vmatpush.msra.mxu0 0.0
  %3329 = vmatpush.msra.mxu0 %v3296
  %3330 = vmatpush.msra.mxu0 %v3293
  %3331 = vmatmul.f32.gmra.mxu0 %v3304
  %v3332 = vpop.f32.mrf.mxu0
  %v3333 = vadd.f32 0.0, %v3332
  %3334 = vmatmul.f32.gmra.mxu0 %v3307
  %v3335 = vpop.f32.mrf.mxu0
  %v3336 = vadd.f32 0.0, %v3335
  %3337 = vmatmul.f32.gmra.mxu0 %v3310
  %v3338 = vpop.f32.mrf.mxu0
  %v3339 = vadd.f32 0.0, %v3338
  %3340 = vmatmul.f32.gmra.mxu0 %v3313
  %v3341 = vpop.f32.mrf.mxu0
  %v3342 = vadd.f32 0.0, %v3341
  %3343 = vdwg.mxu0
  %v3344 = vadd.f32 %v3259, %v3333
  %v3345 = vadd.f32 %v3262, %v3336
  %v3346 = vadd.f32 %v3265, %v3339
  %v3347 = vadd.f32 %v3268, %v3342
  %s3348 = scalar_lea.vmem %s11, 96
  %v3349 = vld [vmem:[%s3348] sm:$0xff]
  %v3350 = vld [vmem:[%s3348 + $0x8] sm:$0xff]
  %v3351 = vld [vmem:[%s3348 + $0x10] sm:$0xff]
  %v3352 = vld [vmem:[%s3348 + $0x18] sm:$0xff]
  %3353 = vmatpush.msra.mxu0 0.0
  %3354 = vmatpush.msra.mxu0 0.0
  %3355 = vmatpush.msra.mxu0 0.0
  %3356 = vmatpush.msra.mxu0 0.0
  %3357 = vmatpush.msra.mxu0 0.0
  %3358 = vmatpush.msra.mxu0 0.0
  %3359 = vmatpush.msra.mxu0 0.0
  %3360 = vmatpush.msra.mxu0 0.0
  %3361 = vmatpush.msra.mxu0 0.0
  %3362 = vmatpush.msra.mxu0 0.0
  %3363 = vmatpush.msra.mxu0 0.0
  %3364 = vmatpush.msra.mxu0 0.0
  %3365 = vmatpush.msra.mxu0 %v3352
  %3366 = vmatpush.msra.mxu0 %v3351
  %3367 = vmatpush.msra.mxu0 %v3350
  %3368 = vmatpush.msra.mxu0 %v3349
  %3369 = vmatmul.f32.gmra.mxu0 %v3127
  %v3370 = vpop.f32.mrf.mxu0
  %v3371 = vadd.f32 0.0, %v3370
  %3372 = vmatmul.f32.gmra.mxu0 %v3130
  %v3373 = vpop.f32.mrf.mxu0
  %v3374 = vadd.f32 0.0, %v3373
  %3375 = vdwg.mxu0
  %s3376 = scalar_lea.vmem %s12, 96
  %v3377 = vld [vmem:[%s3376] sm:$0xff]
  %v3378 = vld [vmem:[%s3376 + $0x8] sm:$0xff]
  %v3379 = vld [vmem:[%s3376 + $0x10] sm:$0xff]
  %v3380 = vld [vmem:[%s3376 + $0x18] sm:$0xff]
  %v3382 = vsel %vm3088, %v3377, 0
  %v3385 = vsel %vm3088, %v3378, 0
  %v3388 = vsel %vm3088, %v3379, 0
  %v3391 = vsel %vm3088, %v3380, 0
  %3393 = vmatpush.msra.mxu0 0.0
  %3394 = vmatpush.msra.mxu0 0.0
  %3395 = vmatpush.msra.mxu0 0.0
  %3396 = vmatpush.msra.mxu0 0.0
  %3397 = vmatpush.msra.mxu0 0.0
  %3398 = vmatpush.msra.mxu0 0.0
  %3399 = vmatpush.msra.mxu0 0.0
  %3400 = vmatpush.msra.mxu0 0.0
  %3401 = vmatpush.msra.mxu0 0.0
  %3402 = vmatpush.msra.mxu0 0.0
  %3403 = vmatpush.msra.mxu0 0.0
  %3404 = vmatpush.msra.mxu0 0.0
  %3405 = vmatpush.msra.mxu0 0.0
  %3406 = vmatpush.msra.mxu0 0.0
  %3407 = vmatpush.msra.mxu0 %v3374
  %3408 = vmatpush.msra.mxu0 %v3371
  %3409 = vmatmul.f32.gmra.mxu0 %v3382
  %v3410 = vpop.f32.mrf.mxu0
  %v3411 = vadd.f32 0.0, %v3410
  %3412 = vmatmul.f32.gmra.mxu0 %v3385
  %v3413 = vpop.f32.mrf.mxu0
  %v3414 = vadd.f32 0.0, %v3413
  %3415 = vmatmul.f32.gmra.mxu0 %v3388
  %v3416 = vpop.f32.mrf.mxu0
  %v3417 = vadd.f32 0.0, %v3416
  %3418 = vmatmul.f32.gmra.mxu0 %v3391
  %v3419 = vpop.f32.mrf.mxu0
  %v3420 = vadd.f32 0.0, %v3419
  %3421 = vdwg.mxu0
  %v3422 = vadd.f32 %v3344, %v3411
  %v3423 = vadd.f32 %v3345, %v3414
  %v3424 = vadd.f32 %v3346, %v3417
  %v3425 = vadd.f32 %v3347, %v3420
  %s3426 = scalar_lea.vmem %s11, 128
  %v3427 = vld [vmem:[%s3426] sm:$0xff]
  %v3428 = vld [vmem:[%s3426 + $0x8] sm:$0xff]
  %v3429 = vld [vmem:[%s3426 + $0x10] sm:$0xff]
  %v3430 = vld [vmem:[%s3426 + $0x18] sm:$0xff]
  %3431 = vmatpush.msra.mxu0 0.0
  %3432 = vmatpush.msra.mxu0 0.0
  %3433 = vmatpush.msra.mxu0 0.0
  %3434 = vmatpush.msra.mxu0 0.0
  %3435 = vmatpush.msra.mxu0 0.0
  %3436 = vmatpush.msra.mxu0 0.0
  %3437 = vmatpush.msra.mxu0 0.0
  %3438 = vmatpush.msra.mxu0 0.0
  %3439 = vmatpush.msra.mxu0 0.0
  %3440 = vmatpush.msra.mxu0 0.0
  %3441 = vmatpush.msra.mxu0 0.0
  %3442 = vmatpush.msra.mxu0 0.0
  %3443 = vmatpush.msra.mxu0 %v3430
  %3444 = vmatpush.msra.mxu0 %v3429
  %3445 = vmatpush.msra.mxu0 %v3428
  %3446 = vmatpush.msra.mxu0 %v3427
  %3447 = vmatmul.f32.gmra.mxu0 %v3127
  %v3448 = vpop.f32.mrf.mxu0
  %v3449 = vadd.f32 0.0, %v3448
  %3450 = vmatmul.f32.gmra.mxu0 %v3130
  %v3451 = vpop.f32.mrf.mxu0
  %v3452 = vadd.f32 0.0, %v3451
  %3453 = vdwg.mxu0
  %s3454 = scalar_lea.vmem %s12, 128
  %v3455 = vld [vmem:[%s3454] sm:$0xff]
  %v3456 = vld [vmem:[%s3454 + $0x8] sm:$0xff]
  %v3457 = vld [vmem:[%s3454 + $0x10] sm:$0xff]
  %v3458 = vld [vmem:[%s3454 + $0x18] sm:$0xff]
  %v3460 = vsel %vm3088, %v3455, 0
  %v3463 = vsel %vm3088, %v3456, 0
  %v3466 = vsel %vm3088, %v3457, 0
  %v3469 = vsel %vm3088, %v3458, 0
  %3471 = vmatpush.msra.mxu0 0.0
  %3472 = vmatpush.msra.mxu0 0.0
  %3473 = vmatpush.msra.mxu0 0.0
  %3474 = vmatpush.msra.mxu0 0.0
  %3475 = vmatpush.msra.mxu0 0.0
  %3476 = vmatpush.msra.mxu0 0.0
  %3477 = vmatpush.msra.mxu0 0.0
  %3478 = vmatpush.msra.mxu0 0.0
  %3479 = vmatpush.msra.mxu0 0.0
  %3480 = vmatpush.msra.mxu0 0.0
  %3481 = vmatpush.msra.mxu0 0.0
  %3482 = vmatpush.msra.mxu0 0.0
  %3483 = vmatpush.msra.mxu0 0.0
  %3484 = vmatpush.msra.mxu0 0.0
  %3485 = vmatpush.msra.mxu0 %v3452
  %3486 = vmatpush.msra.mxu0 %v3449
  %3487 = vmatmul.f32.gmra.mxu0 %v3460
  %v3488 = vpop.f32.mrf.mxu0
  %v3489 = vadd.f32 0.0, %v3488
  %3490 = vmatmul.f32.gmra.mxu0 %v3463
  %v3491 = vpop.f32.mrf.mxu0
  %v3492 = vadd.f32 0.0, %v3491
  %3493 = vmatmul.f32.gmra.mxu0 %v3466
  %v3494 = vpop.f32.mrf.mxu0
  %v3495 = vadd.f32 0.0, %v3494
  %3496 = vmatmul.f32.gmra.mxu0 %v3469
  %v3497 = vpop.f32.mrf.mxu0
  %v3498 = vadd.f32 0.0, %v3497
  %3499 = vdwg.mxu0
  %v3500 = vadd.f32 %v3422, %v3489
  %v3501 = vadd.f32 %v3423, %v3492
  %v3502 = vadd.f32 %v3424, %v3495
  %v3503 = vadd.f32 %v3425, %v3498
  %s3504 = scalar_lea.vmem %s11, 160
  %v3505 = vld [vmem:[%s3504] sm:$0xff]
  %v3506 = vld [vmem:[%s3504 + $0x8] sm:$0xff]
  %v3507 = vld [vmem:[%s3504 + $0x10] sm:$0xff]
  %v3508 = vld [vmem:[%s3504 + $0x18] sm:$0xff]
  %3509 = vmatpush.msra.mxu0 0.0
  %3510 = vmatpush.msra.mxu0 0.0
  %3511 = vmatpush.msra.mxu0 0.0
  %3512 = vmatpush.msra.mxu0 0.0
  %3513 = vmatpush.msra.mxu0 0.0
  %3514 = vmatpush.msra.mxu0 0.0
  %3515 = vmatpush.msra.mxu0 0.0
  %3516 = vmatpush.msra.mxu0 0.0
  %3517 = vmatpush.msra.mxu0 0.0
  %3518 = vmatpush.msra.mxu0 0.0
  %3519 = vmatpush.msra.mxu0 0.0
  %3520 = vmatpush.msra.mxu0 0.0
  %3521 = vmatpush.msra.mxu0 %v3508
  %3522 = vmatpush.msra.mxu0 %v3507
  %3523 = vmatpush.msra.mxu0 %v3506
  %3524 = vmatpush.msra.mxu0 %v3505
  %3525 = vmatmul.f32.gmra.mxu0 %v3127
  %v3526 = vpop.f32.mrf.mxu0
  %v3527 = vadd.f32 0.0, %v3526
  %3528 = vmatmul.f32.gmra.mxu0 %v3130
  %v3529 = vpop.f32.mrf.mxu0
  %v3530 = vadd.f32 0.0, %v3529
  %3531 = vdwg.mxu0
  %s3532 = scalar_lea.vmem %s12, 160
  %v3533 = vld [vmem:[%s3532] sm:$0xff]
  %v3534 = vld [vmem:[%s3532 + $0x8] sm:$0xff]
  %v3535 = vld [vmem:[%s3532 + $0x10] sm:$0xff]
  %v3536 = vld [vmem:[%s3532 + $0x18] sm:$0xff]
  %v3538 = vsel %vm3088, %v3533, 0
  %v3541 = vsel %vm3088, %v3534, 0
  %v3544 = vsel %vm3088, %v3535, 0
  %v3547 = vsel %vm3088, %v3536, 0
  %3549 = vmatpush.msra.mxu0 0.0
  %3550 = vmatpush.msra.mxu0 0.0
  %3551 = vmatpush.msra.mxu0 0.0
  %3552 = vmatpush.msra.mxu0 0.0
  %3553 = vmatpush.msra.mxu0 0.0
  %3554 = vmatpush.msra.mxu0 0.0
  %3555 = vmatpush.msra.mxu0 0.0
  %3556 = vmatpush.msra.mxu0 0.0
  %3557 = vmatpush.msra.mxu0 0.0
  %3558 = vmatpush.msra.mxu0 0.0
  %3559 = vmatpush.msra.mxu0 0.0
  %3560 = vmatpush.msra.mxu0 0.0
  %3561 = vmatpush.msra.mxu0 0.0
  %3562 = vmatpush.msra.mxu0 0.0
  %3563 = vmatpush.msra.mxu0 %v3530
  %3564 = vmatpush.msra.mxu0 %v3527
  %3565 = vmatmul.f32.gmra.mxu0 %v3538
  %v3566 = vpop.f32.mrf.mxu0
  %v3567 = vadd.f32 0.0, %v3566
  %3568 = vmatmul.f32.gmra.mxu0 %v3541
  %v3569 = vpop.f32.mrf.mxu0
  %v3570 = vadd.f32 0.0, %v3569
  %3571 = vmatmul.f32.gmra.mxu0 %v3544
  %v3572 = vpop.f32.mrf.mxu0
  %v3573 = vadd.f32 0.0, %v3572
  %3574 = vmatmul.f32.gmra.mxu0 %v3547
  %v3575 = vpop.f32.mrf.mxu0
  %v3576 = vadd.f32 0.0, %v3575
  %3577 = vdwg.mxu0
  %v3578 = vadd.f32 %v3500, %v3567
  %v3579 = vadd.f32 %v3501, %v3570
  %v3580 = vadd.f32 %v3502, %v3573
  %v3581 = vadd.f32 %v3503, %v3576
  %s3582 = scalar_lea.vmem %s11, 192
  %v3583 = vld [vmem:[%s3582] sm:$0xff]
  %v3584 = vld [vmem:[%s3582 + $0x8] sm:$0xff]
  %v3585 = vld [vmem:[%s3582 + $0x10] sm:$0xff]
  %v3586 = vld [vmem:[%s3582 + $0x18] sm:$0xff]
  %3587 = vmatpush.msra.mxu0 0.0
  %3588 = vmatpush.msra.mxu0 0.0
  %3589 = vmatpush.msra.mxu0 0.0
  %3590 = vmatpush.msra.mxu0 0.0
  %3591 = vmatpush.msra.mxu0 0.0
  %3592 = vmatpush.msra.mxu0 0.0
  %3593 = vmatpush.msra.mxu0 0.0
  %3594 = vmatpush.msra.mxu0 0.0
  %3595 = vmatpush.msra.mxu0 0.0
  %3596 = vmatpush.msra.mxu0 0.0
  %3597 = vmatpush.msra.mxu0 0.0
  %3598 = vmatpush.msra.mxu0 0.0
  %3599 = vmatpush.msra.mxu0 %v3586
  %3600 = vmatpush.msra.mxu0 %v3585
  %3601 = vmatpush.msra.mxu0 %v3584
  %3602 = vmatpush.msra.mxu0 %v3583
  %3603 = vmatmul.f32.gmra.mxu0 %v3127
  %v3604 = vpop.f32.mrf.mxu0
  %v3605 = vadd.f32 0.0, %v3604
  %3606 = vmatmul.f32.gmra.mxu0 %v3130
  %v3607 = vpop.f32.mrf.mxu0
  %v3608 = vadd.f32 0.0, %v3607
  %3609 = vdwg.mxu0
  %s3610 = scalar_lea.vmem %s12, 192
  %v3611 = vld [vmem:[%s3610] sm:$0xff]
  %v3612 = vld [vmem:[%s3610 + $0x8] sm:$0xff]
  %v3613 = vld [vmem:[%s3610 + $0x10] sm:$0xff]
  %v3614 = vld [vmem:[%s3610 + $0x18] sm:$0xff]
  %v3616 = vsel %vm3088, %v3611, 0
  %v3619 = vsel %vm3088, %v3612, 0
  %v3622 = vsel %vm3088, %v3613, 0
  %v3625 = vsel %vm3088, %v3614, 0
  %3627 = vmatpush.msra.mxu0 0.0
  %3628 = vmatpush.msra.mxu0 0.0
  %3629 = vmatpush.msra.mxu0 0.0
  %3630 = vmatpush.msra.mxu0 0.0
  %3631 = vmatpush.msra.mxu0 0.0
  %3632 = vmatpush.msra.mxu0 0.0
  %3633 = vmatpush.msra.mxu0 0.0
  %3634 = vmatpush.msra.mxu0 0.0
  %3635 = vmatpush.msra.mxu0 0.0
  %3636 = vmatpush.msra.mxu0 0.0
  %3637 = vmatpush.msra.mxu0 0.0
  %3638 = vmatpush.msra.mxu0 0.0
  %3639 = vmatpush.msra.mxu0 0.0
  %3640 = vmatpush.msra.mxu0 0.0
  %3641 = vmatpush.msra.mxu0 %v3608
  %3642 = vmatpush.msra.mxu0 %v3605
  %3643 = vmatmul.f32.gmra.mxu0 %v3616
  %v3644 = vpop.f32.mrf.mxu0
  %v3645 = vadd.f32 0.0, %v3644
  %3646 = vmatmul.f32.gmra.mxu0 %v3619
  %v3647 = vpop.f32.mrf.mxu0
  %v3648 = vadd.f32 0.0, %v3647
  %3649 = vmatmul.f32.gmra.mxu0 %v3622
  %v3650 = vpop.f32.mrf.mxu0
  %v3651 = vadd.f32 0.0, %v3650
  %3652 = vmatmul.f32.gmra.mxu0 %v3625
  %v3653 = vpop.f32.mrf.mxu0
  %v3654 = vadd.f32 0.0, %v3653
  %3655 = vdwg.mxu0
  %v3656 = vadd.f32 %v3578, %v3645
  %v3657 = vadd.f32 %v3579, %v3648
  %v3658 = vadd.f32 %v3580, %v3651
  %v3659 = vadd.f32 %v3581, %v3654
  %s3660 = scalar_lea.vmem %s11, 224
  %v3661 = vld [vmem:[%s3660] sm:$0xff]
  %v3662 = vld [vmem:[%s3660 + $0x8] sm:$0xff]
  %v3663 = vld [vmem:[%s3660 + $0x10] sm:$0xff]
  %v3664 = vld [vmem:[%s3660 + $0x18] sm:$0xff]
  %3665 = vmatpush.msra.mxu0 0.0
  %3666 = vmatpush.msra.mxu0 0.0
  %3667 = vmatpush.msra.mxu0 0.0
  %3668 = vmatpush.msra.mxu0 0.0
  %3669 = vmatpush.msra.mxu0 0.0
  %3670 = vmatpush.msra.mxu0 0.0
  %3671 = vmatpush.msra.mxu0 0.0
  %3672 = vmatpush.msra.mxu0 0.0
  %3673 = vmatpush.msra.mxu0 0.0
  %3674 = vmatpush.msra.mxu0 0.0
  %3675 = vmatpush.msra.mxu0 0.0
  %3676 = vmatpush.msra.mxu0 0.0
  %3677 = vmatpush.msra.mxu0 %v3664
  %3678 = vmatpush.msra.mxu0 %v3663
  %3679 = vmatpush.msra.mxu0 %v3662
  %3680 = vmatpush.msra.mxu0 %v3661
  %3681 = vmatmul.f32.gmra.mxu0 %v3127
  %v3682 = vpop.f32.mrf.mxu0
  %v3683 = vadd.f32 0.0, %v3682
  %3684 = vmatmul.f32.gmra.mxu0 %v3130
  %v3685 = vpop.f32.mrf.mxu0
  %v3686 = vadd.f32 0.0, %v3685
  %3687 = vdwg.mxu0
  %s3688 = scalar_lea.vmem %s12, 224
  %v3689 = vld [vmem:[%s3688] sm:$0xff]
  %v3690 = vld [vmem:[%s3688 + $0x8] sm:$0xff]
  %v3691 = vld [vmem:[%s3688 + $0x10] sm:$0xff]
  %v3692 = vld [vmem:[%s3688 + $0x18] sm:$0xff]
  %v3694 = vsel %vm3088, %v3689, 0
  %v3697 = vsel %vm3088, %v3690, 0
  %v3700 = vsel %vm3088, %v3691, 0
  %v3703 = vsel %vm3088, %v3692, 0
  %3705 = vmatpush.msra.mxu0 0.0
  %3706 = vmatpush.msra.mxu0 0.0
  %3707 = vmatpush.msra.mxu0 0.0
  %3708 = vmatpush.msra.mxu0 0.0
  %3709 = vmatpush.msra.mxu0 0.0
  %3710 = vmatpush.msra.mxu0 0.0
  %3711 = vmatpush.msra.mxu0 0.0
  %3712 = vmatpush.msra.mxu0 0.0
  %3713 = vmatpush.msra.mxu0 0.0
  %3714 = vmatpush.msra.mxu0 0.0
  %3715 = vmatpush.msra.mxu0 0.0
  %3716 = vmatpush.msra.mxu0 0.0
  %3717 = vmatpush.msra.mxu0 0.0
  %3718 = vmatpush.msra.mxu0 0.0
  %3719 = vmatpush.msra.mxu0 %v3686
  %3720 = vmatpush.msra.mxu0 %v3683
  %3721 = vmatmul.f32.gmra.mxu0 %v3694
  %v3722 = vpop.f32.mrf.mxu0
  %v3723 = vadd.f32 0.0, %v3722
  %3724 = vmatmul.f32.gmra.mxu0 %v3697
  %v3725 = vpop.f32.mrf.mxu0
  %v3726 = vadd.f32 0.0, %v3725
  %3727 = vmatmul.f32.gmra.mxu0 %v3700
  %v3728 = vpop.f32.mrf.mxu0
  %v3729 = vadd.f32 0.0, %v3728
  %3730 = vmatmul.f32.gmra.mxu0 %v3703
  %v3731 = vpop.f32.mrf.mxu0
  %v3732 = vadd.f32 0.0, %v3731
  %3733 = vdwg.mxu0
  %v3734 = vadd.f32 %v3656, %v3723
  %v3735 = vadd.f32 %v3657, %v3726
  %v3736 = vadd.f32 %v3658, %v3729
  %v3737 = vadd.f32 %v3659, %v3732
  %s3738 = scalar_lea.vmem %s11, 256
  %v3739 = vld [vmem:[%s3738] sm:$0xff]
  %v3740 = vld [vmem:[%s3738 + $0x8] sm:$0xff]
  %v3741 = vld [vmem:[%s3738 + $0x10] sm:$0xff]
  %v3742 = vld [vmem:[%s3738 + $0x18] sm:$0xff]
  %3743 = vmatpush.msra.mxu0 0.0
  %3744 = vmatpush.msra.mxu0 0.0
  %3745 = vmatpush.msra.mxu0 0.0
  %3746 = vmatpush.msra.mxu0 0.0
  %3747 = vmatpush.msra.mxu0 0.0
  %3748 = vmatpush.msra.mxu0 0.0
  %3749 = vmatpush.msra.mxu0 0.0
  %3750 = vmatpush.msra.mxu0 0.0
  %3751 = vmatpush.msra.mxu0 0.0
  %3752 = vmatpush.msra.mxu0 0.0
  %3753 = vmatpush.msra.mxu0 0.0
  %3754 = vmatpush.msra.mxu0 0.0
  %3755 = vmatpush.msra.mxu0 %v3742
  %3756 = vmatpush.msra.mxu0 %v3741
  %3757 = vmatpush.msra.mxu0 %v3740
  %3758 = vmatpush.msra.mxu0 %v3739
  %3759 = vmatmul.f32.gmra.mxu0 %v3127
  %v3760 = vpop.f32.mrf.mxu0
  %v3761 = vadd.f32 0.0, %v3760
  %3762 = vmatmul.f32.gmra.mxu0 %v3130
  %v3763 = vpop.f32.mrf.mxu0
  %v3764 = vadd.f32 0.0, %v3763
  %3765 = vdwg.mxu0
  %s3766 = scalar_lea.vmem %s12, 256
  %v3767 = vld [vmem:[%s3766] sm:$0xff]
  %v3768 = vld [vmem:[%s3766 + $0x8] sm:$0xff]
  %v3769 = vld [vmem:[%s3766 + $0x10] sm:$0xff]
  %v3770 = vld [vmem:[%s3766 + $0x18] sm:$0xff]
  %v3772 = vsel %vm3088, %v3767, 0
  %v3775 = vsel %vm3088, %v3768, 0
  %v3778 = vsel %vm3088, %v3769, 0
  %v3781 = vsel %vm3088, %v3770, 0
  %3783 = vmatpush.msra.mxu0 0.0
  %3784 = vmatpush.msra.mxu0 0.0
  %3785 = vmatpush.msra.mxu0 0.0
  %3786 = vmatpush.msra.mxu0 0.0
  %3787 = vmatpush.msra.mxu0 0.0
  %3788 = vmatpush.msra.mxu0 0.0
  %3789 = vmatpush.msra.mxu0 0.0
  %3790 = vmatpush.msra.mxu0 0.0
  %3791 = vmatpush.msra.mxu0 0.0
  %3792 = vmatpush.msra.mxu0 0.0
  %3793 = vmatpush.msra.mxu0 0.0
  %3794 = vmatpush.msra.mxu0 0.0
  %3795 = vmatpush.msra.mxu0 0.0
  %3796 = vmatpush.msra.mxu0 0.0
  %3797 = vmatpush.msra.mxu0 %v3764
  %3798 = vmatpush.msra.mxu0 %v3761
  %3799 = vmatmul.f32.gmra.mxu0 %v3772
  %v3800 = vpop.f32.mrf.mxu0
  %v3801 = vadd.f32 0.0, %v3800
  %3802 = vmatmul.f32.gmra.mxu0 %v3775
  %v3803 = vpop.f32.mrf.mxu0
  %v3804 = vadd.f32 0.0, %v3803
  %3805 = vmatmul.f32.gmra.mxu0 %v3778
  %v3806 = vpop.f32.mrf.mxu0
  %v3807 = vadd.f32 0.0, %v3806
  %3808 = vmatmul.f32.gmra.mxu0 %v3781
  %v3809 = vpop.f32.mrf.mxu0
  %v3810 = vadd.f32 0.0, %v3809
  %3811 = vdwg.mxu0
  %v3812 = vadd.f32 %v3734, %v3801
  %v3813 = vadd.f32 %v3735, %v3804
  %v3814 = vadd.f32 %v3736, %v3807
  %v3815 = vadd.f32 %v3737, %v3810
  %s3816 = scalar_lea.vmem %s11, 288
  %v3817 = vld [vmem:[%s3816] sm:$0xff]
  %v3818 = vld [vmem:[%s3816 + $0x8] sm:$0xff]
  %v3819 = vld [vmem:[%s3816 + $0x10] sm:$0xff]
  %v3820 = vld [vmem:[%s3816 + $0x18] sm:$0xff]
  %3821 = vmatpush.msra.mxu0 0.0
  %3822 = vmatpush.msra.mxu0 0.0
  %3823 = vmatpush.msra.mxu0 0.0
  %3824 = vmatpush.msra.mxu0 0.0
  %3825 = vmatpush.msra.mxu0 0.0
  %3826 = vmatpush.msra.mxu0 0.0
  %3827 = vmatpush.msra.mxu0 0.0
  %3828 = vmatpush.msra.mxu0 0.0
  %3829 = vmatpush.msra.mxu0 0.0
  %3830 = vmatpush.msra.mxu0 0.0
  %3831 = vmatpush.msra.mxu0 0.0
  %3832 = vmatpush.msra.mxu0 0.0
  %3833 = vmatpush.msra.mxu0 %v3820
  %3834 = vmatpush.msra.mxu0 %v3819
  %3835 = vmatpush.msra.mxu0 %v3818
  %3836 = vmatpush.msra.mxu0 %v3817
  %3837 = vmatmul.f32.gmra.mxu0 %v3127
  %v3838 = vpop.f32.mrf.mxu0
  %v3839 = vadd.f32 0.0, %v3838
  %3840 = vmatmul.f32.gmra.mxu0 %v3130
  %v3841 = vpop.f32.mrf.mxu0
  %v3842 = vadd.f32 0.0, %v3841
  %3843 = vdwg.mxu0
  %s3844 = scalar_lea.vmem %s12, 288
  %v3845 = vld [vmem:[%s3844] sm:$0xff]
  %v3846 = vld [vmem:[%s3844 + $0x8] sm:$0xff]
  %v3847 = vld [vmem:[%s3844 + $0x10] sm:$0xff]
  %v3848 = vld [vmem:[%s3844 + $0x18] sm:$0xff]
  %v3850 = vsel %vm3088, %v3845, 0
  %v3853 = vsel %vm3088, %v3846, 0
  %v3856 = vsel %vm3088, %v3847, 0
  %v3859 = vsel %vm3088, %v3848, 0
  %3861 = vmatpush.msra.mxu0 0.0
  %3862 = vmatpush.msra.mxu0 0.0
  %3863 = vmatpush.msra.mxu0 0.0
  %3864 = vmatpush.msra.mxu0 0.0
  %3865 = vmatpush.msra.mxu0 0.0
  %3866 = vmatpush.msra.mxu0 0.0
  %3867 = vmatpush.msra.mxu0 0.0
  %3868 = vmatpush.msra.mxu0 0.0
  %3869 = vmatpush.msra.mxu0 0.0
  %3870 = vmatpush.msra.mxu0 0.0
  %3871 = vmatpush.msra.mxu0 0.0
  %3872 = vmatpush.msra.mxu0 0.0
  %3873 = vmatpush.msra.mxu0 0.0
  %3874 = vmatpush.msra.mxu0 0.0
  %3875 = vmatpush.msra.mxu0 %v3842
  %3876 = vmatpush.msra.mxu0 %v3839
  %3877 = vmatmul.f32.gmra.mxu0 %v3850
  %v3878 = vpop.f32.mrf.mxu0
  %v3879 = vadd.f32 0.0, %v3878
  %3880 = vmatmul.f32.gmra.mxu0 %v3853
  %v3881 = vpop.f32.mrf.mxu0
  %v3882 = vadd.f32 0.0, %v3881
  %3883 = vmatmul.f32.gmra.mxu0 %v3856
  %v3884 = vpop.f32.mrf.mxu0
  %v3885 = vadd.f32 0.0, %v3884
  %3886 = vmatmul.f32.gmra.mxu0 %v3859
  %v3887 = vpop.f32.mrf.mxu0
  %v3888 = vadd.f32 0.0, %v3887
  %3889 = vdwg.mxu0
  %v3890 = vadd.f32 %v3812, %v3879
  %v3891 = vadd.f32 %v3813, %v3882
  %v3892 = vadd.f32 %v3814, %v3885
  %v3893 = vadd.f32 %v3815, %v3888
  %s3894 = scalar_lea.vmem %s11, 320
  %v3895 = vld [vmem:[%s3894] sm:$0xff]
  %v3896 = vld [vmem:[%s3894 + $0x8] sm:$0xff]
  %v3897 = vld [vmem:[%s3894 + $0x10] sm:$0xff]
  %v3898 = vld [vmem:[%s3894 + $0x18] sm:$0xff]
  %3899 = vmatpush.msra.mxu0 0.0
  %3900 = vmatpush.msra.mxu0 0.0
  %3901 = vmatpush.msra.mxu0 0.0
  %3902 = vmatpush.msra.mxu0 0.0
  %3903 = vmatpush.msra.mxu0 0.0
  %3904 = vmatpush.msra.mxu0 0.0
  %3905 = vmatpush.msra.mxu0 0.0
  %3906 = vmatpush.msra.mxu0 0.0
  %3907 = vmatpush.msra.mxu0 0.0
  %3908 = vmatpush.msra.mxu0 0.0
  %3909 = vmatpush.msra.mxu0 0.0
  %3910 = vmatpush.msra.mxu0 0.0
  %3911 = vmatpush.msra.mxu0 %v3898
  %3912 = vmatpush.msra.mxu0 %v3897
  %3913 = vmatpush.msra.mxu0 %v3896
  %3914 = vmatpush.msra.mxu0 %v3895
  %3915 = vmatmul.f32.gmra.mxu0 %v3127
  %v3916 = vpop.f32.mrf.mxu0
  %v3917 = vadd.f32 0.0, %v3916
  %3918 = vmatmul.f32.gmra.mxu0 %v3130
  %v3919 = vpop.f32.mrf.mxu0
  %v3920 = vadd.f32 0.0, %v3919
  %3921 = vdwg.mxu0
  %s3922 = scalar_lea.vmem %s12, 320
  %v3923 = vld [vmem:[%s3922] sm:$0xff]
  %v3924 = vld [vmem:[%s3922 + $0x8] sm:$0xff]
  %v3925 = vld [vmem:[%s3922 + $0x10] sm:$0xff]
  %v3926 = vld [vmem:[%s3922 + $0x18] sm:$0xff]
  %v3928 = vsel %vm3088, %v3923, 0
  %v3931 = vsel %vm3088, %v3924, 0
  %v3934 = vsel %vm3088, %v3925, 0
  %v3937 = vsel %vm3088, %v3926, 0
  %3939 = vmatpush.msra.mxu0 0.0
  %3940 = vmatpush.msra.mxu0 0.0
  %3941 = vmatpush.msra.mxu0 0.0
  %3942 = vmatpush.msra.mxu0 0.0
  %3943 = vmatpush.msra.mxu0 0.0
  %3944 = vmatpush.msra.mxu0 0.0
  %3945 = vmatpush.msra.mxu0 0.0
  %3946 = vmatpush.msra.mxu0 0.0
  %3947 = vmatpush.msra.mxu0 0.0
  %3948 = vmatpush.msra.mxu0 0.0
  %3949 = vmatpush.msra.mxu0 0.0
  %3950 = vmatpush.msra.mxu0 0.0
  %3951 = vmatpush.msra.mxu0 0.0
  %3952 = vmatpush.msra.mxu0 0.0
  %3953 = vmatpush.msra.mxu0 %v3920
  %3954 = vmatpush.msra.mxu0 %v3917
  %3955 = vmatmul.f32.gmra.mxu0 %v3928
  %v3956 = vpop.f32.mrf.mxu0
  %v3957 = vadd.f32 0.0, %v3956
  %3958 = vmatmul.f32.gmra.mxu0 %v3931
  %v3959 = vpop.f32.mrf.mxu0
  %v3960 = vadd.f32 0.0, %v3959
  %3961 = vmatmul.f32.gmra.mxu0 %v3934
  %v3962 = vpop.f32.mrf.mxu0
  %v3963 = vadd.f32 0.0, %v3962
  %3964 = vmatmul.f32.gmra.mxu0 %v3937
  %v3965 = vpop.f32.mrf.mxu0
  %v3966 = vadd.f32 0.0, %v3965
  %3967 = vdwg.mxu0
  %v3968 = vadd.f32 %v3890, %v3957
  %v3969 = vadd.f32 %v3891, %v3960
  %v3970 = vadd.f32 %v3892, %v3963
  %v3971 = vadd.f32 %v3893, %v3966
  %s3972 = scalar_lea.vmem %s11, 352
  %v3973 = vld [vmem:[%s3972] sm:$0xff]
  %v3974 = vld [vmem:[%s3972 + $0x8] sm:$0xff]
  %v3975 = vld [vmem:[%s3972 + $0x10] sm:$0xff]
  %v3976 = vld [vmem:[%s3972 + $0x18] sm:$0xff]
  %3977 = vmatpush.msra.mxu0 0.0
  %3978 = vmatpush.msra.mxu0 0.0
  %3979 = vmatpush.msra.mxu0 0.0
  %3980 = vmatpush.msra.mxu0 0.0
  %3981 = vmatpush.msra.mxu0 0.0
  %3982 = vmatpush.msra.mxu0 0.0
  %3983 = vmatpush.msra.mxu0 0.0
  %3984 = vmatpush.msra.mxu0 0.0
  %3985 = vmatpush.msra.mxu0 0.0
  %3986 = vmatpush.msra.mxu0 0.0
  %3987 = vmatpush.msra.mxu0 0.0
  %3988 = vmatpush.msra.mxu0 0.0
  %3989 = vmatpush.msra.mxu0 %v3976
  %3990 = vmatpush.msra.mxu0 %v3975
  %3991 = vmatpush.msra.mxu0 %v3974
  %3992 = vmatpush.msra.mxu0 %v3973
  %3993 = vmatmul.f32.gmra.mxu0 %v3127
  %v3994 = vpop.f32.mrf.mxu0
  %v3995 = vadd.f32 0.0, %v3994
  %3996 = vmatmul.f32.gmra.mxu0 %v3130
  %v3997 = vpop.f32.mrf.mxu0
  %v3998 = vadd.f32 0.0, %v3997
  %3999 = vdwg.mxu0
  %s4000 = scalar_lea.vmem %s12, 352
  %v4001 = vld [vmem:[%s4000] sm:$0xff]
  %v4002 = vld [vmem:[%s4000 + $0x8] sm:$0xff]
  %v4003 = vld [vmem:[%s4000 + $0x10] sm:$0xff]
  %v4004 = vld [vmem:[%s4000 + $0x18] sm:$0xff]
  %v4006 = vsel %vm3088, %v4001, 0
  %v4009 = vsel %vm3088, %v4002, 0
  %v4012 = vsel %vm3088, %v4003, 0
  %v4015 = vsel %vm3088, %v4004, 0
  %4017 = vmatpush.msra.mxu0 0.0
  %4018 = vmatpush.msra.mxu0 0.0
  %4019 = vmatpush.msra.mxu0 0.0
  %4020 = vmatpush.msra.mxu0 0.0
  %4021 = vmatpush.msra.mxu0 0.0
  %4022 = vmatpush.msra.mxu0 0.0
  %4023 = vmatpush.msra.mxu0 0.0
  %4024 = vmatpush.msra.mxu0 0.0
  %4025 = vmatpush.msra.mxu0 0.0
  %4026 = vmatpush.msra.mxu0 0.0
  %4027 = vmatpush.msra.mxu0 0.0
  %4028 = vmatpush.msra.mxu0 0.0
  %4029 = vmatpush.msra.mxu0 0.0
  %4030 = vmatpush.msra.mxu0 0.0
  %4031 = vmatpush.msra.mxu0 %v3998
  %4032 = vmatpush.msra.mxu0 %v3995
  %4033 = vmatmul.f32.gmra.mxu0 %v4006
  %v4034 = vpop.f32.mrf.mxu0
  %v4035 = vadd.f32 0.0, %v4034
  %4036 = vmatmul.f32.gmra.mxu0 %v4009
  %v4037 = vpop.f32.mrf.mxu0
  %v4038 = vadd.f32 0.0, %v4037
  %4039 = vmatmul.f32.gmra.mxu0 %v4012
  %v4040 = vpop.f32.mrf.mxu0
  %v4041 = vadd.f32 0.0, %v4040
  %4042 = vmatmul.f32.gmra.mxu0 %v4015
  %v4043 = vpop.f32.mrf.mxu0
  %v4044 = vadd.f32 0.0, %v4043
  %4045 = vdwg.mxu0
  %v4046 = vadd.f32 %v3968, %v4035
  %v4047 = vadd.f32 %v3969, %v4038
  %v4048 = vadd.f32 %v3970, %v4041
  %v4049 = vadd.f32 %v3971, %v4044
  %s4050 = scalar_lea.vmem %s11, 384
  %v4051 = vld [vmem:[%s4050] sm:$0xff]
  %v4052 = vld [vmem:[%s4050 + $0x8] sm:$0xff]
  %v4053 = vld [vmem:[%s4050 + $0x10] sm:$0xff]
  %v4054 = vld [vmem:[%s4050 + $0x18] sm:$0xff]
  %4055 = vmatpush.msra.mxu0 0.0
  %4056 = vmatpush.msra.mxu0 0.0
  %4057 = vmatpush.msra.mxu0 0.0
  %4058 = vmatpush.msra.mxu0 0.0
  %4059 = vmatpush.msra.mxu0 0.0
  %4060 = vmatpush.msra.mxu0 0.0
  %4061 = vmatpush.msra.mxu0 0.0
  %4062 = vmatpush.msra.mxu0 0.0
  %4063 = vmatpush.msra.mxu0 0.0
  %4064 = vmatpush.msra.mxu0 0.0
  %4065 = vmatpush.msra.mxu0 0.0
  %4066 = vmatpush.msra.mxu0 0.0
  %4067 = vmatpush.msra.mxu0 %v4054
  %4068 = vmatpush.msra.mxu0 %v4053
  %4069 = vmatpush.msra.mxu0 %v4052
  %4070 = vmatpush.msra.mxu0 %v4051
  %4071 = vmatmul.f32.gmra.mxu0 %v3127
  %v4072 = vpop.f32.mrf.mxu0
  %v4073 = vadd.f32 0.0, %v4072
  %4074 = vmatmul.f32.gmra.mxu0 %v3130
  %v4075 = vpop.f32.mrf.mxu0
  %v4076 = vadd.f32 0.0, %v4075
  %4077 = vdwg.mxu0
  %s4078 = scalar_lea.vmem %s12, 384
  %v4079 = vld [vmem:[%s4078] sm:$0xff]
  %v4080 = vld [vmem:[%s4078 + $0x8] sm:$0xff]
  %v4081 = vld [vmem:[%s4078 + $0x10] sm:$0xff]
  %v4082 = vld [vmem:[%s4078 + $0x18] sm:$0xff]
  %v4084 = vsel %vm3088, %v4079, 0
  %v4087 = vsel %vm3088, %v4080, 0
  %v4090 = vsel %vm3088, %v4081, 0
  %v4093 = vsel %vm3088, %v4082, 0
  %4095 = vmatpush.msra.mxu0 0.0
  %4096 = vmatpush.msra.mxu0 0.0
  %4097 = vmatpush.msra.mxu0 0.0
  %4098 = vmatpush.msra.mxu0 0.0
  %4099 = vmatpush.msra.mxu0 0.0
  %4100 = vmatpush.msra.mxu0 0.0
  %4101 = vmatpush.msra.mxu0 0.0
  %4102 = vmatpush.msra.mxu0 0.0
  %4103 = vmatpush.msra.mxu0 0.0
  %4104 = vmatpush.msra.mxu0 0.0
  %4105 = vmatpush.msra.mxu0 0.0
  %4106 = vmatpush.msra.mxu0 0.0
  %4107 = vmatpush.msra.mxu0 0.0
  %4108 = vmatpush.msra.mxu0 0.0
  %4109 = vmatpush.msra.mxu0 %v4076
  %4110 = vmatpush.msra.mxu0 %v4073
  %4111 = vmatmul.f32.gmra.mxu0 %v4084
  %v4112 = vpop.f32.mrf.mxu0
  %v4113 = vadd.f32 0.0, %v4112
  %4114 = vmatmul.f32.gmra.mxu0 %v4087
  %v4115 = vpop.f32.mrf.mxu0
  %v4116 = vadd.f32 0.0, %v4115
  %4117 = vmatmul.f32.gmra.mxu0 %v4090
  %v4118 = vpop.f32.mrf.mxu0
  %v4119 = vadd.f32 0.0, %v4118
  %4120 = vmatmul.f32.gmra.mxu0 %v4093
  %v4121 = vpop.f32.mrf.mxu0
  %v4122 = vadd.f32 0.0, %v4121
  %4123 = vdwg.mxu0
  %v4124 = vadd.f32 %v4046, %v4113
  %v4125 = vadd.f32 %v4047, %v4116
  %v4126 = vadd.f32 %v4048, %v4119
  %v4127 = vadd.f32 %v4049, %v4122
  %s4128 = scalar_lea.vmem %s11, 416
  %v4129 = vld [vmem:[%s4128] sm:$0xff]
  %v4130 = vld [vmem:[%s4128 + $0x8] sm:$0xff]
  %v4131 = vld [vmem:[%s4128 + $0x10] sm:$0xff]
  %v4132 = vld [vmem:[%s4128 + $0x18] sm:$0xff]
  %4133 = vmatpush.msra.mxu0 0.0
  %4134 = vmatpush.msra.mxu0 0.0
  %4135 = vmatpush.msra.mxu0 0.0
  %4136 = vmatpush.msra.mxu0 0.0
  %4137 = vmatpush.msra.mxu0 0.0
  %4138 = vmatpush.msra.mxu0 0.0
  %4139 = vmatpush.msra.mxu0 0.0
  %4140 = vmatpush.msra.mxu0 0.0
  %4141 = vmatpush.msra.mxu0 0.0
  %4142 = vmatpush.msra.mxu0 0.0
  %4143 = vmatpush.msra.mxu0 0.0
  %4144 = vmatpush.msra.mxu0 0.0
  %4145 = vmatpush.msra.mxu0 %v4132
  %4146 = vmatpush.msra.mxu0 %v4131
  %4147 = vmatpush.msra.mxu0 %v4130
  %4148 = vmatpush.msra.mxu0 %v4129
  %4149 = vmatmul.f32.gmra.mxu0 %v3127
  %v4150 = vpop.f32.mrf.mxu0
  %v4151 = vadd.f32 0.0, %v4150
  %4152 = vmatmul.f32.gmra.mxu0 %v3130
  %v4153 = vpop.f32.mrf.mxu0
  %v4154 = vadd.f32 0.0, %v4153
  %4155 = vdwg.mxu0
  %s4156 = scalar_lea.vmem %s12, 416
  %v4157 = vld [vmem:[%s4156] sm:$0xff]
  %v4158 = vld [vmem:[%s4156 + $0x8] sm:$0xff]
  %v4159 = vld [vmem:[%s4156 + $0x10] sm:$0xff]
  %v4160 = vld [vmem:[%s4156 + $0x18] sm:$0xff]
  %v4162 = vsel %vm3088, %v4157, 0
  %v4165 = vsel %vm3088, %v4158, 0
  %v4168 = vsel %vm3088, %v4159, 0
  %v4171 = vsel %vm3088, %v4160, 0
  %4173 = vmatpush.msra.mxu0 0.0
  %4174 = vmatpush.msra.mxu0 0.0
  %4175 = vmatpush.msra.mxu0 0.0
  %4176 = vmatpush.msra.mxu0 0.0
  %4177 = vmatpush.msra.mxu0 0.0
  %4178 = vmatpush.msra.mxu0 0.0
  %4179 = vmatpush.msra.mxu0 0.0
  %4180 = vmatpush.msra.mxu0 0.0
  %4181 = vmatpush.msra.mxu0 0.0
  %4182 = vmatpush.msra.mxu0 0.0
  %4183 = vmatpush.msra.mxu0 0.0
  %4184 = vmatpush.msra.mxu0 0.0
  %4185 = vmatpush.msra.mxu0 0.0
  %4186 = vmatpush.msra.mxu0 0.0
  %4187 = vmatpush.msra.mxu0 %v4154
  %4188 = vmatpush.msra.mxu0 %v4151
  %4189 = vmatmul.f32.gmra.mxu0 %v4162
  %v4190 = vpop.f32.mrf.mxu0
  %v4191 = vadd.f32 0.0, %v4190
  %4192 = vmatmul.f32.gmra.mxu0 %v4165
  %v4193 = vpop.f32.mrf.mxu0
  %v4194 = vadd.f32 0.0, %v4193
  %4195 = vmatmul.f32.gmra.mxu0 %v4168
  %v4196 = vpop.f32.mrf.mxu0
  %v4197 = vadd.f32 0.0, %v4196
  %4198 = vmatmul.f32.gmra.mxu0 %v4171
  %v4199 = vpop.f32.mrf.mxu0
  %v4200 = vadd.f32 0.0, %v4199
  %4201 = vdwg.mxu0
  %v4202 = vadd.f32 %v4124, %v4191
  %v4203 = vadd.f32 %v4125, %v4194
  %v4204 = vadd.f32 %v4126, %v4197
  %v4205 = vadd.f32 %v4127, %v4200
  %s4206 = scalar_lea.vmem %s11, 448
  %v4207 = vld [vmem:[%s4206] sm:$0xff]
  %v4208 = vld [vmem:[%s4206 + $0x8] sm:$0xff]
  %v4209 = vld [vmem:[%s4206 + $0x10] sm:$0xff]
  %v4210 = vld [vmem:[%s4206 + $0x18] sm:$0xff]
  %4211 = vmatpush.msra.mxu0 0.0
  %4212 = vmatpush.msra.mxu0 0.0
  %4213 = vmatpush.msra.mxu0 0.0
  %4214 = vmatpush.msra.mxu0 0.0
  %4215 = vmatpush.msra.mxu0 0.0
  %4216 = vmatpush.msra.mxu0 0.0
  %4217 = vmatpush.msra.mxu0 0.0
  %4218 = vmatpush.msra.mxu0 0.0
  %4219 = vmatpush.msra.mxu0 0.0
  %4220 = vmatpush.msra.mxu0 0.0
  %4221 = vmatpush.msra.mxu0 0.0
  %4222 = vmatpush.msra.mxu0 0.0
  %4223 = vmatpush.msra.mxu0 %v4210
  %4224 = vmatpush.msra.mxu0 %v4209
  %4225 = vmatpush.msra.mxu0 %v4208
  %4226 = vmatpush.msra.mxu0 %v4207
  %4227 = vmatmul.f32.gmra.mxu0 %v3127
  %v4228 = vpop.f32.mrf.mxu0
  %v4229 = vadd.f32 0.0, %v4228
  %4230 = vmatmul.f32.gmra.mxu0 %v3130
  %v4231 = vpop.f32.mrf.mxu0
  %v4232 = vadd.f32 0.0, %v4231
  %4233 = vdwg.mxu0
  %s4234 = scalar_lea.vmem %s12, 448
  %v4235 = vld [vmem:[%s4234] sm:$0xff]
  %v4236 = vld [vmem:[%s4234 + $0x8] sm:$0xff]
  %v4237 = vld [vmem:[%s4234 + $0x10] sm:$0xff]
  %v4238 = vld [vmem:[%s4234 + $0x18] sm:$0xff]
  %v4240 = vsel %vm3088, %v4235, 0
  %v4243 = vsel %vm3088, %v4236, 0
  %v4246 = vsel %vm3088, %v4237, 0
  %v4249 = vsel %vm3088, %v4238, 0
  %4251 = vmatpush.msra.mxu0 0.0
  %4252 = vmatpush.msra.mxu0 0.0
  %4253 = vmatpush.msra.mxu0 0.0
  %4254 = vmatpush.msra.mxu0 0.0
  %4255 = vmatpush.msra.mxu0 0.0
  %4256 = vmatpush.msra.mxu0 0.0
  %4257 = vmatpush.msra.mxu0 0.0
  %4258 = vmatpush.msra.mxu0 0.0
  %4259 = vmatpush.msra.mxu0 0.0
  %4260 = vmatpush.msra.mxu0 0.0
  %4261 = vmatpush.msra.mxu0 0.0
  %4262 = vmatpush.msra.mxu0 0.0
  %4263 = vmatpush.msra.mxu0 0.0
  %4264 = vmatpush.msra.mxu0 0.0
  %4265 = vmatpush.msra.mxu0 %v4232
  %4266 = vmatpush.msra.mxu0 %v4229
  %4267 = vmatmul.f32.gmra.mxu0 %v4240
  %v4268 = vpop.f32.mrf.mxu0
  %v4269 = vadd.f32 0.0, %v4268
  %4270 = vmatmul.f32.gmra.mxu0 %v4243
  %v4271 = vpop.f32.mrf.mxu0
  %v4272 = vadd.f32 0.0, %v4271
  %4273 = vmatmul.f32.gmra.mxu0 %v4246
  %v4274 = vpop.f32.mrf.mxu0
  %v4275 = vadd.f32 0.0, %v4274
  %4276 = vmatmul.f32.gmra.mxu0 %v4249
  %v4277 = vpop.f32.mrf.mxu0
  %v4278 = vadd.f32 0.0, %v4277
  %4279 = vdwg.mxu0
  %v4280 = vadd.f32 %v4202, %v4269
  %v4281 = vadd.f32 %v4203, %v4272
  %v4282 = vadd.f32 %v4204, %v4275
  %v4283 = vadd.f32 %v4205, %v4278
  %s4284 = scalar_lea.vmem %s11, 480
  %v4285 = vld [vmem:[%s4284] sm:$0xff]
  %v4286 = vld [vmem:[%s4284 + $0x8] sm:$0xff]
  %v4287 = vld [vmem:[%s4284 + $0x10] sm:$0xff]
  %v4288 = vld [vmem:[%s4284 + $0x18] sm:$0xff]
  %4289 = vmatpush.msra.mxu0 0.0
  %4290 = vmatpush.msra.mxu0 0.0
  %4291 = vmatpush.msra.mxu0 0.0
  %4292 = vmatpush.msra.mxu0 0.0
  %4293 = vmatpush.msra.mxu0 0.0
  %4294 = vmatpush.msra.mxu0 0.0
  %4295 = vmatpush.msra.mxu0 0.0
  %4296 = vmatpush.msra.mxu0 0.0
  %4297 = vmatpush.msra.mxu0 0.0
  %4298 = vmatpush.msra.mxu0 0.0
  %4299 = vmatpush.msra.mxu0 0.0
  %4300 = vmatpush.msra.mxu0 0.0
  %4301 = vmatpush.msra.mxu0 %v4288
  %4302 = vmatpush.msra.mxu0 %v4287
  %4303 = vmatpush.msra.mxu0 %v4286
  %4304 = vmatpush.msra.mxu0 %v4285
  %4305 = vmatmul.f32.gmra.mxu0 %v3127
  %v4306 = vpop.f32.mrf.mxu0
  %v4307 = vadd.f32 0.0, %v4306
  %4308 = vmatmul.f32.gmra.mxu0 %v3130
  %v4309 = vpop.f32.mrf.mxu0
  %v4310 = vadd.f32 0.0, %v4309
  %4311 = vdwg.mxu0
  %s4312 = scalar_lea.vmem %s12, 480
  %v4313 = vld [vmem:[%s4312] sm:$0xff]
  %v4314 = vld [vmem:[%s4312 + $0x8] sm:$0xff]
  %v4315 = vld [vmem:[%s4312 + $0x10] sm:$0xff]
  %v4316 = vld [vmem:[%s4312 + $0x18] sm:$0xff]
  %v4318 = vsel %vm3088, %v4313, 0
  %v4321 = vsel %vm3088, %v4314, 0
  %v4324 = vsel %vm3088, %v4315, 0
  %v4327 = vsel %vm3088, %v4316, 0
  %4329 = vmatpush.msra.mxu0 0.0
  %4330 = vmatpush.msra.mxu0 0.0
  %4331 = vmatpush.msra.mxu0 0.0
  %4332 = vmatpush.msra.mxu0 0.0
  %4333 = vmatpush.msra.mxu0 0.0
  %4334 = vmatpush.msra.mxu0 0.0
  %4335 = vmatpush.msra.mxu0 0.0
  %4336 = vmatpush.msra.mxu0 0.0
  %4337 = vmatpush.msra.mxu0 0.0
  %4338 = vmatpush.msra.mxu0 0.0
  %4339 = vmatpush.msra.mxu0 0.0
  %4340 = vmatpush.msra.mxu0 0.0
  %4341 = vmatpush.msra.mxu0 0.0
  %4342 = vmatpush.msra.mxu0 0.0
  %4343 = vmatpush.msra.mxu0 %v4310
  %4344 = vmatpush.msra.mxu0 %v4307
  %4345 = vmatmul.f32.gmra.mxu0 %v4318
  %v4346 = vpop.f32.mrf.mxu0
  %v4347 = vadd.f32 0.0, %v4346
  %4348 = vmatmul.f32.gmra.mxu0 %v4321
  %v4349 = vpop.f32.mrf.mxu0
  %v4350 = vadd.f32 0.0, %v4349
  %4351 = vmatmul.f32.gmra.mxu0 %v4324
  %v4352 = vpop.f32.mrf.mxu0
  %v4353 = vadd.f32 0.0, %v4352
  %4354 = vmatmul.f32.gmra.mxu0 %v4327
  %v4355 = vpop.f32.mrf.mxu0
  %v4356 = vadd.f32 0.0, %v4355
  %4357 = vdwg.mxu0
  %v4358 = vadd.f32 %v4280, %v4347
  %v4359 = vadd.f32 %v4281, %v4350
  %v4360 = vadd.f32 %v4282, %v4353
  %v4361 = vadd.f32 %v4283, %v4356
  %s4362 = scalar_lea.vmem %s11, 512
  %v4363 = vld [vmem:[%s4362] sm:$0xff]
  %v4364 = vld [vmem:[%s4362 + $0x8] sm:$0xff]
  %v4365 = vld [vmem:[%s4362 + $0x10] sm:$0xff]
  %v4366 = vld [vmem:[%s4362 + $0x18] sm:$0xff]
  %4367 = vmatpush.msra.mxu0 0.0
  %4368 = vmatpush.msra.mxu0 0.0
  %4369 = vmatpush.msra.mxu0 0.0
  %4370 = vmatpush.msra.mxu0 0.0
  %4371 = vmatpush.msra.mxu0 0.0
  %4372 = vmatpush.msra.mxu0 0.0
  %4373 = vmatpush.msra.mxu0 0.0
  %4374 = vmatpush.msra.mxu0 0.0
  %4375 = vmatpush.msra.mxu0 0.0
  %4376 = vmatpush.msra.mxu0 0.0
  %4377 = vmatpush.msra.mxu0 0.0
  %4378 = vmatpush.msra.mxu0 0.0
  %4379 = vmatpush.msra.mxu0 %v4366
  %4380 = vmatpush.msra.mxu0 %v4365
  %4381 = vmatpush.msra.mxu0 %v4364
  %4382 = vmatpush.msra.mxu0 %v4363
  %4383 = vmatmul.f32.gmra.mxu0 %v3127
  %v4384 = vpop.f32.mrf.mxu0
  %v4385 = vadd.f32 0.0, %v4384
  %4386 = vmatmul.f32.gmra.mxu0 %v3130
  %v4387 = vpop.f32.mrf.mxu0
  %v4388 = vadd.f32 0.0, %v4387
  %4389 = vdwg.mxu0
  %s4390 = scalar_lea.vmem %s12, 512
  %v4391 = vld [vmem:[%s4390] sm:$0xff]
  %v4392 = vld [vmem:[%s4390 + $0x8] sm:$0xff]
  %v4393 = vld [vmem:[%s4390 + $0x10] sm:$0xff]
  %v4394 = vld [vmem:[%s4390 + $0x18] sm:$0xff]
  %v4396 = vsel %vm3088, %v4391, 0
  %v4399 = vsel %vm3088, %v4392, 0
  %v4402 = vsel %vm3088, %v4393, 0
  %v4405 = vsel %vm3088, %v4394, 0
  %4407 = vmatpush.msra.mxu0 0.0
  %4408 = vmatpush.msra.mxu0 0.0
  %4409 = vmatpush.msra.mxu0 0.0
  %4410 = vmatpush.msra.mxu0 0.0
  %4411 = vmatpush.msra.mxu0 0.0
  %4412 = vmatpush.msra.mxu0 0.0
  %4413 = vmatpush.msra.mxu0 0.0
  %4414 = vmatpush.msra.mxu0 0.0
  %4415 = vmatpush.msra.mxu0 0.0
  %4416 = vmatpush.msra.mxu0 0.0
  %4417 = vmatpush.msra.mxu0 0.0
  %4418 = vmatpush.msra.mxu0 0.0
  %4419 = vmatpush.msra.mxu0 0.0
  %4420 = vmatpush.msra.mxu0 0.0
  %4421 = vmatpush.msra.mxu0 %v4388
  %4422 = vmatpush.msra.mxu0 %v4385
  %4423 = vmatmul.f32.gmra.mxu0 %v4396
  %v4424 = vpop.f32.mrf.mxu0
  %v4425 = vadd.f32 0.0, %v4424
  %4426 = vmatmul.f32.gmra.mxu0 %v4399
  %v4427 = vpop.f32.mrf.mxu0
  %v4428 = vadd.f32 0.0, %v4427
  %4429 = vmatmul.f32.gmra.mxu0 %v4402
  %v4430 = vpop.f32.mrf.mxu0
  %v4431 = vadd.f32 0.0, %v4430
  %4432 = vmatmul.f32.gmra.mxu0 %v4405
  %v4433 = vpop.f32.mrf.mxu0
  %v4434 = vadd.f32 0.0, %v4433
  %4435 = vdwg.mxu0
  %v4436 = vadd.f32 %v4358, %v4425
  %v4437 = vadd.f32 %v4359, %v4428
  %v4438 = vadd.f32 %v4360, %v4431
  %v4439 = vadd.f32 %v4361, %v4434
  %s4440 = scalar_lea.vmem %s11, 544
  %v4441 = vld [vmem:[%s4440] sm:$0xff]
  %v4442 = vld [vmem:[%s4440 + $0x8] sm:$0xff]
  %v4443 = vld [vmem:[%s4440 + $0x10] sm:$0xff]
  %v4444 = vld [vmem:[%s4440 + $0x18] sm:$0xff]
  %4445 = vmatpush.msra.mxu0 0.0
  %4446 = vmatpush.msra.mxu0 0.0
  %4447 = vmatpush.msra.mxu0 0.0
  %4448 = vmatpush.msra.mxu0 0.0
  %4449 = vmatpush.msra.mxu0 0.0
  %4450 = vmatpush.msra.mxu0 0.0
  %4451 = vmatpush.msra.mxu0 0.0
  %4452 = vmatpush.msra.mxu0 0.0
  %4453 = vmatpush.msra.mxu0 0.0
  %4454 = vmatpush.msra.mxu0 0.0
  %4455 = vmatpush.msra.mxu0 0.0
  %4456 = vmatpush.msra.mxu0 0.0
  %4457 = vmatpush.msra.mxu0 %v4444
  %4458 = vmatpush.msra.mxu0 %v4443
  %4459 = vmatpush.msra.mxu0 %v4442
  %4460 = vmatpush.msra.mxu0 %v4441
  %4461 = vmatmul.f32.gmra.mxu0 %v3127
  %v4462 = vpop.f32.mrf.mxu0
  %v4463 = vadd.f32 0.0, %v4462
  %4464 = vmatmul.f32.gmra.mxu0 %v3130
  %v4465 = vpop.f32.mrf.mxu0
  %v4466 = vadd.f32 0.0, %v4465
  %4467 = vdwg.mxu0
  %s4468 = scalar_lea.vmem %s12, 544
  %v4469 = vld [vmem:[%s4468] sm:$0xff]
  %v4470 = vld [vmem:[%s4468 + $0x8] sm:$0xff]
  %v4471 = vld [vmem:[%s4468 + $0x10] sm:$0xff]
  %v4472 = vld [vmem:[%s4468 + $0x18] sm:$0xff]
  %v4474 = vsel %vm3088, %v4469, 0
  %v4477 = vsel %vm3088, %v4470, 0
  %v4480 = vsel %vm3088, %v4471, 0
  %v4483 = vsel %vm3088, %v4472, 0
  %4485 = vmatpush.msra.mxu0 0.0
  %4486 = vmatpush.msra.mxu0 0.0
  %4487 = vmatpush.msra.mxu0 0.0
  %4488 = vmatpush.msra.mxu0 0.0
  %4489 = vmatpush.msra.mxu0 0.0
  %4490 = vmatpush.msra.mxu0 0.0
  %4491 = vmatpush.msra.mxu0 0.0
  %4492 = vmatpush.msra.mxu0 0.0
  %4493 = vmatpush.msra.mxu0 0.0
  %4494 = vmatpush.msra.mxu0 0.0
  %4495 = vmatpush.msra.mxu0 0.0
  %4496 = vmatpush.msra.mxu0 0.0
  %4497 = vmatpush.msra.mxu0 0.0
  %4498 = vmatpush.msra.mxu0 0.0
  %4499 = vmatpush.msra.mxu0 %v4466
  %4500 = vmatpush.msra.mxu0 %v4463
  %4501 = vmatmul.f32.gmra.mxu0 %v4474
  %v4502 = vpop.f32.mrf.mxu0
  %v4503 = vadd.f32 0.0, %v4502
  %4504 = vmatmul.f32.gmra.mxu0 %v4477
  %v4505 = vpop.f32.mrf.mxu0
  %v4506 = vadd.f32 0.0, %v4505
  %4507 = vmatmul.f32.gmra.mxu0 %v4480
  %v4508 = vpop.f32.mrf.mxu0
  %v4509 = vadd.f32 0.0, %v4508
  %4510 = vmatmul.f32.gmra.mxu0 %v4483
  %v4511 = vpop.f32.mrf.mxu0
  %v4512 = vadd.f32 0.0, %v4511
  %4513 = vdwg.mxu0
  %v4514 = vadd.f32 %v4436, %v4503
  %v4515 = vadd.f32 %v4437, %v4506
  %v4516 = vadd.f32 %v4438, %v4509
  %v4517 = vadd.f32 %v4439, %v4512
  %s4518 = scalar_lea.vmem %s11, 576
  %v4519 = vld [vmem:[%s4518] sm:$0xff]
  %v4520 = vld [vmem:[%s4518 + $0x8] sm:$0xff]
  %v4521 = vld [vmem:[%s4518 + $0x10] sm:$0xff]
  %v4522 = vld [vmem:[%s4518 + $0x18] sm:$0xff]
  %4523 = vmatpush.msra.mxu0 0.0
  %4524 = vmatpush.msra.mxu0 0.0
  %4525 = vmatpush.msra.mxu0 0.0
  %4526 = vmatpush.msra.mxu0 0.0
  %4527 = vmatpush.msra.mxu0 0.0
  %4528 = vmatpush.msra.mxu0 0.0
  %4529 = vmatpush.msra.mxu0 0.0
  %4530 = vmatpush.msra.mxu0 0.0
  %4531 = vmatpush.msra.mxu0 0.0
  %4532 = vmatpush.msra.mxu0 0.0
  %4533 = vmatpush.msra.mxu0 0.0
  %4534 = vmatpush.msra.mxu0 0.0
  %4535 = vmatpush.msra.mxu0 %v4522
  %4536 = vmatpush.msra.mxu0 %v4521
  %4537 = vmatpush.msra.mxu0 %v4520
  %4538 = vmatpush.msra.mxu0 %v4519
  %4539 = vmatmul.f32.gmra.mxu0 %v3127
  %v4540 = vpop.f32.mrf.mxu0
  %v4541 = vadd.f32 0.0, %v4540
  %4542 = vmatmul.f32.gmra.mxu0 %v3130
  %v4543 = vpop.f32.mrf.mxu0
  %v4544 = vadd.f32 0.0, %v4543
  %4545 = vdwg.mxu0
  %s4546 = scalar_lea.vmem %s12, 576
  %v4547 = vld [vmem:[%s4546] sm:$0xff]
  %v4548 = vld [vmem:[%s4546 + $0x8] sm:$0xff]
  %v4549 = vld [vmem:[%s4546 + $0x10] sm:$0xff]
  %v4550 = vld [vmem:[%s4546 + $0x18] sm:$0xff]
  %v4552 = vsel %vm3088, %v4547, 0
  %v4555 = vsel %vm3088, %v4548, 0
  %v4558 = vsel %vm3088, %v4549, 0
  %v4561 = vsel %vm3088, %v4550, 0
  %4563 = vmatpush.msra.mxu0 0.0
  %4564 = vmatpush.msra.mxu0 0.0
  %4565 = vmatpush.msra.mxu0 0.0
  %4566 = vmatpush.msra.mxu0 0.0
  %4567 = vmatpush.msra.mxu0 0.0
  %4568 = vmatpush.msra.mxu0 0.0
  %4569 = vmatpush.msra.mxu0 0.0
  %4570 = vmatpush.msra.mxu0 0.0
  %4571 = vmatpush.msra.mxu0 0.0
  %4572 = vmatpush.msra.mxu0 0.0
  %4573 = vmatpush.msra.mxu0 0.0
  %4574 = vmatpush.msra.mxu0 0.0
  %4575 = vmatpush.msra.mxu0 0.0
  %4576 = vmatpush.msra.mxu0 0.0
  %4577 = vmatpush.msra.mxu0 %v4544
  %4578 = vmatpush.msra.mxu0 %v4541
  %4579 = vmatmul.f32.gmra.mxu0 %v4552
  %v4580 = vpop.f32.mrf.mxu0
  %v4581 = vadd.f32 0.0, %v4580
  %4582 = vmatmul.f32.gmra.mxu0 %v4555
  %v4583 = vpop.f32.mrf.mxu0
  %v4584 = vadd.f32 0.0, %v4583
  %4585 = vmatmul.f32.gmra.mxu0 %v4558
  %v4586 = vpop.f32.mrf.mxu0
  %v4587 = vadd.f32 0.0, %v4586
  %4588 = vmatmul.f32.gmra.mxu0 %v4561
  %v4589 = vpop.f32.mrf.mxu0
  %v4590 = vadd.f32 0.0, %v4589
  %4591 = vdwg.mxu0
  %v4592 = vadd.f32 %v4514, %v4581
  %v4593 = vadd.f32 %v4515, %v4584
  %v4594 = vadd.f32 %v4516, %v4587
  %v4595 = vadd.f32 %v4517, %v4590
  %s4596 = scalar_lea.vmem %s11, 608
  %v4597 = vld [vmem:[%s4596] sm:$0xff]
  %v4598 = vld [vmem:[%s4596 + $0x8] sm:$0xff]
  %v4599 = vld [vmem:[%s4596 + $0x10] sm:$0xff]
  %v4600 = vld [vmem:[%s4596 + $0x18] sm:$0xff]
  %4601 = vmatpush.msra.mxu0 0.0
  %4602 = vmatpush.msra.mxu0 0.0
  %4603 = vmatpush.msra.mxu0 0.0
  %4604 = vmatpush.msra.mxu0 0.0
  %4605 = vmatpush.msra.mxu0 0.0
  %4606 = vmatpush.msra.mxu0 0.0
  %4607 = vmatpush.msra.mxu0 0.0
  %4608 = vmatpush.msra.mxu0 0.0
  %4609 = vmatpush.msra.mxu0 0.0
  %4610 = vmatpush.msra.mxu0 0.0
  %4611 = vmatpush.msra.mxu0 0.0
  %4612 = vmatpush.msra.mxu0 0.0
  %4613 = vmatpush.msra.mxu0 %v4600
  %4614 = vmatpush.msra.mxu0 %v4599
  %4615 = vmatpush.msra.mxu0 %v4598
  %4616 = vmatpush.msra.mxu0 %v4597
  %4617 = vmatmul.f32.gmra.mxu0 %v3127
  %v4618 = vpop.f32.mrf.mxu0
  %v4619 = vadd.f32 0.0, %v4618
  %4620 = vmatmul.f32.gmra.mxu0 %v3130
  %v4621 = vpop.f32.mrf.mxu0
  %v4622 = vadd.f32 0.0, %v4621
  %4623 = vdwg.mxu0
  %s4624 = scalar_lea.vmem %s12, 608
  %v4625 = vld [vmem:[%s4624] sm:$0xff]
  %v4626 = vld [vmem:[%s4624 + $0x8] sm:$0xff]
  %v4627 = vld [vmem:[%s4624 + $0x10] sm:$0xff]
  %v4628 = vld [vmem:[%s4624 + $0x18] sm:$0xff]
  %v4630 = vsel %vm3088, %v4625, 0
  %v4633 = vsel %vm3088, %v4626, 0
  %v4636 = vsel %vm3088, %v4627, 0
  %v4639 = vsel %vm3088, %v4628, 0
  %4641 = vmatpush.msra.mxu0 0.0
  %4642 = vmatpush.msra.mxu0 0.0
  %4643 = vmatpush.msra.mxu0 0.0
  %4644 = vmatpush.msra.mxu0 0.0
  %4645 = vmatpush.msra.mxu0 0.0
  %4646 = vmatpush.msra.mxu0 0.0
  %4647 = vmatpush.msra.mxu0 0.0
  %4648 = vmatpush.msra.mxu0 0.0
  %4649 = vmatpush.msra.mxu0 0.0
  %4650 = vmatpush.msra.mxu0 0.0
  %4651 = vmatpush.msra.mxu0 0.0
  %4652 = vmatpush.msra.mxu0 0.0
  %4653 = vmatpush.msra.mxu0 0.0
  %4654 = vmatpush.msra.mxu0 0.0
  %4655 = vmatpush.msra.mxu0 %v4622
  %4656 = vmatpush.msra.mxu0 %v4619
  %4657 = vmatmul.f32.gmra.mxu0 %v4630
  %v4658 = vpop.f32.mrf.mxu0
  %v4659 = vadd.f32 0.0, %v4658
  %4660 = vmatmul.f32.gmra.mxu0 %v4633
  %v4661 = vpop.f32.mrf.mxu0
  %v4662 = vadd.f32 0.0, %v4661
  %4663 = vmatmul.f32.gmra.mxu0 %v4636
  %v4664 = vpop.f32.mrf.mxu0
  %v4665 = vadd.f32 0.0, %v4664
  %4666 = vmatmul.f32.gmra.mxu0 %v4639
  %v4667 = vpop.f32.mrf.mxu0
  %v4668 = vadd.f32 0.0, %v4667
  %4669 = vdwg.mxu0
  %v4670 = vadd.f32 %v4592, %v4659
  %v4671 = vadd.f32 %v4593, %v4662
  %v4672 = vadd.f32 %v4594, %v4665
  %v4673 = vadd.f32 %v4595, %v4668
  %s4674 = scalar_lea.vmem %s11, 640
  %v4675 = vld [vmem:[%s4674] sm:$0xff]
  %v4676 = vld [vmem:[%s4674 + $0x8] sm:$0xff]
  %v4677 = vld [vmem:[%s4674 + $0x10] sm:$0xff]
  %v4678 = vld [vmem:[%s4674 + $0x18] sm:$0xff]
  %4679 = vmatpush.msra.mxu0 0.0
  %4680 = vmatpush.msra.mxu0 0.0
  %4681 = vmatpush.msra.mxu0 0.0
  %4682 = vmatpush.msra.mxu0 0.0
  %4683 = vmatpush.msra.mxu0 0.0
  %4684 = vmatpush.msra.mxu0 0.0
  %4685 = vmatpush.msra.mxu0 0.0
  %4686 = vmatpush.msra.mxu0 0.0
  %4687 = vmatpush.msra.mxu0 0.0
  %4688 = vmatpush.msra.mxu0 0.0
  %4689 = vmatpush.msra.mxu0 0.0
  %4690 = vmatpush.msra.mxu0 0.0
  %4691 = vmatpush.msra.mxu0 %v4678
  %4692 = vmatpush.msra.mxu0 %v4677
  %4693 = vmatpush.msra.mxu0 %v4676
  %4694 = vmatpush.msra.mxu0 %v4675
  %4695 = vmatmul.f32.gmra.mxu0 %v3127
  %v4696 = vpop.f32.mrf.mxu0
  %v4697 = vadd.f32 0.0, %v4696
  %4698 = vmatmul.f32.gmra.mxu0 %v3130
  %v4699 = vpop.f32.mrf.mxu0
  %v4700 = vadd.f32 0.0, %v4699
  %4701 = vdwg.mxu0
  %s4702 = scalar_lea.vmem %s12, 640
  %v4703 = vld [vmem:[%s4702] sm:$0xff]
  %v4704 = vld [vmem:[%s4702 + $0x8] sm:$0xff]
  %v4705 = vld [vmem:[%s4702 + $0x10] sm:$0xff]
  %v4706 = vld [vmem:[%s4702 + $0x18] sm:$0xff]
  %v4708 = vsel %vm3088, %v4703, 0
  %v4711 = vsel %vm3088, %v4704, 0
  %v4714 = vsel %vm3088, %v4705, 0
  %v4717 = vsel %vm3088, %v4706, 0
  %4719 = vmatpush.msra.mxu0 0.0
  %4720 = vmatpush.msra.mxu0 0.0
  %4721 = vmatpush.msra.mxu0 0.0
  %4722 = vmatpush.msra.mxu0 0.0
  %4723 = vmatpush.msra.mxu0 0.0
  %4724 = vmatpush.msra.mxu0 0.0
  %4725 = vmatpush.msra.mxu0 0.0
  %4726 = vmatpush.msra.mxu0 0.0
  %4727 = vmatpush.msra.mxu0 0.0
  %4728 = vmatpush.msra.mxu0 0.0
  %4729 = vmatpush.msra.mxu0 0.0
  %4730 = vmatpush.msra.mxu0 0.0
  %4731 = vmatpush.msra.mxu0 0.0
  %4732 = vmatpush.msra.mxu0 0.0
  %4733 = vmatpush.msra.mxu0 %v4700
  %4734 = vmatpush.msra.mxu0 %v4697
  %4735 = vmatmul.f32.gmra.mxu0 %v4708
  %v4736 = vpop.f32.mrf.mxu0
  %v4737 = vadd.f32 0.0, %v4736
  %4738 = vmatmul.f32.gmra.mxu0 %v4711
  %v4739 = vpop.f32.mrf.mxu0
  %v4740 = vadd.f32 0.0, %v4739
  %4741 = vmatmul.f32.gmra.mxu0 %v4714
  %v4742 = vpop.f32.mrf.mxu0
  %v4743 = vadd.f32 0.0, %v4742
  %4744 = vmatmul.f32.gmra.mxu0 %v4717
  %v4745 = vpop.f32.mrf.mxu0
  %v4746 = vadd.f32 0.0, %v4745
  %4747 = vdwg.mxu0
  %v4748 = vadd.f32 %v4670, %v4737
  %v4749 = vadd.f32 %v4671, %v4740
  %v4750 = vadd.f32 %v4672, %v4743
  %v4751 = vadd.f32 %v4673, %v4746
  %s4752 = scalar_lea.vmem %s11, 672
  %v4753 = vld [vmem:[%s4752] sm:$0xff]
  %v4754 = vld [vmem:[%s4752 + $0x8] sm:$0xff]
  %v4755 = vld [vmem:[%s4752 + $0x10] sm:$0xff]
  %v4756 = vld [vmem:[%s4752 + $0x18] sm:$0xff]
  %4757 = vmatpush.msra.mxu0 0.0
  %4758 = vmatpush.msra.mxu0 0.0
  %4759 = vmatpush.msra.mxu0 0.0
  %4760 = vmatpush.msra.mxu0 0.0
  %4761 = vmatpush.msra.mxu0 0.0
  %4762 = vmatpush.msra.mxu0 0.0
  %4763 = vmatpush.msra.mxu0 0.0
  %4764 = vmatpush.msra.mxu0 0.0
  %4765 = vmatpush.msra.mxu0 0.0
  %4766 = vmatpush.msra.mxu0 0.0
  %4767 = vmatpush.msra.mxu0 0.0
  %4768 = vmatpush.msra.mxu0 0.0
  %4769 = vmatpush.msra.mxu0 %v4756
  %4770 = vmatpush.msra.mxu0 %v4755
  %4771 = vmatpush.msra.mxu0 %v4754
  %4772 = vmatpush.msra.mxu0 %v4753
  %4773 = vmatmul.f32.gmra.mxu0 %v3127
  %v4774 = vpop.f32.mrf.mxu0
  %v4775 = vadd.f32 0.0, %v4774
  %4776 = vmatmul.f32.gmra.mxu0 %v3130
  %v4777 = vpop.f32.mrf.mxu0
  %v4778 = vadd.f32 0.0, %v4777
  %4779 = vdwg.mxu0
  %s4780 = scalar_lea.vmem %s12, 672
  %v4781 = vld [vmem:[%s4780] sm:$0xff]
  %v4782 = vld [vmem:[%s4780 + $0x8] sm:$0xff]
  %v4783 = vld [vmem:[%s4780 + $0x10] sm:$0xff]
  %v4784 = vld [vmem:[%s4780 + $0x18] sm:$0xff]
  %v4786 = vsel %vm3088, %v4781, 0
  %v4789 = vsel %vm3088, %v4782, 0
  %v4792 = vsel %vm3088, %v4783, 0
  %v4795 = vsel %vm3088, %v4784, 0
  %4797 = vmatpush.msra.mxu0 0.0
  %4798 = vmatpush.msra.mxu0 0.0
  %4799 = vmatpush.msra.mxu0 0.0
  %4800 = vmatpush.msra.mxu0 0.0
  %4801 = vmatpush.msra.mxu0 0.0
  %4802 = vmatpush.msra.mxu0 0.0
  %4803 = vmatpush.msra.mxu0 0.0
  %4804 = vmatpush.msra.mxu0 0.0
  %4805 = vmatpush.msra.mxu0 0.0
  %4806 = vmatpush.msra.mxu0 0.0
  %4807 = vmatpush.msra.mxu0 0.0
  %4808 = vmatpush.msra.mxu0 0.0
  %4809 = vmatpush.msra.mxu0 0.0
  %4810 = vmatpush.msra.mxu0 0.0
  %4811 = vmatpush.msra.mxu0 %v4778
  %4812 = vmatpush.msra.mxu0 %v4775
  %4813 = vmatmul.f32.gmra.mxu0 %v4786
  %v4814 = vpop.f32.mrf.mxu0
  %v4815 = vadd.f32 0.0, %v4814
  %4816 = vmatmul.f32.gmra.mxu0 %v4789
  %v4817 = vpop.f32.mrf.mxu0
  %v4818 = vadd.f32 0.0, %v4817
  %4819 = vmatmul.f32.gmra.mxu0 %v4792
  %v4820 = vpop.f32.mrf.mxu0
  %v4821 = vadd.f32 0.0, %v4820
  %4822 = vmatmul.f32.gmra.mxu0 %v4795
  %v4823 = vpop.f32.mrf.mxu0
  %v4824 = vadd.f32 0.0, %v4823
  %4825 = vdwg.mxu0
  %v4826 = vadd.f32 %v4748, %v4815
  %v4827 = vadd.f32 %v4749, %v4818
  %v4828 = vadd.f32 %v4750, %v4821
  %v4829 = vadd.f32 %v4751, %v4824
  %s4830 = scalar_lea.vmem %s11, 704
  %v4831 = vld [vmem:[%s4830] sm:$0xff]
  %v4832 = vld [vmem:[%s4830 + $0x8] sm:$0xff]
  %v4833 = vld [vmem:[%s4830 + $0x10] sm:$0xff]
  %v4834 = vld [vmem:[%s4830 + $0x18] sm:$0xff]
  %4835 = vmatpush.msra.mxu0 0.0
  %4836 = vmatpush.msra.mxu0 0.0
  %4837 = vmatpush.msra.mxu0 0.0
  %4838 = vmatpush.msra.mxu0 0.0
  %4839 = vmatpush.msra.mxu0 0.0
  %4840 = vmatpush.msra.mxu0 0.0
  %4841 = vmatpush.msra.mxu0 0.0
  %4842 = vmatpush.msra.mxu0 0.0
  %4843 = vmatpush.msra.mxu0 0.0
  %4844 = vmatpush.msra.mxu0 0.0
  %4845 = vmatpush.msra.mxu0 0.0
  %4846 = vmatpush.msra.mxu0 0.0
  %4847 = vmatpush.msra.mxu0 %v4834
  %4848 = vmatpush.msra.mxu0 %v4833
  %4849 = vmatpush.msra.mxu0 %v4832
  %4850 = vmatpush.msra.mxu0 %v4831
  %4851 = vmatmul.f32.gmra.mxu0 %v3127
  %v4852 = vpop.f32.mrf.mxu0
  %v4853 = vadd.f32 0.0, %v4852
  %4854 = vmatmul.f32.gmra.mxu0 %v3130
  %v4855 = vpop.f32.mrf.mxu0
  %v4856 = vadd.f32 0.0, %v4855
  %4857 = vdwg.mxu0
  %s4858 = scalar_lea.vmem %s12, 704
  %v4859 = vld [vmem:[%s4858] sm:$0xff]
  %v4860 = vld [vmem:[%s4858 + $0x8] sm:$0xff]
  %v4861 = vld [vmem:[%s4858 + $0x10] sm:$0xff]
  %v4862 = vld [vmem:[%s4858 + $0x18] sm:$0xff]
  %v4864 = vsel %vm3088, %v4859, 0
  %v4867 = vsel %vm3088, %v4860, 0
  %v4870 = vsel %vm3088, %v4861, 0
  %v4873 = vsel %vm3088, %v4862, 0
  %4875 = vmatpush.msra.mxu0 0.0
  %4876 = vmatpush.msra.mxu0 0.0
  %4877 = vmatpush.msra.mxu0 0.0
  %4878 = vmatpush.msra.mxu0 0.0
  %4879 = vmatpush.msra.mxu0 0.0
  %4880 = vmatpush.msra.mxu0 0.0
  %4881 = vmatpush.msra.mxu0 0.0
  %4882 = vmatpush.msra.mxu0 0.0
  %4883 = vmatpush.msra.mxu0 0.0
  %4884 = vmatpush.msra.mxu0 0.0
  %4885 = vmatpush.msra.mxu0 0.0
  %4886 = vmatpush.msra.mxu0 0.0
  %4887 = vmatpush.msra.mxu0 0.0
  %4888 = vmatpush.msra.mxu0 0.0
  %4889 = vmatpush.msra.mxu0 %v4856
  %4890 = vmatpush.msra.mxu0 %v4853
  %4891 = vmatmul.f32.gmra.mxu0 %v4864
  %v4892 = vpop.f32.mrf.mxu0
  %v4893 = vadd.f32 0.0, %v4892
  %4894 = vmatmul.f32.gmra.mxu0 %v4867
  %v4895 = vpop.f32.mrf.mxu0
  %v4896 = vadd.f32 0.0, %v4895
  %4897 = vmatmul.f32.gmra.mxu0 %v4870
  %v4898 = vpop.f32.mrf.mxu0
  %v4899 = vadd.f32 0.0, %v4898
  %4900 = vmatmul.f32.gmra.mxu0 %v4873
  %v4901 = vpop.f32.mrf.mxu0
  %v4902 = vadd.f32 0.0, %v4901
  %4903 = vdwg.mxu0
  %v4904 = vadd.f32 %v4826, %v4893
  %v4905 = vadd.f32 %v4827, %v4896
  %v4906 = vadd.f32 %v4828, %v4899
  %v4907 = vadd.f32 %v4829, %v4902
  %s4908 = scalar_lea.vmem %s11, 736
  %v4909 = vld [vmem:[%s4908] sm:$0xff]
  %v4910 = vld [vmem:[%s4908 + $0x8] sm:$0xff]
  %v4911 = vld [vmem:[%s4908 + $0x10] sm:$0xff]
  %v4912 = vld [vmem:[%s4908 + $0x18] sm:$0xff]
  %4913 = vmatpush.msra.mxu0 0.0
  %4914 = vmatpush.msra.mxu0 0.0
  %4915 = vmatpush.msra.mxu0 0.0
  %4916 = vmatpush.msra.mxu0 0.0
  %4917 = vmatpush.msra.mxu0 0.0
  %4918 = vmatpush.msra.mxu0 0.0
  %4919 = vmatpush.msra.mxu0 0.0
  %4920 = vmatpush.msra.mxu0 0.0
  %4921 = vmatpush.msra.mxu0 0.0
  %4922 = vmatpush.msra.mxu0 0.0
  %4923 = vmatpush.msra.mxu0 0.0
  %4924 = vmatpush.msra.mxu0 0.0
  %4925 = vmatpush.msra.mxu0 %v4912
  %4926 = vmatpush.msra.mxu0 %v4911
  %4927 = vmatpush.msra.mxu0 %v4910
  %4928 = vmatpush.msra.mxu0 %v4909
  %4929 = vmatmul.f32.gmra.mxu0 %v3127
  %v4930 = vpop.f32.mrf.mxu0
  %v4931 = vadd.f32 0.0, %v4930
  %4932 = vmatmul.f32.gmra.mxu0 %v3130
  %v4933 = vpop.f32.mrf.mxu0
  %v4934 = vadd.f32 0.0, %v4933
  %4935 = vdwg.mxu0
  %s4936 = scalar_lea.vmem %s12, 736
  %v4937 = vld [vmem:[%s4936] sm:$0xff]
  %v4938 = vld [vmem:[%s4936 + $0x8] sm:$0xff]
  %v4939 = vld [vmem:[%s4936 + $0x10] sm:$0xff]
  %v4940 = vld [vmem:[%s4936 + $0x18] sm:$0xff]
  %v4942 = vsel %vm3088, %v4937, 0
  %v4945 = vsel %vm3088, %v4938, 0
  %v4948 = vsel %vm3088, %v4939, 0
  %v4951 = vsel %vm3088, %v4940, 0
  %4953 = vmatpush.msra.mxu0 0.0
  %4954 = vmatpush.msra.mxu0 0.0
  %4955 = vmatpush.msra.mxu0 0.0
  %4956 = vmatpush.msra.mxu0 0.0
  %4957 = vmatpush.msra.mxu0 0.0
  %4958 = vmatpush.msra.mxu0 0.0
  %4959 = vmatpush.msra.mxu0 0.0
  %4960 = vmatpush.msra.mxu0 0.0
  %4961 = vmatpush.msra.mxu0 0.0
  %4962 = vmatpush.msra.mxu0 0.0
  %4963 = vmatpush.msra.mxu0 0.0
  %4964 = vmatpush.msra.mxu0 0.0
  %4965 = vmatpush.msra.mxu0 0.0
  %4966 = vmatpush.msra.mxu0 0.0
  %4967 = vmatpush.msra.mxu0 %v4934
  %4968 = vmatpush.msra.mxu0 %v4931
  %4969 = vmatmul.f32.gmra.mxu0 %v4942
  %v4970 = vpop.f32.mrf.mxu0
  %v4971 = vadd.f32 0.0, %v4970
  %4972 = vmatmul.f32.gmra.mxu0 %v4945
  %v4973 = vpop.f32.mrf.mxu0
  %v4974 = vadd.f32 0.0, %v4973
  %4975 = vmatmul.f32.gmra.mxu0 %v4948
  %v4976 = vpop.f32.mrf.mxu0
  %v4977 = vadd.f32 0.0, %v4976
  %4978 = vmatmul.f32.gmra.mxu0 %v4951
  %v4979 = vpop.f32.mrf.mxu0
  %v4980 = vadd.f32 0.0, %v4979
  %4981 = vdwg.mxu0
  %v4982 = vadd.f32 %v4904, %v4971
  %v4983 = vadd.f32 %v4905, %v4974
  %v4984 = vadd.f32 %v4906, %v4977
  %v4985 = vadd.f32 %v4907, %v4980
  %s4986 = scalar_lea.vmem %s11, 768
  %v4987 = vld [vmem:[%s4986] sm:$0xff]
  %v4988 = vld [vmem:[%s4986 + $0x8] sm:$0xff]
  %v4989 = vld [vmem:[%s4986 + $0x10] sm:$0xff]
  %v4990 = vld [vmem:[%s4986 + $0x18] sm:$0xff]
  %4991 = vmatpush.msra.mxu0 0.0
  %4992 = vmatpush.msra.mxu0 0.0
  %4993 = vmatpush.msra.mxu0 0.0
  %4994 = vmatpush.msra.mxu0 0.0
  %4995 = vmatpush.msra.mxu0 0.0
  %4996 = vmatpush.msra.mxu0 0.0
  %4997 = vmatpush.msra.mxu0 0.0
  %4998 = vmatpush.msra.mxu0 0.0
  %4999 = vmatpush.msra.mxu0 0.0
  %5000 = vmatpush.msra.mxu0 0.0
  %5001 = vmatpush.msra.mxu0 0.0
  %5002 = vmatpush.msra.mxu0 0.0
  %5003 = vmatpush.msra.mxu0 %v4990
  %5004 = vmatpush.msra.mxu0 %v4989
  %5005 = vmatpush.msra.mxu0 %v4988
  %5006 = vmatpush.msra.mxu0 %v4987
  %5007 = vmatmul.f32.gmra.mxu0 %v3127
  %v5008 = vpop.f32.mrf.mxu0
  %v5009 = vadd.f32 0.0, %v5008
  %5010 = vmatmul.f32.gmra.mxu0 %v3130
  %v5011 = vpop.f32.mrf.mxu0
  %v5012 = vadd.f32 0.0, %v5011
  %5013 = vdwg.mxu0
  %s5014 = scalar_lea.vmem %s12, 768
  %v5015 = vld [vmem:[%s5014] sm:$0xff]
  %v5016 = vld [vmem:[%s5014 + $0x8] sm:$0xff]
  %v5017 = vld [vmem:[%s5014 + $0x10] sm:$0xff]
  %v5018 = vld [vmem:[%s5014 + $0x18] sm:$0xff]
  %v5020 = vsel %vm3088, %v5015, 0
  %v5023 = vsel %vm3088, %v5016, 0
  %v5026 = vsel %vm3088, %v5017, 0
  %v5029 = vsel %vm3088, %v5018, 0
  %5031 = vmatpush.msra.mxu0 0.0
  %5032 = vmatpush.msra.mxu0 0.0
  %5033 = vmatpush.msra.mxu0 0.0
  %5034 = vmatpush.msra.mxu0 0.0
  %5035 = vmatpush.msra.mxu0 0.0
  %5036 = vmatpush.msra.mxu0 0.0
  %5037 = vmatpush.msra.mxu0 0.0
  %5038 = vmatpush.msra.mxu0 0.0
  %5039 = vmatpush.msra.mxu0 0.0
  %5040 = vmatpush.msra.mxu0 0.0
  %5041 = vmatpush.msra.mxu0 0.0
  %5042 = vmatpush.msra.mxu0 0.0
  %5043 = vmatpush.msra.mxu0 0.0
  %5044 = vmatpush.msra.mxu0 0.0
  %5045 = vmatpush.msra.mxu0 %v5012
  %5046 = vmatpush.msra.mxu0 %v5009
  %5047 = vmatmul.f32.gmra.mxu0 %v5020
  %v5048 = vpop.f32.mrf.mxu0
  %v5049 = vadd.f32 0.0, %v5048
  %5050 = vmatmul.f32.gmra.mxu0 %v5023
  %v5051 = vpop.f32.mrf.mxu0
  %v5052 = vadd.f32 0.0, %v5051
  %5053 = vmatmul.f32.gmra.mxu0 %v5026
  %v5054 = vpop.f32.mrf.mxu0
  %v5055 = vadd.f32 0.0, %v5054
  %5056 = vmatmul.f32.gmra.mxu0 %v5029
  %v5057 = vpop.f32.mrf.mxu0
  %v5058 = vadd.f32 0.0, %v5057
  %5059 = vdwg.mxu0
  %v5060 = vadd.f32 %v4982, %v5049
  %v5061 = vadd.f32 %v4983, %v5052
  %v5062 = vadd.f32 %v4984, %v5055
  %v5063 = vadd.f32 %v4985, %v5058
  %v5064 = vld [vmem:[%s13] sm:$0xff]
  %v5065 = vld [vmem:[%s13 + $0x8] sm:$0xff]
  %v5066 = vld [vmem:[%s13 + $0x10] sm:$0xff]
  %v5067 = vld [vmem:[%s13 + $0x18] sm:$0xff]
  %5069 = vset.pattern.permute.xlu0 0
  %5070 = vperm.xlu0 %5069, %v5064
  %v5071 = vpop.permute.xlu0 %5070
  %5074 = vset.pattern.permute.xlu0 0
  %5075 = vperm.xlu0 %5074, %v5065
  %v5076 = vpop.permute.xlu0 %5075
  %5079 = vset.pattern.permute.xlu0 0
  %5080 = vperm.xlu0 %5079, %v5066
  %v5081 = vpop.permute.xlu0 %5080
  %5084 = vset.pattern.permute.xlu0 0
  %5085 = vperm.xlu0 %5084, %v5067
  %v5086 = vpop.permute.xlu0 %5085
  %v5088 = vadd.f32 %v5060, %v5071
  %v5089 = vadd.f32 %v5061, %v5076
  %v5090 = vadd.f32 %v5062, %v5081
  %v5091 = vadd.f32 %v5063, %v5086
  %v5092 = vld [vmem:[%s20] sm:$0xff]
  %v5093 = vld [vmem:[%s21] sm:$0x3]
  %v5095 = vsel %vm826, %v5088, 0
  %v5098 = vsel %vm826, %v5089, 0
  %v5101 = vsel %vm826, %v5090, 0
  %v5104 = vsel %vm826, %v5091, 0
  %5106 = vmatpush.msra.mxu0 0.0
  %5107 = vmatpush.msra.mxu0 0.0
  %5108 = vmatpush.msra.mxu0 0.0
  %5109 = vmatpush.msra.mxu0 0.0
  %5110 = vmatpush.msra.mxu0 0.0
  %5111 = vmatpush.msra.mxu0 0.0
  %5112 = vmatpush.msra.mxu0 0.0
  %5113 = vmatpush.msra.mxu0 0.0
  %5114 = vmatpush.msra.mxu0 0.0
  %5115 = vmatpush.msra.mxu0 0.0
  %5116 = vmatpush.msra.mxu0 0.0
  %5117 = vmatpush.msra.mxu0 0.0
  %5118 = vmatpush.msra.mxu0 0.0
  %5119 = vmatpush.msra.mxu0 0.0
  %5120 = vmatpush.msra.mxu0 0.0
  %5121 = vmatpush.msra.mxu0 %v5092
  %5122 = vmatmul.f32.gmra.mxu0 %v5095
  %v5123 = vpop.f32.mrf.mxu0
  %v5124 = vadd.f32 0.0, %v5123
  %5125 = vmatmul.f32.gmra.mxu0 %v5098
  %v5126 = vpop.f32.mrf.mxu0
  %v5127 = vadd.f32 0.0, %v5126
  %5128 = vmatmul.f32.gmra.mxu0 %v5101
  %v5129 = vpop.f32.mrf.mxu0
  %v5130 = vadd.f32 0.0, %v5129
  %5131 = vmatmul.f32.gmra.mxu0 %v5104
  %v5132 = vpop.f32.mrf.mxu0
  %v5133 = vadd.f32 0.0, %v5132
  %5134 = vdwg.mxu0
  %v5135 = vmul.f32 %v5088, %v5088
  %v5136 = vmul.f32 %v5089, %v5089
  %v5137 = vmul.f32 %v5090, %v5090
  %v5138 = vmul.f32 %v5091, %v5091
  %v5140 = vsel %vm826, %v5135, 0
  %v5143 = vsel %vm826, %v5136, 0
  %v5146 = vsel %vm826, %v5137, 0
  %v5149 = vsel %vm826, %v5138, 0
  %5151 = vmatpush.msra.mxu0 0.0
  %5152 = vmatpush.msra.mxu0 0.0
  %5153 = vmatpush.msra.mxu0 0.0
  %5154 = vmatpush.msra.mxu0 0.0
  %5155 = vmatpush.msra.mxu0 0.0
  %5156 = vmatpush.msra.mxu0 0.0
  %5157 = vmatpush.msra.mxu0 0.0
  %5158 = vmatpush.msra.mxu0 0.0
  %5159 = vmatpush.msra.mxu0 0.0
  %5160 = vmatpush.msra.mxu0 0.0
  %5161 = vmatpush.msra.mxu0 0.0
  %5162 = vmatpush.msra.mxu0 0.0
  %5163 = vmatpush.msra.mxu0 0.0
  %5164 = vmatpush.msra.mxu0 0.0
  %5165 = vmatpush.msra.mxu0 0.0
  %5166 = vmatpush.msra.mxu0 %v5092
  %5167 = vmatmul.f32.gmra.mxu0 %v5140
  %v5168 = vpop.f32.mrf.mxu0
  %v5169 = vadd.f32 0.0, %v5168
  %5170 = vmatmul.f32.gmra.mxu0 %v5143
  %v5171 = vpop.f32.mrf.mxu0
  %v5172 = vadd.f32 0.0, %v5171
  %5173 = vmatmul.f32.gmra.mxu0 %v5146
  %v5174 = vpop.f32.mrf.mxu0
  %v5175 = vadd.f32 0.0, %v5174
  %5176 = vmatmul.f32.gmra.mxu0 %v5149
  %v5177 = vpop.f32.mrf.mxu0
  %v5178 = vadd.f32 0.0, %v5177
  %5179 = vdwg.mxu0
  %v5180 = vmul.f32 %v5124, %v5124
  %v5181 = vmul.f32 %v5127, %v5127
  %v5182 = vmul.f32 %v5130, %v5130
  %v5183 = vmul.f32 %v5133, %v5133
  %v5184 = vsub.f32 %v5169, %v5180
  %v5185 = vsub.f32 %v5172, %v5181
  %v5186 = vsub.f32 %v5175, %v5182
  %v5187 = vsub.f32 %v5178, %v5183
  %v5188 = vadd.f32 %v5184, 1e-05
  %v5189 = vadd.f32 %v5185, 1e-05
  %v5190 = vadd.f32 %v5186, 1e-05
  %v5191 = vadd.f32 %v5187, 1e-05
  %v5192 = vrsqrt.pop %v5188
  %v5193 = vmul.f32 %v5192, %v5188
  %v5194 = vmul.f32 %v5193, %v5192
  %v5195 = vmul.f32 0.5, %v5194
  %v5196 = vsub.f32 1.5, %v5195
  %v5197 = vmul.f32 %v5192, %v5196
  %vm5198 = vweird.f32 %v5188
  %vm5199 = vweird.f32 %v5192
  %vm5200 = vmor %vm5198, %vm5199
  %v5201 = vsel %vm5200, %v5192, %v5197
  %v5202 = vrsqrt.pop %v5189
  %v5203 = vmul.f32 %v5202, %v5189
  %v5204 = vmul.f32 %v5203, %v5202
  %v5205 = vmul.f32 0.5, %v5204
  %v5206 = vsub.f32 1.5, %v5205
  %v5207 = vmul.f32 %v5202, %v5206
  %vm5208 = vweird.f32 %v5189
  %vm5209 = vweird.f32 %v5202
  %vm5210 = vmor %vm5208, %vm5209
  %v5211 = vsel %vm5210, %v5202, %v5207
  %v5212 = vrsqrt.pop %v5190
  %v5213 = vmul.f32 %v5212, %v5190
  %v5214 = vmul.f32 %v5213, %v5212
  %v5215 = vmul.f32 0.5, %v5214
  %v5216 = vsub.f32 1.5, %v5215
  %v5217 = vmul.f32 %v5212, %v5216
  %vm5218 = vweird.f32 %v5190
  %vm5219 = vweird.f32 %v5212
  %vm5220 = vmor %vm5218, %vm5219
  %v5221 = vsel %vm5220, %v5212, %v5217
  %v5222 = vrsqrt.pop %v5191
  %v5223 = vmul.f32 %v5222, %v5191
  %v5224 = vmul.f32 %v5223, %v5222
  %v5225 = vmul.f32 0.5, %v5224
  %v5226 = vsub.f32 1.5, %v5225
  %v5227 = vmul.f32 %v5222, %v5226
  %vm5228 = vweird.f32 %v5191
  %vm5229 = vweird.f32 %v5222
  %vm5230 = vmor %vm5228, %vm5229
  %v5231 = vsel %vm5230, %v5222, %v5227
  %v5233 = vsel %vm462, %v5124, 0
  %v5236 = vsel %vm462, %v5127, 0
  %v5239 = vsel %vm462, %v5130, 0
  %v5242 = vsel %vm462, %v5133, 0
  %v5245 = vsel %vm466, %v5093, 0
  %5247 = vmatpush.msra.mxu0 0.0
  %5248 = vmatpush.msra.mxu0 0.0
  %5249 = vmatpush.msra.mxu0 0.0
  %5250 = vmatpush.msra.mxu0 0.0
  %5251 = vmatpush.msra.mxu0 0.0
  %5252 = vmatpush.msra.mxu0 0.0
  %5253 = vmatpush.msra.mxu0 0.0
  %5254 = vmatpush.msra.mxu0 0.0
  %5255 = vmatpush.msra.mxu0 0.0
  %5256 = vmatpush.msra.mxu0 0.0
  %5257 = vmatpush.msra.mxu0 0.0
  %5258 = vmatpush.msra.mxu0 0.0
  %5259 = vmatpush.msra.mxu0 0.0
  %5260 = vmatpush.msra.mxu0 0.0
  %5261 = vmatpush.msra.mxu0 0.0
  %5262 = vmatpush.msra.mxu0 %v5245
  %5263 = vmatmul.f32.gmra.mxu0 %v5233
  %v5264 = vpop.f32.mrf.mxu0
  %v5265 = vadd.f32 0.0, %v5264
  %5266 = vmatmul.f32.gmra.mxu0 %v5236
  %v5267 = vpop.f32.mrf.mxu0
  %v5268 = vadd.f32 0.0, %v5267
  %5269 = vmatmul.f32.gmra.mxu0 %v5239
  %v5270 = vpop.f32.mrf.mxu0
  %v5271 = vadd.f32 0.0, %v5270
  %5272 = vmatmul.f32.gmra.mxu0 %v5242
  %v5273 = vpop.f32.mrf.mxu0
  %v5274 = vadd.f32 0.0, %v5273
  %5275 = vdwg.mxu0
  %v5277 = vsel %vm462, %v5201, 0
  %v5280 = vsel %vm462, %v5211, 0
  %v5283 = vsel %vm462, %v5221, 0
  %v5286 = vsel %vm462, %v5231, 0
  %5288 = vmatpush.msra.mxu0 0.0
  %5289 = vmatpush.msra.mxu0 0.0
  %5290 = vmatpush.msra.mxu0 0.0
  %5291 = vmatpush.msra.mxu0 0.0
  %5292 = vmatpush.msra.mxu0 0.0
  %5293 = vmatpush.msra.mxu0 0.0
  %5294 = vmatpush.msra.mxu0 0.0
  %5295 = vmatpush.msra.mxu0 0.0
  %5296 = vmatpush.msra.mxu0 0.0
  %5297 = vmatpush.msra.mxu0 0.0
  %5298 = vmatpush.msra.mxu0 0.0
  %5299 = vmatpush.msra.mxu0 0.0
  %5300 = vmatpush.msra.mxu0 0.0
  %5301 = vmatpush.msra.mxu0 0.0
  %5302 = vmatpush.msra.mxu0 0.0
  %5303 = vmatpush.msra.mxu0 %v5245
  %5304 = vmatmul.f32.gmra.mxu0 %v5277
  %v5305 = vpop.f32.mrf.mxu0
  %v5306 = vadd.f32 0.0, %v5305
  %5307 = vmatmul.f32.gmra.mxu0 %v5280
  %v5308 = vpop.f32.mrf.mxu0
  %v5309 = vadd.f32 0.0, %v5308
  %5310 = vmatmul.f32.gmra.mxu0 %v5283
  %v5311 = vpop.f32.mrf.mxu0
  %v5312 = vadd.f32 0.0, %v5311
  %5313 = vmatmul.f32.gmra.mxu0 %v5286
  %v5314 = vpop.f32.mrf.mxu0
  %v5315 = vadd.f32 0.0, %v5314
  %5316 = vdwg.mxu0
  %v5317 = vsub.f32 %v5088, %v5265
  %v5318 = vsub.f32 %v5089, %v5268
  %v5319 = vsub.f32 %v5090, %v5271
  %v5320 = vsub.f32 %v5091, %v5274
  %v5321 = vmul.f32 %v5317, %v5306
  %v5322 = vmul.f32 %v5318, %v5309
  %v5323 = vmul.f32 %v5319, %v5312
  %v5324 = vmul.f32 %v5320, %v5315
  %v5325 = vmul.f32 %v5321, 0.5
  %v5326 = vmul.f32 %v5322, 0.5
  %v5327 = vmul.f32 %v5323, 0.5
  %v5328 = vmul.f32 %v5324, 0.5
  %v5329 = vmul.f32 %v5321, 0.70710677
  %v5330 = vmul.f32 %v5322, 0.70710677
  %v5331 = vmul.f32 %v5323, 0.70710677
  %v5332 = vmul.f32 %v5324, 0.70710677
  %v5333 = vand.u32 2147483647, %v5329
  %v5334 = vand.u32 2147483647, %v5330
  %v5335 = vand.u32 2147483647, %v5331
  %v5336 = vand.u32 2147483647, %v5332
  %v5337 = vmul.f32 %v5333, 0.3275911
  %v5338 = vmul.f32 %v5334, 0.3275911
  %v5339 = vmul.f32 %v5335, 0.3275911
  %v5340 = vmul.f32 %v5336, 0.3275911
  %v5341 = vadd.f32 %v5337, 1.0
  %v5342 = vadd.f32 %v5338, 1.0
  %v5343 = vadd.f32 %v5339, 1.0
  %v5344 = vadd.f32 %v5340, 1.0
  %v5345 = vrcp.pop %v5341
  %v5346 = vmul.f32 %v5341, %v5345
  %v5347 = vsub.f32 1.0, %v5346
  %v5348 = vmul.f32 %v5345, %v5347
  %v5349 = vadd.f32 %v5345, %v5348
  %vm5350 = vweird.f32 %v5341
  %vm5351 = vweird.f32 %v5345
  %vm5352 = vmor %vm5350, %vm5351
  %v5353 = vsel %vm5352, %v5345, %v5349
  %v5354 = vand.u32 2147483647, %v5341
  %vm5355 = vcmp.eq.f32.partialorder %v5354, 8.507059e+37
  %v5356 = vand.u32 %v5341, 2147483648
  %v5357 = vor.u32 1.1754944e-38, %v5356
  %v5358 = vsel %vm5355, %v5357, %v5353
  %v5359 = vmul.f32 1.0, %v5358
  %v5360 = vrcp.pop %v5342
  %v5361 = vmul.f32 %v5342, %v5360
  %v5362 = vsub.f32 1.0, %v5361
  %v5363 = vmul.f32 %v5360, %v5362
  %v5364 = vadd.f32 %v5360, %v5363
  %vm5365 = vweird.f32 %v5342
  %vm5366 = vweird.f32 %v5360
  %vm5367 = vmor %vm5365, %vm5366
  %v5368 = vsel %vm5367, %v5360, %v5364
  %v5369 = vand.u32 2147483647, %v5342
  %vm5370 = vcmp.eq.f32.partialorder %v5369, 8.507059e+37
  %v5371 = vand.u32 %v5342, 2147483648
  %v5372 = vor.u32 1.1754944e-38, %v5371
  %v5373 = vsel %vm5370, %v5372, %v5368
  %v5374 = vmul.f32 1.0, %v5373
  %v5375 = vrcp.pop %v5343
  %v5376 = vmul.f32 %v5343, %v5375
  %v5377 = vsub.f32 1.0, %v5376
  %v5378 = vmul.f32 %v5375, %v5377
  %v5379 = vadd.f32 %v5375, %v5378
  %vm5380 = vweird.f32 %v5343
  %vm5381 = vweird.f32 %v5375
  %vm5382 = vmor %vm5380, %vm5381
  %v5383 = vsel %vm5382, %v5375, %v5379
  %v5384 = vand.u32 2147483647, %v5343
  %vm5385 = vcmp.eq.f32.partialorder %v5384, 8.507059e+37
  %v5386 = vand.u32 %v5343, 2147483648
  %v5387 = vor.u32 1.1754944e-38, %v5386
  %v5388 = vsel %vm5385, %v5387, %v5383
  %v5389 = vmul.f32 1.0, %v5388
  %v5390 = vrcp.pop %v5344
  %v5391 = vmul.f32 %v5344, %v5390
  %v5392 = vsub.f32 1.0, %v5391
  %v5393 = vmul.f32 %v5390, %v5392
  %v5394 = vadd.f32 %v5390, %v5393
  %vm5395 = vweird.f32 %v5344
  %vm5396 = vweird.f32 %v5390
  %vm5397 = vmor %vm5395, %vm5396
  %v5398 = vsel %vm5397, %v5390, %v5394
  %v5399 = vand.u32 2147483647, %v5344
  %vm5400 = vcmp.eq.f32.partialorder %v5399, 8.507059e+37
  %v5401 = vand.u32 %v5344, 2147483648
  %v5402 = vor.u32 1.1754944e-38, %v5401
  %v5403 = vsel %vm5400, %v5402, %v5398
  %v5404 = vmul.f32 1.0, %v5403
  %v5405 = vmul.f32 %v5359, 1.0614054
  %v5406 = vmul.f32 %v5374, 1.0614054
  %v5407 = vmul.f32 %v5389, 1.0614054
  %v5408 = vmul.f32 %v5404, 1.0614054
  %v5409 = vadd.f32 %v5405, -1.4531521
  %v5410 = vadd.f32 %v5406, -1.4531521
  %v5411 = vadd.f32 %v5407, -1.4531521
  %v5412 = vadd.f32 %v5408, -1.4531521
  %v5413 = vmul.f32 %v5409, %v5359
  %v5414 = vmul.f32 %v5410, %v5374
  %v5415 = vmul.f32 %v5411, %v5389
  %v5416 = vmul.f32 %v5412, %v5404
  %v5417 = vadd.f32 %v5413, 1.4214138
  %v5418 = vadd.f32 %v5414, 1.4214138
  %v5419 = vadd.f32 %v5415, 1.4214138
  %v5420 = vadd.f32 %v5416, 1.4214138
  %v5421 = vmul.f32 %v5417, %v5359
  %v5422 = vmul.f32 %v5418, %v5374
  %v5423 = vmul.f32 %v5419, %v5389
  %v5424 = vmul.f32 %v5420, %v5404
  %v5425 = vadd.f32 %v5421, -0.28449672
  %v5426 = vadd.f32 %v5422, -0.28449672
  %v5427 = vadd.f32 %v5423, -0.28449672
  %v5428 = vadd.f32 %v5424, -0.28449672
  %v5429 = vmul.f32 %v5425, %v5359
  %v5430 = vmul.f32 %v5426, %v5374
  %v5431 = vmul.f32 %v5427, %v5389
  %v5432 = vmul.f32 %v5428, %v5404
  %v5433 = vadd.f32 %v5429, 0.2548296
  %v5434 = vadd.f32 %v5430, 0.2548296
  %v5435 = vadd.f32 %v5431, 0.2548296
  %v5436 = vadd.f32 %v5432, 0.2548296
  %v5437 = vmul.f32 %v5433, %v5359
  %v5438 = vmul.f32 %v5434, %v5374
  %v5439 = vmul.f32 %v5435, %v5389
  %v5440 = vmul.f32 %v5436, %v5404
  %v5441 = vsub.f32 0.0, %v5333
  %v5442 = vsub.f32 0.0, %v5334
  %v5443 = vsub.f32 0.0, %v5335
  %v5444 = vsub.f32 0.0, %v5336
  %v5445 = vmul.f32 %v5441, %v5333
  %v5446 = vmul.f32 %v5442, %v5334
  %v5447 = vmul.f32 %v5443, %v5335
  %v5448 = vmul.f32 %v5444, %v5336
  %v5449 = vmul.f32 %v5445, 1.442695
  %v5450 = vpow.pop %v5449
  %v5451 = vmul.f32 %v5446, 1.442695
  %v5452 = vpow.pop %v5451
  %v5453 = vmul.f32 %v5447, 1.442695
  %v5454 = vpow.pop %v5453
  %v5455 = vmul.f32 %v5448, 1.442695
  %v5456 = vpow.pop %v5455
  %v5457 = vmul.f32 %v5437, %v5450
  %v5458 = vmul.f32 %v5438, %v5452
  %v5459 = vmul.f32 %v5439, %v5454
  %v5460 = vmul.f32 %v5440, %v5456
  %v5461 = vsub.f32 1.0, %v5457
  %v5462 = vsub.f32 1.0, %v5458
  %v5463 = vsub.f32 1.0, %v5459
  %v5464 = vsub.f32 1.0, %v5460
  %vm5465 = vcmp.ge.f32.partialorder %v5329, 0.0
  %vm5466 = vcmp.ge.f32.partialorder %v5330, 0.0
  %vm5467 = vcmp.ge.f32.partialorder %v5331, 0.0
  %vm5468 = vcmp.ge.f32.partialorder %v5332, 0.0
  %v5469 = vsub.f32 0.0, %v5461
  %v5470 = vsub.f32 0.0, %v5462
  %v5471 = vsub.f32 0.0, %v5463
  %v5472 = vsub.f32 0.0, %v5464
  %v5473 = vsel %vm5465, %v5461, %v5469
  %v5474 = vsel %vm5466, %v5462, %v5470
  %v5475 = vsel %vm5467, %v5463, %v5471
  %v5476 = vsel %vm5468, %v5464, %v5472
  %v5477 = vadd.f32 %v5473, 1.0
  %v5478 = vadd.f32 %v5474, 1.0
  %v5479 = vadd.f32 %v5475, 1.0
  %v5480 = vadd.f32 %v5476, 1.0
  %v5481 = vmul.f32 %v5325, %v5477
  %v5482 = vmul.f32 %v5326, %v5478
  %v5483 = vmul.f32 %v5327, %v5479
  %v5484 = vmul.f32 %v5328, %v5480
  %v5485 = vld [vmem:[%s14] sm:$0xff]
  %v5486 = vld [vmem:[%s14 + $0x8] sm:$0xff]
  %v5487 = vld [vmem:[%s14 + $0x10] sm:$0xff]
  %v5488 = vld [vmem:[%s14 + $0x18] sm:$0xff]
  %v5489 = vld [vmem:[%s15] sm:$0xff]
  %v5490 = vld [vmem:[%s15 + $0x8] sm:$0xff]
  %v5491 = vld [vmem:[%s15 + $0x10] sm:$0xff]
  %v5492 = vld [vmem:[%s15 + $0x18] sm:$0xff]
  %5494 = vset.pattern.permute.xlu0 0
  %5495 = vperm.xlu0 %5494, %v5489
  %v5496 = vpop.permute.xlu0 %5495
  %5499 = vset.pattern.permute.xlu0 0
  %5500 = vperm.xlu0 %5499, %v5490
  %v5501 = vpop.permute.xlu0 %5500
  %5504 = vset.pattern.permute.xlu0 0
  %5505 = vperm.xlu0 %5504, %v5491
  %v5506 = vpop.permute.xlu0 %5505
  %5509 = vset.pattern.permute.xlu0 0
  %5510 = vperm.xlu0 %5509, %v5492
  %v5511 = vpop.permute.xlu0 %5510
  %v5514 = vsel %vm2842, %v5485, 0
  %v5517 = vsel %vm2842, %v5486, 0
  %v5520 = vsel %vm2842, %v5487, 0
  %v5523 = vsel %vm2842, %v5488, 0
  %5525 = vmatpush.msra.mxu0 0.0
  %5526 = vmatpush.msra.mxu0 0.0
  %5527 = vmatpush.msra.mxu0 0.0
  %5528 = vmatpush.msra.mxu0 0.0
  %5529 = vmatpush.msra.mxu0 0.0
  %5530 = vmatpush.msra.mxu0 0.0
  %5531 = vmatpush.msra.mxu0 0.0
  %5532 = vmatpush.msra.mxu0 0.0
  %5533 = vmatpush.msra.mxu0 0.0
  %5534 = vmatpush.msra.mxu0 0.0
  %5535 = vmatpush.msra.mxu0 0.0
  %5536 = vmatpush.msra.mxu0 0.0
  %5537 = vmatpush.msra.mxu0 %v5484
  %5538 = vmatpush.msra.mxu0 %v5483
  %5539 = vmatpush.msra.mxu0 %v5482
  %5540 = vmatpush.msra.mxu0 %v5481
  %5541 = vmatmul.f32.gmra.mxu0 %v5514
  %v5542 = vpop.f32.mrf.mxu0
  %v5543 = vadd.f32 %v5496, %v5542
  %5544 = vmatmul.f32.gmra.mxu0 %v5517
  %v5545 = vpop.f32.mrf.mxu0
  %v5546 = vadd.f32 %v5501, %v5545
  %5547 = vmatmul.f32.gmra.mxu0 %v5520
  %v5548 = vpop.f32.mrf.mxu0
  %v5549 = vadd.f32 %v5506, %v5548
  %5550 = vmatmul.f32.gmra.mxu0 %v5523
  %v5551 = vpop.f32.mrf.mxu0
  %v5552 = vadd.f32 %v5511, %v5551
  %5553 = vdwg.mxu0
  %5554 = vst.msk [vmem:[%s22] sm:$0xff] %vm826, %v5543
  %5555 = vst.msk [vmem:[%s22 + $0x8] sm:$0xff] %vm826, %v5546
  %5556 = vst.msk [vmem:[%s22 + $0x10] sm:$0xff] %vm826, %v5549
  %5557 = vst.msk [vmem:[%s22 + $0x18] sm:$0xff] %vm826, %v5552
  // Predicated region
  $region90: #{style_encoder_forward.1} parent=0 // pred_check
    _
  $region91: #{style_encoder_forward.1} parent=0 // pred_check_branch
    %5559 = sbr.rel (0) target = $region93
  $region92: #{style_encoder_forward.1} parent=0 // pred_region
    _
  $region93: #{style_encoder_forward.1} parent=0 // pred_fallthru
    _
  // Predicated region
  $region94: #{style_encoder_forward.1} parent=0 // pred_check
    _
  $region95: #{style_encoder_forward.1} parent=0 // pred_check_branch
    %5561 = sbr.rel (0) target = $region97
  $region96: #{style_encoder_forward.1} parent=0 // pred_region
    _
  $region97: #{style_encoder_forward.1} parent=0 // pred_fallthru
    _

</llo_original>
